<compile_context>
chip_gen: v5e
topology: v5e:2x2
jax: 0.10.0
libtpu: 0.0.40
codegen_flags: <defaults>
</compile_context>

<pallas_src>
import functools

import numpy as np
import jax
import jax.numpy as jnp
from jax import lax
from jax.experimental import pallas as pl
from jax.experimental.pallas import tpu as pltpu


# ----------------------------------------------------------------------------
# Fused Pallas kernel
# ----------------------------------------------------------------------------
def _zhuyin2char_fused_kernel(*refs, hidden, n_layers, mxu_dtype):
    """Fused bi-LSTM stack + Linear.

    refs layout:
      x_ref        (T, B, D_in)  f32   time-major inputs
      len_ref      (B, 1)        i32   sequence lengths
      per layer l (3 refs):
        wih_ref    (D_l, 8H)     f32   [W_ih_fwd | W_ih_bwd], gate order i,f,o,g
        whh_ref    (2H, 8H)      f32   block-diag [W_hh_fwd | W_hh_bwd]
        b_ref      (1, 8H)       f32   [b_ih+b_hh fwd | b_ih+b_hh bwd]
      fc_w_ref     (2H, V)       f32
      fc_b_ref     (1, V)        f32
      out_ref      (T, B, V)     f32
      scratch: xw_sc (T,B,8H)  hoisted x@W_ih gate slab
               act_sc (T,B,2H) layer output slab [fwd | bwd]
    """
    H = hidden
    H2, H3, H4, H8 = 2 * H, 3 * H, 4 * H, 8 * H

    x_ref, len_ref = refs[0], refs[1]
    layer_refs = refs[2:2 + 3 * n_layers]
    fc_w_ref = refs[2 + 3 * n_layers]
    fc_b_ref = refs[3 + 3 * n_layers]
    out_ref = refs[4 + 3 * n_layers]
    xw_sc, act_sc = refs[5 + 3 * n_layers:]

    T, B, D0 = x_ref.shape

    # Hoisted once: lengths broadcast to (B, H) (JAX does not CSE broadcasts
    # inside loops), reused by every masked select below.
    len_bh = jnp.broadcast_to(len_ref[...], (B, H))

    def mxu(a, w):
        # `w` is pre-cast by the caller (hoisted); only the activation is cast.
        return jnp.dot(a.astype(mxu_dtype), w, preferred_element_type=jnp.float32)

    for layer in range(n_layers):
        wih_ref, whh_ref, b_ref = layer_refs[3 * layer:3 * layer + 3]

        # ---- hoisted input projection: ONE lane-256 MXU matmul, bias folded.
        if layer == 0:
            xin = x_ref[...].reshape(T * B, D0)
        else:
            xin = act_sc[...].reshape(T * B, H2)          # single K=2H contraction
        xw = mxu(xin, wih_ref[...].astype(mxu_dtype)) + b_ref[...]   # (T*B, 8H)
        xw_sc[...] = xw.reshape(T, B, H8)

        whh = whh_ref[...].astype(mxu_dtype)              # hoisted out of the loop

        # ---- recurrence: fwd (ascending t) + bwd (descending t) in one step.
        # State is carried in registers (fori_loop carry), not VMEM.
        def step(s, carry):
            h2, cf, cb = carry                            # (B,2H), (B,H), (B,H)
            t_f = s
            t_b = (T - 1) - s

            # one fused recurrent matmul for both directions (N = 8H = 256)
            hg = mxu(h2, whh)                             # (B, 8H)

            # ---- forward direction at time t_f ------------------------------
            gf = xw_sc[t_f, :, :H4] + hg[:, :H4]
            sg = jax.nn.sigmoid(gf[:, :H3])               # i | f | o  (sigmoid only)
            gg = jnp.tanh(gf[:, H3:])                     # g          (tanh only)
            cf_new = sg[:, H:H2] * cf + sg[:, :H] * gg
            hf_new = sg[:, H2:H3] * jnp.tanh(cf_new)
            mf = t_f < len_bh                             # packed-sequence mask
            cf = jnp.where(mf, cf_new, cf)
            hf = jnp.where(mf, hf_new, h2[:, :H])
            act_sc[t_f, :, :H] = jnp.where(mf, hf_new, 0.0)

            # ---- backward direction at time t_b -----------------------------
            # Mask-gated state starting from zero and walking t = T-1 .. 0
            # reproduces packed-sequence reversal exactly (each sequence
            # "starts" at its own len-1).
            gb = xw_sc[t_b, :, H4:] + hg[:, H4:]
            sg = jax.nn.sigmoid(gb[:, :H3])
            gg = jnp.tanh(gb[:, H3:])
            cb_new = sg[:, H:H2] * cb + sg[:, :H] * gg
            hb_new = sg[:, H2:H3] * jnp.tanh(cb_new)
            mb = t_b < len_bh
            cb = jnp.where(mb, cb_new, cb)
            hb = jnp.where(mb, hb_new, h2[:, H:])
            act_sc[t_b, :, H:] = jnp.where(mb, hb_new, 0.0)

            return (jnp.concatenate([hf, hb], axis=-1), cf, cb)

        init = (jnp.zeros((B, H2), jnp.float32),
                jnp.zeros((B, H), jnp.float32),
                jnp.zeros((B, H), jnp.float32))
        lax.fori_loop(0, T, step, init, unroll=True)

    # ---- final Linear on the whole (T*B, 2H) slab (single K=2H matmul) -----
    logits = (mxu(act_sc[...].reshape(T * B, H2), fc_w_ref[...].astype(mxu_dtype))
              + fc_b_ref[...])
    out_ref[...] = logits.reshape(T, B, out_ref.shape[2])


# ----------------------------------------------------------------------------
# Wrapper
# ----------------------------------------------------------------------------
def zhuyin2char_forward(params, input_seq, input_lengths, mxu_dtype=jnp.float32):
    """input_seq: (B, T_in, input_size) f32, batch-first (like the torch module).
    Returns pred_prob: (B, max(input_lengths), vocab_size) f32.

    mxu_dtype=jnp.bfloat16 is recommended on v6e/v7x (MXU is bf16-native);
    default f32 matches the PyTorch reference bit-for-bit in structure."""
    B = input_seq.shape[0]
    H = params["hidden"]
    n_layers = params["n_layers"]
    V = params["fc_w"].shape[1]

    lengths = np.asarray(input_lengths, np.int32)
    T = int(lengths.max())               # pad_packed_sequence trims to max len

    # single small transpose to time-major; single transpose back at the end.
    x = jnp.transpose(input_seq[:, :T, :].astype(jnp.float32), (1, 0, 2))
    len_col = jnp.asarray(lengths, jnp.int32).reshape(B, 1)

    flat_w = []
    for (wih, whh_blk, b) in params["layers"]:
        flat_w += [wih, whh_blk, b]

    vmem = pl.BlockSpec(memory_space=pltpu.MemorySpace.VMEM)
    kernel = functools.partial(_zhuyin2char_fused_kernel,
                               hidden=H, n_layers=n_layers, mxu_dtype=mxu_dtype)
    n_in = 2 + len(flat_w) + 2

    # VMEM residency at these sizes is < 1 MiB; if T/B/V scale up, set
    # pltpu.CompilerParams(vmem_limit_bytes=...) and tile the final FC over V.
    out_tbv = pl.pallas_call(
        kernel,
        out_shape=jax.ShapeDtypeStruct((T, B, V), jnp.float32),
        in_specs=[vmem] * n_in,
        out_specs=vmem,
        scratch_shapes=[
            pltpu.VMEM((T, B, 8 * H), jnp.float32),   # hoisted x@W_ih gate slab
            pltpu.VMEM((T, B, 2 * H), jnp.float32),   # layer outputs [fwd | bwd]
        ],
    )(x, len_col, *flat_w, params["fc_w"], params["fc_b"])

    return jnp.transpose(out_tbv, (1, 0, 2))           # (B, T, V)


# ----------------------------------------------------------------------------
# Deterministic parameter initialization (matches nn.LSTM / nn.Linear shapes,
# pre-fused into the layout the kernel consumes).
#
# To import real torch weights: transpose weight_ih_l{k}/weight_hh_l{k},
# permute the 4H gate columns from torch's (i, f, g, o) to (i, f, o, g),
# sum b_ih + b_hh, concat fwd|bwd along columns, and place W_hh fwd/bwd on the
# diagonal blocks of a zero (2H, 8H) matrix.
# ----------------------------------------------------------------------------
def init_params(key, input_size, hidden_size, vocab_size, n_layers):
    H = hidden_size
    params = {"hidden": H, "n_layers": n_layers, "layers": []}
    k_lstm = 1.0 / np.sqrt(H)
    keys = iter(jax.random.split(key, n_layers * 8 + 2))

    def u(shape, scale):
        return jax.random.uniform(next(keys), shape, jnp.float32, -scale, scale)

    for layer in range(n_layers):
        d_in = input_size if layer == 0 else 2 * H
        # forward direction (gate order i, f, o, g; torch weights transposed)
        wih_f = u((d_in, 4 * H), k_lstm)
        whh_f = u((H, 4 * H), k_lstm)
        b_f = u((1, 4 * H), k_lstm) + u((1, 4 * H), k_lstm)   # b_ih + b_hh
        # backward direction
        wih_b = u((d_in, 4 * H), k_lstm)
        whh_b = u((H, 4 * H), k_lstm)
        b_b = u((1, 4 * H), k_lstm) + u((1, 4 * H), k_lstm)

        wih = jnp.concatenate([wih_f, wih_b], axis=1)          # (d_in, 8H)
        b = jnp.concatenate([b_f, b_b], axis=1)                # (1, 8H)
        # block-diagonal recurrent weight: one (B,2H)@(2H,8H) dot per step.
        whh_blk = jnp.zeros((2 * H, 8 * H), jnp.float32)
        whh_blk = whh_blk.at[:H, :4 * H].set(whh_f)
        whh_blk = whh_blk.at[H:, 4 * H:].set(whh_b)
        params["layers"].append((wih, whh_blk, b))

    k_fc = 1.0 / np.sqrt(2 * H)
    params["fc_w"] = u((2 * H, vocab_size), k_fc)
    params["fc_b"] = u((1, vocab_size), k_fc)
    return params


# ----------------------------------------------------------------------------
if __name__ == "__main__":
    B, T_IN = 8, 12
    INPUT_SIZE, HIDDEN_SIZE, VOCAB_SIZE, N_LAYERS = 64, 32, 256, 3

    key = jax.random.PRNGKey(0)
    kx, kp = jax.random.split(key)

    # "elmo embeddings": (B, T, input_size); lengths sorted descending as
    # pack_padded_sequence (enforce_sorted=True) requires.
    input_seq = jax.random.normal(kx, (B, T_IN, INPUT_SIZE), jnp.float32)
    input_lengths = [12, 11, 10, 9, 8, 6, 4, 3]

    params = init_params(kp, INPUT_SIZE, HIDDEN_SIZE, VOCAB_SIZE, N_LAYERS)

    pred_prob = zhuyin2char_forward(params, input_seq, input_lengths)
    pred_prob = jax.block_until_ready(pred_prob)

    assert pred_prob.shape == (B, max(input_lengths), VOCAB_SIZE)
    assert pred_prob.dtype == jnp.float32
    assert bool(jnp.all(jnp.isfinite(pred_prob)))
    print("KERNEL_OK")
</pallas_src>

<mosaic_0001>
module attributes {stable_mosaic.version = 11 : i64} {
  func.func @_zhuyin2char_fused_kernel(%arg0: memref<12x8x64xf32, #tpu.memory_space<vmem>>, %arg1: memref<8x1xi32, #tpu.memory_space<vmem>>, %arg2: memref<64x256xf32, #tpu.memory_space<vmem>>, %arg3: memref<64x256xf32, #tpu.memory_space<vmem>>, %arg4: memref<1x256xf32, #tpu.memory_space<vmem>>, %arg5: memref<64x256xf32, #tpu.memory_space<vmem>>, %arg6: memref<64x256xf32, #tpu.memory_space<vmem>>, %arg7: memref<1x256xf32, #tpu.memory_space<vmem>>, %arg8: memref<64x256xf32, #tpu.memory_space<vmem>>, %arg9: memref<64x256xf32, #tpu.memory_space<vmem>>, %arg10: memref<1x256xf32, #tpu.memory_space<vmem>>, %arg11: memref<64x256xf32, #tpu.memory_space<vmem>>, %arg12: memref<1x256xf32, #tpu.memory_space<vmem>>, %arg13: memref<12x8x256xf32, #tpu.memory_space<vmem>>, %arg14: memref<12x8x256xf32, #tpu.memory_space<vmem>>, %arg15: memref<12x8x64xf32, #tpu.memory_space<vmem>>) attributes {dimension_semantics = [], scalar_prefetch = 0 : i64, scratch_operands = 2 : i64, tpu.core_type = #tpu.core_type<tc>} {
    %c0 = arith.constant 0 : index
    %c0_0 = arith.constant 0 : index
    %0 = vector.load %arg1[%c0, %c0_0] : memref<8x1xi32, #tpu.memory_space<vmem>>, vector<8x1xi32>
    %1 = vector.shape_cast %0 : vector<8x1xi32> to vector<8x1xi32>
    %2 = vector.broadcast %1 : vector<8x1xi32> to vector<8x32xi32>
    %c0_1 = arith.constant 0 : index
    %c0_2 = arith.constant 0 : index
    %c0_3 = arith.constant 0 : index
    %3 = vector.load %arg0[%c0_1, %c0_2, %c0_3] : memref<12x8x64xf32, #tpu.memory_space<vmem>>, vector<12x8x64xf32>
    %4 = vector.shape_cast %3 : vector<12x8x64xf32> to vector<96x64xf32>
    %c0_4 = arith.constant 0 : index
    %c0_5 = arith.constant 0 : index
    %5 = vector.load %arg2[%c0_4, %c0_5] : memref<64x256xf32, #tpu.memory_space<vmem>>, vector<64x256xf32>
    %cst = arith.constant dense<0.000000e+00> : vector<96x256xf32>
    %6 = tpu.matmul %4, %5, %cst {dimension_numbers = #tpu.dot_dimension_numbers<[1], [0], [0], [1], [0, 0, 1, 1], [], []>} : vector<96x64xf32>, vector<64x256xf32>, vector<96x256xf32> -> vector<96x256xf32>
    %c0_6 = arith.constant 0 : index
    %c0_7 = arith.constant 0 : index
    %7 = vector.load %arg4[%c0_6, %c0_7] : memref<1x256xf32, #tpu.memory_space<vmem>>, vector<1x256xf32>
    %8 = vector.broadcast %7 : vector<1x256xf32> to vector<96x256xf32>
    %9 = arith.addf %6, %8 : vector<96x256xf32>
    %10 = vector.shape_cast %9 : vector<96x256xf32> to vector<12x8x256xf32>
    %c0_8 = arith.constant 0 : index
    %c0_9 = arith.constant 0 : index
    %c0_10 = arith.constant 0 : index
    %11 = vector.load %arg14[%c0_8, %c0_9, %c0_10] : memref<12x8x256xf32, #tpu.memory_space<vmem>>, vector<12x8x256xf32>
    tpu.vector_store %arg14[%c0_8, %c0_9, %c0_10], %10 {strides = array<i32>} : memref<12x8x256xf32, #tpu.memory_space<vmem>>, vector<12x8x256xf32>,
    %c0_11 = arith.constant 0 : index
    %c0_12 = arith.constant 0 : index
    %12 = vector.load %arg3[%c0_11, %c0_12] : memref<64x256xf32, #tpu.memory_space<vmem>>, vector<64x256xf32>
    %cst_13 = arith.constant 0.000000e+00 : f32
    %13 = vector.broadcast %cst_13 : f32 to vector<8x64xf32>
    %cst_14 = arith.constant 0.000000e+00 : f32
    %14 = vector.broadcast %cst_14 : f32 to vector<8x32xf32>
    %cst_15 = arith.constant 0.000000e+00 : f32
    %15 = vector.broadcast %cst_15 : f32 to vector<8x32xf32>
    %c0_i32 = arith.constant 0 : i32
    %c11_i32 = arith.constant 11 : i32
    %16 = arith.subi %c11_i32, %c0_i32 : i32
    %cst_16 = arith.constant dense<0.000000e+00> : vector<8x256xf32>
    %17 = tpu.matmul %13, %12, %cst_16 {dimension_numbers = #tpu.dot_dimension_numbers<[1], [0], [0], [1], [0, 0, 1, 1], [], []>} : vector<8x64xf32>, vector<64x256xf32>, vector<8x256xf32> -> vector<8x256xf32>
    %18 = arith.index_cast %c0_i32 : i32 to index
    %c0_17 = arith.constant 0 : index
    %c0_18 = arith.constant 0 : index
    %19 = vector.load %arg14[%18, %c0_17, %c0_18] : memref<12x8x256xf32, #tpu.memory_space<vmem>>, vector<1x8x128xf32>
    %20 = vector.shape_cast %19 : vector<1x8x128xf32> to vector<8x128xf32>
    %21 = vector.extract_strided_slice %17 {offsets = [0, 0], sizes = [8, 128], strides = [1, 1]} : vector<8x256xf32> to vector<8x128xf32>
    %22 = arith.addf %20, %21 : vector<8x128xf32>
    %23 = vector.extract_strided_slice %22 {offsets = [0, 0], sizes = [8, 96], strides = [1, 1]} : vector<8x128xf32> to vector<8x96xf32>
    %24 = arith.negf %23 : vector<8x96xf32>
    %25 = math.exp %24 : vector<8x96xf32>
    %cst_19 = arith.constant 1.000000e+00 : f32
    %26 = vector.broadcast %cst_19 : f32 to vector<8x96xf32>
    %27 = arith.addf %26, %25 : vector<8x96xf32>
    %28 = arith.divf %26, %27 : vector<8x96xf32>
    %29 = vector.extract_strided_slice %22 {offsets = [0, 96], sizes = [8, 32], strides = [1, 1]} : vector<8x128xf32> to vector<8x32xf32>
    %30 = math.tanh %29 : vector<8x32xf32>
    %31 = vector.extract_strided_slice %28 {offsets = [0, 32], sizes = [8, 32], strides = [1, 1]} : vector<8x96xf32> to vector<8x32xf32>
    %32 = arith.mulf %31, %14 : vector<8x32xf32>
    %33 = vector.extract_strided_slice %28 {offsets = [0, 0], sizes = [8, 32], strides = [1, 1]} : vector<8x96xf32> to vector<8x32xf32>
    %34 = arith.mulf %33, %30 : vector<8x32xf32>
    %35 = arith.addf %32, %34 : vector<8x32xf32>
    %36 = vector.extract_strided_slice %28 {offsets = [0, 64], sizes = [8, 32], strides = [1, 1]} : vector<8x96xf32> to vector<8x32xf32>
    %37 = math.tanh %35 : vector<8x32xf32>
    %38 = arith.mulf %36, %37 : vector<8x32xf32>
    %39 = vector.broadcast %c0_i32 : i32 to vector<8x32xi32>
    %40 = arith.cmpi slt, %39, %2 : vector<8x32xi32>
    %41 = arith.select %40, %35, %14 : vector<8x32xi1>, vector<8x32xf32>
    %42 = vector.extract_strided_slice %13 {offsets = [0, 0], sizes = [8, 32], strides = [1, 1]} : vector<8x64xf32> to vector<8x32xf32>
    %43 = arith.select %40, %38, %42 : vector<8x32xi1>, vector<8x32xf32>
    %cst_20 = arith.constant 0.000000e+00 : f32
    %44 = vector.broadcast %cst_20 : f32 to vector<8x32xf32>
    %45 = arith.select %40, %38, %44 : vector<8x32xi1>, vector<8x32xf32>
    %46 = arith.index_cast %c0_i32 : i32 to index
    %c0_21 = arith.constant 0 : index
    %c0_22 = arith.constant 0 : index
    %47 = vector.load %arg15[%46, %c0_21, %c0_22] : memref<12x8x64xf32, #tpu.memory_space<vmem>>, vector<1x8x32xf32>
    %48 = vector.shape_cast %47 : vector<1x8x32xf32> to vector<8x32xf32>
    %49 = vector.shape_cast %45 : vector<8x32xf32> to vector<1x8x32xf32>
    tpu.vector_store %arg15[%46, %c0_21, %c0_22], %49 {strides = array<i32>} : memref<12x8x64xf32, #tpu.memory_space<vmem>>, vector<1x8x32xf32>,
    %50 = arith.index_cast %16 : i32 to index
    %c0_23 = arith.constant 0 : index
    %c128 = arith.constant 128 : index
    %51 = vector.load %arg14[%50, %c0_23, %c128] : memref<12x8x256xf32, #tpu.memory_space<vmem>>, vector<1x8x128xf32>
    %52 = vector.shape_cast %51 : vector<1x8x128xf32> to vector<8x128xf32>
    %53 = vector.extract_strided_slice %17 {offsets = [0, 128], sizes = [8, 128], strides = [1, 1]} : vector<8x256xf32> to vector<8x128xf32>
    %54 = arith.addf %52, %53 : vector<8x128xf32>
    %55 = vector.extract_strided_slice %54 {offsets = [0, 0], sizes = [8, 96], strides = [1, 1]} : vector<8x128xf32> to vector<8x96xf32>
    %56 = arith.negf %55 : vector<8x96xf32>
    %57 = math.exp %56 : vector<8x96xf32>
    %cst_24 = arith.constant 1.000000e+00 : f32
    %58 = vector.broadcast %cst_24 : f32 to vector<8x96xf32>
    %59 = arith.addf %58, %57 : vector<8x96xf32>
    %60 = arith.divf %58, %59 : vector<8x96xf32>
    %61 = vector.extract_strided_slice %54 {offsets = [0, 96], sizes = [8, 32], strides = [1, 1]} : vector<8x128xf32> to vector<8x32xf32>
    %62 = math.tanh %61 : vector<8x32xf32>
    %63 = vector.extract_strided_slice %60 {offsets = [0, 32], sizes = [8, 32], strides = [1, 1]} : vector<8x96xf32> to vector<8x32xf32>
    %64 = arith.mulf %63, %15 : vector<8x32xf32>
    %65 = vector.extract_strided_slice %60 {offsets = [0, 0], sizes = [8, 32], strides = [1, 1]} : vector<8x96xf32> to vector<8x32xf32>
    %66 = arith.mulf %65, %62 : vector<8x32xf32>
    %67 = arith.addf %64, %66 : vector<8x32xf32>
    %68 = vector.extract_strided_slice %60 {offsets = [0, 64], sizes = [8, 32], strides = [1, 1]} : vector<8x96xf32> to vector<8x32xf32>
    %69 = math.tanh %67 : vector<8x32xf32>
    %70 = arith.mulf %68, %69 : vector<8x32xf32>
    %71 = vector.broadcast %16 : i32 to vector<8x32xi32>
    %72 = arith.cmpi slt, %71, %2 : vector<8x32xi32>
    %73 = arith.select %72, %67, %15 : vector<8x32xi1>, vector<8x32xf32>
    %74 = vector.extract_strided_slice %13 {offsets = [0, 32], sizes = [8, 32], strides = [1, 1]} : vector<8x64xf32> to vector<8x32xf32>
    %75 = arith.select %72, %70, %74 : vector<8x32xi1>, vector<8x32xf32>
    %cst_25 = arith.constant 0.000000e+00 : f32
    %76 = vector.broadcast %cst_25 : f32 to vector<8x32xf32>
    %77 = arith.select %72, %70, %76 : vector<8x32xi1>, vector<8x32xf32>
    %78 = arith.index_cast %16 : i32 to index
    %c0_26 = arith.constant 0 : index
    %c32 = arith.constant 32 : index
    %79 = vector.load %arg15[%78, %c0_26, %c32] : memref<12x8x64xf32, #tpu.memory_space<vmem>>, vector<1x8x32xf32>
    %80 = vector.shape_cast %79 : vector<1x8x32xf32> to vector<8x32xf32>
    %81 = vector.shape_cast %77 : vector<8x32xf32> to vector<1x8x32xf32>
    tpu.vector_store %arg15[%78, %c0_26, %c32], %81 {strides = array<i32>} : memref<12x8x64xf32, #tpu.memory_space<vmem>>, vector<1x8x32xf32>,
    %82 = tpu.concatenate %43, %75 in 1 : vector<8x32xf32>, vector<8x32xf32> -> vector<8x64xf32>
    %c1_i32 = arith.constant 1 : i32
    %c11_i32_27 = arith.constant 11 : i32
    %83 = arith.subi %c11_i32_27, %c1_i32 : i32
    %cst_28 = arith.constant dense<0.000000e+00> : vector<8x256xf32>
    %84 = tpu.matmul %82, %12, %cst_28 {dimension_numbers = #tpu.dot_dimension_numbers<[1], [0], [0], [1], [0, 0, 1, 1], [], []>} : vector<8x64xf32>, vector<64x256xf32>, vector<8x256xf32> -> vector<8x256xf32>
    %85 = arith.index_cast %c1_i32 : i32 to index
    %c0_29 = arith.constant 0 : index
    %c0_30 = arith.constant 0 : index
    %86 = vector.load %arg14[%85, %c0_29, %c0_30] : memref<12x8x256xf32, #tpu.memory_space<vmem>>, vector<1x8x128xf32>
    %87 = vector.shape_cast %86 : vector<1x8x128xf32> to vector<8x128xf32>
    %88 = vector.extract_strided_slice %84 {offsets = [0, 0], sizes = [8, 128], strides = [1, 1]} : vector<8x256xf32> to vector<8x128xf32>
    %89 = arith.addf %87, %88 : vector<8x128xf32>
    %90 = vector.extract_strided_slice %89 {offsets = [0, 0], sizes = [8, 96], strides = [1, 1]} : vector<8x128xf32> to vector<8x96xf32>
    %91 = arith.negf %90 : vector<8x96xf32>
    %92 = math.exp %91 : vector<8x96xf32>
    %cst_31 = arith.constant 1.000000e+00 : f32
    %93 = vector.broadcast %cst_31 : f32 to vector<8x96xf32>
    %94 = arith.addf %93, %92 : vector<8x96xf32>
    %95 = arith.divf %93, %94 : vector<8x96xf32>
    %96 = vector.extract_strided_slice %89 {offsets = [0, 96], sizes = [8, 32], strides = [1, 1]} : vector<8x128xf32> to vector<8x32xf32>
    %97 = math.tanh %96 : vector<8x32xf32>
    %98 = vector.extract_strided_slice %95 {offsets = [0, 32], sizes = [8, 32], strides = [1, 1]} : vector<8x96xf32> to vector<8x32xf32>
    %99 = arith.mulf %98, %41 : vector<8x32xf32>
    %100 = vector.extract_strided_slice %95 {offsets = [0, 0], sizes = [8, 32], strides = [1, 1]} : vector<8x96xf32> to vector<8x32xf32>
    %101 = arith.mulf %100, %97 : vector<8x32xf32>
    %102 = arith.addf %99, %101 : vector<8x32xf32>
    %103 = vector.extract_strided_slice %95 {offsets = [0, 64], sizes = [8, 32], strides = [1, 1]} : vector<8x96xf32> to vector<8x32xf32>
    %104 = math.tanh %102 : vector<8x32xf32>
    %105 = arith.mulf %103, %104 : vector<8x32xf32>
    %106 = vector.broadcast %c1_i32 : i32 to vector<8x32xi32>
    %107 = arith.cmpi slt, %106, %2 : vector<8x32xi32>
    %108 = arith.select %107, %102, %41 : vector<8x32xi1>, vector<8x32xf32>
    %109 = vector.extract_strided_slice %82 {offsets = [0, 0], sizes = [8, 32], strides = [1, 1]} : vector<8x64xf32> to vector<8x32xf32>
    %110 = arith.select %107, %105, %109 : vector<8x32xi1>, vector<8x32xf32>
    %cst_32 = arith.constant 0.000000e+00 : f32
    %111 = vector.broadcast %cst_32 : f32 to vector<8x32xf32>
    %112 = arith.select %107, %105, %111 : vector<8x32xi1>, vector<8x32xf32>
    %113 = arith.index_cast %c1_i32 : i32 to index
    %c0_33 = arith.constant 0 : index
    %c0_34 = arith.constant 0 : index
    %114 = vector.load %arg15[%113, %c0_33, %c0_34] : memref<12x8x64xf32, #tpu.memory_space<vmem>>, vector<1x8x32xf32>
    %115 = vector.shape_cast %114 : vector<1x8x32xf32> to vector<8x32xf32>
    %116 = vector.shape_cast %112 : vector<8x32xf32> to vector<1x8x32xf32>
    tpu.vector_store %arg15[%113, %c0_33, %c0_34], %116 {strides = array<i32>} : memref<12x8x64xf32, #tpu.memory_space<vmem>>, vector<1x8x32xf32>,
    %117 = arith.index_cast %83 : i32 to index
    %c0_35 = arith.constant 0 : index
    %c128_36 = arith.constant 128 : index
    %118 = vector.load %arg14[%117, %c0_35, %c128_36] : memref<12x8x256xf32, #tpu.memory_space<vmem>>, vector<1x8x128xf32>
    %119 = vector.shape_cast %118 : vector<1x8x128xf32> to vector<8x128xf32>
    %120 = vector.extract_strided_slice %84 {offsets = [0, 128], sizes = [8, 128], strides = [1, 1]} : vector<8x256xf32> to vector<8x128xf32>
    %121 = arith.addf %119, %120 : vector<8x128xf32>
    %122 = vector.extract_strided_slice %121 {offsets = [0, 0], sizes = [8, 96], strides = [1, 1]} : vector<8x128xf32> to vector<8x96xf32>
    %123 = arith.negf %122 : vector<8x96xf32>
    %124 = math.exp %123 : vector<8x96xf32>
    %cst_37 = arith.constant 1.000000e+00 : f32
    %125 = vector.broadcast %cst_37 : f32 to vector<8x96xf32>
    %126 = arith.addf %125, %124 : vector<8x96xf32>
    %127 = arith.divf %125, %126 : vector<8x96xf32>
    %128 = vector.extract_strided_slice %121 {offsets = [0, 96], sizes = [8, 32], strides = [1, 1]} : vector<8x128xf32> to vector<8x32xf32>
    %129 = math.tanh %128 : vector<8x32xf32>
    %130 = vector.extract_strided_slice %127 {offsets = [0, 32], sizes = [8, 32], strides = [1, 1]} : vector<8x96xf32> to vector<8x32xf32>
    %131 = arith.mulf %130, %73 : vector<8x32xf32>
    %132 = vector.extract_strided_slice %127 {offsets = [0, 0], sizes = [8, 32], strides = [1, 1]} : vector<8x96xf32> to vector<8x32xf32>
    %133 = arith.mulf %132, %129 : vector<8x32xf32>
    %134 = arith.addf %131, %133 : vector<8x32xf32>
    %135 = vector.extract_strided_slice %127 {offsets = [0, 64], sizes = [8, 32], strides = [1, 1]} : vector<8x96xf32> to vector<8x32xf32>
    %136 = math.tanh %134 : vector<8x32xf32>
    %137 = arith.mulf %135, %136 : vector<8x32xf32>
    %138 = vector.broadcast %83 : i32 to vector<8x32xi32>
    %139 = arith.cmpi slt, %138, %2 : vector<8x32xi32>
    %140 = arith.select %139, %134, %73 : vector<8x32xi1>, vector<8x32xf32>
    %141 = vector.extract_strided_slice %82 {offsets = [0, 32], sizes = [8, 32], strides = [1, 1]} : vector<8x64xf32> to vector<8x32xf32>
    %142 = arith.select %139, %137, %141 : vector<8x32xi1>, vector<8x32xf32>
    %cst_38 = arith.constant 0.000000e+00 : f32
    %143 = vector.broadcast %cst_38 : f32 to vector<8x32xf32>
    %144 = arith.select %139, %137, %143 : vector<8x32xi1>, vector<8x32xf32>
    %145 = arith.index_cast %83 : i32 to index
    %c0_39 = arith.constant 0 : index
    %c32_40 = arith.constant 32 : index
    %146 = vector.load %arg15[%145, %c0_39, %c32_40] : memref<12x8x64xf32, #tpu.memory_space<vmem>>, vector<1x8x32xf32>
    %147 = vector.shape_cast %146 : vector<1x8x32xf32> to vector<8x32xf32>
    %148 = vector.shape_cast %144 : vector<8x32xf32> to vector<1x8x32xf32>
    tpu.vector_store %arg15[%145, %c0_39, %c32_40], %148 {strides = array<i32>} : memref<12x8x64xf32, #tpu.memory_space<vmem>>, vector<1x8x32xf32>,
    %149 = tpu.concatenate %110, %142 in 1 : vector<8x32xf32>, vector<8x32xf32> -> vector<8x64xf32>
    %c2_i32 = arith.constant 2 : i32
    %c11_i32_41 = arith.constant 11 : i32
    %150 = arith.subi %c11_i32_41, %c2_i32 : i32
    %cst_42 = arith.constant dense<0.000000e+00> : vector<8x256xf32>
    %151 = tpu.matmul %149, %12, %cst_42 {dimension_numbers = #tpu.dot_dimension_numbers<[1], [0], [0], [1], [0, 0, 1, 1], [], []>} : vector<8x64xf32>, vector<64x256xf32>, vector<8x256xf32> -> vector<8x256xf32>
    %152 = arith.index_cast %c2_i32 : i32 to index
    %c0_43 = arith.constant 0 : index
    %c0_44 = arith.constant 0 : index
    %153 = vector.load %arg14[%152, %c0_43, %c0_44] : memref<12x8x256xf32, #tpu.memory_space<vmem>>, vector<1x8x128xf32>
    %154 = vector.shape_cast %153 : vector<1x8x128xf32> to vector<8x128xf32>
    %155 = vector.extract_strided_slice %151 {offsets = [0, 0], sizes = [8, 128], strides = [1, 1]} : vector<8x256xf32> to vector<8x128xf32>
    %156 = arith.addf %154, %155 : vector<8x128xf32>
    %157 = vector.extract_strided_slice %156 {offsets = [0, 0], sizes = [8, 96], strides = [1, 1]} : vector<8x128xf32> to vector<8x96xf32>
    %158 = arith.negf %157 : vector<8x96xf32>
    %159 = math.exp %158 : vector<8x96xf32>
    %cst_45 = arith.constant 1.000000e+00 : f32
    %160 = vector.broadcast %cst_45 : f32 to vector<8x96xf32>
    %161 = arith.addf %160, %159 : vector<8x96xf32>
    %162 = arith.divf %160, %161 : vector<8x96xf32>
    %163 = vector.extract_strided_slice %156 {offsets = [0, 96], sizes = [8, 32], strides = [1, 1]} : vector<8x128xf32> to vector<8x32xf32>
    %164 = math.tanh %163 : vector<8x32xf32>
    %165 = vector.extract_strided_slice %162 {offsets = [0, 32], sizes = [8, 32], strides = [1, 1]} : vector<8x96xf32> to vector<8x32xf32>
    %166 = arith.mulf %165, %108 : vector<8x32xf32>
    %167 = vector.extract_strided_slice %162 {offsets = [0, 0], sizes = [8, 32], strides = [1, 1]} : vector<8x96xf32> to vector<8x32xf32>
    %168 = arith.mulf %167, %164 : vector<8x32xf32>
    %169 = arith.addf %166, %168 : vector<8x32xf32>
    %170 = vector.extract_strided_slice %162 {offsets = [0, 64], sizes = [8, 32], strides = [1, 1]} : vector<8x96xf32> to vector<8x32xf32>
    %171 = math.tanh %169 : vector<8x32xf32>
    %172 = arith.mulf %170, %171 : vector<8x32xf32>
    %173 = vector.broadcast %c2_i32 : i32 to vector<8x32xi32>
    %174 = arith.cmpi slt, %173, %2 : vector<8x32xi32>
    %175 = arith.select %174, %169, %108 : vector<8x32xi1>, vector<8x32xf32>
    %176 = vector.extract_strided_slice %149 {offsets = [0, 0], sizes = [8, 32], strides = [1, 1]} : vector<8x64xf32> to vector<8x32xf32>
    %177 = arith.select %174, %172, %176 : vector<8x32xi1>, vector<8x32xf32>
    %cst_46 = arith.constant 0.000000e+00 : f32
    %178 = vector.broadcast %cst_46 : f32 to vector<8x32xf32>
    %179 = arith.select %174, %172, %178 : vector<8x32xi1>, vector<8x32xf32>
    %180 = arith.index_cast %c2_i32 : i32 to index
    %c0_47 = arith.constant 0 : index
    %c0_48 = arith.constant 0 : index
    %181 = vector.load %arg15[%180, %c0_47, %c0_48] : memref<12x8x64xf32, #tpu.memory_space<vmem>>, vector<1x8x32xf32>
    %182 = vector.shape_cast %181 : vector<1x8x32xf32> to vector<8x32xf32>
    %183 = vector.shape_cast %179 : vector<8x32xf32> to vector<1x8x32xf32>
    tpu.vector_store %arg15[%180, %c0_47, %c0_48], %183 {strides = array<i32>} : memref<12x8x64xf32, #tpu.memory_space<vmem>>, vector<1x8x32xf32>,
    %184 = arith.index_cast %150 : i32 to index
    %c0_49 = arith.constant 0 : index
    %c128_50 = arith.constant 128 : index
    %185 = vector.load %arg14[%184, %c0_49, %c128_50] : memref<12x8x256xf32, #tpu.memory_space<vmem>>, vector<1x8x128xf32>
    %186 = vector.shape_cast %185 : vector<1x8x128xf32> to vector<8x128xf32>
    %187 = vector.extract_strided_slice %151 {offsets = [0, 128], sizes = [8, 128], strides = [1, 1]} : vector<8x256xf32> to vector<8x128xf32>
    %188 = arith.addf %186, %187 : vector<8x128xf32>
    %189 = vector.extract_strided_slice %188 {offsets = [0, 0], sizes = [8, 96], strides = [1, 1]} : vector<8x128xf32> to vector<8x96xf32>
    %190 = arith.negf %189 : vector<8x96xf32>
    %191 = math.exp %190 : vector<8x96xf32>
    %cst_51 = arith.constant 1.000000e+00 : f32
    %192 = vector.broadcast %cst_51 : f32 to vector<8x96xf32>
    %193 = arith.addf %192, %191 : vector<8x96xf32>
    %194 = arith.divf %192, %193 : vector<8x96xf32>
    %195 = vector.extract_strided_slice %188 {offsets = [0, 96], sizes = [8, 32], strides = [1, 1]} : vector<8x128xf32> to vector<8x32xf32>
    %196 = math.tanh %195 : vector<8x32xf32>
    %197 = vector.extract_strided_slice %194 {offsets = [0, 32], sizes = [8, 32], strides = [1, 1]} : vector<8x96xf32> to vector<8x32xf32>
    %198 = arith.mulf %197, %140 : vector<8x32xf32>
    %199 = vector.extract_strided_slice %194 {offsets = [0, 0], sizes = [8, 32], strides = [1, 1]} : vector<8x96xf32> to vector<8x32xf32>
    %200 = arith.mulf %199, %196 : vector<8x32xf32>
    %201 = arith.addf %198, %200 : vector<8x32xf32>
    %202 = vector.extract_strided_slice %194 {offsets = [0, 64], sizes = [8, 32], strides = [1, 1]} : vector<8x96xf32> to vector<8x32xf32>
    %203 = math.tanh %201 : vector<8x32xf32>
    %204 = arith.mulf %202, %203 : vector<8x32xf32>
    %205 = vector.broadcast %150 : i32 to vector<8x32xi32>
    %206 = arith.cmpi slt, %205, %2 : vector<8x32xi32>
    %207 = arith.select %206, %201, %140 : vector<8x32xi1>, vector<8x32xf32>
    %208 = vector.extract_strided_slice %149 {offsets = [0, 32], sizes = [8, 32], strides = [1, 1]} : vector<8x64xf32> to vector<8x32xf32>
    %209 = arith.select %206, %204, %208 : vector<8x32xi1>, vector<8x32xf32>
    %cst_52 = arith.constant 0.000000e+00 : f32
    %210 = vector.broadcast %cst_52 : f32 to vector<8x32xf32>
    %211 = arith.select %206, %204, %210 : vector<8x32xi1>, vector<8x32xf32>
    %212 = arith.index_cast %150 : i32 to index
    %c0_53 = arith.constant 0 : index
    %c32_54 = arith.constant 32 : index
    %213 = vector.load %arg15[%212, %c0_53, %c32_54] : memref<12x8x64xf32, #tpu.memory_space<vmem>>, vector<1x8x32xf32>
    %214 = vector.shape_cast %213 : vector<1x8x32xf32> to vector<8x32xf32>
    %215 = vector.shape_cast %211 : vector<8x32xf32> to vector<1x8x32xf32>
    tpu.vector_store %arg15[%212, %c0_53, %c32_54], %215 {strides = array<i32>} : memref<12x8x64xf32, #tpu.memory_space<vmem>>, vector<1x8x32xf32>,
    %216 = tpu.concatenate %177, %209 in 1 : vector<8x32xf32>, vector<8x32xf32> -> vector<8x64xf32>
    %c3_i32 = arith.constant 3 : i32
    %c11_i32_55 = arith.constant 11 : i32
    %217 = arith.subi %c11_i32_55, %c3_i32 : i32
    %cst_56 = arith.constant dense<0.000000e+00> : vector<8x256xf32>
    %218 = tpu.matmul %216, %12, %cst_56 {dimension_numbers = #tpu.dot_dimension_numbers<[1], [0], [0], [1], [0, 0, 1, 1], [], []>} : vector<8x64xf32>, vector<64x256xf32>, vector<8x256xf32> -> vector<8x256xf32>
    %219 = arith.index_cast %c3_i32 : i32 to index
    %c0_57 = arith.constant 0 : index
    %c0_58 = arith.constant 0 : index
    %220 = vector.load %arg14[%219, %c0_57, %c0_58] : memref<12x8x256xf32, #tpu.memory_space<vmem>>, vector<1x8x128xf32>
    %221 = vector.shape_cast %220 : vector<1x8x128xf32> to vector<8x128xf32>
    %222 = vector.extract_strided_slice %218 {offsets = [0, 0], sizes = [8, 128], strides = [1, 1]} : vector<8x256xf32> to vector<8x128xf32>
    %223 = arith.addf %221, %222 : vector<8x128xf32>
    %224 = vector.extract_strided_slice %223 {offsets = [0, 0], sizes = [8, 96], strides = [1, 1]} : vector<8x128xf32> to vector<8x96xf32>
    %225 = arith.negf %224 : vector<8x96xf32>
    %226 = math.exp %225 : vector<8x96xf32>
    %cst_59 = arith.constant 1.000000e+00 : f32
    %227 = vector.broadcast %cst_59 : f32 to vector<8x96xf32>
    %228 = arith.addf %227, %226 : vector<8x96xf32>
    %229 = arith.divf %227, %228 : vector<8x96xf32>
    %230 = vector.extract_strided_slice %223 {offsets = [0, 96], sizes = [8, 32], strides = [1, 1]} : vector<8x128xf32> to vector<8x32xf32>
    %231 = math.tanh %230 : vector<8x32xf32>
    %232 = vector.extract_strided_slice %229 {offsets = [0, 32], sizes = [8, 32], strides = [1, 1]} : vector<8x96xf32> to vector<8x32xf32>
    %233 = arith.mulf %232, %175 : vector<8x32xf32>
    %234 = vector.extract_strided_slice %229 {offsets = [0, 0], sizes = [8, 32], strides = [1, 1]} : vector<8x96xf32> to vector<8x32xf32>
    %235 = arith.mulf %234, %231 : vector<8x32xf32>
    %236 = arith.addf %233, %235 : vector<8x32xf32>
    %237 = vector.extract_strided_slice %229 {offsets = [0, 64], sizes = [8, 32], strides = [1, 1]} : vector<8x96xf32> to vector<8x32xf32>
    %238 = math.tanh %236 : vector<8x32xf32>
    %239 = arith.mulf %237, %238 : vector<8x32xf32>
    %240 = vector.broadcast %c3_i32 : i32 to vector<8x32xi32>
    %241 = arith.cmpi slt, %240, %2 : vector<8x32xi32>
    %242 = arith.select %241, %236, %175 : vector<8x32xi1>, vector<8x32xf32>
    %243 = vector.extract_strided_slice %216 {offsets = [0, 0], sizes = [8, 32], strides = [1, 1]} : vector<8x64xf32> to vector<8x32xf32>
    %244 = arith.select %241, %239, %243 : vector<8x32xi1>, vector<8x32xf32>
    %cst_60 = arith.constant 0.000000e+00 : f32
    %245 = vector.broadcast %cst_60 : f32 to vector<8x32xf32>
    %246 = arith.select %241, %239, %245 : vector<8x32xi1>, vector<8x32xf32>
    %247 = arith.index_cast %c3_i32 : i32 to index
    %c0_61 = arith.constant 0 : index
    %c0_62 = arith.constant 0 : index
    %248 = vector.load %arg15[%247, %c0_61, %c0_62] : memref<12x8x64xf32, #tpu.memory_space<vmem>>, vector<1x8x32xf32>
    %249 = vector.shape_cast %248 : vector<1x8x32xf32> to vector<8x32xf32>
    %250 = vector.shape_cast %246 : vector<8x32xf32> to vector<1x8x32xf32>
    tpu.vector_store %arg15[%247, %c0_61, %c0_62], %250 {strides = array<i32>} : memref<12x8x64xf32, #tpu.memory_space<vmem>>, vector<1x8x32xf32>,
    %251 = arith.index_cast %217 : i32 to index
    %c0_63 = arith.constant 0 : index
    %c128_64 = arith.constant 128 : index
    %252 = vector.load %arg14[%251, %c0_63, %c128_64] : memref<12x8x256xf32, #tpu.memory_space<vmem>>, vector<1x8x128xf32>
    %253 = vector.shape_cast %252 : vector<1x8x128xf32> to vector<8x128xf32>
    %254 = vector.extract_strided_slice %218 {offsets = [0, 128], sizes = [8, 128], strides = [1, 1]} : vector<8x256xf32> to vector<8x128xf32>
    %255 = arith.addf %253, %254 : vector<8x128xf32>
    %256 = vector.extract_strided_slice %255 {offsets = [0, 0], sizes = [8, 96], strides = [1, 1]} : vector<8x128xf32> to vector<8x96xf32>
    %257 = arith.negf %256 : vector<8x96xf32>
    %258 = math.exp %257 : vector<8x96xf32>
    %cst_65 = arith.constant 1.000000e+00 : f32
    %259 = vector.broadcast %cst_65 : f32 to vector<8x96xf32>
    %260 = arith.addf %259, %258 : vector<8x96xf32>
    %261 = arith.divf %259, %260 : vector<8x96xf32>
    %262 = vector.extract_strided_slice %255 {offsets = [0, 96], sizes = [8, 32], strides = [1, 1]} : vector<8x128xf32> to vector<8x32xf32>
    %263 = math.tanh %262 : vector<8x32xf32>
    %264 = vector.extract_strided_slice %261 {offsets = [0, 32], sizes = [8, 32], strides = [1, 1]} : vector<8x96xf32> to vector<8x32xf32>
    %265 = arith.mulf %264, %207 : vector<8x32xf32>
    %266 = vector.extract_strided_slice %261 {offsets = [0, 0], sizes = [8, 32], strides = [1, 1]} : vector<8x96xf32> to vector<8x32xf32>
    %267 = arith.mulf %266, %263 : vector<8x32xf32>
    %268 = arith.addf %265, %267 : vector<8x32xf32>
    %269 = vector.extract_strided_slice %261 {offsets = [0, 64], sizes = [8, 32], strides = [1, 1]} : vector<8x96xf32> to vector<8x32xf32>
    %270 = math.tanh %268 : vector<8x32xf32>
    %271 = arith.mulf %269, %270 : vector<8x32xf32>
    %272 = vector.broadcast %217 : i32 to vector<8x32xi32>
    %273 = arith.cmpi slt, %272, %2 : vector<8x32xi32>
    %274 = arith.select %273, %268, %207 : vector<8x32xi1>, vector<8x32xf32>
    %275 = vector.extract_strided_slice %216 {offsets = [0, 32], sizes = [8, 32], strides = [1, 1]} : vector<8x64xf32> to vector<8x32xf32>
    %276 = arith.select %273, %271, %275 : vector<8x32xi1>, vector<8x32xf32>
    %cst_66 = arith.constant 0.000000e+00 : f32
    %277 = vector.broadcast %cst_66 : f32 to vector<8x32xf32>
    %278 = arith.select %273, %271, %277 : vector<8x32xi1>, vector<8x32xf32>
    %279 = arith.index_cast %217 : i32 to index
    %c0_67 = arith.constant 0 : index
    %c32_68 = arith.constant 32 : index
    %280 = vector.load %arg15[%279, %c0_67, %c32_68] : memref<12x8x64xf32, #tpu.memory_space<vmem>>, vector<1x8x32xf32>
    %281 = vector.shape_cast %280 : vector<1x8x32xf32> to vector<8x32xf32>
    %282 = vector.shape_cast %278 : vector<8x32xf32> to vector<1x8x32xf32>
    tpu.vector_store %arg15[%279, %c0_67, %c32_68], %282 {strides = array<i32>} : memref<12x8x64xf32, #tpu.memory_space<vmem>>, vector<1x8x32xf32>,
    %283 = tpu.concatenate %244, %276 in 1 : vector<8x32xf32>, vector<8x32xf32> -> vector<8x64xf32>
    %c4_i32 = arith.constant 4 : i32
    %c11_i32_69 = arith.constant 11 : i32
    %284 = arith.subi %c11_i32_69, %c4_i32 : i32
    %cst_70 = arith.constant dense<0.000000e+00> : vector<8x256xf32>
    %285 = tpu.matmul %283, %12, %cst_70 {dimension_numbers = #tpu.dot_dimension_numbers<[1], [0], [0], [1], [0, 0, 1, 1], [], []>} : vector<8x64xf32>, vector<64x256xf32>, vector<8x256xf32> -> vector<8x256xf32>
    %286 = arith.index_cast %c4_i32 : i32 to index
    %c0_71 = arith.constant 0 : index
    %c0_72 = arith.constant 0 : index
    %287 = vector.load %arg14[%286, %c0_71, %c0_72] : memref<12x8x256xf32, #tpu.memory_space<vmem>>, vector<1x8x128xf32>
    %288 = vector.shape_cast %287 : vector<1x8x128xf32> to vector<8x128xf32>
    %289 = vector.extract_strided_slice %285 {offsets = [0, 0], sizes = [8, 128], strides = [1, 1]} : vector<8x256xf32> to vector<8x128xf32>
    %290 = arith.addf %288, %289 : vector<8x128xf32>
    %291 = vector.extract_strided_slice %290 {offsets = [0, 0], sizes = [8, 96], strides = [1, 1]} : vector<8x128xf32> to vector<8x96xf32>
    %292 = arith.negf %291 : vector<8x96xf32>
    %293 = math.exp %292 : vector<8x96xf32>
    %cst_73 = arith.constant 1.000000e+00 : f32
    %294 = vector.broadcast %cst_73 : f32 to vector<8x96xf32>
    %295 = arith.addf %294, %293 : vector<8x96xf32>
    %296 = arith.divf %294, %295 : vector<8x96xf32>
    %297 = vector.extract_strided_slice %290 {offsets = [0, 96], sizes = [8, 32], strides = [1, 1]} : vector<8x128xf32> to vector<8x32xf32>
    %298 = math.tanh %297 : vector<8x32xf32>
    %299 = vector.extract_strided_slice %296 {offsets = [0, 32], sizes = [8, 32], strides = [1, 1]} : vector<8x96xf32> to vector<8x32xf32>
    %300 = arith.mulf %299, %242 : vector<8x32xf32>
    %301 = vector.extract_strided_slice %296 {offsets = [0, 0], sizes = [8, 32], strides = [1, 1]} : vector<8x96xf32> to vector<8x32xf32>
    %302 = arith.mulf %301, %298 : vector<8x32xf32>
    %303 = arith.addf %300, %302 : vector<8x32xf32>
    %304 = vector.extract_strided_slice %296 {offsets = [0, 64], sizes = [8, 32], strides = [1, 1]} : vector<8x96xf32> to vector<8x32xf32>
    %305 = math.tanh %303 : vector<8x32xf32>
    %306 = arith.mulf %304, %305 : vector<8x32xf32>
    %307 = vector.broadcast %c4_i32 : i32 to vector<8x32xi32>
    %308 = arith.cmpi slt, %307, %2 : vector<8x32xi32>
    %309 = arith.select %308, %303, %242 : vector<8x32xi1>, vector<8x32xf32>
    %310 = vector.extract_strided_slice %283 {offsets = [0, 0], sizes = [8, 32], strides = [1, 1]} : vector<8x64xf32> to vector<8x32xf32>
    %311 = arith.select %308, %306, %310 : vector<8x32xi1>, vector<8x32xf32>
    %cst_74 = arith.constant 0.000000e+00 : f32
    %312 = vector.broadcast %cst_74 : f32 to vector<8x32xf32>
    %313 = arith.select %308, %306, %312 : vector<8x32xi1>, vector<8x32xf32>
    %314 = arith.index_cast %c4_i32 : i32 to index
    %c0_75 = arith.constant 0 : index
    %c0_76 = arith.constant 0 : index
    %315 = vector.load %arg15[%314, %c0_75, %c0_76] : memref<12x8x64xf32, #tpu.memory_space<vmem>>, vector<1x8x32xf32>
    %316 = vector.shape_cast %315 : vector<1x8x32xf32> to vector<8x32xf32>
    %317 = vector.shape_cast %313 : vector<8x32xf32> to vector<1x8x32xf32>
    tpu.vector_store %arg15[%314, %c0_75, %c0_76], %317 {strides = array<i32>} : memref<12x8x64xf32, #tpu.memory_space<vmem>>, vector<1x8x32xf32>,
    %318 = arith.index_cast %284 : i32 to index
    %c0_77 = arith.constant 0 : index
    %c128_78 = arith.constant 128 : index
    %319 = vector.load %arg14[%318, %c0_77, %c128_78] : memref<12x8x256xf32, #tpu.memory_space<vmem>>, vector<1x8x128xf32>
    %320 = vector.shape_cast %319 : vector<1x8x128xf32> to vector<8x128xf32>
    %321 = vector.extract_strided_slice %285 {offsets = [0, 128], sizes = [8, 128], strides = [1, 1]} : vector<8x256xf32> to vector<8x128xf32>
    %322 = arith.addf %320, %321 : vector<8x128xf32>
    %323 = vector.extract_strided_slice %322 {offsets = [0, 0], sizes = [8, 96], strides = [1, 1]} : vector<8x128xf32> to vector<8x96xf32>
    %324 = arith.negf %323 : vector<8x96xf32>
    %325 = math.exp %324 : vector<8x96xf32>
    %cst_79 = arith.constant 1.000000e+00 : f32
    %326 = vector.broadcast %cst_79 : f32 to vector<8x96xf32>
    %327 = arith.addf %326, %325 : vector<8x96xf32>
    %328 = arith.divf %326, %327 : vector<8x96xf32>
    %329 = vector.extract_strided_slice %322 {offsets = [0, 96], sizes = [8, 32], strides = [1, 1]} : vector<8x128xf32> to vector<8x32xf32>
    %330 = math.tanh %329 : vector<8x32xf32>
    %331 = vector.extract_strided_slice %328 {offsets = [0, 32], sizes = [8, 32], strides = [1, 1]} : vector<8x96xf32> to vector<8x32xf32>
    %332 = arith.mulf %331, %274 : vector<8x32xf32>
    %333 = vector.extract_strided_slice %328 {offsets = [0, 0], sizes = [8, 32], strides = [1, 1]} : vector<8x96xf32> to vector<8x32xf32>
    %334 = arith.mulf %333, %330 : vector<8x32xf32>
    %335 = arith.addf %332, %334 : vector<8x32xf32>
    %336 = vector.extract_strided_slice %328 {offsets = [0, 64], sizes = [8, 32], strides = [1, 1]} : vector<8x96xf32> to vector<8x32xf32>
    %337 = math.tanh %335 : vector<8x32xf32>
    %338 = arith.mulf %336, %337 : vector<8x32xf32>
    %339 = vector.broadcast %284 : i32 to vector<8x32xi32>
    %340 = arith.cmpi slt, %339, %2 : vector<8x32xi32>
    %341 = arith.select %340, %335, %274 : vector<8x32xi1>, vector<8x32xf32>
    %342 = vector.extract_strided_slice %283 {offsets = [0, 32], sizes = [8, 32], strides = [1, 1]} : vector<8x64xf32> to vector<8x32xf32>
    %343 = arith.select %340, %338, %342 : vector<8x32xi1>, vector<8x32xf32>
    %cst_80 = arith.constant 0.000000e+00 : f32
    %344 = vector.broadcast %cst_80 : f32 to vector<8x32xf32>
    %345 = arith.select %340, %338, %344 : vector<8x32xi1>, vector<8x32xf32>
    %346 = arith.index_cast %284 : i32 to index
    %c0_81 = arith.constant 0 : index
    %c32_82 = arith.constant 32 : index
    %347 = vector.load %arg15[%346, %c0_81, %c32_82] : memref<12x8x64xf32, #tpu.memory_space<vmem>>, vector<1x8x32xf32>
    %348 = vector.shape_cast %347 : vector<1x8x32xf32> to vector<8x32xf32>
    %349 = vector.shape_cast %345 : vector<8x32xf32> to vector<1x8x32xf32>
    tpu.vector_store %arg15[%346, %c0_81, %c32_82], %349 {strides = array<i32>} : memref<12x8x64xf32, #tpu.memory_space<vmem>>, vector<1x8x32xf32>,
    %350 = tpu.concatenate %311, %343 in 1 : vector<8x32xf32>, vector<8x32xf32> -> vector<8x64xf32>
    %c5_i32 = arith.constant 5 : i32
    %c11_i32_83 = arith.constant 11 : i32
    %351 = arith.subi %c11_i32_83, %c5_i32 : i32
    %cst_84 = arith.constant dense<0.000000e+00> : vector<8x256xf32>
    %352 = tpu.matmul %350, %12, %cst_84 {dimension_numbers = #tpu.dot_dimension_numbers<[1], [0], [0], [1], [0, 0, 1, 1], [], []>} : vector<8x64xf32>, vector<64x256xf32>, vector<8x256xf32> -> vector<8x256xf32>
    %353 = arith.index_cast %c5_i32 : i32 to index
    %c0_85 = arith.constant 0 : index
    %c0_86 = arith.constant 0 : index
    %354 = vector.load %arg14[%353, %c0_85, %c0_86] : memref<12x8x256xf32, #tpu.memory_space<vmem>>, vector<1x8x128xf32>
    %355 = vector.shape_cast %354 : vector<1x8x128xf32> to vector<8x128xf32>
    %356 = vector.extract_strided_slice %352 {offsets = [0, 0], sizes = [8, 128], strides = [1, 1]} : vector<8x256xf32> to vector<8x128xf32>
    %357 = arith.addf %355, %356 : vector<8x128xf32>
    %358 = vector.extract_strided_slice %357 {offsets = [0, 0], sizes = [8, 96], strides = [1, 1]} : vector<8x128xf32> to vector<8x96xf32>
    %359 = arith.negf %358 : vector<8x96xf32>
    %360 = math.exp %359 : vector<8x96xf32>
    %cst_87 = arith.constant 1.000000e+00 : f32
    %361 = vector.broadcast %cst_87 : f32 to vector<8x96xf32>
    %362 = arith.addf %361, %360 : vector<8x96xf32>
    %363 = arith.divf %361, %362 : vector<8x96xf32>
    %364 = vector.extract_strided_slice %357 {offsets = [0, 96], sizes = [8, 32], strides = [1, 1]} : vector<8x128xf32> to vector<8x32xf32>
    %365 = math.tanh %364 : vector<8x32xf32>
    %366 = vector.extract_strided_slice %363 {offsets = [0, 32], sizes = [8, 32], strides = [1, 1]} : vector<8x96xf32> to vector<8x32xf32>
    %367 = arith.mulf %366, %309 : vector<8x32xf32>
    %368 = vector.extract_strided_slice %363 {offsets = [0, 0], sizes = [8, 32], strides = [1, 1]} : vector<8x96xf32> to vector<8x32xf32>
    %369 = arith.mulf %368, %365 : vector<8x32xf32>
    %370 = arith.addf %367, %369 : vector<8x32xf32>
    %371 = vector.extract_strided_slice %363 {offsets = [0, 64], sizes = [8, 32], strides = [1, 1]} : vector<8x96xf32> to vector<8x32xf32>
    %372 = math.tanh %370 : vector<8x32xf32>
    %373 = arith.mulf %371, %372 : vector<8x32xf32>
    %374 = vector.broadcast %c5_i32 : i32 to vector<8x32xi32>
    %375 = arith.cmpi slt, %374, %2 : vector<8x32xi32>
    %376 = arith.select %375, %370, %309 : vector<8x32xi1>, vector<8x32xf32>
    %377 = vector.extract_strided_slice %350 {offsets = [0, 0], sizes = [8, 32], strides = [1, 1]} : vector<8x64xf32> to vector<8x32xf32>
    %378 = arith.select %375, %373, %377 : vector<8x32xi1>, vector<8x32xf32>
    %cst_88 = arith.constant 0.000000e+00 : f32
    %379 = vector.broadcast %cst_88 : f32 to vector<8x32xf32>
    %380 = arith.select %375, %373, %379 : vector<8x32xi1>, vector<8x32xf32>
    %381 = arith.index_cast %c5_i32 : i32 to index
    %c0_89 = arith.constant 0 : index
    %c0_90 = arith.constant 0 : index
    %382 = vector.load %arg15[%381, %c0_89, %c0_90] : memref<12x8x64xf32, #tpu.memory_space<vmem>>, vector<1x8x32xf32>
    %383 = vector.shape_cast %382 : vector<1x8x32xf32> to vector<8x32xf32>
    %384 = vector.shape_cast %380 : vector<8x32xf32> to vector<1x8x32xf32>
    tpu.vector_store %arg15[%381, %c0_89, %c0_90], %384 {strides = array<i32>} : memref<12x8x64xf32, #tpu.memory_space<vmem>>, vector<1x8x32xf32>,
    %385 = arith.index_cast %351 : i32 to index
    %c0_91 = arith.constant 0 : index
    %c128_92 = arith.constant 128 : index
    %386 = vector.load %arg14[%385, %c0_91, %c128_92] : memref<12x8x256xf32, #tpu.memory_space<vmem>>, vector<1x8x128xf32>
    %387 = vector.shape_cast %386 : vector<1x8x128xf32> to vector<8x128xf32>
    %388 = vector.extract_strided_slice %352 {offsets = [0, 128], sizes = [8, 128], strides = [1, 1]} : vector<8x256xf32> to vector<8x128xf32>
    %389 = arith.addf %387, %388 : vector<8x128xf32>
    %390 = vector.extract_strided_slice %389 {offsets = [0, 0], sizes = [8, 96], strides = [1, 1]} : vector<8x128xf32> to vector<8x96xf32>
    %391 = arith.negf %390 : vector<8x96xf32>
    %392 = math.exp %391 : vector<8x96xf32>
    %cst_93 = arith.constant 1.000000e+00 : f32
    %393 = vector.broadcast %cst_93 : f32 to vector<8x96xf32>
    %394 = arith.addf %393, %392 : vector<8x96xf32>
    %395 = arith.divf %393, %394 : vector<8x96xf32>
    %396 = vector.extract_strided_slice %389 {offsets = [0, 96], sizes = [8, 32], strides = [1, 1]} : vector<8x128xf32> to vector<8x32xf32>
    %397 = math.tanh %396 : vector<8x32xf32>
    %398 = vector.extract_strided_slice %395 {offsets = [0, 32], sizes = [8, 32], strides = [1, 1]} : vector<8x96xf32> to vector<8x32xf32>
    %399 = arith.mulf %398, %341 : vector<8x32xf32>
    %400 = vector.extract_strided_slice %395 {offsets = [0, 0], sizes = [8, 32], strides = [1, 1]} : vector<8x96xf32> to vector<8x32xf32>
    %401 = arith.mulf %400, %397 : vector<8x32xf32>
    %402 = arith.addf %399, %401 : vector<8x32xf32>
    %403 = vector.extract_strided_slice %395 {offsets = [0, 64], sizes = [8, 32], strides = [1, 1]} : vector<8x96xf32> to vector<8x32xf32>
    %404 = math.tanh %402 : vector<8x32xf32>
    %405 = arith.mulf %403, %404 : vector<8x32xf32>
    %406 = vector.broadcast %351 : i32 to vector<8x32xi32>
    %407 = arith.cmpi slt, %406, %2 : vector<8x32xi32>
    %408 = arith.select %407, %402, %341 : vector<8x32xi1>, vector<8x32xf32>
    %409 = vector.extract_strided_slice %350 {offsets = [0, 32], sizes = [8, 32], strides = [1, 1]} : vector<8x64xf32> to vector<8x32xf32>
    %410 = arith.select %407, %405, %409 : vector<8x32xi1>, vector<8x32xf32>
    %cst_94 = arith.constant 0.000000e+00 : f32
    %411 = vector.broadcast %cst_94 : f32 to vector<8x32xf32>
    %412 = arith.select %407, %405, %411 : vector<8x32xi1>, vector<8x32xf32>
    %413 = arith.index_cast %351 : i32 to index
    %c0_95 = arith.constant 0 : index
    %c32_96 = arith.constant 32 : index
    %414 = vector.load %arg15[%413, %c0_95, %c32_96] : memref<12x8x64xf32, #tpu.memory_space<vmem>>, vector<1x8x32xf32>
    %415 = vector.shape_cast %414 : vector<1x8x32xf32> to vector<8x32xf32>
    %416 = vector.shape_cast %412 : vector<8x32xf32> to vector<1x8x32xf32>
    tpu.vector_store %arg15[%413, %c0_95, %c32_96], %416 {strides = array<i32>} : memref<12x8x64xf32, #tpu.memory_space<vmem>>, vector<1x8x32xf32>,
    %417 = tpu.concatenate %378, %410 in 1 : vector<8x32xf32>, vector<8x32xf32> -> vector<8x64xf32>
    %c6_i32 = arith.constant 6 : i32
    %c11_i32_97 = arith.constant 11 : i32
    %418 = arith.subi %c11_i32_97, %c6_i32 : i32
    %cst_98 = arith.constant dense<0.000000e+00> : vector<8x256xf32>
    %419 = tpu.matmul %417, %12, %cst_98 {dimension_numbers = #tpu.dot_dimension_numbers<[1], [0], [0], [1], [0, 0, 1, 1], [], []>} : vector<8x64xf32>, vector<64x256xf32>, vector<8x256xf32> -> vector<8x256xf32>
    %420 = arith.index_cast %c6_i32 : i32 to index
    %c0_99 = arith.constant 0 : index
    %c0_100 = arith.constant 0 : index
    %421 = vector.load %arg14[%420, %c0_99, %c0_100] : memref<12x8x256xf32, #tpu.memory_space<vmem>>, vector<1x8x128xf32>
    %422 = vector.shape_cast %421 : vector<1x8x128xf32> to vector<8x128xf32>
    %423 = vector.extract_strided_slice %419 {offsets = [0, 0], sizes = [8, 128], strides = [1, 1]} : vector<8x256xf32> to vector<8x128xf32>
    %424 = arith.addf %422, %423 : vector<8x128xf32>
    %425 = vector.extract_strided_slice %424 {offsets = [0, 0], sizes = [8, 96], strides = [1, 1]} : vector<8x128xf32> to vector<8x96xf32>
    %426 = arith.negf %425 : vector<8x96xf32>
    %427 = math.exp %426 : vector<8x96xf32>
    %cst_101 = arith.constant 1.000000e+00 : f32
    %428 = vector.broadcast %cst_101 : f32 to vector<8x96xf32>
    %429 = arith.addf %428, %427 : vector<8x96xf32>
    %430 = arith.divf %428, %429 : vector<8x96xf32>
    %431 = vector.extract_strided_slice %424 {offsets = [0, 96], sizes = [8, 32], strides = [1, 1]} : vector<8x128xf32> to vector<8x32xf32>
    %432 = math.tanh %431 : vector<8x32xf32>
    %433 = vector.extract_strided_slice %430 {offsets = [0, 32], sizes = [8, 32], strides = [1, 1]} : vector<8x96xf32> to vector<8x32xf32>
    %434 = arith.mulf %433, %376 : vector<8x32xf32>
    %435 = vector.extract_strided_slice %430 {offsets = [0, 0], sizes = [8, 32], strides = [1, 1]} : vector<8x96xf32> to vector<8x32xf32>
    %436 = arith.mulf %435, %432 : vector<8x32xf32>
    %437 = arith.addf %434, %436 : vector<8x32xf32>
    %438 = vector.extract_strided_slice %430 {offsets = [0, 64], sizes = [8, 32], strides = [1, 1]} : vector<8x96xf32> to vector<8x32xf32>
    %439 = math.tanh %437 : vector<8x32xf32>
    %440 = arith.mulf %438, %439 : vector<8x32xf32>
    %441 = vector.broadcast %c6_i32 : i32 to vector<8x32xi32>
    %442 = arith.cmpi slt, %441, %2 : vector<8x32xi32>
    %443 = arith.select %442, %437, %376 : vector<8x32xi1>, vector<8x32xf32>
    %444 = vector.extract_strided_slice %417 {offsets = [0, 0], sizes = [8, 32], strides = [1, 1]} : vector<8x64xf32> to vector<8x32xf32>
    %445 = arith.select %442, %440, %444 : vector<8x32xi1>, vector<8x32xf32>
    %cst_102 = arith.constant 0.000000e+00 : f32
    %446 = vector.broadcast %cst_102 : f32 to vector<8x32xf32>
    %447 = arith.select %442, %440, %446 : vector<8x32xi1>, vector<8x32xf32>
    %448 = arith.index_cast %c6_i32 : i32 to index
    %c0_103 = arith.constant 0 : index
    %c0_104 = arith.constant 0 : index
    %449 = vector.load %arg15[%448, %c0_103, %c0_104] : memref<12x8x64xf32, #tpu.memory_space<vmem>>, vector<1x8x32xf32>
    %450 = vector.shape_cast %449 : vector<1x8x32xf32> to vector<8x32xf32>
    %451 = vector.shape_cast %447 : vector<8x32xf32> to vector<1x8x32xf32>
    tpu.vector_store %arg15[%448, %c0_103, %c0_104], %451 {strides = array<i32>} : memref<12x8x64xf32, #tpu.memory_space<vmem>>, vector<1x8x32xf32>,
    %452 = arith.index_cast %418 : i32 to index
    %c0_105 = arith.constant 0 : index
    %c128_106 = arith.constant 128 : index
    %453 = vector.load %arg14[%452, %c0_105, %c128_106] : memref<12x8x256xf32, #tpu.memory_space<vmem>>, vector<1x8x128xf32>
    %454 = vector.shape_cast %453 : vector<1x8x128xf32> to vector<8x128xf32>
    %455 = vector.extract_strided_slice %419 {offsets = [0, 128], sizes = [8, 128], strides = [1, 1]} : vector<8x256xf32> to vector<8x128xf32>
    %456 = arith.addf %454, %455 : vector<8x128xf32>
    %457 = vector.extract_strided_slice %456 {offsets = [0, 0], sizes = [8, 96], strides = [1, 1]} : vector<8x128xf32> to vector<8x96xf32>
    %458 = arith.negf %457 : vector<8x96xf32>
    %459 = math.exp %458 : vector<8x96xf32>
    %cst_107 = arith.constant 1.000000e+00 : f32
    %460 = vector.broadcast %cst_107 : f32 to vector<8x96xf32>
    %461 = arith.addf %460, %459 : vector<8x96xf32>
    %462 = arith.divf %460, %461 : vector<8x96xf32>
    %463 = vector.extract_strided_slice %456 {offsets = [0, 96], sizes = [8, 32], strides = [1, 1]} : vector<8x128xf32> to vector<8x32xf32>
    %464 = math.tanh %463 : vector<8x32xf32>
    %465 = vector.extract_strided_slice %462 {offsets = [0, 32], sizes = [8, 32], strides = [1, 1]} : vector<8x96xf32> to vector<8x32xf32>
    %466 = arith.mulf %465, %408 : vector<8x32xf32>
    %467 = vector.extract_strided_slice %462 {offsets = [0, 0], sizes = [8, 32], strides = [1, 1]} : vector<8x96xf32> to vector<8x32xf32>
    %468 = arith.mulf %467, %464 : vector<8x32xf32>
    %469 = arith.addf %466, %468 : vector<8x32xf32>
    %470 = vector.extract_strided_slice %462 {offsets = [0, 64], sizes = [8, 32], strides = [1, 1]} : vector<8x96xf32> to vector<8x32xf32>
    %471 = math.tanh %469 : vector<8x32xf32>
    %472 = arith.mulf %470, %471 : vector<8x32xf32>
    %473 = vector.broadcast %418 : i32 to vector<8x32xi32>
    %474 = arith.cmpi slt, %473, %2 : vector<8x32xi32>
    %475 = arith.select %474, %469, %408 : vector<8x32xi1>, vector<8x32xf32>
    %476 = vector.extract_strided_slice %417 {offsets = [0, 32], sizes = [8, 32], strides = [1, 1]} : vector<8x64xf32> to vector<8x32xf32>
    %477 = arith.select %474, %472, %476 : vector<8x32xi1>, vector<8x32xf32>
    %cst_108 = arith.constant 0.000000e+00 : f32
    %478 = vector.broadcast %cst_108 : f32 to vector<8x32xf32>
    %479 = arith.select %474, %472, %478 : vector<8x32xi1>, vector<8x32xf32>
    %480 = arith.index_cast %418 : i32 to index
    %c0_109 = arith.constant 0 : index
    %c32_110 = arith.constant 32 : index
    %481 = vector.load %arg15[%480, %c0_109, %c32_110] : memref<12x8x64xf32, #tpu.memory_space<vmem>>, vector<1x8x32xf32>
    %482 = vector.shape_cast %481 : vector<1x8x32xf32> to vector<8x32xf32>
    %483 = vector.shape_cast %479 : vector<8x32xf32> to vector<1x8x32xf32>
    tpu.vector_store %arg15[%480, %c0_109, %c32_110], %483 {strides = array<i32>} : memref<12x8x64xf32, #tpu.memory_space<vmem>>, vector<1x8x32xf32>,
    %484 = tpu.concatenate %445, %477 in 1 : vector<8x32xf32>, vector<8x32xf32> -> vector<8x64xf32>
    %c7_i32 = arith.constant 7 : i32
    %c11_i32_111 = arith.constant 11 : i32
    %485 = arith.subi %c11_i32_111, %c7_i32 : i32
    %cst_112 = arith.constant dense<0.000000e+00> : vector<8x256xf32>
    %486 = tpu.matmul %484, %12, %cst_112 {dimension_numbers = #tpu.dot_dimension_numbers<[1], [0], [0], [1], [0, 0, 1, 1], [], []>} : vector<8x64xf32>, vector<64x256xf32>, vector<8x256xf32> -> vector<8x256xf32>
    %487 = arith.index_cast %c7_i32 : i32 to index
    %c0_113 = arith.constant 0 : index
    %c0_114 = arith.constant 0 : index
    %488 = vector.load %arg14[%487, %c0_113, %c0_114] : memref<12x8x256xf32, #tpu.memory_space<vmem>>, vector<1x8x128xf32>
    %489 = vector.shape_cast %488 : vector<1x8x128xf32> to vector<8x128xf32>
    %490 = vector.extract_strided_slice %486 {offsets = [0, 0], sizes = [8, 128], strides = [1, 1]} : vector<8x256xf32> to vector<8x128xf32>
    %491 = arith.addf %489, %490 : vector<8x128xf32>
    %492 = vector.extract_strided_slice %491 {offsets = [0, 0], sizes = [8, 96], strides = [1, 1]} : vector<8x128xf32> to vector<8x96xf32>
    %493 = arith.negf %492 : vector<8x96xf32>
    %494 = math.exp %493 : vector<8x96xf32>
    %cst_115 = arith.constant 1.000000e+00 : f32
    %495 = vector.broadcast %cst_115 : f32 to vector<8x96xf32>
    %496 = arith.addf %495, %494 : vector<8x96xf32>
    %497 = arith.divf %495, %496 : vector<8x96xf32>
    %498 = vector.extract_strided_slice %491 {offsets = [0, 96], sizes = [8, 32], strides = [1, 1]} : vector<8x128xf32> to vector<8x32xf32>
    %499 = math.tanh %498 : vector<8x32xf32>
    %500 = vector.extract_strided_slice %497 {offsets = [0, 32], sizes = [8, 32], strides = [1, 1]} : vector<8x96xf32> to vector<8x32xf32>
    %501 = arith.mulf %500, %443 : vector<8x32xf32>
    %502 = vector.extract_strided_slice %497 {offsets = [0, 0], sizes = [8, 32], strides = [1, 1]} : vector<8x96xf32> to vector<8x32xf32>
    %503 = arith.mulf %502, %499 : vector<8x32xf32>
    %504 = arith.addf %501, %503 : vector<8x32xf32>
    %505 = vector.extract_strided_slice %497 {offsets = [0, 64], sizes = [8, 32], strides = [1, 1]} : vector<8x96xf32> to vector<8x32xf32>
    %506 = math.tanh %504 : vector<8x32xf32>
    %507 = arith.mulf %505, %506 : vector<8x32xf32>
    %508 = vector.broadcast %c7_i32 : i32 to vector<8x32xi32>
    %509 = arith.cmpi slt, %508, %2 : vector<8x32xi32>
    %510 = arith.select %509, %504, %443 : vector<8x32xi1>, vector<8x32xf32>
    %511 = vector.extract_strided_slice %484 {offsets = [0, 0], sizes = [8, 32], strides = [1, 1]} : vector<8x64xf32> to vector<8x32xf32>
    %512 = arith.select %509, %507, %511 : vector<8x32xi1>, vector<8x32xf32>
    %cst_116 = arith.constant 0.000000e+00 : f32
    %513 = vector.broadcast %cst_116 : f32 to vector<8x32xf32>
    %514 = arith.select %509, %507, %513 : vector<8x32xi1>, vector<8x32xf32>
    %515 = arith.index_cast %c7_i32 : i32 to index
    %c0_117 = arith.constant 0 : index
    %c0_118 = arith.constant 0 : index
    %516 = vector.load %arg15[%515, %c0_117, %c0_118] : memref<12x8x64xf32, #tpu.memory_space<vmem>>, vector<1x8x32xf32>
    %517 = vector.shape_cast %516 : vector<1x8x32xf32> to vector<8x32xf32>
    %518 = vector.shape_cast %514 : vector<8x32xf32> to vector<1x8x32xf32>
    tpu.vector_store %arg15[%515, %c0_117, %c0_118], %518 {strides = array<i32>} : memref<12x8x64xf32, #tpu.memory_space<vmem>>, vector<1x8x32xf32>,
    %519 = arith.index_cast %485 : i32 to index
    %c0_119 = arith.constant 0 : index
    %c128_120 = arith.constant 128 : index
    %520 = vector.load %arg14[%519, %c0_119, %c128_120] : memref<12x8x256xf32, #tpu.memory_space<vmem>>, vector<1x8x128xf32>
    %521 = vector.shape_cast %520 : vector<1x8x128xf32> to vector<8x128xf32>
    %522 = vector.extract_strided_slice %486 {offsets = [0, 128], sizes = [8, 128], strides = [1, 1]} : vector<8x256xf32> to vector<8x128xf32>
    %523 = arith.addf %521, %522 : vector<8x128xf32>
    %524 = vector.extract_strided_slice %523 {offsets = [0, 0], sizes = [8, 96], strides = [1, 1]} : vector<8x128xf32> to vector<8x96xf32>
    %525 = arith.negf %524 : vector<8x96xf32>
    %526 = math.exp %525 : vector<8x96xf32>
    %cst_121 = arith.constant 1.000000e+00 : f32
    %527 = vector.broadcast %cst_121 : f32 to vector<8x96xf32>
    %528 = arith.addf %527, %526 : vector<8x96xf32>
    %529 = arith.divf %527, %528 : vector<8x96xf32>
    %530 = vector.extract_strided_slice %523 {offsets = [0, 96], sizes = [8, 32], strides = [1, 1]} : vector<8x128xf32> to vector<8x32xf32>
    %531 = math.tanh %530 : vector<8x32xf32>
    %532 = vector.extract_strided_slice %529 {offsets = [0, 32], sizes = [8, 32], strides = [1, 1]} : vector<8x96xf32> to vector<8x32xf32>
    %533 = arith.mulf %532, %475 : vector<8x32xf32>
    %534 = vector.extract_strided_slice %529 {offsets = [0, 0], sizes = [8, 32], strides = [1, 1]} : vector<8x96xf32> to vector<8x32xf32>
    %535 = arith.mulf %534, %531 : vector<8x32xf32>
    %536 = arith.addf %533, %535 : vector<8x32xf32>
    %537 = vector.extract_strided_slice %529 {offsets = [0, 64], sizes = [8, 32], strides = [1, 1]} : vector<8x96xf32> to vector<8x32xf32>
    %538 = math.tanh %536 : vector<8x32xf32>
    %539 = arith.mulf %537, %538 : vector<8x32xf32>
    %540 = vector.broadcast %485 : i32 to vector<8x32xi32>
    %541 = arith.cmpi slt, %540, %2 : vector<8x32xi32>
    %542 = arith.select %541, %536, %475 : vector<8x32xi1>, vector<8x32xf32>
    %543 = vector.extract_strided_slice %484 {offsets = [0, 32], sizes = [8, 32], strides = [1, 1]} : vector<8x64xf32> to vector<8x32xf32>
    %544 = arith.select %541, %539, %543 : vector<8x32xi1>, vector<8x32xf32>
    %cst_122 = arith.constant 0.000000e+00 : f32
    %545 = vector.broadcast %cst_122 : f32 to vector<8x32xf32>
    %546 = arith.select %541, %539, %545 : vector<8x32xi1>, vector<8x32xf32>
    %547 = arith.index_cast %485 : i32 to index
    %c0_123 = arith.constant 0 : index
    %c32_124 = arith.constant 32 : index
    %548 = vector.load %arg15[%547, %c0_123, %c32_124] : memref<12x8x64xf32, #tpu.memory_space<vmem>>, vector<1x8x32xf32>
    %549 = vector.shape_cast %548 : vector<1x8x32xf32> to vector<8x32xf32>
    %550 = vector.shape_cast %546 : vector<8x32xf32> to vector<1x8x32xf32>
    tpu.vector_store %arg15[%547, %c0_123, %c32_124], %550 {strides = array<i32>} : memref<12x8x64xf32, #tpu.memory_space<vmem>>, vector<1x8x32xf32>,
    %551 = tpu.concatenate %512, %544 in 1 : vector<8x32xf32>, vector<8x32xf32> -> vector<8x64xf32>
    %c8_i32 = arith.constant 8 : i32
    %c11_i32_125 = arith.constant 11 : i32
    %552 = arith.subi %c11_i32_125, %c8_i32 : i32
    %cst_126 = arith.constant dense<0.000000e+00> : vector<8x256xf32>
    %553 = tpu.matmul %551, %12, %cst_126 {dimension_numbers = #tpu.dot_dimension_numbers<[1], [0], [0], [1], [0, 0, 1, 1], [], []>} : vector<8x64xf32>, vector<64x256xf32>, vector<8x256xf32> -> vector<8x256xf32>
    %554 = arith.index_cast %c8_i32 : i32 to index
    %c0_127 = arith.constant 0 : index
    %c0_128 = arith.constant 0 : index
    %555 = vector.load %arg14[%554, %c0_127, %c0_128] : memref<12x8x256xf32, #tpu.memory_space<vmem>>, vector<1x8x128xf32>
    %556 = vector.shape_cast %555 : vector<1x8x128xf32> to vector<8x128xf32>
    %557 = vector.extract_strided_slice %553 {offsets = [0, 0], sizes = [8, 128], strides = [1, 1]} : vector<8x256xf32> to vector<8x128xf32>
    %558 = arith.addf %556, %557 : vector<8x128xf32>
    %559 = vector.extract_strided_slice %558 {offsets = [0, 0], sizes = [8, 96], strides = [1, 1]} : vector<8x128xf32> to vector<8x96xf32>
    %560 = arith.negf %559 : vector<8x96xf32>
    %561 = math.exp %560 : vector<8x96xf32>
    %cst_129 = arith.constant 1.000000e+00 : f32
    %562 = vector.broadcast %cst_129 : f32 to vector<8x96xf32>
    %563 = arith.addf %562, %561 : vector<8x96xf32>
    %564 = arith.divf %562, %563 : vector<8x96xf32>
    %565 = vector.extract_strided_slice %558 {offsets = [0, 96], sizes = [8, 32], strides = [1, 1]} : vector<8x128xf32> to vector<8x32xf32>
    %566 = math.tanh %565 : vector<8x32xf32>
    %567 = vector.extract_strided_slice %564 {offsets = [0, 32], sizes = [8, 32], strides = [1, 1]} : vector<8x96xf32> to vector<8x32xf32>
    %568 = arith.mulf %567, %510 : vector<8x32xf32>
    %569 = vector.extract_strided_slice %564 {offsets = [0, 0], sizes = [8, 32], strides = [1, 1]} : vector<8x96xf32> to vector<8x32xf32>
    %570 = arith.mulf %569, %566 : vector<8x32xf32>
    %571 = arith.addf %568, %570 : vector<8x32xf32>
    %572 = vector.extract_strided_slice %564 {offsets = [0, 64], sizes = [8, 32], strides = [1, 1]} : vector<8x96xf32> to vector<8x32xf32>
    %573 = math.tanh %571 : vector<8x32xf32>
    %574 = arith.mulf %572, %573 : vector<8x32xf32>
    %575 = vector.broadcast %c8_i32 : i32 to vector<8x32xi32>
    %576 = arith.cmpi slt, %575, %2 : vector<8x32xi32>
    %577 = arith.select %576, %571, %510 : vector<8x32xi1>, vector<8x32xf32>
    %578 = vector.extract_strided_slice %551 {offsets = [0, 0], sizes = [8, 32], strides = [1, 1]} : vector<8x64xf32> to vector<8x32xf32>
    %579 = arith.select %576, %574, %578 : vector<8x32xi1>, vector<8x32xf32>
    %cst_130 = arith.constant 0.000000e+00 : f32
    %580 = vector.broadcast %cst_130 : f32 to vector<8x32xf32>
    %581 = arith.select %576, %574, %580 : vector<8x32xi1>, vector<8x32xf32>
    %582 = arith.index_cast %c8_i32 : i32 to index
    %c0_131 = arith.constant 0 : index
    %c0_132 = arith.constant 0 : index
    %583 = vector.load %arg15[%582, %c0_131, %c0_132] : memref<12x8x64xf32, #tpu.memory_space<vmem>>, vector<1x8x32xf32>
    %584 = vector.shape_cast %583 : vector<1x8x32xf32> to vector<8x32xf32>
    %585 = vector.shape_cast %581 : vector<8x32xf32> to vector<1x8x32xf32>
    tpu.vector_store %arg15[%582, %c0_131, %c0_132], %585 {strides = array<i32>} : memref<12x8x64xf32, #tpu.memory_space<vmem>>, vector<1x8x32xf32>,
    %586 = arith.index_cast %552 : i32 to index
    %c0_133 = arith.constant 0 : index
    %c128_134 = arith.constant 128 : index
    %587 = vector.load %arg14[%586, %c0_133, %c128_134] : memref<12x8x256xf32, #tpu.memory_space<vmem>>, vector<1x8x128xf32>
    %588 = vector.shape_cast %587 : vector<1x8x128xf32> to vector<8x128xf32>
    %589 = vector.extract_strided_slice %553 {offsets = [0, 128], sizes = [8, 128], strides = [1, 1]} : vector<8x256xf32> to vector<8x128xf32>
    %590 = arith.addf %588, %589 : vector<8x128xf32>
    %591 = vector.extract_strided_slice %590 {offsets = [0, 0], sizes = [8, 96], strides = [1, 1]} : vector<8x128xf32> to vector<8x96xf32>
    %592 = arith.negf %591 : vector<8x96xf32>
    %593 = math.exp %592 : vector<8x96xf32>
    %cst_135 = arith.constant 1.000000e+00 : f32
    %594 = vector.broadcast %cst_135 : f32 to vector<8x96xf32>
    %595 = arith.addf %594, %593 : vector<8x96xf32>
    %596 = arith.divf %594, %595 : vector<8x96xf32>
    %597 = vector.extract_strided_slice %590 {offsets = [0, 96], sizes = [8, 32], strides = [1, 1]} : vector<8x128xf32> to vector<8x32xf32>
    %598 = math.tanh %597 : vector<8x32xf32>
    %599 = vector.extract_strided_slice %596 {offsets = [0, 32], sizes = [8, 32], strides = [1, 1]} : vector<8x96xf32> to vector<8x32xf32>
    %600 = arith.mulf %599, %542 : vector<8x32xf32>
    %601 = vector.extract_strided_slice %596 {offsets = [0, 0], sizes = [8, 32], strides = [1, 1]} : vector<8x96xf32> to vector<8x32xf32>
    %602 = arith.mulf %601, %598 : vector<8x32xf32>
    %603 = arith.addf %600, %602 : vector<8x32xf32>
    %604 = vector.extract_strided_slice %596 {offsets = [0, 64], sizes = [8, 32], strides = [1, 1]} : vector<8x96xf32> to vector<8x32xf32>
    %605 = math.tanh %603 : vector<8x32xf32>
    %606 = arith.mulf %604, %605 : vector<8x32xf32>
    %607 = vector.broadcast %552 : i32 to vector<8x32xi32>
    %608 = arith.cmpi slt, %607, %2 : vector<8x32xi32>
    %609 = arith.select %608, %603, %542 : vector<8x32xi1>, vector<8x32xf32>
    %610 = vector.extract_strided_slice %551 {offsets = [0, 32], sizes = [8, 32], strides = [1, 1]} : vector<8x64xf32> to vector<8x32xf32>
    %611 = arith.select %608, %606, %610 : vector<8x32xi1>, vector<8x32xf32>
    %cst_136 = arith.constant 0.000000e+00 : f32
    %612 = vector.broadcast %cst_136 : f32 to vector<8x32xf32>
    %613 = arith.select %608, %606, %612 : vector<8x32xi1>, vector<8x32xf32>
    %614 = arith.index_cast %552 : i32 to index
    %c0_137 = arith.constant 0 : index
    %c32_138 = arith.constant 32 : index
    %615 = vector.load %arg15[%614, %c0_137, %c32_138] : memref<12x8x64xf32, #tpu.memory_space<vmem>>, vector<1x8x32xf32>
    %616 = vector.shape_cast %615 : vector<1x8x32xf32> to vector<8x32xf32>
    %617 = vector.shape_cast %613 : vector<8x32xf32> to vector<1x8x32xf32>
    tpu.vector_store %arg15[%614, %c0_137, %c32_138], %617 {strides = array<i32>} : memref<12x8x64xf32, #tpu.memory_space<vmem>>, vector<1x8x32xf32>,
    %618 = tpu.concatenate %579, %611 in 1 : vector<8x32xf32>, vector<8x32xf32> -> vector<8x64xf32>
    %c9_i32 = arith.constant 9 : i32
    %c11_i32_139 = arith.constant 11 : i32
    %619 = arith.subi %c11_i32_139, %c9_i32 : i32
    %cst_140 = arith.constant dense<0.000000e+00> : vector<8x256xf32>
    %620 = tpu.matmul %618, %12, %cst_140 {dimension_numbers = #tpu.dot_dimension_numbers<[1], [0], [0], [1], [0, 0, 1, 1], [], []>} : vector<8x64xf32>, vector<64x256xf32>, vector<8x256xf32> -> vector<8x256xf32>
    %621 = arith.index_cast %c9_i32 : i32 to index
    %c0_141 = arith.constant 0 : index
    %c0_142 = arith.constant 0 : index
    %622 = vector.load %arg14[%621, %c0_141, %c0_142] : memref<12x8x256xf32, #tpu.memory_space<vmem>>, vector<1x8x128xf32>
    %623 = vector.shape_cast %622 : vector<1x8x128xf32> to vector<8x128xf32>
    %624 = vector.extract_strided_slice %620 {offsets = [0, 0], sizes = [8, 128], strides = [1, 1]} : vector<8x256xf32> to vector<8x128xf32>
    %625 = arith.addf %623, %624 : vector<8x128xf32>
    %626 = vector.extract_strided_slice %625 {offsets = [0, 0], sizes = [8, 96], strides = [1, 1]} : vector<8x128xf32> to vector<8x96xf32>
    %627 = arith.negf %626 : vector<8x96xf32>
    %628 = math.exp %627 : vector<8x96xf32>
    %cst_143 = arith.constant 1.000000e+00 : f32
    %629 = vector.broadcast %cst_143 : f32 to vector<8x96xf32>
    %630 = arith.addf %629, %628 : vector<8x96xf32>
    %631 = arith.divf %629, %630 : vector<8x96xf32>
    %632 = vector.extract_strided_slice %625 {offsets = [0, 96], sizes = [8, 32], strides = [1, 1]} : vector<8x128xf32> to vector<8x32xf32>
    %633 = math.tanh %632 : vector<8x32xf32>
    %634 = vector.extract_strided_slice %631 {offsets = [0, 32], sizes = [8, 32], strides = [1, 1]} : vector<8x96xf32> to vector<8x32xf32>
    %635 = arith.mulf %634, %577 : vector<8x32xf32>
    %636 = vector.extract_strided_slice %631 {offsets = [0, 0], sizes = [8, 32], strides = [1, 1]} : vector<8x96xf32> to vector<8x32xf32>
    %637 = arith.mulf %636, %633 : vector<8x32xf32>
    %638 = arith.addf %635, %637 : vector<8x32xf32>
    %639 = vector.extract_strided_slice %631 {offsets = [0, 64], sizes = [8, 32], strides = [1, 1]} : vector<8x96xf32> to vector<8x32xf32>
    %640 = math.tanh %638 : vector<8x32xf32>
    %641 = arith.mulf %639, %640 : vector<8x32xf32>
    %642 = vector.broadcast %c9_i32 : i32 to vector<8x32xi32>
    %643 = arith.cmpi slt, %642, %2 : vector<8x32xi32>
    %644 = arith.select %643, %638, %577 : vector<8x32xi1>, vector<8x32xf32>
    %645 = vector.extract_strided_slice %618 {offsets = [0, 0], sizes = [8, 32], strides = [1, 1]} : vector<8x64xf32> to vector<8x32xf32>
    %646 = arith.select %643, %641, %645 : vector<8x32xi1>, vector<8x32xf32>
    %cst_144 = arith.constant 0.000000e+00 : f32
    %647 = vector.broadcast %cst_144 : f32 to vector<8x32xf32>
    %648 = arith.select %643, %641, %647 : vector<8x32xi1>, vector<8x32xf32>
    %649 = arith.index_cast %c9_i32 : i32 to index
    %c0_145 = arith.constant 0 : index
    %c0_146 = arith.constant 0 : index
    %650 = vector.load %arg15[%649, %c0_145, %c0_146] : memref<12x8x64xf32, #tpu.memory_space<vmem>>, vector<1x8x32xf32>
    %651 = vector.shape_cast %650 : vector<1x8x32xf32> to vector<8x32xf32>
    %652 = vector.shape_cast %648 : vector<8x32xf32> to vector<1x8x32xf32>
    tpu.vector_store %arg15[%649, %c0_145, %c0_146], %652 {strides = array<i32>} : memref<12x8x64xf32, #tpu.memory_space<vmem>>, vector<1x8x32xf32>,
    %653 = arith.index_cast %619 : i32 to index
    %c0_147 = arith.constant 0 : index
    %c128_148 = arith.constant 128 : index
    %654 = vector.load %arg14[%653, %c0_147, %c128_148] : memref<12x8x256xf32, #tpu.memory_space<vmem>>, vector<1x8x128xf32>
    %655 = vector.shape_cast %654 : vector<1x8x128xf32> to vector<8x128xf32>
    %656 = vector.extract_strided_slice %620 {offsets = [0, 128], sizes = [8, 128], strides = [1, 1]} : vector<8x256xf32> to vector<8x128xf32>
    %657 = arith.addf %655, %656 : vector<8x128xf32>
    %658 = vector.extract_strided_slice %657 {offsets = [0, 0], sizes = [8, 96], strides = [1, 1]} : vector<8x128xf32> to vector<8x96xf32>
    %659 = arith.negf %658 : vector<8x96xf32>
    %660 = math.exp %659 : vector<8x96xf32>
    %cst_149 = arith.constant 1.000000e+00 : f32
    %661 = vector.broadcast %cst_149 : f32 to vector<8x96xf32>
    %662 = arith.addf %661, %660 : vector<8x96xf32>
    %663 = arith.divf %661, %662 : vector<8x96xf32>
    %664 = vector.extract_strided_slice %657 {offsets = [0, 96], sizes = [8, 32], strides = [1, 1]} : vector<8x128xf32> to vector<8x32xf32>
    %665 = math.tanh %664 : vector<8x32xf32>
    %666 = vector.extract_strided_slice %663 {offsets = [0, 32], sizes = [8, 32], strides = [1, 1]} : vector<8x96xf32> to vector<8x32xf32>
    %667 = arith.mulf %666, %609 : vector<8x32xf32>
    %668 = vector.extract_strided_slice %663 {offsets = [0, 0], sizes = [8, 32], strides = [1, 1]} : vector<8x96xf32> to vector<8x32xf32>
    %669 = arith.mulf %668, %665 : vector<8x32xf32>
    %670 = arith.addf %667, %669 : vector<8x32xf32>
    %671 = vector.extract_strided_slice %663 {offsets = [0, 64], sizes = [8, 32], strides = [1, 1]} : vector<8x96xf32> to vector<8x32xf32>
    %672 = math.tanh %670 : vector<8x32xf32>
    %673 = arith.mulf %671, %672 : vector<8x32xf32>
    %674 = vector.broadcast %619 : i32 to vector<8x32xi32>
    %675 = arith.cmpi slt, %674, %2 : vector<8x32xi32>
    %676 = arith.select %675, %670, %609 : vector<8x32xi1>, vector<8x32xf32>
    %677 = vector.extract_strided_slice %618 {offsets = [0, 32], sizes = [8, 32], strides = [1, 1]} : vector<8x64xf32> to vector<8x32xf32>
    %678 = arith.select %675, %673, %677 : vector<8x32xi1>, vector<8x32xf32>
    %cst_150 = arith.constant 0.000000e+00 : f32
    %679 = vector.broadcast %cst_150 : f32 to vector<8x32xf32>
    %680 = arith.select %675, %673, %679 : vector<8x32xi1>, vector<8x32xf32>
    %681 = arith.index_cast %619 : i32 to index
    %c0_151 = arith.constant 0 : index
    %c32_152 = arith.constant 32 : index
    %682 = vector.load %arg15[%681, %c0_151, %c32_152] : memref<12x8x64xf32, #tpu.memory_space<vmem>>, vector<1x8x32xf32>
    %683 = vector.shape_cast %682 : vector<1x8x32xf32> to vector<8x32xf32>
    %684 = vector.shape_cast %680 : vector<8x32xf32> to vector<1x8x32xf32>
    tpu.vector_store %arg15[%681, %c0_151, %c32_152], %684 {strides = array<i32>} : memref<12x8x64xf32, #tpu.memory_space<vmem>>, vector<1x8x32xf32>,
    %685 = tpu.concatenate %646, %678 in 1 : vector<8x32xf32>, vector<8x32xf32> -> vector<8x64xf32>
    %c10_i32 = arith.constant 10 : i32
    %c11_i32_153 = arith.constant 11 : i32
    %686 = arith.subi %c11_i32_153, %c10_i32 : i32
    %cst_154 = arith.constant dense<0.000000e+00> : vector<8x256xf32>
    %687 = tpu.matmul %685, %12, %cst_154 {dimension_numbers = #tpu.dot_dimension_numbers<[1], [0], [0], [1], [0, 0, 1, 1], [], []>} : vector<8x64xf32>, vector<64x256xf32>, vector<8x256xf32> -> vector<8x256xf32>
    %688 = arith.index_cast %c10_i32 : i32 to index
    %c0_155 = arith.constant 0 : index
    %c0_156 = arith.constant 0 : index
    %689 = vector.load %arg14[%688, %c0_155, %c0_156] : memref<12x8x256xf32, #tpu.memory_space<vmem>>, vector<1x8x128xf32>
    %690 = vector.shape_cast %689 : vector<1x8x128xf32> to vector<8x128xf32>
    %691 = vector.extract_strided_slice %687 {offsets = [0, 0], sizes = [8, 128], strides = [1, 1]} : vector<8x256xf32> to vector<8x128xf32>
    %692 = arith.addf %690, %691 : vector<8x128xf32>
    %693 = vector.extract_strided_slice %692 {offsets = [0, 0], sizes = [8, 96], strides = [1, 1]} : vector<8x128xf32> to vector<8x96xf32>
    %694 = arith.negf %693 : vector<8x96xf32>
    %695 = math.exp %694 : vector<8x96xf32>
    %cst_157 = arith.constant 1.000000e+00 : f32
    %696 = vector.broadcast %cst_157 : f32 to vector<8x96xf32>
    %697 = arith.addf %696, %695 : vector<8x96xf32>
    %698 = arith.divf %696, %697 : vector<8x96xf32>
    %699 = vector.extract_strided_slice %692 {offsets = [0, 96], sizes = [8, 32], strides = [1, 1]} : vector<8x128xf32> to vector<8x32xf32>
    %700 = math.tanh %699 : vector<8x32xf32>
    %701 = vector.extract_strided_slice %698 {offsets = [0, 32], sizes = [8, 32], strides = [1, 1]} : vector<8x96xf32> to vector<8x32xf32>
    %702 = arith.mulf %701, %644 : vector<8x32xf32>
    %703 = vector.extract_strided_slice %698 {offsets = [0, 0], sizes = [8, 32], strides = [1, 1]} : vector<8x96xf32> to vector<8x32xf32>
    %704 = arith.mulf %703, %700 : vector<8x32xf32>
    %705 = arith.addf %702, %704 : vector<8x32xf32>
    %706 = vector.extract_strided_slice %698 {offsets = [0, 64], sizes = [8, 32], strides = [1, 1]} : vector<8x96xf32> to vector<8x32xf32>
    %707 = math.tanh %705 : vector<8x32xf32>
    %708 = arith.mulf %706, %707 : vector<8x32xf32>
    %709 = vector.broadcast %c10_i32 : i32 to vector<8x32xi32>
    %710 = arith.cmpi slt, %709, %2 : vector<8x32xi32>
    %711 = arith.select %710, %705, %644 : vector<8x32xi1>, vector<8x32xf32>
    %712 = vector.extract_strided_slice %685 {offsets = [0, 0], sizes = [8, 32], strides = [1, 1]} : vector<8x64xf32> to vector<8x32xf32>
    %713 = arith.select %710, %708, %712 : vector<8x32xi1>, vector<8x32xf32>
    %cst_158 = arith.constant 0.000000e+00 : f32
    %714 = vector.broadcast %cst_158 : f32 to vector<8x32xf32>
    %715 = arith.select %710, %708, %714 : vector<8x32xi1>, vector<8x32xf32>
    %716 = arith.index_cast %c10_i32 : i32 to index
    %c0_159 = arith.constant 0 : index
    %c0_160 = arith.constant 0 : index
    %717 = vector.load %arg15[%716, %c0_159, %c0_160] : memref<12x8x64xf32, #tpu.memory_space<vmem>>, vector<1x8x32xf32>
    %718 = vector.shape_cast %717 : vector<1x8x32xf32> to vector<8x32xf32>
    %719 = vector.shape_cast %715 : vector<8x32xf32> to vector<1x8x32xf32>
    tpu.vector_store %arg15[%716, %c0_159, %c0_160], %719 {strides = array<i32>} : memref<12x8x64xf32, #tpu.memory_space<vmem>>, vector<1x8x32xf32>,
    %720 = arith.index_cast %686 : i32 to index
    %c0_161 = arith.constant 0 : index
    %c128_162 = arith.constant 128 : index
    %721 = vector.load %arg14[%720, %c0_161, %c128_162] : memref<12x8x256xf32, #tpu.memory_space<vmem>>, vector<1x8x128xf32>
    %722 = vector.shape_cast %721 : vector<1x8x128xf32> to vector<8x128xf32>
    %723 = vector.extract_strided_slice %687 {offsets = [0, 128], sizes = [8, 128], strides = [1, 1]} : vector<8x256xf32> to vector<8x128xf32>
    %724 = arith.addf %722, %723 : vector<8x128xf32>
    %725 = vector.extract_strided_slice %724 {offsets = [0, 0], sizes = [8, 96], strides = [1, 1]} : vector<8x128xf32> to vector<8x96xf32>
    %726 = arith.negf %725 : vector<8x96xf32>
    %727 = math.exp %726 : vector<8x96xf32>
    %cst_163 = arith.constant 1.000000e+00 : f32
    %728 = vector.broadcast %cst_163 : f32 to vector<8x96xf32>
    %729 = arith.addf %728, %727 : vector<8x96xf32>
    %730 = arith.divf %728, %729 : vector<8x96xf32>
    %731 = vector.extract_strided_slice %724 {offsets = [0, 96], sizes = [8, 32], strides = [1, 1]} : vector<8x128xf32> to vector<8x32xf32>
    %732 = math.tanh %731 : vector<8x32xf32>
    %733 = vector.extract_strided_slice %730 {offsets = [0, 32], sizes = [8, 32], strides = [1, 1]} : vector<8x96xf32> to vector<8x32xf32>
    %734 = arith.mulf %733, %676 : vector<8x32xf32>
    %735 = vector.extract_strided_slice %730 {offsets = [0, 0], sizes = [8, 32], strides = [1, 1]} : vector<8x96xf32> to vector<8x32xf32>
    %736 = arith.mulf %735, %732 : vector<8x32xf32>
    %737 = arith.addf %734, %736 : vector<8x32xf32>
    %738 = vector.extract_strided_slice %730 {offsets = [0, 64], sizes = [8, 32], strides = [1, 1]} : vector<8x96xf32> to vector<8x32xf32>
    %739 = math.tanh %737 : vector<8x32xf32>
    %740 = arith.mulf %738, %739 : vector<8x32xf32>
    %741 = vector.broadcast %686 : i32 to vector<8x32xi32>
    %742 = arith.cmpi slt, %741, %2 : vector<8x32xi32>
    %743 = arith.select %742, %737, %676 : vector<8x32xi1>, vector<8x32xf32>
    %744 = vector.extract_strided_slice %685 {offsets = [0, 32], sizes = [8, 32], strides = [1, 1]} : vector<8x64xf32> to vector<8x32xf32>
    %745 = arith.select %742, %740, %744 : vector<8x32xi1>, vector<8x32xf32>
    %cst_164 = arith.constant 0.000000e+00 : f32
    %746 = vector.broadcast %cst_164 : f32 to vector<8x32xf32>
    %747 = arith.select %742, %740, %746 : vector<8x32xi1>, vector<8x32xf32>
    %748 = arith.index_cast %686 : i32 to index
    %c0_165 = arith.constant 0 : index
    %c32_166 = arith.constant 32 : index
    %749 = vector.load %arg15[%748, %c0_165, %c32_166] : memref<12x8x64xf32, #tpu.memory_space<vmem>>, vector<1x8x32xf32>
    %750 = vector.shape_cast %749 : vector<1x8x32xf32> to vector<8x32xf32>
    %751 = vector.shape_cast %747 : vector<8x32xf32> to vector<1x8x32xf32>
    tpu.vector_store %arg15[%748, %c0_165, %c32_166], %751 {strides = array<i32>} : memref<12x8x64xf32, #tpu.memory_space<vmem>>, vector<1x8x32xf32>,
    %752 = tpu.concatenate %713, %745 in 1 : vector<8x32xf32>, vector<8x32xf32> -> vector<8x64xf32>
    %c11_i32_167 = arith.constant 11 : i32
    %c11_i32_168 = arith.constant 11 : i32
    %753 = arith.subi %c11_i32_168, %c11_i32_167 : i32
    %cst_169 = arith.constant dense<0.000000e+00> : vector<8x256xf32>
    %754 = tpu.matmul %752, %12, %cst_169 {dimension_numbers = #tpu.dot_dimension_numbers<[1], [0], [0], [1], [0, 0, 1, 1], [], []>} : vector<8x64xf32>, vector<64x256xf32>, vector<8x256xf32> -> vector<8x256xf32>
    %755 = arith.index_cast %c11_i32_167 : i32 to index
    %c0_170 = arith.constant 0 : index
    %c0_171 = arith.constant 0 : index
    %756 = vector.load %arg14[%755, %c0_170, %c0_171] : memref<12x8x256xf32, #tpu.memory_space<vmem>>, vector<1x8x128xf32>
    %757 = vector.shape_cast %756 : vector<1x8x128xf32> to vector<8x128xf32>
    %758 = vector.extract_strided_slice %754 {offsets = [0, 0], sizes = [8, 128], strides = [1, 1]} : vector<8x256xf32> to vector<8x128xf32>
    %759 = arith.addf %757, %758 : vector<8x128xf32>
    %760 = vector.extract_strided_slice %759 {offsets = [0, 0], sizes = [8, 96], strides = [1, 1]} : vector<8x128xf32> to vector<8x96xf32>
    %761 = arith.negf %760 : vector<8x96xf32>
    %762 = math.exp %761 : vector<8x96xf32>
    %cst_172 = arith.constant 1.000000e+00 : f32
    %763 = vector.broadcast %cst_172 : f32 to vector<8x96xf32>
    %764 = arith.addf %763, %762 : vector<8x96xf32>
    %765 = arith.divf %763, %764 : vector<8x96xf32>
    %766 = vector.extract_strided_slice %759 {offsets = [0, 96], sizes = [8, 32], strides = [1, 1]} : vector<8x128xf32> to vector<8x32xf32>
    %767 = math.tanh %766 : vector<8x32xf32>
    %768 = vector.extract_strided_slice %765 {offsets = [0, 32], sizes = [8, 32], strides = [1, 1]} : vector<8x96xf32> to vector<8x32xf32>
    %769 = arith.mulf %768, %711 : vector<8x32xf32>
    %770 = vector.extract_strided_slice %765 {offsets = [0, 0], sizes = [8, 32], strides = [1, 1]} : vector<8x96xf32> to vector<8x32xf32>
    %771 = arith.mulf %770, %767 : vector<8x32xf32>
    %772 = arith.addf %769, %771 : vector<8x32xf32>
    %773 = vector.extract_strided_slice %765 {offsets = [0, 64], sizes = [8, 32], strides = [1, 1]} : vector<8x96xf32> to vector<8x32xf32>
    %774 = math.tanh %772 : vector<8x32xf32>
    %775 = arith.mulf %773, %774 : vector<8x32xf32>
    %776 = vector.broadcast %c11_i32_167 : i32 to vector<8x32xi32>
    %777 = arith.cmpi slt, %776, %2 : vector<8x32xi32>
    %778 = arith.select %777, %772, %711 : vector<8x32xi1>, vector<8x32xf32>
    %779 = vector.extract_strided_slice %752 {offsets = [0, 0], sizes = [8, 32], strides = [1, 1]} : vector<8x64xf32> to vector<8x32xf32>
    %780 = arith.select %777, %775, %779 : vector<8x32xi1>, vector<8x32xf32>
    %cst_173 = arith.constant 0.000000e+00 : f32
    %781 = vector.broadcast %cst_173 : f32 to vector<8x32xf32>
    %782 = arith.select %777, %775, %781 : vector<8x32xi1>, vector<8x32xf32>
    %783 = arith.index_cast %c11_i32_167 : i32 to index
    %c0_174 = arith.constant 0 : index
    %c0_175 = arith.constant 0 : index
    %784 = vector.load %arg15[%783, %c0_174, %c0_175] : memref<12x8x64xf32, #tpu.memory_space<vmem>>, vector<1x8x32xf32>
    %785 = vector.shape_cast %784 : vector<1x8x32xf32> to vector<8x32xf32>
    %786 = vector.shape_cast %782 : vector<8x32xf32> to vector<1x8x32xf32>
    tpu.vector_store %arg15[%783, %c0_174, %c0_175], %786 {strides = array<i32>} : memref<12x8x64xf32, #tpu.memory_space<vmem>>, vector<1x8x32xf32>,
    %787 = arith.index_cast %753 : i32 to index
    %c0_176 = arith.constant 0 : index
    %c128_177 = arith.constant 128 : index
    %788 = vector.load %arg14[%787, %c0_176, %c128_177] : memref<12x8x256xf32, #tpu.memory_space<vmem>>, vector<1x8x128xf32>
    %789 = vector.shape_cast %788 : vector<1x8x128xf32> to vector<8x128xf32>
    %790 = vector.extract_strided_slice %754 {offsets = [0, 128], sizes = [8, 128], strides = [1, 1]} : vector<8x256xf32> to vector<8x128xf32>
    %791 = arith.addf %789, %790 : vector<8x128xf32>
    %792 = vector.extract_strided_slice %791 {offsets = [0, 0], sizes = [8, 96], strides = [1, 1]} : vector<8x128xf32> to vector<8x96xf32>
    %793 = arith.negf %792 : vector<8x96xf32>
    %794 = math.exp %793 : vector<8x96xf32>
    %cst_178 = arith.constant 1.000000e+00 : f32
    %795 = vector.broadcast %cst_178 : f32 to vector<8x96xf32>
    %796 = arith.addf %795, %794 : vector<8x96xf32>
    %797 = arith.divf %795, %796 : vector<8x96xf32>
    %798 = vector.extract_strided_slice %791 {offsets = [0, 96], sizes = [8, 32], strides = [1, 1]} : vector<8x128xf32> to vector<8x32xf32>
    %799 = math.tanh %798 : vector<8x32xf32>
    %800 = vector.extract_strided_slice %797 {offsets = [0, 32], sizes = [8, 32], strides = [1, 1]} : vector<8x96xf32> to vector<8x32xf32>
    %801 = arith.mulf %800, %743 : vector<8x32xf32>
    %802 = vector.extract_strided_slice %797 {offsets = [0, 0], sizes = [8, 32], strides = [1, 1]} : vector<8x96xf32> to vector<8x32xf32>
    %803 = arith.mulf %802, %799 : vector<8x32xf32>
    %804 = arith.addf %801, %803 : vector<8x32xf32>
    %805 = vector.extract_strided_slice %797 {offsets = [0, 64], sizes = [8, 32], strides = [1, 1]} : vector<8x96xf32> to vector<8x32xf32>
    %806 = math.tanh %804 : vector<8x32xf32>
    %807 = arith.mulf %805, %806 : vector<8x32xf32>
    %808 = vector.broadcast %753 : i32 to vector<8x32xi32>
    %809 = arith.cmpi slt, %808, %2 : vector<8x32xi32>
    %810 = arith.select %809, %804, %743 : vector<8x32xi1>, vector<8x32xf32>
    %811 = vector.extract_strided_slice %752 {offsets = [0, 32], sizes = [8, 32], strides = [1, 1]} : vector<8x64xf32> to vector<8x32xf32>
    %812 = arith.select %809, %807, %811 : vector<8x32xi1>, vector<8x32xf32>
    %cst_179 = arith.constant 0.000000e+00 : f32
    %813 = vector.broadcast %cst_179 : f32 to vector<8x32xf32>
    %814 = arith.select %809, %807, %813 : vector<8x32xi1>, vector<8x32xf32>
    %815 = arith.index_cast %753 : i32 to index
    %c0_180 = arith.constant 0 : index
    %c32_181 = arith.constant 32 : index
    %816 = vector.load %arg15[%815, %c0_180, %c32_181] : memref<12x8x64xf32, #tpu.memory_space<vmem>>, vector<1x8x32xf32>
    %817 = vector.shape_cast %816 : vector<1x8x32xf32> to vector<8x32xf32>
    %818 = vector.shape_cast %814 : vector<8x32xf32> to vector<1x8x32xf32>
    tpu.vector_store %arg15[%815, %c0_180, %c32_181], %818 {strides = array<i32>} : memref<12x8x64xf32, #tpu.memory_space<vmem>>, vector<1x8x32xf32>,
    %819 = tpu.concatenate %780, %812 in 1 : vector<8x32xf32>, vector<8x32xf32> -> vector<8x64xf32>
    %c12_i32 = arith.constant 12 : i32
    %c0_182 = arith.constant 0 : index
    %c0_183 = arith.constant 0 : index
    %c0_184 = arith.constant 0 : index
    %820 = vector.load %arg15[%c0_182, %c0_183, %c0_184] : memref<12x8x64xf32, #tpu.memory_space<vmem>>, vector<12x8x64xf32>
    %821 = vector.shape_cast %820 : vector<12x8x64xf32> to vector<96x64xf32>
    %c0_185 = arith.constant 0 : index
    %c0_186 = arith.constant 0 : index
    %822 = vector.load %arg5[%c0_185, %c0_186] : memref<64x256xf32, #tpu.memory_space<vmem>>, vector<64x256xf32>
    %cst_187 = arith.constant dense<0.000000e+00> : vector<96x256xf32>
    %823 = tpu.matmul %821, %822, %cst_187 {dimension_numbers = #tpu.dot_dimension_numbers<[1], [0], [0], [1], [0, 0, 1, 1], [], []>} : vector<96x64xf32>, vector<64x256xf32>, vector<96x256xf32> -> vector<96x256xf32>
    %c0_188 = arith.constant 0 : index
    %c0_189 = arith.constant 0 : index
    %824 = vector.load %arg7[%c0_188, %c0_189] : memref<1x256xf32, #tpu.memory_space<vmem>>, vector<1x256xf32>
    %825 = vector.broadcast %824 : vector<1x256xf32> to vector<96x256xf32>
    %826 = arith.addf %823, %825 : vector<96x256xf32>
    %827 = vector.shape_cast %826 : vector<96x256xf32> to vector<12x8x256xf32>
    %c0_190 = arith.constant 0 : index
    %c0_191 = arith.constant 0 : index
    %c0_192 = arith.constant 0 : index
    %828 = vector.load %arg14[%c0_190, %c0_191, %c0_192] : memref<12x8x256xf32, #tpu.memory_space<vmem>>, vector<12x8x256xf32>
    tpu.vector_store %arg14[%c0_190, %c0_191, %c0_192], %827 {strides = array<i32>} : memref<12x8x256xf32, #tpu.memory_space<vmem>>, vector<12x8x256xf32>,
    %c0_193 = arith.constant 0 : index
    %c0_194 = arith.constant 0 : index
    %829 = vector.load %arg6[%c0_193, %c0_194] : memref<64x256xf32, #tpu.memory_space<vmem>>, vector<64x256xf32>
    %cst_195 = arith.constant 0.000000e+00 : f32
    %830 = vector.broadcast %cst_195 : f32 to vector<8x64xf32>
    %cst_196 = arith.constant 0.000000e+00 : f32
    %831 = vector.broadcast %cst_196 : f32 to vector<8x32xf32>
    %cst_197 = arith.constant 0.000000e+00 : f32
    %832 = vector.broadcast %cst_197 : f32 to vector<8x32xf32>
    %c0_i32_198 = arith.constant 0 : i32
    %c11_i32_199 = arith.constant 11 : i32
    %833 = arith.subi %c11_i32_199, %c0_i32_198 : i32
    %cst_200 = arith.constant dense<0.000000e+00> : vector<8x256xf32>
    %834 = tpu.matmul %830, %829, %cst_200 {dimension_numbers = #tpu.dot_dimension_numbers<[1], [0], [0], [1], [0, 0, 1, 1], [], []>} : vector<8x64xf32>, vector<64x256xf32>, vector<8x256xf32> -> vector<8x256xf32>
    %835 = arith.index_cast %c0_i32_198 : i32 to index
    %c0_201 = arith.constant 0 : index
    %c0_202 = arith.constant 0 : index
    %836 = vector.load %arg14[%835, %c0_201, %c0_202] : memref<12x8x256xf32, #tpu.memory_space<vmem>>, vector<1x8x128xf32>
    %837 = vector.shape_cast %836 : vector<1x8x128xf32> to vector<8x128xf32>
    %838 = vector.extract_strided_slice %834 {offsets = [0, 0], sizes = [8, 128], strides = [1, 1]} : vector<8x256xf32> to vector<8x128xf32>
    %839 = arith.addf %837, %838 : vector<8x128xf32>
    %840 = vector.extract_strided_slice %839 {offsets = [0, 0], sizes = [8, 96], strides = [1, 1]} : vector<8x128xf32> to vector<8x96xf32>
    %841 = arith.negf %840 : vector<8x96xf32>
    %842 = math.exp %841 : vector<8x96xf32>
    %cst_203 = arith.constant 1.000000e+00 : f32
    %843 = vector.broadcast %cst_203 : f32 to vector<8x96xf32>
    %844 = arith.addf %843, %842 : vector<8x96xf32>
    %845 = arith.divf %843, %844 : vector<8x96xf32>
    %846 = vector.extract_strided_slice %839 {offsets = [0, 96], sizes = [8, 32], strides = [1, 1]} : vector<8x128xf32> to vector<8x32xf32>
    %847 = math.tanh %846 : vector<8x32xf32>
    %848 = vector.extract_strided_slice %845 {offsets = [0, 32], sizes = [8, 32], strides = [1, 1]} : vector<8x96xf32> to vector<8x32xf32>
    %849 = arith.mulf %848, %831 : vector<8x32xf32>
    %850 = vector.extract_strided_slice %845 {offsets = [0, 0], sizes = [8, 32], strides = [1, 1]} : vector<8x96xf32> to vector<8x32xf32>
    %851 = arith.mulf %850, %847 : vector<8x32xf32>
    %852 = arith.addf %849, %851 : vector<8x32xf32>
    %853 = vector.extract_strided_slice %845 {offsets = [0, 64], sizes = [8, 32], strides = [1, 1]} : vector<8x96xf32> to vector<8x32xf32>
    %854 = math.tanh %852 : vector<8x32xf32>
    %855 = arith.mulf %853, %854 : vector<8x32xf32>
    %856 = vector.broadcast %c0_i32_198 : i32 to vector<8x32xi32>
    %857 = arith.cmpi slt, %856, %2 : vector<8x32xi32>
    %858 = arith.select %857, %852, %831 : vector<8x32xi1>, vector<8x32xf32>
    %859 = vector.extract_strided_slice %830 {offsets = [0, 0], sizes = [8, 32], strides = [1, 1]} : vector<8x64xf32> to vector<8x32xf32>
    %860 = arith.select %857, %855, %859 : vector<8x32xi1>, vector<8x32xf32>
    %cst_204 = arith.constant 0.000000e+00 : f32
    %861 = vector.broadcast %cst_204 : f32 to vector<8x32xf32>
    %862 = arith.select %857, %855, %861 : vector<8x32xi1>, vector<8x32xf32>
    %863 = arith.index_cast %c0_i32_198 : i32 to index
    %c0_205 = arith.constant 0 : index
    %c0_206 = arith.constant 0 : index
    %864 = vector.load %arg15[%863, %c0_205, %c0_206] : memref<12x8x64xf32, #tpu.memory_space<vmem>>, vector<1x8x32xf32>
    %865 = vector.shape_cast %864 : vector<1x8x32xf32> to vector<8x32xf32>
    %866 = vector.shape_cast %862 : vector<8x32xf32> to vector<1x8x32xf32>
    tpu.vector_store %arg15[%863, %c0_205, %c0_206], %866 {strides = array<i32>} : memref<12x8x64xf32, #tpu.memory_space<vmem>>, vector<1x8x32xf32>,
    %867 = arith.index_cast %833 : i32 to index
    %c0_207 = arith.constant 0 : index
    %c128_208 = arith.constant 128 : index
    %868 = vector.load %arg14[%867, %c0_207, %c128_208] : memref<12x8x256xf32, #tpu.memory_space<vmem>>, vector<1x8x128xf32>
    %869 = vector.shape_cast %868 : vector<1x8x128xf32> to vector<8x128xf32>
    %870 = vector.extract_strided_slice %834 {offsets = [0, 128], sizes = [8, 128], strides = [1, 1]} : vector<8x256xf32> to vector<8x128xf32>
    %871 = arith.addf %869, %870 : vector<8x128xf32>
    %872 = vector.extract_strided_slice %871 {offsets = [0, 0], sizes = [8, 96], strides = [1, 1]} : vector<8x128xf32> to vector<8x96xf32>
    %873 = arith.negf %872 : vector<8x96xf32>
    %874 = math.exp %873 : vector<8x96xf32>
    %cst_209 = arith.constant 1.000000e+00 : f32
    %875 = vector.broadcast %cst_209 : f32 to vector<8x96xf32>
    %876 = arith.addf %875, %874 : vector<8x96xf32>
    %877 = arith.divf %875, %876 : vector<8x96xf32>
    %878 = vector.extract_strided_slice %871 {offsets = [0, 96], sizes = [8, 32], strides = [1, 1]} : vector<8x128xf32> to vector<8x32xf32>
    %879 = math.tanh %878 : vector<8x32xf32>
    %880 = vector.extract_strided_slice %877 {offsets = [0, 32], sizes = [8, 32], strides = [1, 1]} : vector<8x96xf32> to vector<8x32xf32>
    %881 = arith.mulf %880, %832 : vector<8x32xf32>
    %882 = vector.extract_strided_slice %877 {offsets = [0, 0], sizes = [8, 32], strides = [1, 1]} : vector<8x96xf32> to vector<8x32xf32>
    %883 = arith.mulf %882, %879 : vector<8x32xf32>
    %884 = arith.addf %881, %883 : vector<8x32xf32>
    %885 = vector.extract_strided_slice %877 {offsets = [0, 64], sizes = [8, 32], strides = [1, 1]} : vector<8x96xf32> to vector<8x32xf32>
    %886 = math.tanh %884 : vector<8x32xf32>
    %887 = arith.mulf %885, %886 : vector<8x32xf32>
    %888 = vector.broadcast %833 : i32 to vector<8x32xi32>
    %889 = arith.cmpi slt, %888, %2 : vector<8x32xi32>
    %890 = arith.select %889, %884, %832 : vector<8x32xi1>, vector<8x32xf32>
    %891 = vector.extract_strided_slice %830 {offsets = [0, 32], sizes = [8, 32], strides = [1, 1]} : vector<8x64xf32> to vector<8x32xf32>
    %892 = arith.select %889, %887, %891 : vector<8x32xi1>, vector<8x32xf32>
    %cst_210 = arith.constant 0.000000e+00 : f32
    %893 = vector.broadcast %cst_210 : f32 to vector<8x32xf32>
    %894 = arith.select %889, %887, %893 : vector<8x32xi1>, vector<8x32xf32>
    %895 = arith.index_cast %833 : i32 to index
    %c0_211 = arith.constant 0 : index
    %c32_212 = arith.constant 32 : index
    %896 = vector.load %arg15[%895, %c0_211, %c32_212] : memref<12x8x64xf32, #tpu.memory_space<vmem>>, vector<1x8x32xf32>
    %897 = vector.shape_cast %896 : vector<1x8x32xf32> to vector<8x32xf32>
    %898 = vector.shape_cast %894 : vector<8x32xf32> to vector<1x8x32xf32>
    tpu.vector_store %arg15[%895, %c0_211, %c32_212], %898 {strides = array<i32>} : memref<12x8x64xf32, #tpu.memory_space<vmem>>, vector<1x8x32xf32>,
    %899 = tpu.concatenate %860, %892 in 1 : vector<8x32xf32>, vector<8x32xf32> -> vector<8x64xf32>
    %c1_i32_213 = arith.constant 1 : i32
    %c11_i32_214 = arith.constant 11 : i32
    %900 = arith.subi %c11_i32_214, %c1_i32_213 : i32
    %cst_215 = arith.constant dense<0.000000e+00> : vector<8x256xf32>
    %901 = tpu.matmul %899, %829, %cst_215 {dimension_numbers = #tpu.dot_dimension_numbers<[1], [0], [0], [1], [0, 0, 1, 1], [], []>} : vector<8x64xf32>, vector<64x256xf32>, vector<8x256xf32> -> vector<8x256xf32>
    %902 = arith.index_cast %c1_i32_213 : i32 to index
    %c0_216 = arith.constant 0 : index
    %c0_217 = arith.constant 0 : index
    %903 = vector.load %arg14[%902, %c0_216, %c0_217] : memref<12x8x256xf32, #tpu.memory_space<vmem>>, vector<1x8x128xf32>
    %904 = vector.shape_cast %903 : vector<1x8x128xf32> to vector<8x128xf32>
    %905 = vector.extract_strided_slice %901 {offsets = [0, 0], sizes = [8, 128], strides = [1, 1]} : vector<8x256xf32> to vector<8x128xf32>
    %906 = arith.addf %904, %905 : vector<8x128xf32>
    %907 = vector.extract_strided_slice %906 {offsets = [0, 0], sizes = [8, 96], strides = [1, 1]} : vector<8x128xf32> to vector<8x96xf32>
    %908 = arith.negf %907 : vector<8x96xf32>
    %909 = math.exp %908 : vector<8x96xf32>
    %cst_218 = arith.constant 1.000000e+00 : f32
    %910 = vector.broadcast %cst_218 : f32 to vector<8x96xf32>
    %911 = arith.addf %910, %909 : vector<8x96xf32>
    %912 = arith.divf %910, %911 : vector<8x96xf32>
    %913 = vector.extract_strided_slice %906 {offsets = [0, 96], sizes = [8, 32], strides = [1, 1]} : vector<8x128xf32> to vector<8x32xf32>
    %914 = math.tanh %913 : vector<8x32xf32>
    %915 = vector.extract_strided_slice %912 {offsets = [0, 32], sizes = [8, 32], strides = [1, 1]} : vector<8x96xf32> to vector<8x32xf32>
    %916 = arith.mulf %915, %858 : vector<8x32xf32>
    %917 = vector.extract_strided_slice %912 {offsets = [0, 0], sizes = [8, 32], strides = [1, 1]} : vector<8x96xf32> to vector<8x32xf32>
    %918 = arith.mulf %917, %914 : vector<8x32xf32>
    %919 = arith.addf %916, %918 : vector<8x32xf32>
    %920 = vector.extract_strided_slice %912 {offsets = [0, 64], sizes = [8, 32], strides = [1, 1]} : vector<8x96xf32> to vector<8x32xf32>
    %921 = math.tanh %919 : vector<8x32xf32>
    %922 = arith.mulf %920, %921 : vector<8x32xf32>
    %923 = vector.broadcast %c1_i32_213 : i32 to vector<8x32xi32>
    %924 = arith.cmpi slt, %923, %2 : vector<8x32xi32>
    %925 = arith.select %924, %919, %858 : vector<8x32xi1>, vector<8x32xf32>
    %926 = vector.extract_strided_slice %899 {offsets = [0, 0], sizes = [8, 32], strides = [1, 1]} : vector<8x64xf32> to vector<8x32xf32>
    %927 = arith.select %924, %922, %926 : vector<8x32xi1>, vector<8x32xf32>
    %cst_219 = arith.constant 0.000000e+00 : f32
    %928 = vector.broadcast %cst_219 : f32 to vector<8x32xf32>
    %929 = arith.select %924, %922, %928 : vector<8x32xi1>, vector<8x32xf32>
    %930 = arith.index_cast %c1_i32_213 : i32 to index
    %c0_220 = arith.constant 0 : index
    %c0_221 = arith.constant 0 : index
    %931 = vector.load %arg15[%930, %c0_220, %c0_221] : memref<12x8x64xf32, #tpu.memory_space<vmem>>, vector<1x8x32xf32>
    %932 = vector.shape_cast %931 : vector<1x8x32xf32> to vector<8x32xf32>
    %933 = vector.shape_cast %929 : vector<8x32xf32> to vector<1x8x32xf32>
    tpu.vector_store %arg15[%930, %c0_220, %c0_221], %933 {strides = array<i32>} : memref<12x8x64xf32, #tpu.memory_space<vmem>>, vector<1x8x32xf32>,
    %934 = arith.index_cast %900 : i32 to index
    %c0_222 = arith.constant 0 : index
    %c128_223 = arith.constant 128 : index
    %935 = vector.load %arg14[%934, %c0_222, %c128_223] : memref<12x8x256xf32, #tpu.memory_space<vmem>>, vector<1x8x128xf32>
    %936 = vector.shape_cast %935 : vector<1x8x128xf32> to vector<8x128xf32>
    %937 = vector.extract_strided_slice %901 {offsets = [0, 128], sizes = [8, 128], strides = [1, 1]} : vector<8x256xf32> to vector<8x128xf32>
    %938 = arith.addf %936, %937 : vector<8x128xf32>
    %939 = vector.extract_strided_slice %938 {offsets = [0, 0], sizes = [8, 96], strides = [1, 1]} : vector<8x128xf32> to vector<8x96xf32>
    %940 = arith.negf %939 : vector<8x96xf32>
    %941 = math.exp %940 : vector<8x96xf32>
    %cst_224 = arith.constant 1.000000e+00 : f32
    %942 = vector.broadcast %cst_224 : f32 to vector<8x96xf32>
    %943 = arith.addf %942, %941 : vector<8x96xf32>
    %944 = arith.divf %942, %943 : vector<8x96xf32>
    %945 = vector.extract_strided_slice %938 {offsets = [0, 96], sizes = [8, 32], strides = [1, 1]} : vector<8x128xf32> to vector<8x32xf32>
    %946 = math.tanh %945 : vector<8x32xf32>
    %947 = vector.extract_strided_slice %944 {offsets = [0, 32], sizes = [8, 32], strides = [1, 1]} : vector<8x96xf32> to vector<8x32xf32>
    %948 = arith.mulf %947, %890 : vector<8x32xf32>
    %949 = vector.extract_strided_slice %944 {offsets = [0, 0], sizes = [8, 32], strides = [1, 1]} : vector<8x96xf32> to vector<8x32xf32>
    %950 = arith.mulf %949, %946 : vector<8x32xf32>
    %951 = arith.addf %948, %950 : vector<8x32xf32>
    %952 = vector.extract_strided_slice %944 {offsets = [0, 64], sizes = [8, 32], strides = [1, 1]} : vector<8x96xf32> to vector<8x32xf32>
    %953 = math.tanh %951 : vector<8x32xf32>
    %954 = arith.mulf %952, %953 : vector<8x32xf32>
    %955 = vector.broadcast %900 : i32 to vector<8x32xi32>
    %956 = arith.cmpi slt, %955, %2 : vector<8x32xi32>
    %957 = arith.select %956, %951, %890 : vector<8x32xi1>, vector<8x32xf32>
    %958 = vector.extract_strided_slice %899 {offsets = [0, 32], sizes = [8, 32], strides = [1, 1]} : vector<8x64xf32> to vector<8x32xf32>
    %959 = arith.select %956, %954, %958 : vector<8x32xi1>, vector<8x32xf32>
    %cst_225 = arith.constant 0.000000e+00 : f32
    %960 = vector.broadcast %cst_225 : f32 to vector<8x32xf32>
    %961 = arith.select %956, %954, %960 : vector<8x32xi1>, vector<8x32xf32>
    %962 = arith.index_cast %900 : i32 to index
    %c0_226 = arith.constant 0 : index
    %c32_227 = arith.constant 32 : index
    %963 = vector.load %arg15[%962, %c0_226, %c32_227] : memref<12x8x64xf32, #tpu.memory_space<vmem>>, vector<1x8x32xf32>
    %964 = vector.shape_cast %963 : vector<1x8x32xf32> to vector<8x32xf32>
    %965 = vector.shape_cast %961 : vector<8x32xf32> to vector<1x8x32xf32>
    tpu.vector_store %arg15[%962, %c0_226, %c32_227], %965 {strides = array<i32>} : memref<12x8x64xf32, #tpu.memory_space<vmem>>, vector<1x8x32xf32>,
    %966 = tpu.concatenate %927, %959 in 1 : vector<8x32xf32>, vector<8x32xf32> -> vector<8x64xf32>
    %c2_i32_228 = arith.constant 2 : i32
    %c11_i32_229 = arith.constant 11 : i32
    %967 = arith.subi %c11_i32_229, %c2_i32_228 : i32
    %cst_230 = arith.constant dense<0.000000e+00> : vector<8x256xf32>
    %968 = tpu.matmul %966, %829, %cst_230 {dimension_numbers = #tpu.dot_dimension_numbers<[1], [0], [0], [1], [0, 0, 1, 1], [], []>} : vector<8x64xf32>, vector<64x256xf32>, vector<8x256xf32> -> vector<8x256xf32>
    %969 = arith.index_cast %c2_i32_228 : i32 to index
    %c0_231 = arith.constant 0 : index
    %c0_232 = arith.constant 0 : index
    %970 = vector.load %arg14[%969, %c0_231, %c0_232] : memref<12x8x256xf32, #tpu.memory_space<vmem>>, vector<1x8x128xf32>
    %971 = vector.shape_cast %970 : vector<1x8x128xf32> to vector<8x128xf32>
    %972 = vector.extract_strided_slice %968 {offsets = [0, 0], sizes = [8, 128], strides = [1, 1]} : vector<8x256xf32> to vector<8x128xf32>
    %973 = arith.addf %971, %972 : vector<8x128xf32>
    %974 = vector.extract_strided_slice %973 {offsets = [0, 0], sizes = [8, 96], strides = [1, 1]} : vector<8x128xf32> to vector<8x96xf32>
    %975 = arith.negf %974 : vector<8x96xf32>
    %976 = math.exp %975 : vector<8x96xf32>
    %cst_233 = arith.constant 1.000000e+00 : f32
    %977 = vector.broadcast %cst_233 : f32 to vector<8x96xf32>
    %978 = arith.addf %977, %976 : vector<8x96xf32>
    %979 = arith.divf %977, %978 : vector<8x96xf32>
    %980 = vector.extract_strided_slice %973 {offsets = [0, 96], sizes = [8, 32], strides = [1, 1]} : vector<8x128xf32> to vector<8x32xf32>
    %981 = math.tanh %980 : vector<8x32xf32>
    %982 = vector.extract_strided_slice %979 {offsets = [0, 32], sizes = [8, 32], strides = [1, 1]} : vector<8x96xf32> to vector<8x32xf32>
    %983 = arith.mulf %982, %925 : vector<8x32xf32>
    %984 = vector.extract_strided_slice %979 {offsets = [0, 0], sizes = [8, 32], strides = [1, 1]} : vector<8x96xf32> to vector<8x32xf32>
    %985 = arith.mulf %984, %981 : vector<8x32xf32>
    %986 = arith.addf %983, %985 : vector<8x32xf32>
    %987 = vector.extract_strided_slice %979 {offsets = [0, 64], sizes = [8, 32], strides = [1, 1]} : vector<8x96xf32> to vector<8x32xf32>
    %988 = math.tanh %986 : vector<8x32xf32>
    %989 = arith.mulf %987, %988 : vector<8x32xf32>
    %990 = vector.broadcast %c2_i32_228 : i32 to vector<8x32xi32>
    %991 = arith.cmpi slt, %990, %2 : vector<8x32xi32>
    %992 = arith.select %991, %986, %925 : vector<8x32xi1>, vector<8x32xf32>
    %993 = vector.extract_strided_slice %966 {offsets = [0, 0], sizes = [8, 32], strides = [1, 1]} : vector<8x64xf32> to vector<8x32xf32>
    %994 = arith.select %991, %989, %993 : vector<8x32xi1>, vector<8x32xf32>
    %cst_234 = arith.constant 0.000000e+00 : f32
    %995 = vector.broadcast %cst_234 : f32 to vector<8x32xf32>
    %996 = arith.select %991, %989, %995 : vector<8x32xi1>, vector<8x32xf32>
    %997 = arith.index_cast %c2_i32_228 : i32 to index
    %c0_235 = arith.constant 0 : index
    %c0_236 = arith.constant 0 : index
    %998 = vector.load %arg15[%997, %c0_235, %c0_236] : memref<12x8x64xf32, #tpu.memory_space<vmem>>, vector<1x8x32xf32>
    %999 = vector.shape_cast %998 : vector<1x8x32xf32> to vector<8x32xf32>
    %1000 = vector.shape_cast %996 : vector<8x32xf32> to vector<1x8x32xf32>
    tpu.vector_store %arg15[%997, %c0_235, %c0_236], %1000 {strides = array<i32>} : memref<12x8x64xf32, #tpu.memory_space<vmem>>, vector<1x8x32xf32>,
    %1001 = arith.index_cast %967 : i32 to index
    %c0_237 = arith.constant 0 : index
    %c128_238 = arith.constant 128 : index
    %1002 = vector.load %arg14[%1001, %c0_237, %c128_238] : memref<12x8x256xf32, #tpu.memory_space<vmem>>, vector<1x8x128xf32>
    %1003 = vector.shape_cast %1002 : vector<1x8x128xf32> to vector<8x128xf32>
    %1004 = vector.extract_strided_slice %968 {offsets = [0, 128], sizes = [8, 128], strides = [1, 1]} : vector<8x256xf32> to vector<8x128xf32>
    %1005 = arith.addf %1003, %1004 : vector<8x128xf32>
    %1006 = vector.extract_strided_slice %1005 {offsets = [0, 0], sizes = [8, 96], strides = [1, 1]} : vector<8x128xf32> to vector<8x96xf32>
    %1007 = arith.negf %1006 : vector<8x96xf32>
    %1008 = math.exp %1007 : vector<8x96xf32>
    %cst_239 = arith.constant 1.000000e+00 : f32
    %1009 = vector.broadcast %cst_239 : f32 to vector<8x96xf32>
    %1010 = arith.addf %1009, %1008 : vector<8x96xf32>
    %1011 = arith.divf %1009, %1010 : vector<8x96xf32>
    %1012 = vector.extract_strided_slice %1005 {offsets = [0, 96], sizes = [8, 32], strides = [1, 1]} : vector<8x128xf32> to vector<8x32xf32>
    %1013 = math.tanh %1012 : vector<8x32xf32>
    %1014 = vector.extract_strided_slice %1011 {offsets = [0, 32], sizes = [8, 32], strides = [1, 1]} : vector<8x96xf32> to vector<8x32xf32>
    %1015 = arith.mulf %1014, %957 : vector<8x32xf32>
    %1016 = vector.extract_strided_slice %1011 {offsets = [0, 0], sizes = [8, 32], strides = [1, 1]} : vector<8x96xf32> to vector<8x32xf32>
    %1017 = arith.mulf %1016, %1013 : vector<8x32xf32>
    %1018 = arith.addf %1015, %1017 : vector<8x32xf32>
    %1019 = vector.extract_strided_slice %1011 {offsets = [0, 64], sizes = [8, 32], strides = [1, 1]} : vector<8x96xf32> to vector<8x32xf32>
    %1020 = math.tanh %1018 : vector<8x32xf32>
    %1021 = arith.mulf %1019, %1020 : vector<8x32xf32>
    %1022 = vector.broadcast %967 : i32 to vector<8x32xi32>
    %1023 = arith.cmpi slt, %1022, %2 : vector<8x32xi32>
    %1024 = arith.select %1023, %1018, %957 : vector<8x32xi1>, vector<8x32xf32>
    %1025 = vector.extract_strided_slice %966 {offsets = [0, 32], sizes = [8, 32], strides = [1, 1]} : vector<8x64xf32> to vector<8x32xf32>
    %1026 = arith.select %1023, %1021, %1025 : vector<8x32xi1>, vector<8x32xf32>
    %cst_240 = arith.constant 0.000000e+00 : f32
    %1027 = vector.broadcast %cst_240 : f32 to vector<8x32xf32>
    %1028 = arith.select %1023, %1021, %1027 : vector<8x32xi1>, vector<8x32xf32>
    %1029 = arith.index_cast %967 : i32 to index
    %c0_241 = arith.constant 0 : index
    %c32_242 = arith.constant 32 : index
    %1030 = vector.load %arg15[%1029, %c0_241, %c32_242] : memref<12x8x64xf32, #tpu.memory_space<vmem>>, vector<1x8x32xf32>
    %1031 = vector.shape_cast %1030 : vector<1x8x32xf32> to vector<8x32xf32>
    %1032 = vector.shape_cast %1028 : vector<8x32xf32> to vector<1x8x32xf32>
    tpu.vector_store %arg15[%1029, %c0_241, %c32_242], %1032 {strides = array<i32>} : memref<12x8x64xf32, #tpu.memory_space<vmem>>, vector<1x8x32xf32>,
    %1033 = tpu.concatenate %994, %1026 in 1 : vector<8x32xf32>, vector<8x32xf32> -> vector<8x64xf32>
    %c3_i32_243 = arith.constant 3 : i32
    %c11_i32_244 = arith.constant 11 : i32
    %1034 = arith.subi %c11_i32_244, %c3_i32_243 : i32
    %cst_245 = arith.constant dense<0.000000e+00> : vector<8x256xf32>
    %1035 = tpu.matmul %1033, %829, %cst_245 {dimension_numbers = #tpu.dot_dimension_numbers<[1], [0], [0], [1], [0, 0, 1, 1], [], []>} : vector<8x64xf32>, vector<64x256xf32>, vector<8x256xf32> -> vector<8x256xf32>
    %1036 = arith.index_cast %c3_i32_243 : i32 to index
    %c0_246 = arith.constant 0 : index
    %c0_247 = arith.constant 0 : index
    %1037 = vector.load %arg14[%1036, %c0_246, %c0_247] : memref<12x8x256xf32, #tpu.memory_space<vmem>>, vector<1x8x128xf32>
    %1038 = vector.shape_cast %1037 : vector<1x8x128xf32> to vector<8x128xf32>
    %1039 = vector.extract_strided_slice %1035 {offsets = [0, 0], sizes = [8, 128], strides = [1, 1]} : vector<8x256xf32> to vector<8x128xf32>
    %1040 = arith.addf %1038, %1039 : vector<8x128xf32>
    %1041 = vector.extract_strided_slice %1040 {offsets = [0, 0], sizes = [8, 96], strides = [1, 1]} : vector<8x128xf32> to vector<8x96xf32>
    %1042 = arith.negf %1041 : vector<8x96xf32>
    %1043 = math.exp %1042 : vector<8x96xf32>
    %cst_248 = arith.constant 1.000000e+00 : f32
    %1044 = vector.broadcast %cst_248 : f32 to vector<8x96xf32>
    %1045 = arith.addf %1044, %1043 : vector<8x96xf32>
    %1046 = arith.divf %1044, %1045 : vector<8x96xf32>
    %1047 = vector.extract_strided_slice %1040 {offsets = [0, 96], sizes = [8, 32], strides = [1, 1]} : vector<8x128xf32> to vector<8x32xf32>
    %1048 = math.tanh %1047 : vector<8x32xf32>
    %1049 = vector.extract_strided_slice %1046 {offsets = [0, 32], sizes = [8, 32], strides = [1, 1]} : vector<8x96xf32> to vector<8x32xf32>
    %1050 = arith.mulf %1049, %992 : vector<8x32xf32>
    %1051 = vector.extract_strided_slice %1046 {offsets = [0, 0], sizes = [8, 32], strides = [1, 1]} : vector<8x96xf32> to vector<8x32xf32>
    %1052 = arith.mulf %1051, %1048 : vector<8x32xf32>
    %1053 = arith.addf %1050, %1052 : vector<8x32xf32>
    %1054 = vector.extract_strided_slice %1046 {offsets = [0, 64], sizes = [8, 32], strides = [1, 1]} : vector<8x96xf32> to vector<8x32xf32>
    %1055 = math.tanh %1053 : vector<8x32xf32>
    %1056 = arith.mulf %1054, %1055 : vector<8x32xf32>
    %1057 = vector.broadcast %c3_i32_243 : i32 to vector<8x32xi32>
    %1058 = arith.cmpi slt, %1057, %2 : vector<8x32xi32>
    %1059 = arith.select %1058, %1053, %992 : vector<8x32xi1>, vector<8x32xf32>
    %1060 = vector.extract_strided_slice %1033 {offsets = [0, 0], sizes = [8, 32], strides = [1, 1]} : vector<8x64xf32> to vector<8x32xf32>
    %1061 = arith.select %1058, %1056, %1060 : vector<8x32xi1>, vector<8x32xf32>
    %cst_249 = arith.constant 0.000000e+00 : f32
    %1062 = vector.broadcast %cst_249 : f32 to vector<8x32xf32>
    %1063 = arith.select %1058, %1056, %1062 : vector<8x32xi1>, vector<8x32xf32>
    %1064 = arith.index_cast %c3_i32_243 : i32 to index
    %c0_250 = arith.constant 0 : index
    %c0_251 = arith.constant 0 : index
    %1065 = vector.load %arg15[%1064, %c0_250, %c0_251] : memref<12x8x64xf32, #tpu.memory_space<vmem>>, vector<1x8x32xf32>
    %1066 = vector.shape_cast %1065 : vector<1x8x32xf32> to vector<8x32xf32>
    %1067 = vector.shape_cast %1063 : vector<8x32xf32> to vector<1x8x32xf32>
    tpu.vector_store %arg15[%1064, %c0_250, %c0_251], %1067 {strides = array<i32>} : memref<12x8x64xf32, #tpu.memory_space<vmem>>, vector<1x8x32xf32>,
    %1068 = arith.index_cast %1034 : i32 to index
    %c0_252 = arith.constant 0 : index
    %c128_253 = arith.constant 128 : index
    %1069 = vector.load %arg14[%1068, %c0_252, %c128_253] : memref<12x8x256xf32, #tpu.memory_space<vmem>>, vector<1x8x128xf32>
    %1070 = vector.shape_cast %1069 : vector<1x8x128xf32> to vector<8x128xf32>
    %1071 = vector.extract_strided_slice %1035 {offsets = [0, 128], sizes = [8, 128], strides = [1, 1]} : vector<8x256xf32> to vector<8x128xf32>
    %1072 = arith.addf %1070, %1071 : vector<8x128xf32>
    %1073 = vector.extract_strided_slice %1072 {offsets = [0, 0], sizes = [8, 96], strides = [1, 1]} : vector<8x128xf32> to vector<8x96xf32>
    %1074 = arith.negf %1073 : vector<8x96xf32>
    %1075 = math.exp %1074 : vector<8x96xf32>
    %cst_254 = arith.constant 1.000000e+00 : f32
    %1076 = vector.broadcast %cst_254 : f32 to vector<8x96xf32>
    %1077 = arith.addf %1076, %1075 : vector<8x96xf32>
    %1078 = arith.divf %1076, %1077 : vector<8x96xf32>
    %1079 = vector.extract_strided_slice %1072 {offsets = [0, 96], sizes = [8, 32], strides = [1, 1]} : vector<8x128xf32> to vector<8x32xf32>
    %1080 = math.tanh %1079 : vector<8x32xf32>
    %1081 = vector.extract_strided_slice %1078 {offsets = [0, 32], sizes = [8, 32], strides = [1, 1]} : vector<8x96xf32> to vector<8x32xf32>
    %1082 = arith.mulf %1081, %1024 : vector<8x32xf32>
    %1083 = vector.extract_strided_slice %1078 {offsets = [0, 0], sizes = [8, 32], strides = [1, 1]} : vector<8x96xf32> to vector<8x32xf32>
    %1084 = arith.mulf %1083, %1080 : vector<8x32xf32>
    %1085 = arith.addf %1082, %1084 : vector<8x32xf32>
    %1086 = vector.extract_strided_slice %1078 {offsets = [0, 64], sizes = [8, 32], strides = [1, 1]} : vector<8x96xf32> to vector<8x32xf32>
    %1087 = math.tanh %1085 : vector<8x32xf32>
    %1088 = arith.mulf %1086, %1087 : vector<8x32xf32>
    %1089 = vector.broadcast %1034 : i32 to vector<8x32xi32>
    %1090 = arith.cmpi slt, %1089, %2 : vector<8x32xi32>
    %1091 = arith.select %1090, %1085, %1024 : vector<8x32xi1>, vector<8x32xf32>
    %1092 = vector.extract_strided_slice %1033 {offsets = [0, 32], sizes = [8, 32], strides = [1, 1]} : vector<8x64xf32> to vector<8x32xf32>
    %1093 = arith.select %1090, %1088, %1092 : vector<8x32xi1>, vector<8x32xf32>
    %cst_255 = arith.constant 0.000000e+00 : f32
    %1094 = vector.broadcast %cst_255 : f32 to vector<8x32xf32>
    %1095 = arith.select %1090, %1088, %1094 : vector<8x32xi1>, vector<8x32xf32>
    %1096 = arith.index_cast %1034 : i32 to index
    %c0_256 = arith.constant 0 : index
    %c32_257 = arith.constant 32 : index
    %1097 = vector.load %arg15[%1096, %c0_256, %c32_257] : memref<12x8x64xf32, #tpu.memory_space<vmem>>, vector<1x8x32xf32>
    %1098 = vector.shape_cast %1097 : vector<1x8x32xf32> to vector<8x32xf32>
    %1099 = vector.shape_cast %1095 : vector<8x32xf32> to vector<1x8x32xf32>
    tpu.vector_store %arg15[%1096, %c0_256, %c32_257], %1099 {strides = array<i32>} : memref<12x8x64xf32, #tpu.memory_space<vmem>>, vector<1x8x32xf32>,
    %1100 = tpu.concatenate %1061, %1093 in 1 : vector<8x32xf32>, vector<8x32xf32> -> vector<8x64xf32>
    %c4_i32_258 = arith.constant 4 : i32
    %c11_i32_259 = arith.constant 11 : i32
    %1101 = arith.subi %c11_i32_259, %c4_i32_258 : i32
    %cst_260 = arith.constant dense<0.000000e+00> : vector<8x256xf32>
    %1102 = tpu.matmul %1100, %829, %cst_260 {dimension_numbers = #tpu.dot_dimension_numbers<[1], [0], [0], [1], [0, 0, 1, 1], [], []>} : vector<8x64xf32>, vector<64x256xf32>, vector<8x256xf32> -> vector<8x256xf32>
    %1103 = arith.index_cast %c4_i32_258 : i32 to index
    %c0_261 = arith.constant 0 : index
    %c0_262 = arith.constant 0 : index
    %1104 = vector.load %arg14[%1103, %c0_261, %c0_262] : memref<12x8x256xf32, #tpu.memory_space<vmem>>, vector<1x8x128xf32>
    %1105 = vector.shape_cast %1104 : vector<1x8x128xf32> to vector<8x128xf32>
    %1106 = vector.extract_strided_slice %1102 {offsets = [0, 0], sizes = [8, 128], strides = [1, 1]} : vector<8x256xf32> to vector<8x128xf32>
    %1107 = arith.addf %1105, %1106 : vector<8x128xf32>
    %1108 = vector.extract_strided_slice %1107 {offsets = [0, 0], sizes = [8, 96], strides = [1, 1]} : vector<8x128xf32> to vector<8x96xf32>
    %1109 = arith.negf %1108 : vector<8x96xf32>
    %1110 = math.exp %1109 : vector<8x96xf32>
    %cst_263 = arith.constant 1.000000e+00 : f32
    %1111 = vector.broadcast %cst_263 : f32 to vector<8x96xf32>
    %1112 = arith.addf %1111, %1110 : vector<8x96xf32>
    %1113 = arith.divf %1111, %1112 : vector<8x96xf32>
    %1114 = vector.extract_strided_slice %1107 {offsets = [0, 96], sizes = [8, 32], strides = [1, 1]} : vector<8x128xf32> to vector<8x32xf32>
    %1115 = math.tanh %1114 : vector<8x32xf32>
    %1116 = vector.extract_strided_slice %1113 {offsets = [0, 32], sizes = [8, 32], strides = [1, 1]} : vector<8x96xf32> to vector<8x32xf32>
    %1117 = arith.mulf %1116, %1059 : vector<8x32xf32>
    %1118 = vector.extract_strided_slice %1113 {offsets = [0, 0], sizes = [8, 32], strides = [1, 1]} : vector<8x96xf32> to vector<8x32xf32>
    %1119 = arith.mulf %1118, %1115 : vector<8x32xf32>
    %1120 = arith.addf %1117, %1119 : vector<8x32xf32>
    %1121 = vector.extract_strided_slice %1113 {offsets = [0, 64], sizes = [8, 32], strides = [1, 1]} : vector<8x96xf32> to vector<8x32xf32>
    %1122 = math.tanh %1120 : vector<8x32xf32>
    %1123 = arith.mulf %1121, %1122 : vector<8x32xf32>
    %1124 = vector.broadcast %c4_i32_258 : i32 to vector<8x32xi32>
    %1125 = arith.cmpi slt, %1124, %2 : vector<8x32xi32>
    %1126 = arith.select %1125, %1120, %1059 : vector<8x32xi1>, vector<8x32xf32>
    %1127 = vector.extract_strided_slice %1100 {offsets = [0, 0], sizes = [8, 32], strides = [1, 1]} : vector<8x64xf32> to vector<8x32xf32>
    %1128 = arith.select %1125, %1123, %1127 : vector<8x32xi1>, vector<8x32xf32>
    %cst_264 = arith.constant 0.000000e+00 : f32
    %1129 = vector.broadcast %cst_264 : f32 to vector<8x32xf32>
    %1130 = arith.select %1125, %1123, %1129 : vector<8x32xi1>, vector<8x32xf32>
    %1131 = arith.index_cast %c4_i32_258 : i32 to index
    %c0_265 = arith.constant 0 : index
    %c0_266 = arith.constant 0 : index
    %1132 = vector.load %arg15[%1131, %c0_265, %c0_266] : memref<12x8x64xf32, #tpu.memory_space<vmem>>, vector<1x8x32xf32>
    %1133 = vector.shape_cast %1132 : vector<1x8x32xf32> to vector<8x32xf32>
    %1134 = vector.shape_cast %1130 : vector<8x32xf32> to vector<1x8x32xf32>
    tpu.vector_store %arg15[%1131, %c0_265, %c0_266], %1134 {strides = array<i32>} : memref<12x8x64xf32, #tpu.memory_space<vmem>>, vector<1x8x32xf32>,
    %1135 = arith.index_cast %1101 : i32 to index
    %c0_267 = arith.constant 0 : index
    %c128_268 = arith.constant 128 : index
    %1136 = vector.load %arg14[%1135, %c0_267, %c128_268] : memref<12x8x256xf32, #tpu.memory_space<vmem>>, vector<1x8x128xf32>
    %1137 = vector.shape_cast %1136 : vector<1x8x128xf32> to vector<8x128xf32>
    %1138 = vector.extract_strided_slice %1102 {offsets = [0, 128], sizes = [8, 128], strides = [1, 1]} : vector<8x256xf32> to vector<8x128xf32>
    %1139 = arith.addf %1137, %1138 : vector<8x128xf32>
    %1140 = vector.extract_strided_slice %1139 {offsets = [0, 0], sizes = [8, 96], strides = [1, 1]} : vector<8x128xf32> to vector<8x96xf32>
    %1141 = arith.negf %1140 : vector<8x96xf32>
    %1142 = math.exp %1141 : vector<8x96xf32>
    %cst_269 = arith.constant 1.000000e+00 : f32
    %1143 = vector.broadcast %cst_269 : f32 to vector<8x96xf32>
    %1144 = arith.addf %1143, %1142 : vector<8x96xf32>
    %1145 = arith.divf %1143, %1144 : vector<8x96xf32>
    %1146 = vector.extract_strided_slice %1139 {offsets = [0, 96], sizes = [8, 32], strides = [1, 1]} : vector<8x128xf32> to vector<8x32xf32>
    %1147 = math.tanh %1146 : vector<8x32xf32>
    %1148 = vector.extract_strided_slice %1145 {offsets = [0, 32], sizes = [8, 32], strides = [1, 1]} : vector<8x96xf32> to vector<8x32xf32>
    %1149 = arith.mulf %1148, %1091 : vector<8x32xf32>
    %1150 = vector.extract_strided_slice %1145 {offsets = [0, 0], sizes = [8, 32], strides = [1, 1]} : vector<8x96xf32> to vector<8x32xf32>
    %1151 = arith.mulf %1150, %1147 : vector<8x32xf32>
    %1152 = arith.addf %1149, %1151 : vector<8x32xf32>
    %1153 = vector.extract_strided_slice %1145 {offsets = [0, 64], sizes = [8, 32], strides = [1, 1]} : vector<8x96xf32> to vector<8x32xf32>
    %1154 = math.tanh %1152 : vector<8x32xf32>
    %1155 = arith.mulf %1153, %1154 : vector<8x32xf32>
    %1156 = vector.broadcast %1101 : i32 to vector<8x32xi32>
    %1157 = arith.cmpi slt, %1156, %2 : vector<8x32xi32>
    %1158 = arith.select %1157, %1152, %1091 : vector<8x32xi1>, vector<8x32xf32>
    %1159 = vector.extract_strided_slice %1100 {offsets = [0, 32], sizes = [8, 32], strides = [1, 1]} : vector<8x64xf32> to vector<8x32xf32>
    %1160 = arith.select %1157, %1155, %1159 : vector<8x32xi1>, vector<8x32xf32>
    %cst_270 = arith.constant 0.000000e+00 : f32
    %1161 = vector.broadcast %cst_270 : f32 to vector<8x32xf32>
    %1162 = arith.select %1157, %1155, %1161 : vector<8x32xi1>, vector<8x32xf32>
    %1163 = arith.index_cast %1101 : i32 to index
    %c0_271 = arith.constant 0 : index
    %c32_272 = arith.constant 32 : index
    %1164 = vector.load %arg15[%1163, %c0_271, %c32_272] : memref<12x8x64xf32, #tpu.memory_space<vmem>>, vector<1x8x32xf32>
    %1165 = vector.shape_cast %1164 : vector<1x8x32xf32> to vector<8x32xf32>
    %1166 = vector.shape_cast %1162 : vector<8x32xf32> to vector<1x8x32xf32>
    tpu.vector_store %arg15[%1163, %c0_271, %c32_272], %1166 {strides = array<i32>} : memref<12x8x64xf32, #tpu.memory_space<vmem>>, vector<1x8x32xf32>,
    %1167 = tpu.concatenate %1128, %1160 in 1 : vector<8x32xf32>, vector<8x32xf32> -> vector<8x64xf32>
    %c5_i32_273 = arith.constant 5 : i32
    %c11_i32_274 = arith.constant 11 : i32
    %1168 = arith.subi %c11_i32_274, %c5_i32_273 : i32
    %cst_275 = arith.constant dense<0.000000e+00> : vector<8x256xf32>
    %1169 = tpu.matmul %1167, %829, %cst_275 {dimension_numbers = #tpu.dot_dimension_numbers<[1], [0], [0], [1], [0, 0, 1, 1], [], []>} : vector<8x64xf32>, vector<64x256xf32>, vector<8x256xf32> -> vector<8x256xf32>
    %1170 = arith.index_cast %c5_i32_273 : i32 to index
    %c0_276 = arith.constant 0 : index
    %c0_277 = arith.constant 0 : index
    %1171 = vector.load %arg14[%1170, %c0_276, %c0_277] : memref<12x8x256xf32, #tpu.memory_space<vmem>>, vector<1x8x128xf32>
    %1172 = vector.shape_cast %1171 : vector<1x8x128xf32> to vector<8x128xf32>
    %1173 = vector.extract_strided_slice %1169 {offsets = [0, 0], sizes = [8, 128], strides = [1, 1]} : vector<8x256xf32> to vector<8x128xf32>
    %1174 = arith.addf %1172, %1173 : vector<8x128xf32>
    %1175 = vector.extract_strided_slice %1174 {offsets = [0, 0], sizes = [8, 96], strides = [1, 1]} : vector<8x128xf32> to vector<8x96xf32>
    %1176 = arith.negf %1175 : vector<8x96xf32>
    %1177 = math.exp %1176 : vector<8x96xf32>
    %cst_278 = arith.constant 1.000000e+00 : f32
    %1178 = vector.broadcast %cst_278 : f32 to vector<8x96xf32>
    %1179 = arith.addf %1178, %1177 : vector<8x96xf32>
    %1180 = arith.divf %1178, %1179 : vector<8x96xf32>
    %1181 = vector.extract_strided_slice %1174 {offsets = [0, 96], sizes = [8, 32], strides = [1, 1]} : vector<8x128xf32> to vector<8x32xf32>
    %1182 = math.tanh %1181 : vector<8x32xf32>
    %1183 = vector.extract_strided_slice %1180 {offsets = [0, 32], sizes = [8, 32], strides = [1, 1]} : vector<8x96xf32> to vector<8x32xf32>
    %1184 = arith.mulf %1183, %1126 : vector<8x32xf32>
    %1185 = vector.extract_strided_slice %1180 {offsets = [0, 0], sizes = [8, 32], strides = [1, 1]} : vector<8x96xf32> to vector<8x32xf32>
    %1186 = arith.mulf %1185, %1182 : vector<8x32xf32>
    %1187 = arith.addf %1184, %1186 : vector<8x32xf32>
    %1188 = vector.extract_strided_slice %1180 {offsets = [0, 64], sizes = [8, 32], strides = [1, 1]} : vector<8x96xf32> to vector<8x32xf32>
    %1189 = math.tanh %1187 : vector<8x32xf32>
    %1190 = arith.mulf %1188, %1189 : vector<8x32xf32>
    %1191 = vector.broadcast %c5_i32_273 : i32 to vector<8x32xi32>
    %1192 = arith.cmpi slt, %1191, %2 : vector<8x32xi32>
    %1193 = arith.select %1192, %1187, %1126 : vector<8x32xi1>, vector<8x32xf32>
    %1194 = vector.extract_strided_slice %1167 {offsets = [0, 0], sizes = [8, 32], strides = [1, 1]} : vector<8x64xf32> to vector<8x32xf32>
    %1195 = arith.select %1192, %1190, %1194 : vector<8x32xi1>, vector<8x32xf32>
    %cst_279 = arith.constant 0.000000e+00 : f32
    %1196 = vector.broadcast %cst_279 : f32 to vector<8x32xf32>
    %1197 = arith.select %1192, %1190, %1196 : vector<8x32xi1>, vector<8x32xf32>
    %1198 = arith.index_cast %c5_i32_273 : i32 to index
    %c0_280 = arith.constant 0 : index
    %c0_281 = arith.constant 0 : index
    %1199 = vector.load %arg15[%1198, %c0_280, %c0_281] : memref<12x8x64xf32, #tpu.memory_space<vmem>>, vector<1x8x32xf32>
    %1200 = vector.shape_cast %1199 : vector<1x8x32xf32> to vector<8x32xf32>
    %1201 = vector.shape_cast %1197 : vector<8x32xf32> to vector<1x8x32xf32>
    tpu.vector_store %arg15[%1198, %c0_280, %c0_281], %1201 {strides = array<i32>} : memref<12x8x64xf32, #tpu.memory_space<vmem>>, vector<1x8x32xf32>,
    %1202 = arith.index_cast %1168 : i32 to index
    %c0_282 = arith.constant 0 : index
    %c128_283 = arith.constant 128 : index
    %1203 = vector.load %arg14[%1202, %c0_282, %c128_283] : memref<12x8x256xf32, #tpu.memory_space<vmem>>, vector<1x8x128xf32>
    %1204 = vector.shape_cast %1203 : vector<1x8x128xf32> to vector<8x128xf32>
    %1205 = vector.extract_strided_slice %1169 {offsets = [0, 128], sizes = [8, 128], strides = [1, 1]} : vector<8x256xf32> to vector<8x128xf32>
    %1206 = arith.addf %1204, %1205 : vector<8x128xf32>
    %1207 = vector.extract_strided_slice %1206 {offsets = [0, 0], sizes = [8, 96], strides = [1, 1]} : vector<8x128xf32> to vector<8x96xf32>
    %1208 = arith.negf %1207 : vector<8x96xf32>
    %1209 = math.exp %1208 : vector<8x96xf32>
    %cst_284 = arith.constant 1.000000e+00 : f32
    %1210 = vector.broadcast %cst_284 : f32 to vector<8x96xf32>
    %1211 = arith.addf %1210, %1209 : vector<8x96xf32>
    %1212 = arith.divf %1210, %1211 : vector<8x96xf32>
    %1213 = vector.extract_strided_slice %1206 {offsets = [0, 96], sizes = [8, 32], strides = [1, 1]} : vector<8x128xf32> to vector<8x32xf32>
    %1214 = math.tanh %1213 : vector<8x32xf32>
    %1215 = vector.extract_strided_slice %1212 {offsets = [0, 32], sizes = [8, 32], strides = [1, 1]} : vector<8x96xf32> to vector<8x32xf32>
    %1216 = arith.mulf %1215, %1158 : vector<8x32xf32>
    %1217 = vector.extract_strided_slice %1212 {offsets = [0, 0], sizes = [8, 32], strides = [1, 1]} : vector<8x96xf32> to vector<8x32xf32>
    %1218 = arith.mulf %1217, %1214 : vector<8x32xf32>
    %1219 = arith.addf %1216, %1218 : vector<8x32xf32>
    %1220 = vector.extract_strided_slice %1212 {offsets = [0, 64], sizes = [8, 32], strides = [1, 1]} : vector<8x96xf32> to vector<8x32xf32>
    %1221 = math.tanh %1219 : vector<8x32xf32>
    %1222 = arith.mulf %1220, %1221 : vector<8x32xf32>
    %1223 = vector.broadcast %1168 : i32 to vector<8x32xi32>
    %1224 = arith.cmpi slt, %1223, %2 : vector<8x32xi32>
    %1225 = arith.select %1224, %1219, %1158 : vector<8x32xi1>, vector<8x32xf32>
    %1226 = vector.extract_strided_slice %1167 {offsets = [0, 32], sizes = [8, 32], strides = [1, 1]} : vector<8x64xf32> to vector<8x32xf32>
    %1227 = arith.select %1224, %1222, %1226 : vector<8x32xi1>, vector<8x32xf32>
    %cst_285 = arith.constant 0.000000e+00 : f32
    %1228 = vector.broadcast %cst_285 : f32 to vector<8x32xf32>
    %1229 = arith.select %1224, %1222, %1228 : vector<8x32xi1>, vector<8x32xf32>
    %1230 = arith.index_cast %1168 : i32 to index
    %c0_286 = arith.constant 0 : index
    %c32_287 = arith.constant 32 : index
    %1231 = vector.load %arg15[%1230, %c0_286, %c32_287] : memref<12x8x64xf32, #tpu.memory_space<vmem>>, vector<1x8x32xf32>
    %1232 = vector.shape_cast %1231 : vector<1x8x32xf32> to vector<8x32xf32>
    %1233 = vector.shape_cast %1229 : vector<8x32xf32> to vector<1x8x32xf32>
    tpu.vector_store %arg15[%1230, %c0_286, %c32_287], %1233 {strides = array<i32>} : memref<12x8x64xf32, #tpu.memory_space<vmem>>, vector<1x8x32xf32>,
    %1234 = tpu.concatenate %1195, %1227 in 1 : vector<8x32xf32>, vector<8x32xf32> -> vector<8x64xf32>
    %c6_i32_288 = arith.constant 6 : i32
    %c11_i32_289 = arith.constant 11 : i32
    %1235 = arith.subi %c11_i32_289, %c6_i32_288 : i32
    %cst_290 = arith.constant dense<0.000000e+00> : vector<8x256xf32>
    %1236 = tpu.matmul %1234, %829, %cst_290 {dimension_numbers = #tpu.dot_dimension_numbers<[1], [0], [0], [1], [0, 0, 1, 1], [], []>} : vector<8x64xf32>, vector<64x256xf32>, vector<8x256xf32> -> vector<8x256xf32>
    %1237 = arith.index_cast %c6_i32_288 : i32 to index
    %c0_291 = arith.constant 0 : index
    %c0_292 = arith.constant 0 : index
    %1238 = vector.load %arg14[%1237, %c0_291, %c0_292] : memref<12x8x256xf32, #tpu.memory_space<vmem>>, vector<1x8x128xf32>
    %1239 = vector.shape_cast %1238 : vector<1x8x128xf32> to vector<8x128xf32>
    %1240 = vector.extract_strided_slice %1236 {offsets = [0, 0], sizes = [8, 128], strides = [1, 1]} : vector<8x256xf32> to vector<8x128xf32>
    %1241 = arith.addf %1239, %1240 : vector<8x128xf32>
    %1242 = vector.extract_strided_slice %1241 {offsets = [0, 0], sizes = [8, 96], strides = [1, 1]} : vector<8x128xf32> to vector<8x96xf32>
    %1243 = arith.negf %1242 : vector<8x96xf32>
    %1244 = math.exp %1243 : vector<8x96xf32>
    %cst_293 = arith.constant 1.000000e+00 : f32
    %1245 = vector.broadcast %cst_293 : f32 to vector<8x96xf32>
    %1246 = arith.addf %1245, %1244 : vector<8x96xf32>
    %1247 = arith.divf %1245, %1246 : vector<8x96xf32>
    %1248 = vector.extract_strided_slice %1241 {offsets = [0, 96], sizes = [8, 32], strides = [1, 1]} : vector<8x128xf32> to vector<8x32xf32>
    %1249 = math.tanh %1248 : vector<8x32xf32>
    %1250 = vector.extract_strided_slice %1247 {offsets = [0, 32], sizes = [8, 32], strides = [1, 1]} : vector<8x96xf32> to vector<8x32xf32>
    %1251 = arith.mulf %1250, %1193 : vector<8x32xf32>
    %1252 = vector.extract_strided_slice %1247 {offsets = [0, 0], sizes = [8, 32], strides = [1, 1]} : vector<8x96xf32> to vector<8x32xf32>
    %1253 = arith.mulf %1252, %1249 : vector<8x32xf32>
    %1254 = arith.addf %1251, %1253 : vector<8x32xf32>
    %1255 = vector.extract_strided_slice %1247 {offsets = [0, 64], sizes = [8, 32], strides = [1, 1]} : vector<8x96xf32> to vector<8x32xf32>
    %1256 = math.tanh %1254 : vector<8x32xf32>
    %1257 = arith.mulf %1255, %1256 : vector<8x32xf32>
    %1258 = vector.broadcast %c6_i32_288 : i32 to vector<8x32xi32>
    %1259 = arith.cmpi slt, %1258, %2 : vector<8x32xi32>
    %1260 = arith.select %1259, %1254, %1193 : vector<8x32xi1>, vector<8x32xf32>
    %1261 = vector.extract_strided_slice %1234 {offsets = [0, 0], sizes = [8, 32], strides = [1, 1]} : vector<8x64xf32> to vector<8x32xf32>
    %1262 = arith.select %1259, %1257, %1261 : vector<8x32xi1>, vector<8x32xf32>
    %cst_294 = arith.constant 0.000000e+00 : f32
    %1263 = vector.broadcast %cst_294 : f32 to vector<8x32xf32>
    %1264 = arith.select %1259, %1257, %1263 : vector<8x32xi1>, vector<8x32xf32>
    %1265 = arith.index_cast %c6_i32_288 : i32 to index
    %c0_295 = arith.constant 0 : index
    %c0_296 = arith.constant 0 : index
    %1266 = vector.load %arg15[%1265, %c0_295, %c0_296] : memref<12x8x64xf32, #tpu.memory_space<vmem>>, vector<1x8x32xf32>
    %1267 = vector.shape_cast %1266 : vector<1x8x32xf32> to vector<8x32xf32>
    %1268 = vector.shape_cast %1264 : vector<8x32xf32> to vector<1x8x32xf32>
    tpu.vector_store %arg15[%1265, %c0_295, %c0_296], %1268 {strides = array<i32>} : memref<12x8x64xf32, #tpu.memory_space<vmem>>, vector<1x8x32xf32>,
    %1269 = arith.index_cast %1235 : i32 to index
    %c0_297 = arith.constant 0 : index
    %c128_298 = arith.constant 128 : index
    %1270 = vector.load %arg14[%1269, %c0_297, %c128_298] : memref<12x8x256xf32, #tpu.memory_space<vmem>>, vector<1x8x128xf32>
    %1271 = vector.shape_cast %1270 : vector<1x8x128xf32> to vector<8x128xf32>
    %1272 = vector.extract_strided_slice %1236 {offsets = [0, 128], sizes = [8, 128], strides = [1, 1]} : vector<8x256xf32> to vector<8x128xf32>
    %1273 = arith.addf %1271, %1272 : vector<8x128xf32>
    %1274 = vector.extract_strided_slice %1273 {offsets = [0, 0], sizes = [8, 96], strides = [1, 1]} : vector<8x128xf32> to vector<8x96xf32>
    %1275 = arith.negf %1274 : vector<8x96xf32>
    %1276 = math.exp %1275 : vector<8x96xf32>
    %cst_299 = arith.constant 1.000000e+00 : f32
    %1277 = vector.broadcast %cst_299 : f32 to vector<8x96xf32>
    %1278 = arith.addf %1277, %1276 : vector<8x96xf32>
    %1279 = arith.divf %1277, %1278 : vector<8x96xf32>
    %1280 = vector.extract_strided_slice %1273 {offsets = [0, 96], sizes = [8, 32], strides = [1, 1]} : vector<8x128xf32> to vector<8x32xf32>
    %1281 = math.tanh %1280 : vector<8x32xf32>
    %1282 = vector.extract_strided_slice %1279 {offsets = [0, 32], sizes = [8, 32], strides = [1, 1]} : vector<8x96xf32> to vector<8x32xf32>
    %1283 = arith.mulf %1282, %1225 : vector<8x32xf32>
    %1284 = vector.extract_strided_slice %1279 {offsets = [0, 0], sizes = [8, 32], strides = [1, 1]} : vector<8x96xf32> to vector<8x32xf32>
    %1285 = arith.mulf %1284, %1281 : vector<8x32xf32>
    %1286 = arith.addf %1283, %1285 : vector<8x32xf32>
    %1287 = vector.extract_strided_slice %1279 {offsets = [0, 64], sizes = [8, 32], strides = [1, 1]} : vector<8x96xf32> to vector<8x32xf32>
    %1288 = math.tanh %1286 : vector<8x32xf32>
    %1289 = arith.mulf %1287, %1288 : vector<8x32xf32>
    %1290 = vector.broadcast %1235 : i32 to vector<8x32xi32>
    %1291 = arith.cmpi slt, %1290, %2 : vector<8x32xi32>
    %1292 = arith.select %1291, %1286, %1225 : vector<8x32xi1>, vector<8x32xf32>
    %1293 = vector.extract_strided_slice %1234 {offsets = [0, 32], sizes = [8, 32], strides = [1, 1]} : vector<8x64xf32> to vector<8x32xf32>
    %1294 = arith.select %1291, %1289, %1293 : vector<8x32xi1>, vector<8x32xf32>
    %cst_300 = arith.constant 0.000000e+00 : f32
    %1295 = vector.broadcast %cst_300 : f32 to vector<8x32xf32>
    %1296 = arith.select %1291, %1289, %1295 : vector<8x32xi1>, vector<8x32xf32>
    %1297 = arith.index_cast %1235 : i32 to index
    %c0_301 = arith.constant 0 : index
    %c32_302 = arith.constant 32 : index
    %1298 = vector.load %arg15[%1297, %c0_301, %c32_302] : memref<12x8x64xf32, #tpu.memory_space<vmem>>, vector<1x8x32xf32>
    %1299 = vector.shape_cast %1298 : vector<1x8x32xf32> to vector<8x32xf32>
    %1300 = vector.shape_cast %1296 : vector<8x32xf32> to vector<1x8x32xf32>
    tpu.vector_store %arg15[%1297, %c0_301, %c32_302], %1300 {strides = array<i32>} : memref<12x8x64xf32, #tpu.memory_space<vmem>>, vector<1x8x32xf32>,
    %1301 = tpu.concatenate %1262, %1294 in 1 : vector<8x32xf32>, vector<8x32xf32> -> vector<8x64xf32>
    %c7_i32_303 = arith.constant 7 : i32
    %c11_i32_304 = arith.constant 11 : i32
    %1302 = arith.subi %c11_i32_304, %c7_i32_303 : i32
    %cst_305 = arith.constant dense<0.000000e+00> : vector<8x256xf32>
    %1303 = tpu.matmul %1301, %829, %cst_305 {dimension_numbers = #tpu.dot_dimension_numbers<[1], [0], [0], [1], [0, 0, 1, 1], [], []>} : vector<8x64xf32>, vector<64x256xf32>, vector<8x256xf32> -> vector<8x256xf32>
    %1304 = arith.index_cast %c7_i32_303 : i32 to index
    %c0_306 = arith.constant 0 : index
    %c0_307 = arith.constant 0 : index
    %1305 = vector.load %arg14[%1304, %c0_306, %c0_307] : memref<12x8x256xf32, #tpu.memory_space<vmem>>, vector<1x8x128xf32>
    %1306 = vector.shape_cast %1305 : vector<1x8x128xf32> to vector<8x128xf32>
    %1307 = vector.extract_strided_slice %1303 {offsets = [0, 0], sizes = [8, 128], strides = [1, 1]} : vector<8x256xf32> to vector<8x128xf32>
    %1308 = arith.addf %1306, %1307 : vector<8x128xf32>
    %1309 = vector.extract_strided_slice %1308 {offsets = [0, 0], sizes = [8, 96], strides = [1, 1]} : vector<8x128xf32> to vector<8x96xf32>
    %1310 = arith.negf %1309 : vector<8x96xf32>
    %1311 = math.exp %1310 : vector<8x96xf32>
    %cst_308 = arith.constant 1.000000e+00 : f32
    %1312 = vector.broadcast %cst_308 : f32 to vector<8x96xf32>
    %1313 = arith.addf %1312, %1311 : vector<8x96xf32>
    %1314 = arith.divf %1312, %1313 : vector<8x96xf32>
    %1315 = vector.extract_strided_slice %1308 {offsets = [0, 96], sizes = [8, 32], strides = [1, 1]} : vector<8x128xf32> to vector<8x32xf32>
    %1316 = math.tanh %1315 : vector<8x32xf32>
    %1317 = vector.extract_strided_slice %1314 {offsets = [0, 32], sizes = [8, 32], strides = [1, 1]} : vector<8x96xf32> to vector<8x32xf32>
    %1318 = arith.mulf %1317, %1260 : vector<8x32xf32>
    %1319 = vector.extract_strided_slice %1314 {offsets = [0, 0], sizes = [8, 32], strides = [1, 1]} : vector<8x96xf32> to vector<8x32xf32>
    %1320 = arith.mulf %1319, %1316 : vector<8x32xf32>
    %1321 = arith.addf %1318, %1320 : vector<8x32xf32>
    %1322 = vector.extract_strided_slice %1314 {offsets = [0, 64], sizes = [8, 32], strides = [1, 1]} : vector<8x96xf32> to vector<8x32xf32>
    %1323 = math.tanh %1321 : vector<8x32xf32>
    %1324 = arith.mulf %1322, %1323 : vector<8x32xf32>
    %1325 = vector.broadcast %c7_i32_303 : i32 to vector<8x32xi32>
    %1326 = arith.cmpi slt, %1325, %2 : vector<8x32xi32>
    %1327 = arith.select %1326, %1321, %1260 : vector<8x32xi1>, vector<8x32xf32>
    %1328 = vector.extract_strided_slice %1301 {offsets = [0, 0], sizes = [8, 32], strides = [1, 1]} : vector<8x64xf32> to vector<8x32xf32>
    %1329 = arith.select %1326, %1324, %1328 : vector<8x32xi1>, vector<8x32xf32>
    %cst_309 = arith.constant 0.000000e+00 : f32
    %1330 = vector.broadcast %cst_309 : f32 to vector<8x32xf32>
    %1331 = arith.select %1326, %1324, %1330 : vector<8x32xi1>, vector<8x32xf32>
    %1332 = arith.index_cast %c7_i32_303 : i32 to index
    %c0_310 = arith.constant 0 : index
    %c0_311 = arith.constant 0 : index
    %1333 = vector.load %arg15[%1332, %c0_310, %c0_311] : memref<12x8x64xf32, #tpu.memory_space<vmem>>, vector<1x8x32xf32>
    %1334 = vector.shape_cast %1333 : vector<1x8x32xf32> to vector<8x32xf32>
    %1335 = vector.shape_cast %1331 : vector<8x32xf32> to vector<1x8x32xf32>
    tpu.vector_store %arg15[%1332, %c0_310, %c0_311], %1335 {strides = array<i32>} : memref<12x8x64xf32, #tpu.memory_space<vmem>>, vector<1x8x32xf32>,
    %1336 = arith.index_cast %1302 : i32 to index
    %c0_312 = arith.constant 0 : index
    %c128_313 = arith.constant 128 : index
    %1337 = vector.load %arg14[%1336, %c0_312, %c128_313] : memref<12x8x256xf32, #tpu.memory_space<vmem>>, vector<1x8x128xf32>
    %1338 = vector.shape_cast %1337 : vector<1x8x128xf32> to vector<8x128xf32>
    %1339 = vector.extract_strided_slice %1303 {offsets = [0, 128], sizes = [8, 128], strides = [1, 1]} : vector<8x256xf32> to vector<8x128xf32>
    %1340 = arith.addf %1338, %1339 : vector<8x128xf32>
    %1341 = vector.extract_strided_slice %1340 {offsets = [0, 0], sizes = [8, 96], strides = [1, 1]} : vector<8x128xf32> to vector<8x96xf32>
    %1342 = arith.negf %1341 : vector<8x96xf32>
    %1343 = math.exp %1342 : vector<8x96xf32>
    %cst_314 = arith.constant 1.000000e+00 : f32
    %1344 = vector.broadcast %cst_314 : f32 to vector<8x96xf32>
    %1345 = arith.addf %1344, %1343 : vector<8x96xf32>
    %1346 = arith.divf %1344, %1345 : vector<8x96xf32>
    %1347 = vector.extract_strided_slice %1340 {offsets = [0, 96], sizes = [8, 32], strides = [1, 1]} : vector<8x128xf32> to vector<8x32xf32>
    %1348 = math.tanh %1347 : vector<8x32xf32>
    %1349 = vector.extract_strided_slice %1346 {offsets = [0, 32], sizes = [8, 32], strides = [1, 1]} : vector<8x96xf32> to vector<8x32xf32>
    %1350 = arith.mulf %1349, %1292 : vector<8x32xf32>
    %1351 = vector.extract_strided_slice %1346 {offsets = [0, 0], sizes = [8, 32], strides = [1, 1]} : vector<8x96xf32> to vector<8x32xf32>
    %1352 = arith.mulf %1351, %1348 : vector<8x32xf32>
    %1353 = arith.addf %1350, %1352 : vector<8x32xf32>
    %1354 = vector.extract_strided_slice %1346 {offsets = [0, 64], sizes = [8, 32], strides = [1, 1]} : vector<8x96xf32> to vector<8x32xf32>
    %1355 = math.tanh %1353 : vector<8x32xf32>
    %1356 = arith.mulf %1354, %1355 : vector<8x32xf32>
    %1357 = vector.broadcast %1302 : i32 to vector<8x32xi32>
    %1358 = arith.cmpi slt, %1357, %2 : vector<8x32xi32>
    %1359 = arith.select %1358, %1353, %1292 : vector<8x32xi1>, vector<8x32xf32>
    %1360 = vector.extract_strided_slice %1301 {offsets = [0, 32], sizes = [8, 32], strides = [1, 1]} : vector<8x64xf32> to vector<8x32xf32>
    %1361 = arith.select %1358, %1356, %1360 : vector<8x32xi1>, vector<8x32xf32>
    %cst_315 = arith.constant 0.000000e+00 : f32
    %1362 = vector.broadcast %cst_315 : f32 to vector<8x32xf32>
    %1363 = arith.select %1358, %1356, %1362 : vector<8x32xi1>, vector<8x32xf32>
    %1364 = arith.index_cast %1302 : i32 to index
    %c0_316 = arith.constant 0 : index
    %c32_317 = arith.constant 32 : index
    %1365 = vector.load %arg15[%1364, %c0_316, %c32_317] : memref<12x8x64xf32, #tpu.memory_space<vmem>>, vector<1x8x32xf32>
    %1366 = vector.shape_cast %1365 : vector<1x8x32xf32> to vector<8x32xf32>
    %1367 = vector.shape_cast %1363 : vector<8x32xf32> to vector<1x8x32xf32>
    tpu.vector_store %arg15[%1364, %c0_316, %c32_317], %1367 {strides = array<i32>} : memref<12x8x64xf32, #tpu.memory_space<vmem>>, vector<1x8x32xf32>,
    %1368 = tpu.concatenate %1329, %1361 in 1 : vector<8x32xf32>, vector<8x32xf32> -> vector<8x64xf32>
    %c8_i32_318 = arith.constant 8 : i32
    %c11_i32_319 = arith.constant 11 : i32
    %1369 = arith.subi %c11_i32_319, %c8_i32_318 : i32
    %cst_320 = arith.constant dense<0.000000e+00> : vector<8x256xf32>
    %1370 = tpu.matmul %1368, %829, %cst_320 {dimension_numbers = #tpu.dot_dimension_numbers<[1], [0], [0], [1], [0, 0, 1, 1], [], []>} : vector<8x64xf32>, vector<64x256xf32>, vector<8x256xf32> -> vector<8x256xf32>
    %1371 = arith.index_cast %c8_i32_318 : i32 to index
    %c0_321 = arith.constant 0 : index
    %c0_322 = arith.constant 0 : index
    %1372 = vector.load %arg14[%1371, %c0_321, %c0_322] : memref<12x8x256xf32, #tpu.memory_space<vmem>>, vector<1x8x128xf32>
    %1373 = vector.shape_cast %1372 : vector<1x8x128xf32> to vector<8x128xf32>
    %1374 = vector.extract_strided_slice %1370 {offsets = [0, 0], sizes = [8, 128], strides = [1, 1]} : vector<8x256xf32> to vector<8x128xf32>
    %1375 = arith.addf %1373, %1374 : vector<8x128xf32>
    %1376 = vector.extract_strided_slice %1375 {offsets = [0, 0], sizes = [8, 96], strides = [1, 1]} : vector<8x128xf32> to vector<8x96xf32>
    %1377 = arith.negf %1376 : vector<8x96xf32>
    %1378 = math.exp %1377 : vector<8x96xf32>
    %cst_323 = arith.constant 1.000000e+00 : f32
    %1379 = vector.broadcast %cst_323 : f32 to vector<8x96xf32>
    %1380 = arith.addf %1379, %1378 : vector<8x96xf32>
    %1381 = arith.divf %1379, %1380 : vector<8x96xf32>
    %1382 = vector.extract_strided_slice %1375 {offsets = [0, 96], sizes = [8, 32], strides = [1, 1]} : vector<8x128xf32> to vector<8x32xf32>
    %1383 = math.tanh %1382 : vector<8x32xf32>
    %1384 = vector.extract_strided_slice %1381 {offsets = [0, 32], sizes = [8, 32], strides = [1, 1]} : vector<8x96xf32> to vector<8x32xf32>
    %1385 = arith.mulf %1384, %1327 : vector<8x32xf32>
    %1386 = vector.extract_strided_slice %1381 {offsets = [0, 0], sizes = [8, 32], strides = [1, 1]} : vector<8x96xf32> to vector<8x32xf32>
    %1387 = arith.mulf %1386, %1383 : vector<8x32xf32>
    %1388 = arith.addf %1385, %1387 : vector<8x32xf32>
    %1389 = vector.extract_strided_slice %1381 {offsets = [0, 64], sizes = [8, 32], strides = [1, 1]} : vector<8x96xf32> to vector<8x32xf32>
    %1390 = math.tanh %1388 : vector<8x32xf32>
    %1391 = arith.mulf %1389, %1390 : vector<8x32xf32>
    %1392 = vector.broadcast %c8_i32_318 : i32 to vector<8x32xi32>
    %1393 = arith.cmpi slt, %1392, %2 : vector<8x32xi32>
    %1394 = arith.select %1393, %1388, %1327 : vector<8x32xi1>, vector<8x32xf32>
    %1395 = vector.extract_strided_slice %1368 {offsets = [0, 0], sizes = [8, 32], strides = [1, 1]} : vector<8x64xf32> to vector<8x32xf32>
    %1396 = arith.select %1393, %1391, %1395 : vector<8x32xi1>, vector<8x32xf32>
    %cst_324 = arith.constant 0.000000e+00 : f32
    %1397 = vector.broadcast %cst_324 : f32 to vector<8x32xf32>
    %1398 = arith.select %1393, %1391, %1397 : vector<8x32xi1>, vector<8x32xf32>
    %1399 = arith.index_cast %c8_i32_318 : i32 to index
    %c0_325 = arith.constant 0 : index
    %c0_326 = arith.constant 0 : index
    %1400 = vector.load %arg15[%1399, %c0_325, %c0_326] : memref<12x8x64xf32, #tpu.memory_space<vmem>>, vector<1x8x32xf32>
    %1401 = vector.shape_cast %1400 : vector<1x8x32xf32> to vector<8x32xf32>
    %1402 = vector.shape_cast %1398 : vector<8x32xf32> to vector<1x8x32xf32>
    tpu.vector_store %arg15[%1399, %c0_325, %c0_326], %1402 {strides = array<i32>} : memref<12x8x64xf32, #tpu.memory_space<vmem>>, vector<1x8x32xf32>,
    %1403 = arith.index_cast %1369 : i32 to index
    %c0_327 = arith.constant 0 : index
    %c128_328 = arith.constant 128 : index
    %1404 = vector.load %arg14[%1403, %c0_327, %c128_328] : memref<12x8x256xf32, #tpu.memory_space<vmem>>, vector<1x8x128xf32>
    %1405 = vector.shape_cast %1404 : vector<1x8x128xf32> to vector<8x128xf32>
    %1406 = vector.extract_strided_slice %1370 {offsets = [0, 128], sizes = [8, 128], strides = [1, 1]} : vector<8x256xf32> to vector<8x128xf32>
    %1407 = arith.addf %1405, %1406 : vector<8x128xf32>
    %1408 = vector.extract_strided_slice %1407 {offsets = [0, 0], sizes = [8, 96], strides = [1, 1]} : vector<8x128xf32> to vector<8x96xf32>
    %1409 = arith.negf %1408 : vector<8x96xf32>
    %1410 = math.exp %1409 : vector<8x96xf32>
    %cst_329 = arith.constant 1.000000e+00 : f32
    %1411 = vector.broadcast %cst_329 : f32 to vector<8x96xf32>
    %1412 = arith.addf %1411, %1410 : vector<8x96xf32>
    %1413 = arith.divf %1411, %1412 : vector<8x96xf32>
    %1414 = vector.extract_strided_slice %1407 {offsets = [0, 96], sizes = [8, 32], strides = [1, 1]} : vector<8x128xf32> to vector<8x32xf32>
    %1415 = math.tanh %1414 : vector<8x32xf32>
    %1416 = vector.extract_strided_slice %1413 {offsets = [0, 32], sizes = [8, 32], strides = [1, 1]} : vector<8x96xf32> to vector<8x32xf32>
    %1417 = arith.mulf %1416, %1359 : vector<8x32xf32>
    %1418 = vector.extract_strided_slice %1413 {offsets = [0, 0], sizes = [8, 32], strides = [1, 1]} : vector<8x96xf32> to vector<8x32xf32>
    %1419 = arith.mulf %1418, %1415 : vector<8x32xf32>
    %1420 = arith.addf %1417, %1419 : vector<8x32xf32>
    %1421 = vector.extract_strided_slice %1413 {offsets = [0, 64], sizes = [8, 32], strides = [1, 1]} : vector<8x96xf32> to vector<8x32xf32>
    %1422 = math.tanh %1420 : vector<8x32xf32>
    %1423 = arith.mulf %1421, %1422 : vector<8x32xf32>
    %1424 = vector.broadcast %1369 : i32 to vector<8x32xi32>
    %1425 = arith.cmpi slt, %1424, %2 : vector<8x32xi32>
    %1426 = arith.select %1425, %1420, %1359 : vector<8x32xi1>, vector<8x32xf32>
    %1427 = vector.extract_strided_slice %1368 {offsets = [0, 32], sizes = [8, 32], strides = [1, 1]} : vector<8x64xf32> to vector<8x32xf32>
    %1428 = arith.select %1425, %1423, %1427 : vector<8x32xi1>, vector<8x32xf32>
    %cst_330 = arith.constant 0.000000e+00 : f32
    %1429 = vector.broadcast %cst_330 : f32 to vector<8x32xf32>
    %1430 = arith.select %1425, %1423, %1429 : vector<8x32xi1>, vector<8x32xf32>
    %1431 = arith.index_cast %1369 : i32 to index
    %c0_331 = arith.constant 0 : index
    %c32_332 = arith.constant 32 : index
    %1432 = vector.load %arg15[%1431, %c0_331, %c32_332] : memref<12x8x64xf32, #tpu.memory_space<vmem>>, vector<1x8x32xf32>
    %1433 = vector.shape_cast %1432 : vector<1x8x32xf32> to vector<8x32xf32>
    %1434 = vector.shape_cast %1430 : vector<8x32xf32> to vector<1x8x32xf32>
    tpu.vector_store %arg15[%1431, %c0_331, %c32_332], %1434 {strides = array<i32>} : memref<12x8x64xf32, #tpu.memory_space<vmem>>, vector<1x8x32xf32>,
    %1435 = tpu.concatenate %1396, %1428 in 1 : vector<8x32xf32>, vector<8x32xf32> -> vector<8x64xf32>
    %c9_i32_333 = arith.constant 9 : i32
    %c11_i32_334 = arith.constant 11 : i32
    %1436 = arith.subi %c11_i32_334, %c9_i32_333 : i32
    %cst_335 = arith.constant dense<0.000000e+00> : vector<8x256xf32>
    %1437 = tpu.matmul %1435, %829, %cst_335 {dimension_numbers = #tpu.dot_dimension_numbers<[1], [0], [0], [1], [0, 0, 1, 1], [], []>} : vector<8x64xf32>, vector<64x256xf32>, vector<8x256xf32> -> vector<8x256xf32>
    %1438 = arith.index_cast %c9_i32_333 : i32 to index
    %c0_336 = arith.constant 0 : index
    %c0_337 = arith.constant 0 : index
    %1439 = vector.load %arg14[%1438, %c0_336, %c0_337] : memref<12x8x256xf32, #tpu.memory_space<vmem>>, vector<1x8x128xf32>
    %1440 = vector.shape_cast %1439 : vector<1x8x128xf32> to vector<8x128xf32>
    %1441 = vector.extract_strided_slice %1437 {offsets = [0, 0], sizes = [8, 128], strides = [1, 1]} : vector<8x256xf32> to vector<8x128xf32>
    %1442 = arith.addf %1440, %1441 : vector<8x128xf32>
    %1443 = vector.extract_strided_slice %1442 {offsets = [0, 0], sizes = [8, 96], strides = [1, 1]} : vector<8x128xf32> to vector<8x96xf32>
    %1444 = arith.negf %1443 : vector<8x96xf32>
    %1445 = math.exp %1444 : vector<8x96xf32>
    %cst_338 = arith.constant 1.000000e+00 : f32
    %1446 = vector.broadcast %cst_338 : f32 to vector<8x96xf32>
    %1447 = arith.addf %1446, %1445 : vector<8x96xf32>
    %1448 = arith.divf %1446, %1447 : vector<8x96xf32>
    %1449 = vector.extract_strided_slice %1442 {offsets = [0, 96], sizes = [8, 32], strides = [1, 1]} : vector<8x128xf32> to vector<8x32xf32>
    %1450 = math.tanh %1449 : vector<8x32xf32>
    %1451 = vector.extract_strided_slice %1448 {offsets = [0, 32], sizes = [8, 32], strides = [1, 1]} : vector<8x96xf32> to vector<8x32xf32>
    %1452 = arith.mulf %1451, %1394 : vector<8x32xf32>
    %1453 = vector.extract_strided_slice %1448 {offsets = [0, 0], sizes = [8, 32], strides = [1, 1]} : vector<8x96xf32> to vector<8x32xf32>
    %1454 = arith.mulf %1453, %1450 : vector<8x32xf32>
    %1455 = arith.addf %1452, %1454 : vector<8x32xf32>
    %1456 = vector.extract_strided_slice %1448 {offsets = [0, 64], sizes = [8, 32], strides = [1, 1]} : vector<8x96xf32> to vector<8x32xf32>
    %1457 = math.tanh %1455 : vector<8x32xf32>
    %1458 = arith.mulf %1456, %1457 : vector<8x32xf32>
    %1459 = vector.broadcast %c9_i32_333 : i32 to vector<8x32xi32>
    %1460 = arith.cmpi slt, %1459, %2 : vector<8x32xi32>
    %1461 = arith.select %1460, %1455, %1394 : vector<8x32xi1>, vector<8x32xf32>
    %1462 = vector.extract_strided_slice %1435 {offsets = [0, 0], sizes = [8, 32], strides = [1, 1]} : vector<8x64xf32> to vector<8x32xf32>
    %1463 = arith.select %1460, %1458, %1462 : vector<8x32xi1>, vector<8x32xf32>
    %cst_339 = arith.constant 0.000000e+00 : f32
    %1464 = vector.broadcast %cst_339 : f32 to vector<8x32xf32>
    %1465 = arith.select %1460, %1458, %1464 : vector<8x32xi1>, vector<8x32xf32>
    %1466 = arith.index_cast %c9_i32_333 : i32 to index
    %c0_340 = arith.constant 0 : index
    %c0_341 = arith.constant 0 : index
    %1467 = vector.load %arg15[%1466, %c0_340, %c0_341] : memref<12x8x64xf32, #tpu.memory_space<vmem>>, vector<1x8x32xf32>
    %1468 = vector.shape_cast %1467 : vector<1x8x32xf32> to vector<8x32xf32>
    %1469 = vector.shape_cast %1465 : vector<8x32xf32> to vector<1x8x32xf32>
    tpu.vector_store %arg15[%1466, %c0_340, %c0_341], %1469 {strides = array<i32>} : memref<12x8x64xf32, #tpu.memory_space<vmem>>, vector<1x8x32xf32>,
    %1470 = arith.index_cast %1436 : i32 to index
    %c0_342 = arith.constant 0 : index
    %c128_343 = arith.constant 128 : index
    %1471 = vector.load %arg14[%1470, %c0_342, %c128_343] : memref<12x8x256xf32, #tpu.memory_space<vmem>>, vector<1x8x128xf32>
    %1472 = vector.shape_cast %1471 : vector<1x8x128xf32> to vector<8x128xf32>
    %1473 = vector.extract_strided_slice %1437 {offsets = [0, 128], sizes = [8, 128], strides = [1, 1]} : vector<8x256xf32> to vector<8x128xf32>
    %1474 = arith.addf %1472, %1473 : vector<8x128xf32>
    %1475 = vector.extract_strided_slice %1474 {offsets = [0, 0], sizes = [8, 96], strides = [1, 1]} : vector<8x128xf32> to vector<8x96xf32>
    %1476 = arith.negf %1475 : vector<8x96xf32>
    %1477 = math.exp %1476 : vector<8x96xf32>
    %cst_344 = arith.constant 1.000000e+00 : f32
    %1478 = vector.broadcast %cst_344 : f32 to vector<8x96xf32>
    %1479 = arith.addf %1478, %1477 : vector<8x96xf32>
    %1480 = arith.divf %1478, %1479 : vector<8x96xf32>
    %1481 = vector.extract_strided_slice %1474 {offsets = [0, 96], sizes = [8, 32], strides = [1, 1]} : vector<8x128xf32> to vector<8x32xf32>
    %1482 = math.tanh %1481 : vector<8x32xf32>
    %1483 = vector.extract_strided_slice %1480 {offsets = [0, 32], sizes = [8, 32], strides = [1, 1]} : vector<8x96xf32> to vector<8x32xf32>
    %1484 = arith.mulf %1483, %1426 : vector<8x32xf32>
    %1485 = vector.extract_strided_slice %1480 {offsets = [0, 0], sizes = [8, 32], strides = [1, 1]} : vector<8x96xf32> to vector<8x32xf32>
    %1486 = arith.mulf %1485, %1482 : vector<8x32xf32>
    %1487 = arith.addf %1484, %1486 : vector<8x32xf32>
    %1488 = vector.extract_strided_slice %1480 {offsets = [0, 64], sizes = [8, 32], strides = [1, 1]} : vector<8x96xf32> to vector<8x32xf32>
    %1489 = math.tanh %1487 : vector<8x32xf32>
    %1490 = arith.mulf %1488, %1489 : vector<8x32xf32>
    %1491 = vector.broadcast %1436 : i32 to vector<8x32xi32>
    %1492 = arith.cmpi slt, %1491, %2 : vector<8x32xi32>
    %1493 = arith.select %1492, %1487, %1426 : vector<8x32xi1>, vector<8x32xf32>
    %1494 = vector.extract_strided_slice %1435 {offsets = [0, 32], sizes = [8, 32], strides = [1, 1]} : vector<8x64xf32> to vector<8x32xf32>
    %1495 = arith.select %1492, %1490, %1494 : vector<8x32xi1>, vector<8x32xf32>
    %cst_345 = arith.constant 0.000000e+00 : f32
    %1496 = vector.broadcast %cst_345 : f32 to vector<8x32xf32>
    %1497 = arith.select %1492, %1490, %1496 : vector<8x32xi1>, vector<8x32xf32>
    %1498 = arith.index_cast %1436 : i32 to index
    %c0_346 = arith.constant 0 : index
    %c32_347 = arith.constant 32 : index
    %1499 = vector.load %arg15[%1498, %c0_346, %c32_347] : memref<12x8x64xf32, #tpu.memory_space<vmem>>, vector<1x8x32xf32>
    %1500 = vector.shape_cast %1499 : vector<1x8x32xf32> to vector<8x32xf32>
    %1501 = vector.shape_cast %1497 : vector<8x32xf32> to vector<1x8x32xf32>
    tpu.vector_store %arg15[%1498, %c0_346, %c32_347], %1501 {strides = array<i32>} : memref<12x8x64xf32, #tpu.memory_space<vmem>>, vector<1x8x32xf32>,
    %1502 = tpu.concatenate %1463, %1495 in 1 : vector<8x32xf32>, vector<8x32xf32> -> vector<8x64xf32>
    %c10_i32_348 = arith.constant 10 : i32
    %c11_i32_349 = arith.constant 11 : i32
    %1503 = arith.subi %c11_i32_349, %c10_i32_348 : i32
    %cst_350 = arith.constant dense<0.000000e+00> : vector<8x256xf32>
    %1504 = tpu.matmul %1502, %829, %cst_350 {dimension_numbers = #tpu.dot_dimension_numbers<[1], [0], [0], [1], [0, 0, 1, 1], [], []>} : vector<8x64xf32>, vector<64x256xf32>, vector<8x256xf32> -> vector<8x256xf32>
    %1505 = arith.index_cast %c10_i32_348 : i32 to index
    %c0_351 = arith.constant 0 : index
    %c0_352 = arith.constant 0 : index
    %1506 = vector.load %arg14[%1505, %c0_351, %c0_352] : memref<12x8x256xf32, #tpu.memory_space<vmem>>, vector<1x8x128xf32>
    %1507 = vector.shape_cast %1506 : vector<1x8x128xf32> to vector<8x128xf32>
    %1508 = vector.extract_strided_slice %1504 {offsets = [0, 0], sizes = [8, 128], strides = [1, 1]} : vector<8x256xf32> to vector<8x128xf32>
    %1509 = arith.addf %1507, %1508 : vector<8x128xf32>
    %1510 = vector.extract_strided_slice %1509 {offsets = [0, 0], sizes = [8, 96], strides = [1, 1]} : vector<8x128xf32> to vector<8x96xf32>
    %1511 = arith.negf %1510 : vector<8x96xf32>
    %1512 = math.exp %1511 : vector<8x96xf32>
    %cst_353 = arith.constant 1.000000e+00 : f32
    %1513 = vector.broadcast %cst_353 : f32 to vector<8x96xf32>
    %1514 = arith.addf %1513, %1512 : vector<8x96xf32>
    %1515 = arith.divf %1513, %1514 : vector<8x96xf32>
    %1516 = vector.extract_strided_slice %1509 {offsets = [0, 96], sizes = [8, 32], strides = [1, 1]} : vector<8x128xf32> to vector<8x32xf32>
    %1517 = math.tanh %1516 : vector<8x32xf32>
    %1518 = vector.extract_strided_slice %1515 {offsets = [0, 32], sizes = [8, 32], strides = [1, 1]} : vector<8x96xf32> to vector<8x32xf32>
    %1519 = arith.mulf %1518, %1461 : vector<8x32xf32>
    %1520 = vector.extract_strided_slice %1515 {offsets = [0, 0], sizes = [8, 32], strides = [1, 1]} : vector<8x96xf32> to vector<8x32xf32>
    %1521 = arith.mulf %1520, %1517 : vector<8x32xf32>
    %1522 = arith.addf %1519, %1521 : vector<8x32xf32>
    %1523 = vector.extract_strided_slice %1515 {offsets = [0, 64], sizes = [8, 32], strides = [1, 1]} : vector<8x96xf32> to vector<8x32xf32>
    %1524 = math.tanh %1522 : vector<8x32xf32>
    %1525 = arith.mulf %1523, %1524 : vector<8x32xf32>
    %1526 = vector.broadcast %c10_i32_348 : i32 to vector<8x32xi32>
    %1527 = arith.cmpi slt, %1526, %2 : vector<8x32xi32>
    %1528 = arith.select %1527, %1522, %1461 : vector<8x32xi1>, vector<8x32xf32>
    %1529 = vector.extract_strided_slice %1502 {offsets = [0, 0], sizes = [8, 32], strides = [1, 1]} : vector<8x64xf32> to vector<8x32xf32>
    %1530 = arith.select %1527, %1525, %1529 : vector<8x32xi1>, vector<8x32xf32>
    %cst_354 = arith.constant 0.000000e+00 : f32
    %1531 = vector.broadcast %cst_354 : f32 to vector<8x32xf32>
    %1532 = arith.select %1527, %1525, %1531 : vector<8x32xi1>, vector<8x32xf32>
    %1533 = arith.index_cast %c10_i32_348 : i32 to index
    %c0_355 = arith.constant 0 : index
    %c0_356 = arith.constant 0 : index
    %1534 = vector.load %arg15[%1533, %c0_355, %c0_356] : memref<12x8x64xf32, #tpu.memory_space<vmem>>, vector<1x8x32xf32>
    %1535 = vector.shape_cast %1534 : vector<1x8x32xf32> to vector<8x32xf32>
    %1536 = vector.shape_cast %1532 : vector<8x32xf32> to vector<1x8x32xf32>
    tpu.vector_store %arg15[%1533, %c0_355, %c0_356], %1536 {strides = array<i32>} : memref<12x8x64xf32, #tpu.memory_space<vmem>>, vector<1x8x32xf32>,
    %1537 = arith.index_cast %1503 : i32 to index
    %c0_357 = arith.constant 0 : index
    %c128_358 = arith.constant 128 : index
    %1538 = vector.load %arg14[%1537, %c0_357, %c128_358] : memref<12x8x256xf32, #tpu.memory_space<vmem>>, vector<1x8x128xf32>
    %1539 = vector.shape_cast %1538 : vector<1x8x128xf32> to vector<8x128xf32>
    %1540 = vector.extract_strided_slice %1504 {offsets = [0, 128], sizes = [8, 128], strides = [1, 1]} : vector<8x256xf32> to vector<8x128xf32>
    %1541 = arith.addf %1539, %1540 : vector<8x128xf32>
    %1542 = vector.extract_strided_slice %1541 {offsets = [0, 0], sizes = [8, 96], strides = [1, 1]} : vector<8x128xf32> to vector<8x96xf32>
    %1543 = arith.negf %1542 : vector<8x96xf32>
    %1544 = math.exp %1543 : vector<8x96xf32>
    %cst_359 = arith.constant 1.000000e+00 : f32
    %1545 = vector.broadcast %cst_359 : f32 to vector<8x96xf32>
    %1546 = arith.addf %1545, %1544 : vector<8x96xf32>
    %1547 = arith.divf %1545, %1546 : vector<8x96xf32>
    %1548 = vector.extract_strided_slice %1541 {offsets = [0, 96], sizes = [8, 32], strides = [1, 1]} : vector<8x128xf32> to vector<8x32xf32>
    %1549 = math.tanh %1548 : vector<8x32xf32>
    %1550 = vector.extract_strided_slice %1547 {offsets = [0, 32], sizes = [8, 32], strides = [1, 1]} : vector<8x96xf32> to vector<8x32xf32>
    %1551 = arith.mulf %1550, %1493 : vector<8x32xf32>
    %1552 = vector.extract_strided_slice %1547 {offsets = [0, 0], sizes = [8, 32], strides = [1, 1]} : vector<8x96xf32> to vector<8x32xf32>
    %1553 = arith.mulf %1552, %1549 : vector<8x32xf32>
    %1554 = arith.addf %1551, %1553 : vector<8x32xf32>
    %1555 = vector.extract_strided_slice %1547 {offsets = [0, 64], sizes = [8, 32], strides = [1, 1]} : vector<8x96xf32> to vector<8x32xf32>
    %1556 = math.tanh %1554 : vector<8x32xf32>
    %1557 = arith.mulf %1555, %1556 : vector<8x32xf32>
    %1558 = vector.broadcast %1503 : i32 to vector<8x32xi32>
    %1559 = arith.cmpi slt, %1558, %2 : vector<8x32xi32>
    %1560 = arith.select %1559, %1554, %1493 : vector<8x32xi1>, vector<8x32xf32>
    %1561 = vector.extract_strided_slice %1502 {offsets = [0, 32], sizes = [8, 32], strides = [1, 1]} : vector<8x64xf32> to vector<8x32xf32>
    %1562 = arith.select %1559, %1557, %1561 : vector<8x32xi1>, vector<8x32xf32>
    %cst_360 = arith.constant 0.000000e+00 : f32
    %1563 = vector.broadcast %cst_360 : f32 to vector<8x32xf32>
    %1564 = arith.select %1559, %1557, %1563 : vector<8x32xi1>, vector<8x32xf32>
    %1565 = arith.index_cast %1503 : i32 to index
    %c0_361 = arith.constant 0 : index
    %c32_362 = arith.constant 32 : index
    %1566 = vector.load %arg15[%1565, %c0_361, %c32_362] : memref<12x8x64xf32, #tpu.memory_space<vmem>>, vector<1x8x32xf32>
    %1567 = vector.shape_cast %1566 : vector<1x8x32xf32> to vector<8x32xf32>
    %1568 = vector.shape_cast %1564 : vector<8x32xf32> to vector<1x8x32xf32>
    tpu.vector_store %arg15[%1565, %c0_361, %c32_362], %1568 {strides = array<i32>} : memref<12x8x64xf32, #tpu.memory_space<vmem>>, vector<1x8x32xf32>,
    %1569 = tpu.concatenate %1530, %1562 in 1 : vector<8x32xf32>, vector<8x32xf32> -> vector<8x64xf32>
    %c11_i32_363 = arith.constant 11 : i32
    %c11_i32_364 = arith.constant 11 : i32
    %1570 = arith.subi %c11_i32_364, %c11_i32_363 : i32
    %cst_365 = arith.constant dense<0.000000e+00> : vector<8x256xf32>
    %1571 = tpu.matmul %1569, %829, %cst_365 {dimension_numbers = #tpu.dot_dimension_numbers<[1], [0], [0], [1], [0, 0, 1, 1], [], []>} : vector<8x64xf32>, vector<64x256xf32>, vector<8x256xf32> -> vector<8x256xf32>
    %1572 = arith.index_cast %c11_i32_363 : i32 to index
    %c0_366 = arith.constant 0 : index
    %c0_367 = arith.constant 0 : index
    %1573 = vector.load %arg14[%1572, %c0_366, %c0_367] : memref<12x8x256xf32, #tpu.memory_space<vmem>>, vector<1x8x128xf32>
    %1574 = vector.shape_cast %1573 : vector<1x8x128xf32> to vector<8x128xf32>
    %1575 = vector.extract_strided_slice %1571 {offsets = [0, 0], sizes = [8, 128], strides = [1, 1]} : vector<8x256xf32> to vector<8x128xf32>
    %1576 = arith.addf %1574, %1575 : vector<8x128xf32>
    %1577 = vector.extract_strided_slice %1576 {offsets = [0, 0], sizes = [8, 96], strides = [1, 1]} : vector<8x128xf32> to vector<8x96xf32>
    %1578 = arith.negf %1577 : vector<8x96xf32>
    %1579 = math.exp %1578 : vector<8x96xf32>
    %cst_368 = arith.constant 1.000000e+00 : f32
    %1580 = vector.broadcast %cst_368 : f32 to vector<8x96xf32>
    %1581 = arith.addf %1580, %1579 : vector<8x96xf32>
    %1582 = arith.divf %1580, %1581 : vector<8x96xf32>
    %1583 = vector.extract_strided_slice %1576 {offsets = [0, 96], sizes = [8, 32], strides = [1, 1]} : vector<8x128xf32> to vector<8x32xf32>
    %1584 = math.tanh %1583 : vector<8x32xf32>
    %1585 = vector.extract_strided_slice %1582 {offsets = [0, 32], sizes = [8, 32], strides = [1, 1]} : vector<8x96xf32> to vector<8x32xf32>
    %1586 = arith.mulf %1585, %1528 : vector<8x32xf32>
    %1587 = vector.extract_strided_slice %1582 {offsets = [0, 0], sizes = [8, 32], strides = [1, 1]} : vector<8x96xf32> to vector<8x32xf32>
    %1588 = arith.mulf %1587, %1584 : vector<8x32xf32>
    %1589 = arith.addf %1586, %1588 : vector<8x32xf32>
    %1590 = vector.extract_strided_slice %1582 {offsets = [0, 64], sizes = [8, 32], strides = [1, 1]} : vector<8x96xf32> to vector<8x32xf32>
    %1591 = math.tanh %1589 : vector<8x32xf32>
    %1592 = arith.mulf %1590, %1591 : vector<8x32xf32>
    %1593 = vector.broadcast %c11_i32_363 : i32 to vector<8x32xi32>
    %1594 = arith.cmpi slt, %1593, %2 : vector<8x32xi32>
    %1595 = arith.select %1594, %1589, %1528 : vector<8x32xi1>, vector<8x32xf32>
    %1596 = vector.extract_strided_slice %1569 {offsets = [0, 0], sizes = [8, 32], strides = [1, 1]} : vector<8x64xf32> to vector<8x32xf32>
    %1597 = arith.select %1594, %1592, %1596 : vector<8x32xi1>, vector<8x32xf32>
    %cst_369 = arith.constant 0.000000e+00 : f32
    %1598 = vector.broadcast %cst_369 : f32 to vector<8x32xf32>
    %1599 = arith.select %1594, %1592, %1598 : vector<8x32xi1>, vector<8x32xf32>
    %1600 = arith.index_cast %c11_i32_363 : i32 to index
    %c0_370 = arith.constant 0 : index
    %c0_371 = arith.constant 0 : index
    %1601 = vector.load %arg15[%1600, %c0_370, %c0_371] : memref<12x8x64xf32, #tpu.memory_space<vmem>>, vector<1x8x32xf32>
    %1602 = vector.shape_cast %1601 : vector<1x8x32xf32> to vector<8x32xf32>
    %1603 = vector.shape_cast %1599 : vector<8x32xf32> to vector<1x8x32xf32>
    tpu.vector_store %arg15[%1600, %c0_370, %c0_371], %1603 {strides = array<i32>} : memref<12x8x64xf32, #tpu.memory_space<vmem>>, vector<1x8x32xf32>,
    %1604 = arith.index_cast %1570 : i32 to index
    %c0_372 = arith.constant 0 : index
    %c128_373 = arith.constant 128 : index
    %1605 = vector.load %arg14[%1604, %c0_372, %c128_373] : memref<12x8x256xf32, #tpu.memory_space<vmem>>, vector<1x8x128xf32>
    %1606 = vector.shape_cast %1605 : vector<1x8x128xf32> to vector<8x128xf32>
    %1607 = vector.extract_strided_slice %1571 {offsets = [0, 128], sizes = [8, 128], strides = [1, 1]} : vector<8x256xf32> to vector<8x128xf32>
    %1608 = arith.addf %1606, %1607 : vector<8x128xf32>
    %1609 = vector.extract_strided_slice %1608 {offsets = [0, 0], sizes = [8, 96], strides = [1, 1]} : vector<8x128xf32> to vector<8x96xf32>
    %1610 = arith.negf %1609 : vector<8x96xf32>
    %1611 = math.exp %1610 : vector<8x96xf32>
    %cst_374 = arith.constant 1.000000e+00 : f32
    %1612 = vector.broadcast %cst_374 : f32 to vector<8x96xf32>
    %1613 = arith.addf %1612, %1611 : vector<8x96xf32>
    %1614 = arith.divf %1612, %1613 : vector<8x96xf32>
    %1615 = vector.extract_strided_slice %1608 {offsets = [0, 96], sizes = [8, 32], strides = [1, 1]} : vector<8x128xf32> to vector<8x32xf32>
    %1616 = math.tanh %1615 : vector<8x32xf32>
    %1617 = vector.extract_strided_slice %1614 {offsets = [0, 32], sizes = [8, 32], strides = [1, 1]} : vector<8x96xf32> to vector<8x32xf32>
    %1618 = arith.mulf %1617, %1560 : vector<8x32xf32>
    %1619 = vector.extract_strided_slice %1614 {offsets = [0, 0], sizes = [8, 32], strides = [1, 1]} : vector<8x96xf32> to vector<8x32xf32>
    %1620 = arith.mulf %1619, %1616 : vector<8x32xf32>
    %1621 = arith.addf %1618, %1620 : vector<8x32xf32>
    %1622 = vector.extract_strided_slice %1614 {offsets = [0, 64], sizes = [8, 32], strides = [1, 1]} : vector<8x96xf32> to vector<8x32xf32>
    %1623 = math.tanh %1621 : vector<8x32xf32>
    %1624 = arith.mulf %1622, %1623 : vector<8x32xf32>
    %1625 = vector.broadcast %1570 : i32 to vector<8x32xi32>
    %1626 = arith.cmpi slt, %1625, %2 : vector<8x32xi32>
    %1627 = arith.select %1626, %1621, %1560 : vector<8x32xi1>, vector<8x32xf32>
    %1628 = vector.extract_strided_slice %1569 {offsets = [0, 32], sizes = [8, 32], strides = [1, 1]} : vector<8x64xf32> to vector<8x32xf32>
    %1629 = arith.select %1626, %1624, %1628 : vector<8x32xi1>, vector<8x32xf32>
    %cst_375 = arith.constant 0.000000e+00 : f32
    %1630 = vector.broadcast %cst_375 : f32 to vector<8x32xf32>
    %1631 = arith.select %1626, %1624, %1630 : vector<8x32xi1>, vector<8x32xf32>
    %1632 = arith.index_cast %1570 : i32 to index
    %c0_376 = arith.constant 0 : index
    %c32_377 = arith.constant 32 : index
    %1633 = vector.load %arg15[%1632, %c0_376, %c32_377] : memref<12x8x64xf32, #tpu.memory_space<vmem>>, vector<1x8x32xf32>
    %1634 = vector.shape_cast %1633 : vector<1x8x32xf32> to vector<8x32xf32>
    %1635 = vector.shape_cast %1631 : vector<8x32xf32> to vector<1x8x32xf32>
    tpu.vector_store %arg15[%1632, %c0_376, %c32_377], %1635 {strides = array<i32>} : memref<12x8x64xf32, #tpu.memory_space<vmem>>, vector<1x8x32xf32>,
    %1636 = tpu.concatenate %1597, %1629 in 1 : vector<8x32xf32>, vector<8x32xf32> -> vector<8x64xf32>
    %c12_i32_378 = arith.constant 12 : i32
    %c0_379 = arith.constant 0 : index
    %c0_380 = arith.constant 0 : index
    %c0_381 = arith.constant 0 : index
    %1637 = vector.load %arg15[%c0_379, %c0_380, %c0_381] : memref<12x8x64xf32, #tpu.memory_space<vmem>>, vector<12x8x64xf32>
    %1638 = vector.shape_cast %1637 : vector<12x8x64xf32> to vector<96x64xf32>
    %c0_382 = arith.constant 0 : index
    %c0_383 = arith.constant 0 : index
    %1639 = vector.load %arg8[%c0_382, %c0_383] : memref<64x256xf32, #tpu.memory_space<vmem>>, vector<64x256xf32>
    %cst_384 = arith.constant dense<0.000000e+00> : vector<96x256xf32>
    %1640 = tpu.matmul %1638, %1639, %cst_384 {dimension_numbers = #tpu.dot_dimension_numbers<[1], [0], [0], [1], [0, 0, 1, 1], [], []>} : vector<96x64xf32>, vector<64x256xf32>, vector<96x256xf32> -> vector<96x256xf32>
    %c0_385 = arith.constant 0 : index
    %c0_386 = arith.constant 0 : index
    %1641 = vector.load %arg10[%c0_385, %c0_386] : memref<1x256xf32, #tpu.memory_space<vmem>>, vector<1x256xf32>
    %1642 = vector.broadcast %1641 : vector<1x256xf32> to vector<96x256xf32>
    %1643 = arith.addf %1640, %1642 : vector<96x256xf32>
    %1644 = vector.shape_cast %1643 : vector<96x256xf32> to vector<12x8x256xf32>
    %c0_387 = arith.constant 0 : index
    %c0_388 = arith.constant 0 : index
    %c0_389 = arith.constant 0 : index
    %1645 = vector.load %arg14[%c0_387, %c0_388, %c0_389] : memref<12x8x256xf32, #tpu.memory_space<vmem>>, vector<12x8x256xf32>
    tpu.vector_store %arg14[%c0_387, %c0_388, %c0_389], %1644 {strides = array<i32>} : memref<12x8x256xf32, #tpu.memory_space<vmem>>, vector<12x8x256xf32>,
    %c0_390 = arith.constant 0 : index
    %c0_391 = arith.constant 0 : index
    %1646 = vector.load %arg9[%c0_390, %c0_391] : memref<64x256xf32, #tpu.memory_space<vmem>>, vector<64x256xf32>
    %cst_392 = arith.constant 0.000000e+00 : f32
    %1647 = vector.broadcast %cst_392 : f32 to vector<8x64xf32>
    %cst_393 = arith.constant 0.000000e+00 : f32
    %1648 = vector.broadcast %cst_393 : f32 to vector<8x32xf32>
    %cst_394 = arith.constant 0.000000e+00 : f32
    %1649 = vector.broadcast %cst_394 : f32 to vector<8x32xf32>
    %c0_i32_395 = arith.constant 0 : i32
    %c11_i32_396 = arith.constant 11 : i32
    %1650 = arith.subi %c11_i32_396, %c0_i32_395 : i32
    %cst_397 = arith.constant dense<0.000000e+00> : vector<8x256xf32>
    %1651 = tpu.matmul %1647, %1646, %cst_397 {dimension_numbers = #tpu.dot_dimension_numbers<[1], [0], [0], [1], [0, 0, 1, 1], [], []>} : vector<8x64xf32>, vector<64x256xf32>, vector<8x256xf32> -> vector<8x256xf32>
    %1652 = arith.index_cast %c0_i32_395 : i32 to index
    %c0_398 = arith.constant 0 : index
    %c0_399 = arith.constant 0 : index
    %1653 = vector.load %arg14[%1652, %c0_398, %c0_399] : memref<12x8x256xf32, #tpu.memory_space<vmem>>, vector<1x8x128xf32>
    %1654 = vector.shape_cast %1653 : vector<1x8x128xf32> to vector<8x128xf32>
    %1655 = vector.extract_strided_slice %1651 {offsets = [0, 0], sizes = [8, 128], strides = [1, 1]} : vector<8x256xf32> to vector<8x128xf32>
    %1656 = arith.addf %1654, %1655 : vector<8x128xf32>
    %1657 = vector.extract_strided_slice %1656 {offsets = [0, 0], sizes = [8, 96], strides = [1, 1]} : vector<8x128xf32> to vector<8x96xf32>
    %1658 = arith.negf %1657 : vector<8x96xf32>
    %1659 = math.exp %1658 : vector<8x96xf32>
    %cst_400 = arith.constant 1.000000e+00 : f32
    %1660 = vector.broadcast %cst_400 : f32 to vector<8x96xf32>
    %1661 = arith.addf %1660, %1659 : vector<8x96xf32>
    %1662 = arith.divf %1660, %1661 : vector<8x96xf32>
    %1663 = vector.extract_strided_slice %1656 {offsets = [0, 96], sizes = [8, 32], strides = [1, 1]} : vector<8x128xf32> to vector<8x32xf32>
    %1664 = math.tanh %1663 : vector<8x32xf32>
    %1665 = vector.extract_strided_slice %1662 {offsets = [0, 32], sizes = [8, 32], strides = [1, 1]} : vector<8x96xf32> to vector<8x32xf32>
    %1666 = arith.mulf %1665, %1648 : vector<8x32xf32>
    %1667 = vector.extract_strided_slice %1662 {offsets = [0, 0], sizes = [8, 32], strides = [1, 1]} : vector<8x96xf32> to vector<8x32xf32>
    %1668 = arith.mulf %1667, %1664 : vector<8x32xf32>
    %1669 = arith.addf %1666, %1668 : vector<8x32xf32>
    %1670 = vector.extract_strided_slice %1662 {offsets = [0, 64], sizes = [8, 32], strides = [1, 1]} : vector<8x96xf32> to vector<8x32xf32>
    %1671 = math.tanh %1669 : vector<8x32xf32>
    %1672 = arith.mulf %1670, %1671 : vector<8x32xf32>
    %1673 = vector.broadcast %c0_i32_395 : i32 to vector<8x32xi32>
    %1674 = arith.cmpi slt, %1673, %2 : vector<8x32xi32>
    %1675 = arith.select %1674, %1669, %1648 : vector<8x32xi1>, vector<8x32xf32>
    %1676 = vector.extract_strided_slice %1647 {offsets = [0, 0], sizes = [8, 32], strides = [1, 1]} : vector<8x64xf32> to vector<8x32xf32>
    %1677 = arith.select %1674, %1672, %1676 : vector<8x32xi1>, vector<8x32xf32>
    %cst_401 = arith.constant 0.000000e+00 : f32
    %1678 = vector.broadcast %cst_401 : f32 to vector<8x32xf32>
    %1679 = arith.select %1674, %1672, %1678 : vector<8x32xi1>, vector<8x32xf32>
    %1680 = arith.index_cast %c0_i32_395 : i32 to index
    %c0_402 = arith.constant 0 : index
    %c0_403 = arith.constant 0 : index
    %1681 = vector.load %arg15[%1680, %c0_402, %c0_403] : memref<12x8x64xf32, #tpu.memory_space<vmem>>, vector<1x8x32xf32>
    %1682 = vector.shape_cast %1681 : vector<1x8x32xf32> to vector<8x32xf32>
    %1683 = vector.shape_cast %1679 : vector<8x32xf32> to vector<1x8x32xf32>
    tpu.vector_store %arg15[%1680, %c0_402, %c0_403], %1683 {strides = array<i32>} : memref<12x8x64xf32, #tpu.memory_space<vmem>>, vector<1x8x32xf32>,
    %1684 = arith.index_cast %1650 : i32 to index
    %c0_404 = arith.constant 0 : index
    %c128_405 = arith.constant 128 : index
    %1685 = vector.load %arg14[%1684, %c0_404, %c128_405] : memref<12x8x256xf32, #tpu.memory_space<vmem>>, vector<1x8x128xf32>
    %1686 = vector.shape_cast %1685 : vector<1x8x128xf32> to vector<8x128xf32>
    %1687 = vector.extract_strided_slice %1651 {offsets = [0, 128], sizes = [8, 128], strides = [1, 1]} : vector<8x256xf32> to vector<8x128xf32>
    %1688 = arith.addf %1686, %1687 : vector<8x128xf32>
    %1689 = vector.extract_strided_slice %1688 {offsets = [0, 0], sizes = [8, 96], strides = [1, 1]} : vector<8x128xf32> to vector<8x96xf32>
    %1690 = arith.negf %1689 : vector<8x96xf32>
    %1691 = math.exp %1690 : vector<8x96xf32>
    %cst_406 = arith.constant 1.000000e+00 : f32
    %1692 = vector.broadcast %cst_406 : f32 to vector<8x96xf32>
    %1693 = arith.addf %1692, %1691 : vector<8x96xf32>
    %1694 = arith.divf %1692, %1693 : vector<8x96xf32>
    %1695 = vector.extract_strided_slice %1688 {offsets = [0, 96], sizes = [8, 32], strides = [1, 1]} : vector<8x128xf32> to vector<8x32xf32>
    %1696 = math.tanh %1695 : vector<8x32xf32>
    %1697 = vector.extract_strided_slice %1694 {offsets = [0, 32], sizes = [8, 32], strides = [1, 1]} : vector<8x96xf32> to vector<8x32xf32>
    %1698 = arith.mulf %1697, %1649 : vector<8x32xf32>
    %1699 = vector.extract_strided_slice %1694 {offsets = [0, 0], sizes = [8, 32], strides = [1, 1]} : vector<8x96xf32> to vector<8x32xf32>
    %1700 = arith.mulf %1699, %1696 : vector<8x32xf32>
    %1701 = arith.addf %1698, %1700 : vector<8x32xf32>
    %1702 = vector.extract_strided_slice %1694 {offsets = [0, 64], sizes = [8, 32], strides = [1, 1]} : vector<8x96xf32> to vector<8x32xf32>
    %1703 = math.tanh %1701 : vector<8x32xf32>
    %1704 = arith.mulf %1702, %1703 : vector<8x32xf32>
    %1705 = vector.broadcast %1650 : i32 to vector<8x32xi32>
    %1706 = arith.cmpi slt, %1705, %2 : vector<8x32xi32>
    %1707 = arith.select %1706, %1701, %1649 : vector<8x32xi1>, vector<8x32xf32>
    %1708 = vector.extract_strided_slice %1647 {offsets = [0, 32], sizes = [8, 32], strides = [1, 1]} : vector<8x64xf32> to vector<8x32xf32>
    %1709 = arith.select %1706, %1704, %1708 : vector<8x32xi1>, vector<8x32xf32>
    %cst_407 = arith.constant 0.000000e+00 : f32
    %1710 = vector.broadcast %cst_407 : f32 to vector<8x32xf32>
    %1711 = arith.select %1706, %1704, %1710 : vector<8x32xi1>, vector<8x32xf32>
    %1712 = arith.index_cast %1650 : i32 to index
    %c0_408 = arith.constant 0 : index
    %c32_409 = arith.constant 32 : index
    %1713 = vector.load %arg15[%1712, %c0_408, %c32_409] : memref<12x8x64xf32, #tpu.memory_space<vmem>>, vector<1x8x32xf32>
    %1714 = vector.shape_cast %1713 : vector<1x8x32xf32> to vector<8x32xf32>
    %1715 = vector.shape_cast %1711 : vector<8x32xf32> to vector<1x8x32xf32>
    tpu.vector_store %arg15[%1712, %c0_408, %c32_409], %1715 {strides = array<i32>} : memref<12x8x64xf32, #tpu.memory_space<vmem>>, vector<1x8x32xf32>,
    %1716 = tpu.concatenate %1677, %1709 in 1 : vector<8x32xf32>, vector<8x32xf32> -> vector<8x64xf32>
    %c1_i32_410 = arith.constant 1 : i32
    %c11_i32_411 = arith.constant 11 : i32
    %1717 = arith.subi %c11_i32_411, %c1_i32_410 : i32
    %cst_412 = arith.constant dense<0.000000e+00> : vector<8x256xf32>
    %1718 = tpu.matmul %1716, %1646, %cst_412 {dimension_numbers = #tpu.dot_dimension_numbers<[1], [0], [0], [1], [0, 0, 1, 1], [], []>} : vector<8x64xf32>, vector<64x256xf32>, vector<8x256xf32> -> vector<8x256xf32>
    %1719 = arith.index_cast %c1_i32_410 : i32 to index
    %c0_413 = arith.constant 0 : index
    %c0_414 = arith.constant 0 : index
    %1720 = vector.load %arg14[%1719, %c0_413, %c0_414] : memref<12x8x256xf32, #tpu.memory_space<vmem>>, vector<1x8x128xf32>
    %1721 = vector.shape_cast %1720 : vector<1x8x128xf32> to vector<8x128xf32>
    %1722 = vector.extract_strided_slice %1718 {offsets = [0, 0], sizes = [8, 128], strides = [1, 1]} : vector<8x256xf32> to vector<8x128xf32>
    %1723 = arith.addf %1721, %1722 : vector<8x128xf32>
    %1724 = vector.extract_strided_slice %1723 {offsets = [0, 0], sizes = [8, 96], strides = [1, 1]} : vector<8x128xf32> to vector<8x96xf32>
    %1725 = arith.negf %1724 : vector<8x96xf32>
    %1726 = math.exp %1725 : vector<8x96xf32>
    %cst_415 = arith.constant 1.000000e+00 : f32
    %1727 = vector.broadcast %cst_415 : f32 to vector<8x96xf32>
    %1728 = arith.addf %1727, %1726 : vector<8x96xf32>
    %1729 = arith.divf %1727, %1728 : vector<8x96xf32>
    %1730 = vector.extract_strided_slice %1723 {offsets = [0, 96], sizes = [8, 32], strides = [1, 1]} : vector<8x128xf32> to vector<8x32xf32>
    %1731 = math.tanh %1730 : vector<8x32xf32>
    %1732 = vector.extract_strided_slice %1729 {offsets = [0, 32], sizes = [8, 32], strides = [1, 1]} : vector<8x96xf32> to vector<8x32xf32>
    %1733 = arith.mulf %1732, %1675 : vector<8x32xf32>
    %1734 = vector.extract_strided_slice %1729 {offsets = [0, 0], sizes = [8, 32], strides = [1, 1]} : vector<8x96xf32> to vector<8x32xf32>
    %1735 = arith.mulf %1734, %1731 : vector<8x32xf32>
    %1736 = arith.addf %1733, %1735 : vector<8x32xf32>
    %1737 = vector.extract_strided_slice %1729 {offsets = [0, 64], sizes = [8, 32], strides = [1, 1]} : vector<8x96xf32> to vector<8x32xf32>
    %1738 = math.tanh %1736 : vector<8x32xf32>
    %1739 = arith.mulf %1737, %1738 : vector<8x32xf32>
    %1740 = vector.broadcast %c1_i32_410 : i32 to vector<8x32xi32>
    %1741 = arith.cmpi slt, %1740, %2 : vector<8x32xi32>
    %1742 = arith.select %1741, %1736, %1675 : vector<8x32xi1>, vector<8x32xf32>
    %1743 = vector.extract_strided_slice %1716 {offsets = [0, 0], sizes = [8, 32], strides = [1, 1]} : vector<8x64xf32> to vector<8x32xf32>
    %1744 = arith.select %1741, %1739, %1743 : vector<8x32xi1>, vector<8x32xf32>
    %cst_416 = arith.constant 0.000000e+00 : f32
    %1745 = vector.broadcast %cst_416 : f32 to vector<8x32xf32>
    %1746 = arith.select %1741, %1739, %1745 : vector<8x32xi1>, vector<8x32xf32>
    %1747 = arith.index_cast %c1_i32_410 : i32 to index
    %c0_417 = arith.constant 0 : index
    %c0_418 = arith.constant 0 : index
    %1748 = vector.load %arg15[%1747, %c0_417, %c0_418] : memref<12x8x64xf32, #tpu.memory_space<vmem>>, vector<1x8x32xf32>
    %1749 = vector.shape_cast %1748 : vector<1x8x32xf32> to vector<8x32xf32>
    %1750 = vector.shape_cast %1746 : vector<8x32xf32> to vector<1x8x32xf32>
    tpu.vector_store %arg15[%1747, %c0_417, %c0_418], %1750 {strides = array<i32>} : memref<12x8x64xf32, #tpu.memory_space<vmem>>, vector<1x8x32xf32>,
    %1751 = arith.index_cast %1717 : i32 to index
    %c0_419 = arith.constant 0 : index
    %c128_420 = arith.constant 128 : index
    %1752 = vector.load %arg14[%1751, %c0_419, %c128_420] : memref<12x8x256xf32, #tpu.memory_space<vmem>>, vector<1x8x128xf32>
    %1753 = vector.shape_cast %1752 : vector<1x8x128xf32> to vector<8x128xf32>
    %1754 = vector.extract_strided_slice %1718 {offsets = [0, 128], sizes = [8, 128], strides = [1, 1]} : vector<8x256xf32> to vector<8x128xf32>
    %1755 = arith.addf %1753, %1754 : vector<8x128xf32>
    %1756 = vector.extract_strided_slice %1755 {offsets = [0, 0], sizes = [8, 96], strides = [1, 1]} : vector<8x128xf32> to vector<8x96xf32>
    %1757 = arith.negf %1756 : vector<8x96xf32>
    %1758 = math.exp %1757 : vector<8x96xf32>
    %cst_421 = arith.constant 1.000000e+00 : f32
    %1759 = vector.broadcast %cst_421 : f32 to vector<8x96xf32>
    %1760 = arith.addf %1759, %1758 : vector<8x96xf32>
    %1761 = arith.divf %1759, %1760 : vector<8x96xf32>
    %1762 = vector.extract_strided_slice %1755 {offsets = [0, 96], sizes = [8, 32], strides = [1, 1]} : vector<8x128xf32> to vector<8x32xf32>
    %1763 = math.tanh %1762 : vector<8x32xf32>
    %1764 = vector.extract_strided_slice %1761 {offsets = [0, 32], sizes = [8, 32], strides = [1, 1]} : vector<8x96xf32> to vector<8x32xf32>
    %1765 = arith.mulf %1764, %1707 : vector<8x32xf32>
    %1766 = vector.extract_strided_slice %1761 {offsets = [0, 0], sizes = [8, 32], strides = [1, 1]} : vector<8x96xf32> to vector<8x32xf32>
    %1767 = arith.mulf %1766, %1763 : vector<8x32xf32>
    %1768 = arith.addf %1765, %1767 : vector<8x32xf32>
    %1769 = vector.extract_strided_slice %1761 {offsets = [0, 64], sizes = [8, 32], strides = [1, 1]} : vector<8x96xf32> to vector<8x32xf32>
    %1770 = math.tanh %1768 : vector<8x32xf32>
    %1771 = arith.mulf %1769, %1770 : vector<8x32xf32>
    %1772 = vector.broadcast %1717 : i32 to vector<8x32xi32>
    %1773 = arith.cmpi slt, %1772, %2 : vector<8x32xi32>
    %1774 = arith.select %1773, %1768, %1707 : vector<8x32xi1>, vector<8x32xf32>
    %1775 = vector.extract_strided_slice %1716 {offsets = [0, 32], sizes = [8, 32], strides = [1, 1]} : vector<8x64xf32> to vector<8x32xf32>
    %1776 = arith.select %1773, %1771, %1775 : vector<8x32xi1>, vector<8x32xf32>
    %cst_422 = arith.constant 0.000000e+00 : f32
    %1777 = vector.broadcast %cst_422 : f32 to vector<8x32xf32>
    %1778 = arith.select %1773, %1771, %1777 : vector<8x32xi1>, vector<8x32xf32>
    %1779 = arith.index_cast %1717 : i32 to index
    %c0_423 = arith.constant 0 : index
    %c32_424 = arith.constant 32 : index
    %1780 = vector.load %arg15[%1779, %c0_423, %c32_424] : memref<12x8x64xf32, #tpu.memory_space<vmem>>, vector<1x8x32xf32>
    %1781 = vector.shape_cast %1780 : vector<1x8x32xf32> to vector<8x32xf32>
    %1782 = vector.shape_cast %1778 : vector<8x32xf32> to vector<1x8x32xf32>
    tpu.vector_store %arg15[%1779, %c0_423, %c32_424], %1782 {strides = array<i32>} : memref<12x8x64xf32, #tpu.memory_space<vmem>>, vector<1x8x32xf32>,
    %1783 = tpu.concatenate %1744, %1776 in 1 : vector<8x32xf32>, vector<8x32xf32> -> vector<8x64xf32>
    %c2_i32_425 = arith.constant 2 : i32
    %c11_i32_426 = arith.constant 11 : i32
    %1784 = arith.subi %c11_i32_426, %c2_i32_425 : i32
    %cst_427 = arith.constant dense<0.000000e+00> : vector<8x256xf32>
    %1785 = tpu.matmul %1783, %1646, %cst_427 {dimension_numbers = #tpu.dot_dimension_numbers<[1], [0], [0], [1], [0, 0, 1, 1], [], []>} : vector<8x64xf32>, vector<64x256xf32>, vector<8x256xf32> -> vector<8x256xf32>
    %1786 = arith.index_cast %c2_i32_425 : i32 to index
    %c0_428 = arith.constant 0 : index
    %c0_429 = arith.constant 0 : index
    %1787 = vector.load %arg14[%1786, %c0_428, %c0_429] : memref<12x8x256xf32, #tpu.memory_space<vmem>>, vector<1x8x128xf32>
    %1788 = vector.shape_cast %1787 : vector<1x8x128xf32> to vector<8x128xf32>
    %1789 = vector.extract_strided_slice %1785 {offsets = [0, 0], sizes = [8, 128], strides = [1, 1]} : vector<8x256xf32> to vector<8x128xf32>
    %1790 = arith.addf %1788, %1789 : vector<8x128xf32>
    %1791 = vector.extract_strided_slice %1790 {offsets = [0, 0], sizes = [8, 96], strides = [1, 1]} : vector<8x128xf32> to vector<8x96xf32>
    %1792 = arith.negf %1791 : vector<8x96xf32>
    %1793 = math.exp %1792 : vector<8x96xf32>
    %cst_430 = arith.constant 1.000000e+00 : f32
    %1794 = vector.broadcast %cst_430 : f32 to vector<8x96xf32>
    %1795 = arith.addf %1794, %1793 : vector<8x96xf32>
    %1796 = arith.divf %1794, %1795 : vector<8x96xf32>
    %1797 = vector.extract_strided_slice %1790 {offsets = [0, 96], sizes = [8, 32], strides = [1, 1]} : vector<8x128xf32> to vector<8x32xf32>
    %1798 = math.tanh %1797 : vector<8x32xf32>
    %1799 = vector.extract_strided_slice %1796 {offsets = [0, 32], sizes = [8, 32], strides = [1, 1]} : vector<8x96xf32> to vector<8x32xf32>
    %1800 = arith.mulf %1799, %1742 : vector<8x32xf32>
    %1801 = vector.extract_strided_slice %1796 {offsets = [0, 0], sizes = [8, 32], strides = [1, 1]} : vector<8x96xf32> to vector<8x32xf32>
    %1802 = arith.mulf %1801, %1798 : vector<8x32xf32>
    %1803 = arith.addf %1800, %1802 : vector<8x32xf32>
    %1804 = vector.extract_strided_slice %1796 {offsets = [0, 64], sizes = [8, 32], strides = [1, 1]} : vector<8x96xf32> to vector<8x32xf32>
    %1805 = math.tanh %1803 : vector<8x32xf32>
    %1806 = arith.mulf %1804, %1805 : vector<8x32xf32>
    %1807 = vector.broadcast %c2_i32_425 : i32 to vector<8x32xi32>
    %1808 = arith.cmpi slt, %1807, %2 : vector<8x32xi32>
    %1809 = arith.select %1808, %1803, %1742 : vector<8x32xi1>, vector<8x32xf32>
    %1810 = vector.extract_strided_slice %1783 {offsets = [0, 0], sizes = [8, 32], strides = [1, 1]} : vector<8x64xf32> to vector<8x32xf32>
    %1811 = arith.select %1808, %1806, %1810 : vector<8x32xi1>, vector<8x32xf32>
    %cst_431 = arith.constant 0.000000e+00 : f32
    %1812 = vector.broadcast %cst_431 : f32 to vector<8x32xf32>
    %1813 = arith.select %1808, %1806, %1812 : vector<8x32xi1>, vector<8x32xf32>
    %1814 = arith.index_cast %c2_i32_425 : i32 to index
    %c0_432 = arith.constant 0 : index
    %c0_433 = arith.constant 0 : index
    %1815 = vector.load %arg15[%1814, %c0_432, %c0_433] : memref<12x8x64xf32, #tpu.memory_space<vmem>>, vector<1x8x32xf32>
    %1816 = vector.shape_cast %1815 : vector<1x8x32xf32> to vector<8x32xf32>
    %1817 = vector.shape_cast %1813 : vector<8x32xf32> to vector<1x8x32xf32>
    tpu.vector_store %arg15[%1814, %c0_432, %c0_433], %1817 {strides = array<i32>} : memref<12x8x64xf32, #tpu.memory_space<vmem>>, vector<1x8x32xf32>,
    %1818 = arith.index_cast %1784 : i32 to index
    %c0_434 = arith.constant 0 : index
    %c128_435 = arith.constant 128 : index
    %1819 = vector.load %arg14[%1818, %c0_434, %c128_435] : memref<12x8x256xf32, #tpu.memory_space<vmem>>, vector<1x8x128xf32>
    %1820 = vector.shape_cast %1819 : vector<1x8x128xf32> to vector<8x128xf32>
    %1821 = vector.extract_strided_slice %1785 {offsets = [0, 128], sizes = [8, 128], strides = [1, 1]} : vector<8x256xf32> to vector<8x128xf32>
    %1822 = arith.addf %1820, %1821 : vector<8x128xf32>
    %1823 = vector.extract_strided_slice %1822 {offsets = [0, 0], sizes = [8, 96], strides = [1, 1]} : vector<8x128xf32> to vector<8x96xf32>
    %1824 = arith.negf %1823 : vector<8x96xf32>
    %1825 = math.exp %1824 : vector<8x96xf32>
    %cst_436 = arith.constant 1.000000e+00 : f32
    %1826 = vector.broadcast %cst_436 : f32 to vector<8x96xf32>
    %1827 = arith.addf %1826, %1825 : vector<8x96xf32>
    %1828 = arith.divf %1826, %1827 : vector<8x96xf32>
    %1829 = vector.extract_strided_slice %1822 {offsets = [0, 96], sizes = [8, 32], strides = [1, 1]} : vector<8x128xf32> to vector<8x32xf32>
    %1830 = math.tanh %1829 : vector<8x32xf32>
    %1831 = vector.extract_strided_slice %1828 {offsets = [0, 32], sizes = [8, 32], strides = [1, 1]} : vector<8x96xf32> to vector<8x32xf32>
    %1832 = arith.mulf %1831, %1774 : vector<8x32xf32>
    %1833 = vector.extract_strided_slice %1828 {offsets = [0, 0], sizes = [8, 32], strides = [1, 1]} : vector<8x96xf32> to vector<8x32xf32>
    %1834 = arith.mulf %1833, %1830 : vector<8x32xf32>
    %1835 = arith.addf %1832, %1834 : vector<8x32xf32>
    %1836 = vector.extract_strided_slice %1828 {offsets = [0, 64], sizes = [8, 32], strides = [1, 1]} : vector<8x96xf32> to vector<8x32xf32>
    %1837 = math.tanh %1835 : vector<8x32xf32>
    %1838 = arith.mulf %1836, %1837 : vector<8x32xf32>
    %1839 = vector.broadcast %1784 : i32 to vector<8x32xi32>
    %1840 = arith.cmpi slt, %1839, %2 : vector<8x32xi32>
    %1841 = arith.select %1840, %1835, %1774 : vector<8x32xi1>, vector<8x32xf32>
    %1842 = vector.extract_strided_slice %1783 {offsets = [0, 32], sizes = [8, 32], strides = [1, 1]} : vector<8x64xf32> to vector<8x32xf32>
    %1843 = arith.select %1840, %1838, %1842 : vector<8x32xi1>, vector<8x32xf32>
    %cst_437 = arith.constant 0.000000e+00 : f32
    %1844 = vector.broadcast %cst_437 : f32 to vector<8x32xf32>
    %1845 = arith.select %1840, %1838, %1844 : vector<8x32xi1>, vector<8x32xf32>
    %1846 = arith.index_cast %1784 : i32 to index
    %c0_438 = arith.constant 0 : index
    %c32_439 = arith.constant 32 : index
    %1847 = vector.load %arg15[%1846, %c0_438, %c32_439] : memref<12x8x64xf32, #tpu.memory_space<vmem>>, vector<1x8x32xf32>
    %1848 = vector.shape_cast %1847 : vector<1x8x32xf32> to vector<8x32xf32>
    %1849 = vector.shape_cast %1845 : vector<8x32xf32> to vector<1x8x32xf32>
    tpu.vector_store %arg15[%1846, %c0_438, %c32_439], %1849 {strides = array<i32>} : memref<12x8x64xf32, #tpu.memory_space<vmem>>, vector<1x8x32xf32>,
    %1850 = tpu.concatenate %1811, %1843 in 1 : vector<8x32xf32>, vector<8x32xf32> -> vector<8x64xf32>
    %c3_i32_440 = arith.constant 3 : i32
    %c11_i32_441 = arith.constant 11 : i32
    %1851 = arith.subi %c11_i32_441, %c3_i32_440 : i32
    %cst_442 = arith.constant dense<0.000000e+00> : vector<8x256xf32>
    %1852 = tpu.matmul %1850, %1646, %cst_442 {dimension_numbers = #tpu.dot_dimension_numbers<[1], [0], [0], [1], [0, 0, 1, 1], [], []>} : vector<8x64xf32>, vector<64x256xf32>, vector<8x256xf32> -> vector<8x256xf32>
    %1853 = arith.index_cast %c3_i32_440 : i32 to index
    %c0_443 = arith.constant 0 : index
    %c0_444 = arith.constant 0 : index
    %1854 = vector.load %arg14[%1853, %c0_443, %c0_444] : memref<12x8x256xf32, #tpu.memory_space<vmem>>, vector<1x8x128xf32>
    %1855 = vector.shape_cast %1854 : vector<1x8x128xf32> to vector<8x128xf32>
    %1856 = vector.extract_strided_slice %1852 {offsets = [0, 0], sizes = [8, 128], strides = [1, 1]} : vector<8x256xf32> to vector<8x128xf32>
    %1857 = arith.addf %1855, %1856 : vector<8x128xf32>
    %1858 = vector.extract_strided_slice %1857 {offsets = [0, 0], sizes = [8, 96], strides = [1, 1]} : vector<8x128xf32> to vector<8x96xf32>
    %1859 = arith.negf %1858 : vector<8x96xf32>
    %1860 = math.exp %1859 : vector<8x96xf32>
    %cst_445 = arith.constant 1.000000e+00 : f32
    %1861 = vector.broadcast %cst_445 : f32 to vector<8x96xf32>
    %1862 = arith.addf %1861, %1860 : vector<8x96xf32>
    %1863 = arith.divf %1861, %1862 : vector<8x96xf32>
    %1864 = vector.extract_strided_slice %1857 {offsets = [0, 96], sizes = [8, 32], strides = [1, 1]} : vector<8x128xf32> to vector<8x32xf32>
    %1865 = math.tanh %1864 : vector<8x32xf32>
    %1866 = vector.extract_strided_slice %1863 {offsets = [0, 32], sizes = [8, 32], strides = [1, 1]} : vector<8x96xf32> to vector<8x32xf32>
    %1867 = arith.mulf %1866, %1809 : vector<8x32xf32>
    %1868 = vector.extract_strided_slice %1863 {offsets = [0, 0], sizes = [8, 32], strides = [1, 1]} : vector<8x96xf32> to vector<8x32xf32>
    %1869 = arith.mulf %1868, %1865 : vector<8x32xf32>
    %1870 = arith.addf %1867, %1869 : vector<8x32xf32>
    %1871 = vector.extract_strided_slice %1863 {offsets = [0, 64], sizes = [8, 32], strides = [1, 1]} : vector<8x96xf32> to vector<8x32xf32>
    %1872 = math.tanh %1870 : vector<8x32xf32>
    %1873 = arith.mulf %1871, %1872 : vector<8x32xf32>
    %1874 = vector.broadcast %c3_i32_440 : i32 to vector<8x32xi32>
    %1875 = arith.cmpi slt, %1874, %2 : vector<8x32xi32>
    %1876 = arith.select %1875, %1870, %1809 : vector<8x32xi1>, vector<8x32xf32>
    %1877 = vector.extract_strided_slice %1850 {offsets = [0, 0], sizes = [8, 32], strides = [1, 1]} : vector<8x64xf32> to vector<8x32xf32>
    %1878 = arith.select %1875, %1873, %1877 : vector<8x32xi1>, vector<8x32xf32>
    %cst_446 = arith.constant 0.000000e+00 : f32
    %1879 = vector.broadcast %cst_446 : f32 to vector<8x32xf32>
    %1880 = arith.select %1875, %1873, %1879 : vector<8x32xi1>, vector<8x32xf32>
    %1881 = arith.index_cast %c3_i32_440 : i32 to index
    %c0_447 = arith.constant 0 : index
    %c0_448 = arith.constant 0 : index
    %1882 = vector.load %arg15[%1881, %c0_447, %c0_448] : memref<12x8x64xf32, #tpu.memory_space<vmem>>, vector<1x8x32xf32>
    %1883 = vector.shape_cast %1882 : vector<1x8x32xf32> to vector<8x32xf32>
    %1884 = vector.shape_cast %1880 : vector<8x32xf32> to vector<1x8x32xf32>
    tpu.vector_store %arg15[%1881, %c0_447, %c0_448], %1884 {strides = array<i32>} : memref<12x8x64xf32, #tpu.memory_space<vmem>>, vector<1x8x32xf32>,
    %1885 = arith.index_cast %1851 : i32 to index
    %c0_449 = arith.constant 0 : index
    %c128_450 = arith.constant 128 : index
    %1886 = vector.load %arg14[%1885, %c0_449, %c128_450] : memref<12x8x256xf32, #tpu.memory_space<vmem>>, vector<1x8x128xf32>
    %1887 = vector.shape_cast %1886 : vector<1x8x128xf32> to vector<8x128xf32>
    %1888 = vector.extract_strided_slice %1852 {offsets = [0, 128], sizes = [8, 128], strides = [1, 1]} : vector<8x256xf32> to vector<8x128xf32>
    %1889 = arith.addf %1887, %1888 : vector<8x128xf32>
    %1890 = vector.extract_strided_slice %1889 {offsets = [0, 0], sizes = [8, 96], strides = [1, 1]} : vector<8x128xf32> to vector<8x96xf32>
    %1891 = arith.negf %1890 : vector<8x96xf32>
    %1892 = math.exp %1891 : vector<8x96xf32>
    %cst_451 = arith.constant 1.000000e+00 : f32
    %1893 = vector.broadcast %cst_451 : f32 to vector<8x96xf32>
    %1894 = arith.addf %1893, %1892 : vector<8x96xf32>
    %1895 = arith.divf %1893, %1894 : vector<8x96xf32>
    %1896 = vector.extract_strided_slice %1889 {offsets = [0, 96], sizes = [8, 32], strides = [1, 1]} : vector<8x128xf32> to vector<8x32xf32>
    %1897 = math.tanh %1896 : vector<8x32xf32>
    %1898 = vector.extract_strided_slice %1895 {offsets = [0, 32], sizes = [8, 32], strides = [1, 1]} : vector<8x96xf32> to vector<8x32xf32>
    %1899 = arith.mulf %1898, %1841 : vector<8x32xf32>
    %1900 = vector.extract_strided_slice %1895 {offsets = [0, 0], sizes = [8, 32], strides = [1, 1]} : vector<8x96xf32> to vector<8x32xf32>
    %1901 = arith.mulf %1900, %1897 : vector<8x32xf32>
    %1902 = arith.addf %1899, %1901 : vector<8x32xf32>
    %1903 = vector.extract_strided_slice %1895 {offsets = [0, 64], sizes = [8, 32], strides = [1, 1]} : vector<8x96xf32> to vector<8x32xf32>
    %1904 = math.tanh %1902 : vector<8x32xf32>
    %1905 = arith.mulf %1903, %1904 : vector<8x32xf32>
    %1906 = vector.broadcast %1851 : i32 to vector<8x32xi32>
    %1907 = arith.cmpi slt, %1906, %2 : vector<8x32xi32>
    %1908 = arith.select %1907, %1902, %1841 : vector<8x32xi1>, vector<8x32xf32>
    %1909 = vector.extract_strided_slice %1850 {offsets = [0, 32], sizes = [8, 32], strides = [1, 1]} : vector<8x64xf32> to vector<8x32xf32>
    %1910 = arith.select %1907, %1905, %1909 : vector<8x32xi1>, vector<8x32xf32>
    %cst_452 = arith.constant 0.000000e+00 : f32
    %1911 = vector.broadcast %cst_452 : f32 to vector<8x32xf32>
    %1912 = arith.select %1907, %1905, %1911 : vector<8x32xi1>, vector<8x32xf32>
    %1913 = arith.index_cast %1851 : i32 to index
    %c0_453 = arith.constant 0 : index
    %c32_454 = arith.constant 32 : index
    %1914 = vector.load %arg15[%1913, %c0_453, %c32_454] : memref<12x8x64xf32, #tpu.memory_space<vmem>>, vector<1x8x32xf32>
    %1915 = vector.shape_cast %1914 : vector<1x8x32xf32> to vector<8x32xf32>
    %1916 = vector.shape_cast %1912 : vector<8x32xf32> to vector<1x8x32xf32>
    tpu.vector_store %arg15[%1913, %c0_453, %c32_454], %1916 {strides = array<i32>} : memref<12x8x64xf32, #tpu.memory_space<vmem>>, vector<1x8x32xf32>,
    %1917 = tpu.concatenate %1878, %1910 in 1 : vector<8x32xf32>, vector<8x32xf32> -> vector<8x64xf32>
    %c4_i32_455 = arith.constant 4 : i32
    %c11_i32_456 = arith.constant 11 : i32
    %1918 = arith.subi %c11_i32_456, %c4_i32_455 : i32
    %cst_457 = arith.constant dense<0.000000e+00> : vector<8x256xf32>
    %1919 = tpu.matmul %1917, %1646, %cst_457 {dimension_numbers = #tpu.dot_dimension_numbers<[1], [0], [0], [1], [0, 0, 1, 1], [], []>} : vector<8x64xf32>, vector<64x256xf32>, vector<8x256xf32> -> vector<8x256xf32>
    %1920 = arith.index_cast %c4_i32_455 : i32 to index
    %c0_458 = arith.constant 0 : index
    %c0_459 = arith.constant 0 : index
    %1921 = vector.load %arg14[%1920, %c0_458, %c0_459] : memref<12x8x256xf32, #tpu.memory_space<vmem>>, vector<1x8x128xf32>
    %1922 = vector.shape_cast %1921 : vector<1x8x128xf32> to vector<8x128xf32>
    %1923 = vector.extract_strided_slice %1919 {offsets = [0, 0], sizes = [8, 128], strides = [1, 1]} : vector<8x256xf32> to vector<8x128xf32>
    %1924 = arith.addf %1922, %1923 : vector<8x128xf32>
    %1925 = vector.extract_strided_slice %1924 {offsets = [0, 0], sizes = [8, 96], strides = [1, 1]} : vector<8x128xf32> to vector<8x96xf32>
    %1926 = arith.negf %1925 : vector<8x96xf32>
    %1927 = math.exp %1926 : vector<8x96xf32>
    %cst_460 = arith.constant 1.000000e+00 : f32
    %1928 = vector.broadcast %cst_460 : f32 to vector<8x96xf32>
    %1929 = arith.addf %1928, %1927 : vector<8x96xf32>
    %1930 = arith.divf %1928, %1929 : vector<8x96xf32>
    %1931 = vector.extract_strided_slice %1924 {offsets = [0, 96], sizes = [8, 32], strides = [1, 1]} : vector<8x128xf32> to vector<8x32xf32>
    %1932 = math.tanh %1931 : vector<8x32xf32>
    %1933 = vector.extract_strided_slice %1930 {offsets = [0, 32], sizes = [8, 32], strides = [1, 1]} : vector<8x96xf32> to vector<8x32xf32>
    %1934 = arith.mulf %1933, %1876 : vector<8x32xf32>
    %1935 = vector.extract_strided_slice %1930 {offsets = [0, 0], sizes = [8, 32], strides = [1, 1]} : vector<8x96xf32> to vector<8x32xf32>
    %1936 = arith.mulf %1935, %1932 : vector<8x32xf32>
    %1937 = arith.addf %1934, %1936 : vector<8x32xf32>
    %1938 = vector.extract_strided_slice %1930 {offsets = [0, 64], sizes = [8, 32], strides = [1, 1]} : vector<8x96xf32> to vector<8x32xf32>
    %1939 = math.tanh %1937 : vector<8x32xf32>
    %1940 = arith.mulf %1938, %1939 : vector<8x32xf32>
    %1941 = vector.broadcast %c4_i32_455 : i32 to vector<8x32xi32>
    %1942 = arith.cmpi slt, %1941, %2 : vector<8x32xi32>
    %1943 = arith.select %1942, %1937, %1876 : vector<8x32xi1>, vector<8x32xf32>
    %1944 = vector.extract_strided_slice %1917 {offsets = [0, 0], sizes = [8, 32], strides = [1, 1]} : vector<8x64xf32> to vector<8x32xf32>
    %1945 = arith.select %1942, %1940, %1944 : vector<8x32xi1>, vector<8x32xf32>
    %cst_461 = arith.constant 0.000000e+00 : f32
    %1946 = vector.broadcast %cst_461 : f32 to vector<8x32xf32>
    %1947 = arith.select %1942, %1940, %1946 : vector<8x32xi1>, vector<8x32xf32>
    %1948 = arith.index_cast %c4_i32_455 : i32 to index
    %c0_462 = arith.constant 0 : index
    %c0_463 = arith.constant 0 : index
    %1949 = vector.load %arg15[%1948, %c0_462, %c0_463] : memref<12x8x64xf32, #tpu.memory_space<vmem>>, vector<1x8x32xf32>
    %1950 = vector.shape_cast %1949 : vector<1x8x32xf32> to vector<8x32xf32>
    %1951 = vector.shape_cast %1947 : vector<8x32xf32> to vector<1x8x32xf32>
    tpu.vector_store %arg15[%1948, %c0_462, %c0_463], %1951 {strides = array<i32>} : memref<12x8x64xf32, #tpu.memory_space<vmem>>, vector<1x8x32xf32>,
    %1952 = arith.index_cast %1918 : i32 to index
    %c0_464 = arith.constant 0 : index
    %c128_465 = arith.constant 128 : index
    %1953 = vector.load %arg14[%1952, %c0_464, %c128_465] : memref<12x8x256xf32, #tpu.memory_space<vmem>>, vector<1x8x128xf32>
    %1954 = vector.shape_cast %1953 : vector<1x8x128xf32> to vector<8x128xf32>
    %1955 = vector.extract_strided_slice %1919 {offsets = [0, 128], sizes = [8, 128], strides = [1, 1]} : vector<8x256xf32> to vector<8x128xf32>
    %1956 = arith.addf %1954, %1955 : vector<8x128xf32>
    %1957 = vector.extract_strided_slice %1956 {offsets = [0, 0], sizes = [8, 96], strides = [1, 1]} : vector<8x128xf32> to vector<8x96xf32>
    %1958 = arith.negf %1957 : vector<8x96xf32>
    %1959 = math.exp %1958 : vector<8x96xf32>
    %cst_466 = arith.constant 1.000000e+00 : f32
    %1960 = vector.broadcast %cst_466 : f32 to vector<8x96xf32>
    %1961 = arith.addf %1960, %1959 : vector<8x96xf32>
    %1962 = arith.divf %1960, %1961 : vector<8x96xf32>
    %1963 = vector.extract_strided_slice %1956 {offsets = [0, 96], sizes = [8, 32], strides = [1, 1]} : vector<8x128xf32> to vector<8x32xf32>
    %1964 = math.tanh %1963 : vector<8x32xf32>
    %1965 = vector.extract_strided_slice %1962 {offsets = [0, 32], sizes = [8, 32], strides = [1, 1]} : vector<8x96xf32> to vector<8x32xf32>
    %1966 = arith.mulf %1965, %1908 : vector<8x32xf32>
    %1967 = vector.extract_strided_slice %1962 {offsets = [0, 0], sizes = [8, 32], strides = [1, 1]} : vector<8x96xf32> to vector<8x32xf32>
    %1968 = arith.mulf %1967, %1964 : vector<8x32xf32>
    %1969 = arith.addf %1966, %1968 : vector<8x32xf32>
    %1970 = vector.extract_strided_slice %1962 {offsets = [0, 64], sizes = [8, 32], strides = [1, 1]} : vector<8x96xf32> to vector<8x32xf32>
    %1971 = math.tanh %1969 : vector<8x32xf32>
    %1972 = arith.mulf %1970, %1971 : vector<8x32xf32>
    %1973 = vector.broadcast %1918 : i32 to vector<8x32xi32>
    %1974 = arith.cmpi slt, %1973, %2 : vector<8x32xi32>
    %1975 = arith.select %1974, %1969, %1908 : vector<8x32xi1>, vector<8x32xf32>
    %1976 = vector.extract_strided_slice %1917 {offsets = [0, 32], sizes = [8, 32], strides = [1, 1]} : vector<8x64xf32> to vector<8x32xf32>
    %1977 = arith.select %1974, %1972, %1976 : vector<8x32xi1>, vector<8x32xf32>
    %cst_467 = arith.constant 0.000000e+00 : f32
    %1978 = vector.broadcast %cst_467 : f32 to vector<8x32xf32>
    %1979 = arith.select %1974, %1972, %1978 : vector<8x32xi1>, vector<8x32xf32>
    %1980 = arith.index_cast %1918 : i32 to index
    %c0_468 = arith.constant 0 : index
    %c32_469 = arith.constant 32 : index
    %1981 = vector.load %arg15[%1980, %c0_468, %c32_469] : memref<12x8x64xf32, #tpu.memory_space<vmem>>, vector<1x8x32xf32>
    %1982 = vector.shape_cast %1981 : vector<1x8x32xf32> to vector<8x32xf32>
    %1983 = vector.shape_cast %1979 : vector<8x32xf32> to vector<1x8x32xf32>
    tpu.vector_store %arg15[%1980, %c0_468, %c32_469], %1983 {strides = array<i32>} : memref<12x8x64xf32, #tpu.memory_space<vmem>>, vector<1x8x32xf32>,
    %1984 = tpu.concatenate %1945, %1977 in 1 : vector<8x32xf32>, vector<8x32xf32> -> vector<8x64xf32>
    %c5_i32_470 = arith.constant 5 : i32
    %c11_i32_471 = arith.constant 11 : i32
    %1985 = arith.subi %c11_i32_471, %c5_i32_470 : i32
    %cst_472 = arith.constant dense<0.000000e+00> : vector<8x256xf32>
    %1986 = tpu.matmul %1984, %1646, %cst_472 {dimension_numbers = #tpu.dot_dimension_numbers<[1], [0], [0], [1], [0, 0, 1, 1], [], []>} : vector<8x64xf32>, vector<64x256xf32>, vector<8x256xf32> -> vector<8x256xf32>
    %1987 = arith.index_cast %c5_i32_470 : i32 to index
    %c0_473 = arith.constant 0 : index
    %c0_474 = arith.constant 0 : index
    %1988 = vector.load %arg14[%1987, %c0_473, %c0_474] : memref<12x8x256xf32, #tpu.memory_space<vmem>>, vector<1x8x128xf32>
    %1989 = vector.shape_cast %1988 : vector<1x8x128xf32> to vector<8x128xf32>
    %1990 = vector.extract_strided_slice %1986 {offsets = [0, 0], sizes = [8, 128], strides = [1, 1]} : vector<8x256xf32> to vector<8x128xf32>
    %1991 = arith.addf %1989, %1990 : vector<8x128xf32>
    %1992 = vector.extract_strided_slice %1991 {offsets = [0, 0], sizes = [8, 96], strides = [1, 1]} : vector<8x128xf32> to vector<8x96xf32>
    %1993 = arith.negf %1992 : vector<8x96xf32>
    %1994 = math.exp %1993 : vector<8x96xf32>
    %cst_475 = arith.constant 1.000000e+00 : f32
    %1995 = vector.broadcast %cst_475 : f32 to vector<8x96xf32>
    %1996 = arith.addf %1995, %1994 : vector<8x96xf32>
    %1997 = arith.divf %1995, %1996 : vector<8x96xf32>
    %1998 = vector.extract_strided_slice %1991 {offsets = [0, 96], sizes = [8, 32], strides = [1, 1]} : vector<8x128xf32> to vector<8x32xf32>
    %1999 = math.tanh %1998 : vector<8x32xf32>
    %2000 = vector.extract_strided_slice %1997 {offsets = [0, 32], sizes = [8, 32], strides = [1, 1]} : vector<8x96xf32> to vector<8x32xf32>
    %2001 = arith.mulf %2000, %1943 : vector<8x32xf32>
    %2002 = vector.extract_strided_slice %1997 {offsets = [0, 0], sizes = [8, 32], strides = [1, 1]} : vector<8x96xf32> to vector<8x32xf32>
    %2003 = arith.mulf %2002, %1999 : vector<8x32xf32>
    %2004 = arith.addf %2001, %2003 : vector<8x32xf32>
    %2005 = vector.extract_strided_slice %1997 {offsets = [0, 64], sizes = [8, 32], strides = [1, 1]} : vector<8x96xf32> to vector<8x32xf32>
    %2006 = math.tanh %2004 : vector<8x32xf32>
    %2007 = arith.mulf %2005, %2006 : vector<8x32xf32>
    %2008 = vector.broadcast %c5_i32_470 : i32 to vector<8x32xi32>
    %2009 = arith.cmpi slt, %2008, %2 : vector<8x32xi32>
    %2010 = arith.select %2009, %2004, %1943 : vector<8x32xi1>, vector<8x32xf32>
    %2011 = vector.extract_strided_slice %1984 {offsets = [0, 0], sizes = [8, 32], strides = [1, 1]} : vector<8x64xf32> to vector<8x32xf32>
    %2012 = arith.select %2009, %2007, %2011 : vector<8x32xi1>, vector<8x32xf32>
    %cst_476 = arith.constant 0.000000e+00 : f32
    %2013 = vector.broadcast %cst_476 : f32 to vector<8x32xf32>
    %2014 = arith.select %2009, %2007, %2013 : vector<8x32xi1>, vector<8x32xf32>
    %2015 = arith.index_cast %c5_i32_470 : i32 to index
    %c0_477 = arith.constant 0 : index
    %c0_478 = arith.constant 0 : index
    %2016 = vector.load %arg15[%2015, %c0_477, %c0_478] : memref<12x8x64xf32, #tpu.memory_space<vmem>>, vector<1x8x32xf32>
    %2017 = vector.shape_cast %2016 : vector<1x8x32xf32> to vector<8x32xf32>
    %2018 = vector.shape_cast %2014 : vector<8x32xf32> to vector<1x8x32xf32>
    tpu.vector_store %arg15[%2015, %c0_477, %c0_478], %2018 {strides = array<i32>} : memref<12x8x64xf32, #tpu.memory_space<vmem>>, vector<1x8x32xf32>,
    %2019 = arith.index_cast %1985 : i32 to index
    %c0_479 = arith.constant 0 : index
    %c128_480 = arith.constant 128 : index
    %2020 = vector.load %arg14[%2019, %c0_479, %c128_480] : memref<12x8x256xf32, #tpu.memory_space<vmem>>, vector<1x8x128xf32>
    %2021 = vector.shape_cast %2020 : vector<1x8x128xf32> to vector<8x128xf32>
    %2022 = vector.extract_strided_slice %1986 {offsets = [0, 128], sizes = [8, 128], strides = [1, 1]} : vector<8x256xf32> to vector<8x128xf32>
    %2023 = arith.addf %2021, %2022 : vector<8x128xf32>
    %2024 = vector.extract_strided_slice %2023 {offsets = [0, 0], sizes = [8, 96], strides = [1, 1]} : vector<8x128xf32> to vector<8x96xf32>
    %2025 = arith.negf %2024 : vector<8x96xf32>
    %2026 = math.exp %2025 : vector<8x96xf32>
    %cst_481 = arith.constant 1.000000e+00 : f32
    %2027 = vector.broadcast %cst_481 : f32 to vector<8x96xf32>
    %2028 = arith.addf %2027, %2026 : vector<8x96xf32>
    %2029 = arith.divf %2027, %2028 : vector<8x96xf32>
    %2030 = vector.extract_strided_slice %2023 {offsets = [0, 96], sizes = [8, 32], strides = [1, 1]} : vector<8x128xf32> to vector<8x32xf32>
    %2031 = math.tanh %2030 : vector<8x32xf32>
    %2032 = vector.extract_strided_slice %2029 {offsets = [0, 32], sizes = [8, 32], strides = [1, 1]} : vector<8x96xf32> to vector<8x32xf32>
    %2033 = arith.mulf %2032, %1975 : vector<8x32xf32>
    %2034 = vector.extract_strided_slice %2029 {offsets = [0, 0], sizes = [8, 32], strides = [1, 1]} : vector<8x96xf32> to vector<8x32xf32>
    %2035 = arith.mulf %2034, %2031 : vector<8x32xf32>
    %2036 = arith.addf %2033, %2035 : vector<8x32xf32>
    %2037 = vector.extract_strided_slice %2029 {offsets = [0, 64], sizes = [8, 32], strides = [1, 1]} : vector<8x96xf32> to vector<8x32xf32>
    %2038 = math.tanh %2036 : vector<8x32xf32>
    %2039 = arith.mulf %2037, %2038 : vector<8x32xf32>
    %2040 = vector.broadcast %1985 : i32 to vector<8x32xi32>
    %2041 = arith.cmpi slt, %2040, %2 : vector<8x32xi32>
    %2042 = arith.select %2041, %2036, %1975 : vector<8x32xi1>, vector<8x32xf32>
    %2043 = vector.extract_strided_slice %1984 {offsets = [0, 32], sizes = [8, 32], strides = [1, 1]} : vector<8x64xf32> to vector<8x32xf32>
    %2044 = arith.select %2041, %2039, %2043 : vector<8x32xi1>, vector<8x32xf32>
    %cst_482 = arith.constant 0.000000e+00 : f32
    %2045 = vector.broadcast %cst_482 : f32 to vector<8x32xf32>
    %2046 = arith.select %2041, %2039, %2045 : vector<8x32xi1>, vector<8x32xf32>
    %2047 = arith.index_cast %1985 : i32 to index
    %c0_483 = arith.constant 0 : index
    %c32_484 = arith.constant 32 : index
    %2048 = vector.load %arg15[%2047, %c0_483, %c32_484] : memref<12x8x64xf32, #tpu.memory_space<vmem>>, vector<1x8x32xf32>
    %2049 = vector.shape_cast %2048 : vector<1x8x32xf32> to vector<8x32xf32>
    %2050 = vector.shape_cast %2046 : vector<8x32xf32> to vector<1x8x32xf32>
    tpu.vector_store %arg15[%2047, %c0_483, %c32_484], %2050 {strides = array<i32>} : memref<12x8x64xf32, #tpu.memory_space<vmem>>, vector<1x8x32xf32>,
    %2051 = tpu.concatenate %2012, %2044 in 1 : vector<8x32xf32>, vector<8x32xf32> -> vector<8x64xf32>
    %c6_i32_485 = arith.constant 6 : i32
    %c11_i32_486 = arith.constant 11 : i32
    %2052 = arith.subi %c11_i32_486, %c6_i32_485 : i32
    %cst_487 = arith.constant dense<0.000000e+00> : vector<8x256xf32>
    %2053 = tpu.matmul %2051, %1646, %cst_487 {dimension_numbers = #tpu.dot_dimension_numbers<[1], [0], [0], [1], [0, 0, 1, 1], [], []>} : vector<8x64xf32>, vector<64x256xf32>, vector<8x256xf32> -> vector<8x256xf32>
    %2054 = arith.index_cast %c6_i32_485 : i32 to index
    %c0_488 = arith.constant 0 : index
    %c0_489 = arith.constant 0 : index
    %2055 = vector.load %arg14[%2054, %c0_488, %c0_489] : memref<12x8x256xf32, #tpu.memory_space<vmem>>, vector<1x8x128xf32>
    %2056 = vector.shape_cast %2055 : vector<1x8x128xf32> to vector<8x128xf32>
    %2057 = vector.extract_strided_slice %2053 {offsets = [0, 0], sizes = [8, 128], strides = [1, 1]} : vector<8x256xf32> to vector<8x128xf32>
    %2058 = arith.addf %2056, %2057 : vector<8x128xf32>
    %2059 = vector.extract_strided_slice %2058 {offsets = [0, 0], sizes = [8, 96], strides = [1, 1]} : vector<8x128xf32> to vector<8x96xf32>
    %2060 = arith.negf %2059 : vector<8x96xf32>
    %2061 = math.exp %2060 : vector<8x96xf32>
    %cst_490 = arith.constant 1.000000e+00 : f32
    %2062 = vector.broadcast %cst_490 : f32 to vector<8x96xf32>
    %2063 = arith.addf %2062, %2061 : vector<8x96xf32>
    %2064 = arith.divf %2062, %2063 : vector<8x96xf32>
    %2065 = vector.extract_strided_slice %2058 {offsets = [0, 96], sizes = [8, 32], strides = [1, 1]} : vector<8x128xf32> to vector<8x32xf32>
    %2066 = math.tanh %2065 : vector<8x32xf32>
    %2067 = vector.extract_strided_slice %2064 {offsets = [0, 32], sizes = [8, 32], strides = [1, 1]} : vector<8x96xf32> to vector<8x32xf32>
    %2068 = arith.mulf %2067, %2010 : vector<8x32xf32>
    %2069 = vector.extract_strided_slice %2064 {offsets = [0, 0], sizes = [8, 32], strides = [1, 1]} : vector<8x96xf32> to vector<8x32xf32>
    %2070 = arith.mulf %2069, %2066 : vector<8x32xf32>
    %2071 = arith.addf %2068, %2070 : vector<8x32xf32>
    %2072 = vector.extract_strided_slice %2064 {offsets = [0, 64], sizes = [8, 32], strides = [1, 1]} : vector<8x96xf32> to vector<8x32xf32>
    %2073 = math.tanh %2071 : vector<8x32xf32>
    %2074 = arith.mulf %2072, %2073 : vector<8x32xf32>
    %2075 = vector.broadcast %c6_i32_485 : i32 to vector<8x32xi32>
    %2076 = arith.cmpi slt, %2075, %2 : vector<8x32xi32>
    %2077 = arith.select %2076, %2071, %2010 : vector<8x32xi1>, vector<8x32xf32>
    %2078 = vector.extract_strided_slice %2051 {offsets = [0, 0], sizes = [8, 32], strides = [1, 1]} : vector<8x64xf32> to vector<8x32xf32>
    %2079 = arith.select %2076, %2074, %2078 : vector<8x32xi1>, vector<8x32xf32>
    %cst_491 = arith.constant 0.000000e+00 : f32
    %2080 = vector.broadcast %cst_491 : f32 to vector<8x32xf32>
    %2081 = arith.select %2076, %2074, %2080 : vector<8x32xi1>, vector<8x32xf32>
    %2082 = arith.index_cast %c6_i32_485 : i32 to index
    %c0_492 = arith.constant 0 : index
    %c0_493 = arith.constant 0 : index
    %2083 = vector.load %arg15[%2082, %c0_492, %c0_493] : memref<12x8x64xf32, #tpu.memory_space<vmem>>, vector<1x8x32xf32>
    %2084 = vector.shape_cast %2083 : vector<1x8x32xf32> to vector<8x32xf32>
    %2085 = vector.shape_cast %2081 : vector<8x32xf32> to vector<1x8x32xf32>
    tpu.vector_store %arg15[%2082, %c0_492, %c0_493], %2085 {strides = array<i32>} : memref<12x8x64xf32, #tpu.memory_space<vmem>>, vector<1x8x32xf32>,
    %2086 = arith.index_cast %2052 : i32 to index
    %c0_494 = arith.constant 0 : index
    %c128_495 = arith.constant 128 : index
    %2087 = vector.load %arg14[%2086, %c0_494, %c128_495] : memref<12x8x256xf32, #tpu.memory_space<vmem>>, vector<1x8x128xf32>
    %2088 = vector.shape_cast %2087 : vector<1x8x128xf32> to vector<8x128xf32>
    %2089 = vector.extract_strided_slice %2053 {offsets = [0, 128], sizes = [8, 128], strides = [1, 1]} : vector<8x256xf32> to vector<8x128xf32>
    %2090 = arith.addf %2088, %2089 : vector<8x128xf32>
    %2091 = vector.extract_strided_slice %2090 {offsets = [0, 0], sizes = [8, 96], strides = [1, 1]} : vector<8x128xf32> to vector<8x96xf32>
    %2092 = arith.negf %2091 : vector<8x96xf32>
    %2093 = math.exp %2092 : vector<8x96xf32>
    %cst_496 = arith.constant 1.000000e+00 : f32
    %2094 = vector.broadcast %cst_496 : f32 to vector<8x96xf32>
    %2095 = arith.addf %2094, %2093 : vector<8x96xf32>
    %2096 = arith.divf %2094, %2095 : vector<8x96xf32>
    %2097 = vector.extract_strided_slice %2090 {offsets = [0, 96], sizes = [8, 32], strides = [1, 1]} : vector<8x128xf32> to vector<8x32xf32>
    %2098 = math.tanh %2097 : vector<8x32xf32>
    %2099 = vector.extract_strided_slice %2096 {offsets = [0, 32], sizes = [8, 32], strides = [1, 1]} : vector<8x96xf32> to vector<8x32xf32>
    %2100 = arith.mulf %2099, %2042 : vector<8x32xf32>
    %2101 = vector.extract_strided_slice %2096 {offsets = [0, 0], sizes = [8, 32], strides = [1, 1]} : vector<8x96xf32> to vector<8x32xf32>
    %2102 = arith.mulf %2101, %2098 : vector<8x32xf32>
    %2103 = arith.addf %2100, %2102 : vector<8x32xf32>
    %2104 = vector.extract_strided_slice %2096 {offsets = [0, 64], sizes = [8, 32], strides = [1, 1]} : vector<8x96xf32> to vector<8x32xf32>
    %2105 = math.tanh %2103 : vector<8x32xf32>
    %2106 = arith.mulf %2104, %2105 : vector<8x32xf32>
    %2107 = vector.broadcast %2052 : i32 to vector<8x32xi32>
    %2108 = arith.cmpi slt, %2107, %2 : vector<8x32xi32>
    %2109 = arith.select %2108, %2103, %2042 : vector<8x32xi1>, vector<8x32xf32>
    %2110 = vector.extract_strided_slice %2051 {offsets = [0, 32], sizes = [8, 32], strides = [1, 1]} : vector<8x64xf32> to vector<8x32xf32>
    %2111 = arith.select %2108, %2106, %2110 : vector<8x32xi1>, vector<8x32xf32>
    %cst_497 = arith.constant 0.000000e+00 : f32
    %2112 = vector.broadcast %cst_497 : f32 to vector<8x32xf32>
    %2113 = arith.select %2108, %2106, %2112 : vector<8x32xi1>, vector<8x32xf32>
    %2114 = arith.index_cast %2052 : i32 to index
    %c0_498 = arith.constant 0 : index
    %c32_499 = arith.constant 32 : index
    %2115 = vector.load %arg15[%2114, %c0_498, %c32_499] : memref<12x8x64xf32, #tpu.memory_space<vmem>>, vector<1x8x32xf32>
    %2116 = vector.shape_cast %2115 : vector<1x8x32xf32> to vector<8x32xf32>
    %2117 = vector.shape_cast %2113 : vector<8x32xf32> to vector<1x8x32xf32>
    tpu.vector_store %arg15[%2114, %c0_498, %c32_499], %2117 {strides = array<i32>} : memref<12x8x64xf32, #tpu.memory_space<vmem>>, vector<1x8x32xf32>,
    %2118 = tpu.concatenate %2079, %2111 in 1 : vector<8x32xf32>, vector<8x32xf32> -> vector<8x64xf32>
    %c7_i32_500 = arith.constant 7 : i32
    %c11_i32_501 = arith.constant 11 : i32
    %2119 = arith.subi %c11_i32_501, %c7_i32_500 : i32
    %cst_502 = arith.constant dense<0.000000e+00> : vector<8x256xf32>
    %2120 = tpu.matmul %2118, %1646, %cst_502 {dimension_numbers = #tpu.dot_dimension_numbers<[1], [0], [0], [1], [0, 0, 1, 1], [], []>} : vector<8x64xf32>, vector<64x256xf32>, vector<8x256xf32> -> vector<8x256xf32>
    %2121 = arith.index_cast %c7_i32_500 : i32 to index
    %c0_503 = arith.constant 0 : index
    %c0_504 = arith.constant 0 : index
    %2122 = vector.load %arg14[%2121, %c0_503, %c0_504] : memref<12x8x256xf32, #tpu.memory_space<vmem>>, vector<1x8x128xf32>
    %2123 = vector.shape_cast %2122 : vector<1x8x128xf32> to vector<8x128xf32>
    %2124 = vector.extract_strided_slice %2120 {offsets = [0, 0], sizes = [8, 128], strides = [1, 1]} : vector<8x256xf32> to vector<8x128xf32>
    %2125 = arith.addf %2123, %2124 : vector<8x128xf32>
    %2126 = vector.extract_strided_slice %2125 {offsets = [0, 0], sizes = [8, 96], strides = [1, 1]} : vector<8x128xf32> to vector<8x96xf32>
    %2127 = arith.negf %2126 : vector<8x96xf32>
    %2128 = math.exp %2127 : vector<8x96xf32>
    %cst_505 = arith.constant 1.000000e+00 : f32
    %2129 = vector.broadcast %cst_505 : f32 to vector<8x96xf32>
    %2130 = arith.addf %2129, %2128 : vector<8x96xf32>
    %2131 = arith.divf %2129, %2130 : vector<8x96xf32>
    %2132 = vector.extract_strided_slice %2125 {offsets = [0, 96], sizes = [8, 32], strides = [1, 1]} : vector<8x128xf32> to vector<8x32xf32>
    %2133 = math.tanh %2132 : vector<8x32xf32>
    %2134 = vector.extract_strided_slice %2131 {offsets = [0, 32], sizes = [8, 32], strides = [1, 1]} : vector<8x96xf32> to vector<8x32xf32>
    %2135 = arith.mulf %2134, %2077 : vector<8x32xf32>
    %2136 = vector.extract_strided_slice %2131 {offsets = [0, 0], sizes = [8, 32], strides = [1, 1]} : vector<8x96xf32> to vector<8x32xf32>
    %2137 = arith.mulf %2136, %2133 : vector<8x32xf32>
    %2138 = arith.addf %2135, %2137 : vector<8x32xf32>
    %2139 = vector.extract_strided_slice %2131 {offsets = [0, 64], sizes = [8, 32], strides = [1, 1]} : vector<8x96xf32> to vector<8x32xf32>
    %2140 = math.tanh %2138 : vector<8x32xf32>
    %2141 = arith.mulf %2139, %2140 : vector<8x32xf32>
    %2142 = vector.broadcast %c7_i32_500 : i32 to vector<8x32xi32>
    %2143 = arith.cmpi slt, %2142, %2 : vector<8x32xi32>
    %2144 = arith.select %2143, %2138, %2077 : vector<8x32xi1>, vector<8x32xf32>
    %2145 = vector.extract_strided_slice %2118 {offsets = [0, 0], sizes = [8, 32], strides = [1, 1]} : vector<8x64xf32> to vector<8x32xf32>
    %2146 = arith.select %2143, %2141, %2145 : vector<8x32xi1>, vector<8x32xf32>
    %cst_506 = arith.constant 0.000000e+00 : f32
    %2147 = vector.broadcast %cst_506 : f32 to vector<8x32xf32>
    %2148 = arith.select %2143, %2141, %2147 : vector<8x32xi1>, vector<8x32xf32>
    %2149 = arith.index_cast %c7_i32_500 : i32 to index
    %c0_507 = arith.constant 0 : index
    %c0_508 = arith.constant 0 : index
    %2150 = vector.load %arg15[%2149, %c0_507, %c0_508] : memref<12x8x64xf32, #tpu.memory_space<vmem>>, vector<1x8x32xf32>
    %2151 = vector.shape_cast %2150 : vector<1x8x32xf32> to vector<8x32xf32>
    %2152 = vector.shape_cast %2148 : vector<8x32xf32> to vector<1x8x32xf32>
    tpu.vector_store %arg15[%2149, %c0_507, %c0_508], %2152 {strides = array<i32>} : memref<12x8x64xf32, #tpu.memory_space<vmem>>, vector<1x8x32xf32>,
    %2153 = arith.index_cast %2119 : i32 to index
    %c0_509 = arith.constant 0 : index
    %c128_510 = arith.constant 128 : index
    %2154 = vector.load %arg14[%2153, %c0_509, %c128_510] : memref<12x8x256xf32, #tpu.memory_space<vmem>>, vector<1x8x128xf32>
    %2155 = vector.shape_cast %2154 : vector<1x8x128xf32> to vector<8x128xf32>
    %2156 = vector.extract_strided_slice %2120 {offsets = [0, 128], sizes = [8, 128], strides = [1, 1]} : vector<8x256xf32> to vector<8x128xf32>
    %2157 = arith.addf %2155, %2156 : vector<8x128xf32>
    %2158 = vector.extract_strided_slice %2157 {offsets = [0, 0], sizes = [8, 96], strides = [1, 1]} : vector<8x128xf32> to vector<8x96xf32>
    %2159 = arith.negf %2158 : vector<8x96xf32>
    %2160 = math.exp %2159 : vector<8x96xf32>
    %cst_511 = arith.constant 1.000000e+00 : f32
    %2161 = vector.broadcast %cst_511 : f32 to vector<8x96xf32>
    %2162 = arith.addf %2161, %2160 : vector<8x96xf32>
    %2163 = arith.divf %2161, %2162 : vector<8x96xf32>
    %2164 = vector.extract_strided_slice %2157 {offsets = [0, 96], sizes = [8, 32], strides = [1, 1]} : vector<8x128xf32> to vector<8x32xf32>
    %2165 = math.tanh %2164 : vector<8x32xf32>
    %2166 = vector.extract_strided_slice %2163 {offsets = [0, 32], sizes = [8, 32], strides = [1, 1]} : vector<8x96xf32> to vector<8x32xf32>
    %2167 = arith.mulf %2166, %2109 : vector<8x32xf32>
    %2168 = vector.extract_strided_slice %2163 {offsets = [0, 0], sizes = [8, 32], strides = [1, 1]} : vector<8x96xf32> to vector<8x32xf32>
    %2169 = arith.mulf %2168, %2165 : vector<8x32xf32>
    %2170 = arith.addf %2167, %2169 : vector<8x32xf32>
    %2171 = vector.extract_strided_slice %2163 {offsets = [0, 64], sizes = [8, 32], strides = [1, 1]} : vector<8x96xf32> to vector<8x32xf32>
    %2172 = math.tanh %2170 : vector<8x32xf32>
    %2173 = arith.mulf %2171, %2172 : vector<8x32xf32>
    %2174 = vector.broadcast %2119 : i32 to vector<8x32xi32>
    %2175 = arith.cmpi slt, %2174, %2 : vector<8x32xi32>
    %2176 = arith.select %2175, %2170, %2109 : vector<8x32xi1>, vector<8x32xf32>
    %2177 = vector.extract_strided_slice %2118 {offsets = [0, 32], sizes = [8, 32], strides = [1, 1]} : vector<8x64xf32> to vector<8x32xf32>
    %2178 = arith.select %2175, %2173, %2177 : vector<8x32xi1>, vector<8x32xf32>
    %cst_512 = arith.constant 0.000000e+00 : f32
    %2179 = vector.broadcast %cst_512 : f32 to vector<8x32xf32>
    %2180 = arith.select %2175, %2173, %2179 : vector<8x32xi1>, vector<8x32xf32>
    %2181 = arith.index_cast %2119 : i32 to index
    %c0_513 = arith.constant 0 : index
    %c32_514 = arith.constant 32 : index
    %2182 = vector.load %arg15[%2181, %c0_513, %c32_514] : memref<12x8x64xf32, #tpu.memory_space<vmem>>, vector<1x8x32xf32>
    %2183 = vector.shape_cast %2182 : vector<1x8x32xf32> to vector<8x32xf32>
    %2184 = vector.shape_cast %2180 : vector<8x32xf32> to vector<1x8x32xf32>
    tpu.vector_store %arg15[%2181, %c0_513, %c32_514], %2184 {strides = array<i32>} : memref<12x8x64xf32, #tpu.memory_space<vmem>>, vector<1x8x32xf32>,
    %2185 = tpu.concatenate %2146, %2178 in 1 : vector<8x32xf32>, vector<8x32xf32> -> vector<8x64xf32>
    %c8_i32_515 = arith.constant 8 : i32
    %c11_i32_516 = arith.constant 11 : i32
    %2186 = arith.subi %c11_i32_516, %c8_i32_515 : i32
    %cst_517 = arith.constant dense<0.000000e+00> : vector<8x256xf32>
    %2187 = tpu.matmul %2185, %1646, %cst_517 {dimension_numbers = #tpu.dot_dimension_numbers<[1], [0], [0], [1], [0, 0, 1, 1], [], []>} : vector<8x64xf32>, vector<64x256xf32>, vector<8x256xf32> -> vector<8x256xf32>
    %2188 = arith.index_cast %c8_i32_515 : i32 to index
    %c0_518 = arith.constant 0 : index
    %c0_519 = arith.constant 0 : index
    %2189 = vector.load %arg14[%2188, %c0_518, %c0_519] : memref<12x8x256xf32, #tpu.memory_space<vmem>>, vector<1x8x128xf32>
    %2190 = vector.shape_cast %2189 : vector<1x8x128xf32> to vector<8x128xf32>
    %2191 = vector.extract_strided_slice %2187 {offsets = [0, 0], sizes = [8, 128], strides = [1, 1]} : vector<8x256xf32> to vector<8x128xf32>
    %2192 = arith.addf %2190, %2191 : vector<8x128xf32>
    %2193 = vector.extract_strided_slice %2192 {offsets = [0, 0], sizes = [8, 96], strides = [1, 1]} : vector<8x128xf32> to vector<8x96xf32>
    %2194 = arith.negf %2193 : vector<8x96xf32>
    %2195 = math.exp %2194 : vector<8x96xf32>
    %cst_520 = arith.constant 1.000000e+00 : f32
    %2196 = vector.broadcast %cst_520 : f32 to vector<8x96xf32>
    %2197 = arith.addf %2196, %2195 : vector<8x96xf32>
    %2198 = arith.divf %2196, %2197 : vector<8x96xf32>
    %2199 = vector.extract_strided_slice %2192 {offsets = [0, 96], sizes = [8, 32], strides = [1, 1]} : vector<8x128xf32> to vector<8x32xf32>
    %2200 = math.tanh %2199 : vector<8x32xf32>
    %2201 = vector.extract_strided_slice %2198 {offsets = [0, 32], sizes = [8, 32], strides = [1, 1]} : vector<8x96xf32> to vector<8x32xf32>
    %2202 = arith.mulf %2201, %2144 : vector<8x32xf32>
    %2203 = vector.extract_strided_slice %2198 {offsets = [0, 0], sizes = [8, 32], strides = [1, 1]} : vector<8x96xf32> to vector<8x32xf32>
    %2204 = arith.mulf %2203, %2200 : vector<8x32xf32>
    %2205 = arith.addf %2202, %2204 : vector<8x32xf32>
    %2206 = vector.extract_strided_slice %2198 {offsets = [0, 64], sizes = [8, 32], strides = [1, 1]} : vector<8x96xf32> to vector<8x32xf32>
    %2207 = math.tanh %2205 : vector<8x32xf32>
    %2208 = arith.mulf %2206, %2207 : vector<8x32xf32>
    %2209 = vector.broadcast %c8_i32_515 : i32 to vector<8x32xi32>
    %2210 = arith.cmpi slt, %2209, %2 : vector<8x32xi32>
    %2211 = arith.select %2210, %2205, %2144 : vector<8x32xi1>, vector<8x32xf32>
    %2212 = vector.extract_strided_slice %2185 {offsets = [0, 0], sizes = [8, 32], strides = [1, 1]} : vector<8x64xf32> to vector<8x32xf32>
    %2213 = arith.select %2210, %2208, %2212 : vector<8x32xi1>, vector<8x32xf32>
    %cst_521 = arith.constant 0.000000e+00 : f32
    %2214 = vector.broadcast %cst_521 : f32 to vector<8x32xf32>
    %2215 = arith.select %2210, %2208, %2214 : vector<8x32xi1>, vector<8x32xf32>
    %2216 = arith.index_cast %c8_i32_515 : i32 to index
    %c0_522 = arith.constant 0 : index
    %c0_523 = arith.constant 0 : index
    %2217 = vector.load %arg15[%2216, %c0_522, %c0_523] : memref<12x8x64xf32, #tpu.memory_space<vmem>>, vector<1x8x32xf32>
    %2218 = vector.shape_cast %2217 : vector<1x8x32xf32> to vector<8x32xf32>
    %2219 = vector.shape_cast %2215 : vector<8x32xf32> to vector<1x8x32xf32>
    tpu.vector_store %arg15[%2216, %c0_522, %c0_523], %2219 {strides = array<i32>} : memref<12x8x64xf32, #tpu.memory_space<vmem>>, vector<1x8x32xf32>,
    %2220 = arith.index_cast %2186 : i32 to index
    %c0_524 = arith.constant 0 : index
    %c128_525 = arith.constant 128 : index
    %2221 = vector.load %arg14[%2220, %c0_524, %c128_525] : memref<12x8x256xf32, #tpu.memory_space<vmem>>, vector<1x8x128xf32>
    %2222 = vector.shape_cast %2221 : vector<1x8x128xf32> to vector<8x128xf32>
    %2223 = vector.extract_strided_slice %2187 {offsets = [0, 128], sizes = [8, 128], strides = [1, 1]} : vector<8x256xf32> to vector<8x128xf32>
    %2224 = arith.addf %2222, %2223 : vector<8x128xf32>
    %2225 = vector.extract_strided_slice %2224 {offsets = [0, 0], sizes = [8, 96], strides = [1, 1]} : vector<8x128xf32> to vector<8x96xf32>
    %2226 = arith.negf %2225 : vector<8x96xf32>
    %2227 = math.exp %2226 : vector<8x96xf32>
    %cst_526 = arith.constant 1.000000e+00 : f32
    %2228 = vector.broadcast %cst_526 : f32 to vector<8x96xf32>
    %2229 = arith.addf %2228, %2227 : vector<8x96xf32>
    %2230 = arith.divf %2228, %2229 : vector<8x96xf32>
    %2231 = vector.extract_strided_slice %2224 {offsets = [0, 96], sizes = [8, 32], strides = [1, 1]} : vector<8x128xf32> to vector<8x32xf32>
    %2232 = math.tanh %2231 : vector<8x32xf32>
    %2233 = vector.extract_strided_slice %2230 {offsets = [0, 32], sizes = [8, 32], strides = [1, 1]} : vector<8x96xf32> to vector<8x32xf32>
    %2234 = arith.mulf %2233, %2176 : vector<8x32xf32>
    %2235 = vector.extract_strided_slice %2230 {offsets = [0, 0], sizes = [8, 32], strides = [1, 1]} : vector<8x96xf32> to vector<8x32xf32>
    %2236 = arith.mulf %2235, %2232 : vector<8x32xf32>
    %2237 = arith.addf %2234, %2236 : vector<8x32xf32>
    %2238 = vector.extract_strided_slice %2230 {offsets = [0, 64], sizes = [8, 32], strides = [1, 1]} : vector<8x96xf32> to vector<8x32xf32>
    %2239 = math.tanh %2237 : vector<8x32xf32>
    %2240 = arith.mulf %2238, %2239 : vector<8x32xf32>
    %2241 = vector.broadcast %2186 : i32 to vector<8x32xi32>
    %2242 = arith.cmpi slt, %2241, %2 : vector<8x32xi32>
    %2243 = arith.select %2242, %2237, %2176 : vector<8x32xi1>, vector<8x32xf32>
    %2244 = vector.extract_strided_slice %2185 {offsets = [0, 32], sizes = [8, 32], strides = [1, 1]} : vector<8x64xf32> to vector<8x32xf32>
    %2245 = arith.select %2242, %2240, %2244 : vector<8x32xi1>, vector<8x32xf32>
    %cst_527 = arith.constant 0.000000e+00 : f32
    %2246 = vector.broadcast %cst_527 : f32 to vector<8x32xf32>
    %2247 = arith.select %2242, %2240, %2246 : vector<8x32xi1>, vector<8x32xf32>
    %2248 = arith.index_cast %2186 : i32 to index
    %c0_528 = arith.constant 0 : index
    %c32_529 = arith.constant 32 : index
    %2249 = vector.load %arg15[%2248, %c0_528, %c32_529] : memref<12x8x64xf32, #tpu.memory_space<vmem>>, vector<1x8x32xf32>
    %2250 = vector.shape_cast %2249 : vector<1x8x32xf32> to vector<8x32xf32>
    %2251 = vector.shape_cast %2247 : vector<8x32xf32> to vector<1x8x32xf32>
    tpu.vector_store %arg15[%2248, %c0_528, %c32_529], %2251 {strides = array<i32>} : memref<12x8x64xf32, #tpu.memory_space<vmem>>, vector<1x8x32xf32>,
    %2252 = tpu.concatenate %2213, %2245 in 1 : vector<8x32xf32>, vector<8x32xf32> -> vector<8x64xf32>
    %c9_i32_530 = arith.constant 9 : i32
    %c11_i32_531 = arith.constant 11 : i32
    %2253 = arith.subi %c11_i32_531, %c9_i32_530 : i32
    %cst_532 = arith.constant dense<0.000000e+00> : vector<8x256xf32>
    %2254 = tpu.matmul %2252, %1646, %cst_532 {dimension_numbers = #tpu.dot_dimension_numbers<[1], [0], [0], [1], [0, 0, 1, 1], [], []>} : vector<8x64xf32>, vector<64x256xf32>, vector<8x256xf32> -> vector<8x256xf32>
    %2255 = arith.index_cast %c9_i32_530 : i32 to index
    %c0_533 = arith.constant 0 : index
    %c0_534 = arith.constant 0 : index
    %2256 = vector.load %arg14[%2255, %c0_533, %c0_534] : memref<12x8x256xf32, #tpu.memory_space<vmem>>, vector<1x8x128xf32>
    %2257 = vector.shape_cast %2256 : vector<1x8x128xf32> to vector<8x128xf32>
    %2258 = vector.extract_strided_slice %2254 {offsets = [0, 0], sizes = [8, 128], strides = [1, 1]} : vector<8x256xf32> to vector<8x128xf32>
    %2259 = arith.addf %2257, %2258 : vector<8x128xf32>
    %2260 = vector.extract_strided_slice %2259 {offsets = [0, 0], sizes = [8, 96], strides = [1, 1]} : vector<8x128xf32> to vector<8x96xf32>
    %2261 = arith.negf %2260 : vector<8x96xf32>
    %2262 = math.exp %2261 : vector<8x96xf32>
    %cst_535 = arith.constant 1.000000e+00 : f32
    %2263 = vector.broadcast %cst_535 : f32 to vector<8x96xf32>
    %2264 = arith.addf %2263, %2262 : vector<8x96xf32>
    %2265 = arith.divf %2263, %2264 : vector<8x96xf32>
    %2266 = vector.extract_strided_slice %2259 {offsets = [0, 96], sizes = [8, 32], strides = [1, 1]} : vector<8x128xf32> to vector<8x32xf32>
    %2267 = math.tanh %2266 : vector<8x32xf32>
    %2268 = vector.extract_strided_slice %2265 {offsets = [0, 32], sizes = [8, 32], strides = [1, 1]} : vector<8x96xf32> to vector<8x32xf32>
    %2269 = arith.mulf %2268, %2211 : vector<8x32xf32>
    %2270 = vector.extract_strided_slice %2265 {offsets = [0, 0], sizes = [8, 32], strides = [1, 1]} : vector<8x96xf32> to vector<8x32xf32>
    %2271 = arith.mulf %2270, %2267 : vector<8x32xf32>
    %2272 = arith.addf %2269, %2271 : vector<8x32xf32>
    %2273 = vector.extract_strided_slice %2265 {offsets = [0, 64], sizes = [8, 32], strides = [1, 1]} : vector<8x96xf32> to vector<8x32xf32>
    %2274 = math.tanh %2272 : vector<8x32xf32>
    %2275 = arith.mulf %2273, %2274 : vector<8x32xf32>
    %2276 = vector.broadcast %c9_i32_530 : i32 to vector<8x32xi32>
    %2277 = arith.cmpi slt, %2276, %2 : vector<8x32xi32>
    %2278 = arith.select %2277, %2272, %2211 : vector<8x32xi1>, vector<8x32xf32>
    %2279 = vector.extract_strided_slice %2252 {offsets = [0, 0], sizes = [8, 32], strides = [1, 1]} : vector<8x64xf32> to vector<8x32xf32>
    %2280 = arith.select %2277, %2275, %2279 : vector<8x32xi1>, vector<8x32xf32>
    %cst_536 = arith.constant 0.000000e+00 : f32
    %2281 = vector.broadcast %cst_536 : f32 to vector<8x32xf32>
    %2282 = arith.select %2277, %2275, %2281 : vector<8x32xi1>, vector<8x32xf32>
    %2283 = arith.index_cast %c9_i32_530 : i32 to index
    %c0_537 = arith.constant 0 : index
    %c0_538 = arith.constant 0 : index
    %2284 = vector.load %arg15[%2283, %c0_537, %c0_538] : memref<12x8x64xf32, #tpu.memory_space<vmem>>, vector<1x8x32xf32>
    %2285 = vector.shape_cast %2284 : vector<1x8x32xf32> to vector<8x32xf32>
    %2286 = vector.shape_cast %2282 : vector<8x32xf32> to vector<1x8x32xf32>
    tpu.vector_store %arg15[%2283, %c0_537, %c0_538], %2286 {strides = array<i32>} : memref<12x8x64xf32, #tpu.memory_space<vmem>>, vector<1x8x32xf32>,
    %2287 = arith.index_cast %2253 : i32 to index
    %c0_539 = arith.constant 0 : index
    %c128_540 = arith.constant 128 : index
    %2288 = vector.load %arg14[%2287, %c0_539, %c128_540] : memref<12x8x256xf32, #tpu.memory_space<vmem>>, vector<1x8x128xf32>
    %2289 = vector.shape_cast %2288 : vector<1x8x128xf32> to vector<8x128xf32>
    %2290 = vector.extract_strided_slice %2254 {offsets = [0, 128], sizes = [8, 128], strides = [1, 1]} : vector<8x256xf32> to vector<8x128xf32>
    %2291 = arith.addf %2289, %2290 : vector<8x128xf32>
    %2292 = vector.extract_strided_slice %2291 {offsets = [0, 0], sizes = [8, 96], strides = [1, 1]} : vector<8x128xf32> to vector<8x96xf32>
    %2293 = arith.negf %2292 : vector<8x96xf32>
    %2294 = math.exp %2293 : vector<8x96xf32>
    %cst_541 = arith.constant 1.000000e+00 : f32
    %2295 = vector.broadcast %cst_541 : f32 to vector<8x96xf32>
    %2296 = arith.addf %2295, %2294 : vector<8x96xf32>
    %2297 = arith.divf %2295, %2296 : vector<8x96xf32>
    %2298 = vector.extract_strided_slice %2291 {offsets = [0, 96], sizes = [8, 32], strides = [1, 1]} : vector<8x128xf32> to vector<8x32xf32>
    %2299 = math.tanh %2298 : vector<8x32xf32>
    %2300 = vector.extract_strided_slice %2297 {offsets = [0, 32], sizes = [8, 32], strides = [1, 1]} : vector<8x96xf32> to vector<8x32xf32>
    %2301 = arith.mulf %2300, %2243 : vector<8x32xf32>
    %2302 = vector.extract_strided_slice %2297 {offsets = [0, 0], sizes = [8, 32], strides = [1, 1]} : vector<8x96xf32> to vector<8x32xf32>
    %2303 = arith.mulf %2302, %2299 : vector<8x32xf32>
    %2304 = arith.addf %2301, %2303 : vector<8x32xf32>
    %2305 = vector.extract_strided_slice %2297 {offsets = [0, 64], sizes = [8, 32], strides = [1, 1]} : vector<8x96xf32> to vector<8x32xf32>
    %2306 = math.tanh %2304 : vector<8x32xf32>
    %2307 = arith.mulf %2305, %2306 : vector<8x32xf32>
    %2308 = vector.broadcast %2253 : i32 to vector<8x32xi32>
    %2309 = arith.cmpi slt, %2308, %2 : vector<8x32xi32>
    %2310 = arith.select %2309, %2304, %2243 : vector<8x32xi1>, vector<8x32xf32>
    %2311 = vector.extract_strided_slice %2252 {offsets = [0, 32], sizes = [8, 32], strides = [1, 1]} : vector<8x64xf32> to vector<8x32xf32>
    %2312 = arith.select %2309, %2307, %2311 : vector<8x32xi1>, vector<8x32xf32>
    %cst_542 = arith.constant 0.000000e+00 : f32
    %2313 = vector.broadcast %cst_542 : f32 to vector<8x32xf32>
    %2314 = arith.select %2309, %2307, %2313 : vector<8x32xi1>, vector<8x32xf32>
    %2315 = arith.index_cast %2253 : i32 to index
    %c0_543 = arith.constant 0 : index
    %c32_544 = arith.constant 32 : index
    %2316 = vector.load %arg15[%2315, %c0_543, %c32_544] : memref<12x8x64xf32, #tpu.memory_space<vmem>>, vector<1x8x32xf32>
    %2317 = vector.shape_cast %2316 : vector<1x8x32xf32> to vector<8x32xf32>
    %2318 = vector.shape_cast %2314 : vector<8x32xf32> to vector<1x8x32xf32>
    tpu.vector_store %arg15[%2315, %c0_543, %c32_544], %2318 {strides = array<i32>} : memref<12x8x64xf32, #tpu.memory_space<vmem>>, vector<1x8x32xf32>,
    %2319 = tpu.concatenate %2280, %2312 in 1 : vector<8x32xf32>, vector<8x32xf32> -> vector<8x64xf32>
    %c10_i32_545 = arith.constant 10 : i32
    %c11_i32_546 = arith.constant 11 : i32
    %2320 = arith.subi %c11_i32_546, %c10_i32_545 : i32
    %cst_547 = arith.constant dense<0.000000e+00> : vector<8x256xf32>
    %2321 = tpu.matmul %2319, %1646, %cst_547 {dimension_numbers = #tpu.dot_dimension_numbers<[1], [0], [0], [1], [0, 0, 1, 1], [], []>} : vector<8x64xf32>, vector<64x256xf32>, vector<8x256xf32> -> vector<8x256xf32>
    %2322 = arith.index_cast %c10_i32_545 : i32 to index
    %c0_548 = arith.constant 0 : index
    %c0_549 = arith.constant 0 : index
    %2323 = vector.load %arg14[%2322, %c0_548, %c0_549] : memref<12x8x256xf32, #tpu.memory_space<vmem>>, vector<1x8x128xf32>
    %2324 = vector.shape_cast %2323 : vector<1x8x128xf32> to vector<8x128xf32>
    %2325 = vector.extract_strided_slice %2321 {offsets = [0, 0], sizes = [8, 128], strides = [1, 1]} : vector<8x256xf32> to vector<8x128xf32>
    %2326 = arith.addf %2324, %2325 : vector<8x128xf32>
    %2327 = vector.extract_strided_slice %2326 {offsets = [0, 0], sizes = [8, 96], strides = [1, 1]} : vector<8x128xf32> to vector<8x96xf32>
    %2328 = arith.negf %2327 : vector<8x96xf32>
    %2329 = math.exp %2328 : vector<8x96xf32>
    %cst_550 = arith.constant 1.000000e+00 : f32
    %2330 = vector.broadcast %cst_550 : f32 to vector<8x96xf32>
    %2331 = arith.addf %2330, %2329 : vector<8x96xf32>
    %2332 = arith.divf %2330, %2331 : vector<8x96xf32>
    %2333 = vector.extract_strided_slice %2326 {offsets = [0, 96], sizes = [8, 32], strides = [1, 1]} : vector<8x128xf32> to vector<8x32xf32>
    %2334 = math.tanh %2333 : vector<8x32xf32>
    %2335 = vector.extract_strided_slice %2332 {offsets = [0, 32], sizes = [8, 32], strides = [1, 1]} : vector<8x96xf32> to vector<8x32xf32>
    %2336 = arith.mulf %2335, %2278 : vector<8x32xf32>
    %2337 = vector.extract_strided_slice %2332 {offsets = [0, 0], sizes = [8, 32], strides = [1, 1]} : vector<8x96xf32> to vector<8x32xf32>
    %2338 = arith.mulf %2337, %2334 : vector<8x32xf32>
    %2339 = arith.addf %2336, %2338 : vector<8x32xf32>
    %2340 = vector.extract_strided_slice %2332 {offsets = [0, 64], sizes = [8, 32], strides = [1, 1]} : vector<8x96xf32> to vector<8x32xf32>
    %2341 = math.tanh %2339 : vector<8x32xf32>
    %2342 = arith.mulf %2340, %2341 : vector<8x32xf32>
    %2343 = vector.broadcast %c10_i32_545 : i32 to vector<8x32xi32>
    %2344 = arith.cmpi slt, %2343, %2 : vector<8x32xi32>
    %2345 = arith.select %2344, %2339, %2278 : vector<8x32xi1>, vector<8x32xf32>
    %2346 = vector.extract_strided_slice %2319 {offsets = [0, 0], sizes = [8, 32], strides = [1, 1]} : vector<8x64xf32> to vector<8x32xf32>
    %2347 = arith.select %2344, %2342, %2346 : vector<8x32xi1>, vector<8x32xf32>
    %cst_551 = arith.constant 0.000000e+00 : f32
    %2348 = vector.broadcast %cst_551 : f32 to vector<8x32xf32>
    %2349 = arith.select %2344, %2342, %2348 : vector<8x32xi1>, vector<8x32xf32>
    %2350 = arith.index_cast %c10_i32_545 : i32 to index
    %c0_552 = arith.constant 0 : index
    %c0_553 = arith.constant 0 : index
    %2351 = vector.load %arg15[%2350, %c0_552, %c0_553] : memref<12x8x64xf32, #tpu.memory_space<vmem>>, vector<1x8x32xf32>
    %2352 = vector.shape_cast %2351 : vector<1x8x32xf32> to vector<8x32xf32>
    %2353 = vector.shape_cast %2349 : vector<8x32xf32> to vector<1x8x32xf32>
    tpu.vector_store %arg15[%2350, %c0_552, %c0_553], %2353 {strides = array<i32>} : memref<12x8x64xf32, #tpu.memory_space<vmem>>, vector<1x8x32xf32>,
    %2354 = arith.index_cast %2320 : i32 to index
    %c0_554 = arith.constant 0 : index
    %c128_555 = arith.constant 128 : index
    %2355 = vector.load %arg14[%2354, %c0_554, %c128_555] : memref<12x8x256xf32, #tpu.memory_space<vmem>>, vector<1x8x128xf32>
    %2356 = vector.shape_cast %2355 : vector<1x8x128xf32> to vector<8x128xf32>
    %2357 = vector.extract_strided_slice %2321 {offsets = [0, 128], sizes = [8, 128], strides = [1, 1]} : vector<8x256xf32> to vector<8x128xf32>
    %2358 = arith.addf %2356, %2357 : vector<8x128xf32>
    %2359 = vector.extract_strided_slice %2358 {offsets = [0, 0], sizes = [8, 96], strides = [1, 1]} : vector<8x128xf32> to vector<8x96xf32>
    %2360 = arith.negf %2359 : vector<8x96xf32>
    %2361 = math.exp %2360 : vector<8x96xf32>
    %cst_556 = arith.constant 1.000000e+00 : f32
    %2362 = vector.broadcast %cst_556 : f32 to vector<8x96xf32>
    %2363 = arith.addf %2362, %2361 : vector<8x96xf32>
    %2364 = arith.divf %2362, %2363 : vector<8x96xf32>
    %2365 = vector.extract_strided_slice %2358 {offsets = [0, 96], sizes = [8, 32], strides = [1, 1]} : vector<8x128xf32> to vector<8x32xf32>
    %2366 = math.tanh %2365 : vector<8x32xf32>
    %2367 = vector.extract_strided_slice %2364 {offsets = [0, 32], sizes = [8, 32], strides = [1, 1]} : vector<8x96xf32> to vector<8x32xf32>
    %2368 = arith.mulf %2367, %2310 : vector<8x32xf32>
    %2369 = vector.extract_strided_slice %2364 {offsets = [0, 0], sizes = [8, 32], strides = [1, 1]} : vector<8x96xf32> to vector<8x32xf32>
    %2370 = arith.mulf %2369, %2366 : vector<8x32xf32>
    %2371 = arith.addf %2368, %2370 : vector<8x32xf32>
    %2372 = vector.extract_strided_slice %2364 {offsets = [0, 64], sizes = [8, 32], strides = [1, 1]} : vector<8x96xf32> to vector<8x32xf32>
    %2373 = math.tanh %2371 : vector<8x32xf32>
    %2374 = arith.mulf %2372, %2373 : vector<8x32xf32>
    %2375 = vector.broadcast %2320 : i32 to vector<8x32xi32>
    %2376 = arith.cmpi slt, %2375, %2 : vector<8x32xi32>
    %2377 = arith.select %2376, %2371, %2310 : vector<8x32xi1>, vector<8x32xf32>
    %2378 = vector.extract_strided_slice %2319 {offsets = [0, 32], sizes = [8, 32], strides = [1, 1]} : vector<8x64xf32> to vector<8x32xf32>
    %2379 = arith.select %2376, %2374, %2378 : vector<8x32xi1>, vector<8x32xf32>
    %cst_557 = arith.constant 0.000000e+00 : f32
    %2380 = vector.broadcast %cst_557 : f32 to vector<8x32xf32>
    %2381 = arith.select %2376, %2374, %2380 : vector<8x32xi1>, vector<8x32xf32>
    %2382 = arith.index_cast %2320 : i32 to index
    %c0_558 = arith.constant 0 : index
    %c32_559 = arith.constant 32 : index
    %2383 = vector.load %arg15[%2382, %c0_558, %c32_559] : memref<12x8x64xf32, #tpu.memory_space<vmem>>, vector<1x8x32xf32>
    %2384 = vector.shape_cast %2383 : vector<1x8x32xf32> to vector<8x32xf32>
    %2385 = vector.shape_cast %2381 : vector<8x32xf32> to vector<1x8x32xf32>
    tpu.vector_store %arg15[%2382, %c0_558, %c32_559], %2385 {strides = array<i32>} : memref<12x8x64xf32, #tpu.memory_space<vmem>>, vector<1x8x32xf32>,
    %2386 = tpu.concatenate %2347, %2379 in 1 : vector<8x32xf32>, vector<8x32xf32> -> vector<8x64xf32>
    %c11_i32_560 = arith.constant 11 : i32
    %c11_i32_561 = arith.constant 11 : i32
    %2387 = arith.subi %c11_i32_561, %c11_i32_560 : i32
    %cst_562 = arith.constant dense<0.000000e+00> : vector<8x256xf32>
    %2388 = tpu.matmul %2386, %1646, %cst_562 {dimension_numbers = #tpu.dot_dimension_numbers<[1], [0], [0], [1], [0, 0, 1, 1], [], []>} : vector<8x64xf32>, vector<64x256xf32>, vector<8x256xf32> -> vector<8x256xf32>
    %2389 = arith.index_cast %c11_i32_560 : i32 to index
    %c0_563 = arith.constant 0 : index
    %c0_564 = arith.constant 0 : index
    %2390 = vector.load %arg14[%2389, %c0_563, %c0_564] : memref<12x8x256xf32, #tpu.memory_space<vmem>>, vector<1x8x128xf32>
    %2391 = vector.shape_cast %2390 : vector<1x8x128xf32> to vector<8x128xf32>
    %2392 = vector.extract_strided_slice %2388 {offsets = [0, 0], sizes = [8, 128], strides = [1, 1]} : vector<8x256xf32> to vector<8x128xf32>
    %2393 = arith.addf %2391, %2392 : vector<8x128xf32>
    %2394 = vector.extract_strided_slice %2393 {offsets = [0, 0], sizes = [8, 96], strides = [1, 1]} : vector<8x128xf32> to vector<8x96xf32>
    %2395 = arith.negf %2394 : vector<8x96xf32>
    %2396 = math.exp %2395 : vector<8x96xf32>
    %cst_565 = arith.constant 1.000000e+00 : f32
    %2397 = vector.broadcast %cst_565 : f32 to vector<8x96xf32>
    %2398 = arith.addf %2397, %2396 : vector<8x96xf32>
    %2399 = arith.divf %2397, %2398 : vector<8x96xf32>
    %2400 = vector.extract_strided_slice %2393 {offsets = [0, 96], sizes = [8, 32], strides = [1, 1]} : vector<8x128xf32> to vector<8x32xf32>
    %2401 = math.tanh %2400 : vector<8x32xf32>
    %2402 = vector.extract_strided_slice %2399 {offsets = [0, 32], sizes = [8, 32], strides = [1, 1]} : vector<8x96xf32> to vector<8x32xf32>
    %2403 = arith.mulf %2402, %2345 : vector<8x32xf32>
    %2404 = vector.extract_strided_slice %2399 {offsets = [0, 0], sizes = [8, 32], strides = [1, 1]} : vector<8x96xf32> to vector<8x32xf32>
    %2405 = arith.mulf %2404, %2401 : vector<8x32xf32>
    %2406 = arith.addf %2403, %2405 : vector<8x32xf32>
    %2407 = vector.extract_strided_slice %2399 {offsets = [0, 64], sizes = [8, 32], strides = [1, 1]} : vector<8x96xf32> to vector<8x32xf32>
    %2408 = math.tanh %2406 : vector<8x32xf32>
    %2409 = arith.mulf %2407, %2408 : vector<8x32xf32>
    %2410 = vector.broadcast %c11_i32_560 : i32 to vector<8x32xi32>
    %2411 = arith.cmpi slt, %2410, %2 : vector<8x32xi32>
    %2412 = arith.select %2411, %2406, %2345 : vector<8x32xi1>, vector<8x32xf32>
    %2413 = vector.extract_strided_slice %2386 {offsets = [0, 0], sizes = [8, 32], strides = [1, 1]} : vector<8x64xf32> to vector<8x32xf32>
    %2414 = arith.select %2411, %2409, %2413 : vector<8x32xi1>, vector<8x32xf32>
    %cst_566 = arith.constant 0.000000e+00 : f32
    %2415 = vector.broadcast %cst_566 : f32 to vector<8x32xf32>
    %2416 = arith.select %2411, %2409, %2415 : vector<8x32xi1>, vector<8x32xf32>
    %2417 = arith.index_cast %c11_i32_560 : i32 to index
    %c0_567 = arith.constant 0 : index
    %c0_568 = arith.constant 0 : index
    %2418 = vector.load %arg15[%2417, %c0_567, %c0_568] : memref<12x8x64xf32, #tpu.memory_space<vmem>>, vector<1x8x32xf32>
    %2419 = vector.shape_cast %2418 : vector<1x8x32xf32> to vector<8x32xf32>
    %2420 = vector.shape_cast %2416 : vector<8x32xf32> to vector<1x8x32xf32>
    tpu.vector_store %arg15[%2417, %c0_567, %c0_568], %2420 {strides = array<i32>} : memref<12x8x64xf32, #tpu.memory_space<vmem>>, vector<1x8x32xf32>,
    %2421 = arith.index_cast %2387 : i32 to index
    %c0_569 = arith.constant 0 : index
    %c128_570 = arith.constant 128 : index
    %2422 = vector.load %arg14[%2421, %c0_569, %c128_570] : memref<12x8x256xf32, #tpu.memory_space<vmem>>, vector<1x8x128xf32>
    %2423 = vector.shape_cast %2422 : vector<1x8x128xf32> to vector<8x128xf32>
    %2424 = vector.extract_strided_slice %2388 {offsets = [0, 128], sizes = [8, 128], strides = [1, 1]} : vector<8x256xf32> to vector<8x128xf32>
    %2425 = arith.addf %2423, %2424 : vector<8x128xf32>
    %2426 = vector.extract_strided_slice %2425 {offsets = [0, 0], sizes = [8, 96], strides = [1, 1]} : vector<8x128xf32> to vector<8x96xf32>
    %2427 = arith.negf %2426 : vector<8x96xf32>
    %2428 = math.exp %2427 : vector<8x96xf32>
    %cst_571 = arith.constant 1.000000e+00 : f32
    %2429 = vector.broadcast %cst_571 : f32 to vector<8x96xf32>
    %2430 = arith.addf %2429, %2428 : vector<8x96xf32>
    %2431 = arith.divf %2429, %2430 : vector<8x96xf32>
    %2432 = vector.extract_strided_slice %2425 {offsets = [0, 96], sizes = [8, 32], strides = [1, 1]} : vector<8x128xf32> to vector<8x32xf32>
    %2433 = math.tanh %2432 : vector<8x32xf32>
    %2434 = vector.extract_strided_slice %2431 {offsets = [0, 32], sizes = [8, 32], strides = [1, 1]} : vector<8x96xf32> to vector<8x32xf32>
    %2435 = arith.mulf %2434, %2377 : vector<8x32xf32>
    %2436 = vector.extract_strided_slice %2431 {offsets = [0, 0], sizes = [8, 32], strides = [1, 1]} : vector<8x96xf32> to vector<8x32xf32>
    %2437 = arith.mulf %2436, %2433 : vector<8x32xf32>
    %2438 = arith.addf %2435, %2437 : vector<8x32xf32>
    %2439 = vector.extract_strided_slice %2431 {offsets = [0, 64], sizes = [8, 32], strides = [1, 1]} : vector<8x96xf32> to vector<8x32xf32>
    %2440 = math.tanh %2438 : vector<8x32xf32>
    %2441 = arith.mulf %2439, %2440 : vector<8x32xf32>
    %2442 = vector.broadcast %2387 : i32 to vector<8x32xi32>
    %2443 = arith.cmpi slt, %2442, %2 : vector<8x32xi32>
    %2444 = arith.select %2443, %2438, %2377 : vector<8x32xi1>, vector<8x32xf32>
    %2445 = vector.extract_strided_slice %2386 {offsets = [0, 32], sizes = [8, 32], strides = [1, 1]} : vector<8x64xf32> to vector<8x32xf32>
    %2446 = arith.select %2443, %2441, %2445 : vector<8x32xi1>, vector<8x32xf32>
    %cst_572 = arith.constant 0.000000e+00 : f32
    %2447 = vector.broadcast %cst_572 : f32 to vector<8x32xf32>
    %2448 = arith.select %2443, %2441, %2447 : vector<8x32xi1>, vector<8x32xf32>
    %2449 = arith.index_cast %2387 : i32 to index
    %c0_573 = arith.constant 0 : index
    %c32_574 = arith.constant 32 : index
    %2450 = vector.load %arg15[%2449, %c0_573, %c32_574] : memref<12x8x64xf32, #tpu.memory_space<vmem>>, vector<1x8x32xf32>
    %2451 = vector.shape_cast %2450 : vector<1x8x32xf32> to vector<8x32xf32>
    %2452 = vector.shape_cast %2448 : vector<8x32xf32> to vector<1x8x32xf32>
    tpu.vector_store %arg15[%2449, %c0_573, %c32_574], %2452 {strides = array<i32>} : memref<12x8x64xf32, #tpu.memory_space<vmem>>, vector<1x8x32xf32>,
    %2453 = tpu.concatenate %2414, %2446 in 1 : vector<8x32xf32>, vector<8x32xf32> -> vector<8x64xf32>
    %c12_i32_575 = arith.constant 12 : i32
    %c0_576 = arith.constant 0 : index
    %c0_577 = arith.constant 0 : index
    %c0_578 = arith.constant 0 : index
    %2454 = vector.load %arg15[%c0_576, %c0_577, %c0_578] : memref<12x8x64xf32, #tpu.memory_space<vmem>>, vector<12x8x64xf32>
    %2455 = vector.shape_cast %2454 : vector<12x8x64xf32> to vector<96x64xf32>
    %c0_579 = arith.constant 0 : index
    %c0_580 = arith.constant 0 : index
    %2456 = vector.load %arg11[%c0_579, %c0_580] : memref<64x256xf32, #tpu.memory_space<vmem>>, vector<64x256xf32>
    %cst_581 = arith.constant dense<0.000000e+00> : vector<96x256xf32>
    %2457 = tpu.matmul %2455, %2456, %cst_581 {dimension_numbers = #tpu.dot_dimension_numbers<[1], [0], [0], [1], [0, 0, 1, 1], [], []>} : vector<96x64xf32>, vector<64x256xf32>, vector<96x256xf32> -> vector<96x256xf32>
    %c0_582 = arith.constant 0 : index
    %c0_583 = arith.constant 0 : index
    %2458 = vector.load %arg12[%c0_582, %c0_583] : memref<1x256xf32, #tpu.memory_space<vmem>>, vector<1x256xf32>
    %2459 = vector.broadcast %2458 : vector<1x256xf32> to vector<96x256xf32>
    %2460 = arith.addf %2457, %2459 : vector<96x256xf32>
    %2461 = vector.shape_cast %2460 : vector<96x256xf32> to vector<12x8x256xf32>
    %c0_584 = arith.constant 0 : index
    %c0_585 = arith.constant 0 : index
    %c0_586 = arith.constant 0 : index
    %2462 = vector.load %arg13[%c0_584, %c0_585, %c0_586] : memref<12x8x256xf32, #tpu.memory_space<vmem>>, vector<12x8x256xf32>
    tpu.vector_store %arg13[%c0_584, %c0_585, %c0_586], %2461 {strides = array<i32>} : memref<12x8x256xf32, #tpu.memory_space<vmem>>, vector<12x8x256xf32>,
    return
  }
}

</mosaic_0001>

<llo_original>
// kernel: tpu_custom_call.1
$region0: #{tpu_custom_call.1}
  #allocation0 [shape = 'u32[]', space=smem, size = 0x4, offset = 0x4, fixed_abs, tag = 'smem constant byte address 0x4 - core index']
  #allocation1 [shape = 'u32[72,128]{1,0:T(1,128)}', space=vmem, size = 0x9000, scoped, tag = 'internal scratch']
  #allocation2 [shape = 'f32[12,8,256]{2,1,0:T(8,128)}', space=vmem, size = 0x18000, scoped, tag = 'scratch operand']
  #allocation3 [shape = 'f32[12,8,64]{2,1,0:T(8,128)}', space=vmem, size = 0xc000, scoped, tag = 'scratch operand']
  %s0 = inlined_call_operand.hbm [shape: f32[12,8,64], index: 0, kind: input, shape index: {}]
  %s1 = inlined_call_operand.vmem [shape: s32[8,1], index: 1, kind: input, shape index: {}]
  %s2 = inlined_call_operand.hbm [shape: f32[64,256], index: 2, kind: input, shape index: {}]
  %s3 = inlined_call_operand.hbm [shape: f32[64,256], index: 3, kind: input, shape index: {}]
  %s4 = inlined_call_operand.vmem [shape: f32[1,256], index: 4, kind: input, shape index: {}]
  %s5 = inlined_call_operand.hbm [shape: f32[64,256], index: 5, kind: input, shape index: {}]
  %s6 = inlined_call_operand.hbm [shape: f32[64,256], index: 6, kind: input, shape index: {}]
  %s7 = inlined_call_operand.vmem [shape: f32[1,256], index: 7, kind: input, shape index: {}]
  %s8 = inlined_call_operand.hbm [shape: f32[64,256], index: 8, kind: input, shape index: {}]
  %s9 = inlined_call_operand.hbm [shape: f32[64,256], index: 9, kind: input, shape index: {}]
  %s10 = inlined_call_operand.vmem [shape: f32[1,256], index: 10, kind: input, shape index: {}]
  %s11 = inlined_call_operand.hbm [shape: f32[64,256], index: 11, kind: input, shape index: {}]
  %s12 = inlined_call_operand.vmem [shape: f32[1,256], index: 12, kind: input, shape index: {}]
  %s13 = inlined_call_operand.hbm [shape: f32[12,8,256], index: 13, kind: output, shape index: {}]
  %s14 = sld [smem:[#allocation0]]
  $region94: #{tpu_custom_call.1} parent=0
    _
  %s16 = ssub.s32 1, %s14
  %s17 = scalar_select 0, %s16, %s14
  $region1: #{tpu_custom_call.1} parent=0
    #allocation4 [shape = 'u8[49152]{0}', space=vmem, size = 0xc000, scoped, tag = 'input window, operand 0, single buffered']
    #allocation5 [shape = 's32[1]{0}', space=sflag, size = 0x4, scoped, tag = 'scoped memory for tpu_custom_call.1']
    #allocation6 [shape = 's32[1]{0}', space=sflag, size = 0x4, scoped, tag = 'scoped memory for tpu_custom_call.1']
    #allocation7 [shape = 'u8[65536]{0}', space=vmem, size = 0x10000, scoped, tag = 'input window, operand 2, single buffered']
    #allocation8 [shape = 's32[1]{0}', space=sflag, size = 0x4, scoped, tag = 'scoped memory for tpu_custom_call.1']
    #allocation9 [shape = 'u8[65536]{0}', space=vmem, size = 0x10000, scoped, tag = 'input window, operand 3, single buffered']
    #allocation10 [shape = 'u8[65536]{0}', space=vmem, size = 0x10000, scoped, tag = 'input window, operand 5, single buffered']
    #allocation11 [shape = 's32[1]{0}', space=sflag, size = 0x4, scoped, tag = 'scoped memory for tpu_custom_call.1']
    #allocation12 [shape = 'u8[65536]{0}', space=vmem, size = 0x10000, scoped, tag = 'input window, operand 6, single buffered']
    #allocation13 [shape = 'u8[65536]{0}', space=vmem, size = 0x10000, scoped, tag = 'input window, operand 8, single buffered']
    #allocation14 [shape = 's32[1]{0}', space=sflag, size = 0x4, scoped, tag = 'scoped memory for tpu_custom_call.1']
    #allocation15 [shape = 'u8[65536]{0}', space=vmem, size = 0x10000, scoped, tag = 'input window, operand 9, single buffered']
    #allocation16 [shape = 'u8[65536]{0}', space=vmem, size = 0x10000, scoped, tag = 'input window, operand 11, single buffered']
    #allocation17 [shape = 's32[1]{0}', space=sflag, size = 0x4, scoped, tag = 'scoped memory for tpu_custom_call.1']
    #allocation18 [shape = 'u8[98304]{0}', space=vmem, size = 0x18000, scoped, tag = 'output window, operand 0, single buffered']
    %18 = vsyncpa [#allocation5], 0
    %19 = vsyncpa [#allocation8], 0
    %20 = vsyncpa [#allocation11], 0
    %21 = vsyncpa [#allocation14], 0
    %22 = vsyncpa [#allocation17], 0
    %23 = vsyncpa [#allocation6], 0
    // Predicated region
    $region2: #{tpu_custom_call.1} parent=1 // pred_check
      _
    $region3: #{tpu_custom_call.1} parent=1 // pred_check_branch
      %25 = sbr.rel (0) target = $region5
    $region4: #{tpu_custom_call.1} parent=1 // pred_region
      %27 = vsyncadd [#allocation5], 0
      %s28 = sshll.u32 %s0, 4
      %s29 = int_to_ptr.hbm [resolvable:$true] %s28
      %s30 = sshll.u32 [#allocation4], 4
      %s31 = int_to_ptr.vmem [resolvable:$true] %s30
      %36 = dma.hbm_to_vmem [thread:$0]  %s29, 1536, %s31, [#allocation5], 128, 128, 8
    $region5: #{tpu_custom_call.1} parent=1 // pred_fallthru
      _
    // Predicated region
    $region6: #{tpu_custom_call.1} parent=1 // pred_check
      _
    $region7: #{tpu_custom_call.1} parent=1 // pred_check_branch
      %38 = sbr.rel (0) target = $region9
    $region8: #{tpu_custom_call.1} parent=1 // pred_region
      _
    $region9: #{tpu_custom_call.1} parent=1 // pred_fallthru
      _
    // Predicated region
    $region10: #{tpu_custom_call.1} parent=1 // pred_check
      _
    $region11: #{tpu_custom_call.1} parent=1 // pred_check_branch
      %40 = sbr.rel (0) target = $region13
    $region12: #{tpu_custom_call.1} parent=1 // pred_region
      %42 = vsyncadd [#allocation8], 0
      %s43 = sshll.u32 %s2, 4
      %s44 = int_to_ptr.hbm [resolvable:$true] %s43
      %s45 = sshll.u32 [#allocation7], 4
      %s46 = int_to_ptr.vmem [resolvable:$true] %s45
      %51 = dma.hbm_to_vmem [thread:$0]  %s44, 2048, %s46, [#allocation8], 256, 256, 16
    $region13: #{tpu_custom_call.1} parent=1 // pred_fallthru
      _
    // Predicated region
    $region14: #{tpu_custom_call.1} parent=1 // pred_check
      _
    $region15: #{tpu_custom_call.1} parent=1 // pred_check_branch
      %53 = sbr.rel (0) target = $region17
    $region16: #{tpu_custom_call.1} parent=1 // pred_region
      %55 = vsyncadd [#allocation8], 0
      %s56 = sshll.u32 %s3, 4
      %s57 = int_to_ptr.hbm [resolvable:$true] %s56
      %s58 = sshll.u32 [#allocation9], 4
      %s59 = int_to_ptr.vmem [resolvable:$true] %s58
      %64 = dma.hbm_to_vmem [thread:$0]  %s57, 2048, %s59, [#allocation8], 256, 256, 16
    $region17: #{tpu_custom_call.1} parent=1 // pred_fallthru
      _
    // Predicated region
    $region18: #{tpu_custom_call.1} parent=1 // pred_check
      _
    $region19: #{tpu_custom_call.1} parent=1 // pred_check_branch
      %66 = sbr.rel (0) target = $region21
    $region20: #{tpu_custom_call.1} parent=1 // pred_region
      _
    $region21: #{tpu_custom_call.1} parent=1 // pred_fallthru
      _
    // Predicated region
    $region22: #{tpu_custom_call.1} parent=1 // pred_check
      _
    $region23: #{tpu_custom_call.1} parent=1 // pred_check_branch
      %68 = sbr.rel (0) target = $region25
    $region24: #{tpu_custom_call.1} parent=1 // pred_region
      %70 = vsyncadd [#allocation11], 0
      %s71 = sshll.u32 %s5, 4
      %s72 = int_to_ptr.hbm [resolvable:$true] %s71
      %s73 = sshll.u32 [#allocation10], 4
      %s74 = int_to_ptr.vmem [resolvable:$true] %s73
      %79 = dma.hbm_to_vmem [thread:$0]  %s72, 2048, %s74, [#allocation11], 256, 256, 16
    $region25: #{tpu_custom_call.1} parent=1 // pred_fallthru
      _
    // Predicated region
    $region26: #{tpu_custom_call.1} parent=1 // pred_check
      _
    $region27: #{tpu_custom_call.1} parent=1 // pred_check_branch
      %81 = sbr.rel (0) target = $region29
    $region28: #{tpu_custom_call.1} parent=1 // pred_region
      %83 = vsyncadd [#allocation11], 0
      %s84 = sshll.u32 %s6, 4
      %s85 = int_to_ptr.hbm [resolvable:$true] %s84
      %s86 = sshll.u32 [#allocation12], 4
      %s87 = int_to_ptr.vmem [resolvable:$true] %s86
      %92 = dma.hbm_to_vmem [thread:$0]  %s85, 2048, %s87, [#allocation11], 256, 256, 16
    $region29: #{tpu_custom_call.1} parent=1 // pred_fallthru
      _
    // Predicated region
    $region30: #{tpu_custom_call.1} parent=1 // pred_check
      _
    $region31: #{tpu_custom_call.1} parent=1 // pred_check_branch
      %94 = sbr.rel (0) target = $region33
    $region32: #{tpu_custom_call.1} parent=1 // pred_region
      _
    $region33: #{tpu_custom_call.1} parent=1 // pred_fallthru
      _
    // Predicated region
    $region34: #{tpu_custom_call.1} parent=1 // pred_check
      _
    $region35: #{tpu_custom_call.1} parent=1 // pred_check_branch
      %96 = sbr.rel (0) target = $region37
    $region36: #{tpu_custom_call.1} parent=1 // pred_region
      %98 = vsyncadd [#allocation14], 0
      %s99 = sshll.u32 %s8, 4
      %s100 = int_to_ptr.hbm [resolvable:$true] %s99
      %s101 = sshll.u32 [#allocation13], 4
      %s102 = int_to_ptr.vmem [resolvable:$true] %s101
      %107 = dma.hbm_to_vmem [thread:$0]  %s100, 2048, %s102, [#allocation14], 256, 256, 16
    $region37: #{tpu_custom_call.1} parent=1 // pred_fallthru
      _
    // Predicated region
    $region38: #{tpu_custom_call.1} parent=1 // pred_check
      _
    $region39: #{tpu_custom_call.1} parent=1 // pred_check_branch
      %109 = sbr.rel (0) target = $region41
    $region40: #{tpu_custom_call.1} parent=1 // pred_region
      %111 = vsyncadd [#allocation14], 0
      %s112 = sshll.u32 %s9, 4
      %s113 = int_to_ptr.hbm [resolvable:$true] %s112
      %s114 = sshll.u32 [#allocation15], 4
      %s115 = int_to_ptr.vmem [resolvable:$true] %s114
      %120 = dma.hbm_to_vmem [thread:$0]  %s113, 2048, %s115, [#allocation14], 256, 256, 16
    $region41: #{tpu_custom_call.1} parent=1 // pred_fallthru
      _
    // Predicated region
    $region42: #{tpu_custom_call.1} parent=1 // pred_check
      _
    $region43: #{tpu_custom_call.1} parent=1 // pred_check_branch
      %122 = sbr.rel (0) target = $region45
    $region44: #{tpu_custom_call.1} parent=1 // pred_region
      _
    $region45: #{tpu_custom_call.1} parent=1 // pred_fallthru
      _
    // Predicated region
    $region46: #{tpu_custom_call.1} parent=1 // pred_check
      _
    $region47: #{tpu_custom_call.1} parent=1 // pred_check_branch
      %124 = sbr.rel (0) target = $region49
    $region48: #{tpu_custom_call.1} parent=1 // pred_region
      %126 = vsyncadd [#allocation17], 0
      %s127 = sshll.u32 %s11, 4
      %s128 = int_to_ptr.hbm [resolvable:$true] %s127
      %s129 = sshll.u32 [#allocation16], 4
      %s130 = int_to_ptr.vmem [resolvable:$true] %s129
      %135 = dma.hbm_to_vmem [thread:$0]  %s128, 2048, %s130, [#allocation17], 256, 256, 16
    $region49: #{tpu_custom_call.1} parent=1 // pred_fallthru
      _
    // Predicated region
    $region50: #{tpu_custom_call.1} parent=1 // pred_check
      _
    $region51: #{tpu_custom_call.1} parent=1 // pred_check_branch
      %137 = sbr.rel (0) target = $region53
    $region52: #{tpu_custom_call.1} parent=1 // pred_region
      _
    $region53: #{tpu_custom_call.1} parent=1 // pred_fallthru
      _
    // Predicated region
    $region54: #{tpu_custom_call.1} parent=1 // pred_check
      _
    $region55: #{tpu_custom_call.1} parent=1 // pred_check_branch
      %139 = sbr.rel (0) target = $region57
    $region56: #{tpu_custom_call.1} parent=1 // pred_region
      %141 = dma.done [#allocation5], 1536
    $region57: #{tpu_custom_call.1} parent=1 // pred_fallthru
      _
    // Predicated region
    $region58: #{tpu_custom_call.1} parent=1 // pred_check
      _
    $region59: #{tpu_custom_call.1} parent=1 // pred_check_branch
      %143 = sbr.rel (0) target = $region61
    $region60: #{tpu_custom_call.1} parent=1 // pred_region
      %145 = dma.done [#allocation8], 2048
    $region61: #{tpu_custom_call.1} parent=1 // pred_fallthru
      _
    // Predicated region
    $region62: #{tpu_custom_call.1} parent=1 // pred_check
      _
    $region63: #{tpu_custom_call.1} parent=1 // pred_check_branch
      %147 = sbr.rel (0) target = $region65
    $region64: #{tpu_custom_call.1} parent=1 // pred_region
      %149 = dma.done [#allocation8], 2048
    $region65: #{tpu_custom_call.1} parent=1 // pred_fallthru
      _
    // Predicated region
    $region66: #{tpu_custom_call.1} parent=1 // pred_check
      _
    $region67: #{tpu_custom_call.1} parent=1 // pred_check_branch
      %151 = sbr.rel (0) target = $region69
    $region68: #{tpu_custom_call.1} parent=1 // pred_region
      %153 = dma.done [#allocation11], 2048
    $region69: #{tpu_custom_call.1} parent=1 // pred_fallthru
      _
    // Predicated region
    $region70: #{tpu_custom_call.1} parent=1 // pred_check
      _
    $region71: #{tpu_custom_call.1} parent=1 // pred_check_branch
      %155 = sbr.rel (0) target = $region73
    $region72: #{tpu_custom_call.1} parent=1 // pred_region
      %157 = dma.done [#allocation11], 2048
    $region73: #{tpu_custom_call.1} parent=1 // pred_fallthru
      _
    // Predicated region
    $region74: #{tpu_custom_call.1} parent=1 // pred_check
      _
    $region75: #{tpu_custom_call.1} parent=1 // pred_check_branch
      %159 = sbr.rel (0) target = $region77
    $region76: #{tpu_custom_call.1} parent=1 // pred_region
      %161 = dma.done [#allocation14], 2048
    $region77: #{tpu_custom_call.1} parent=1 // pred_fallthru
      _
    // Predicated region
    $region78: #{tpu_custom_call.1} parent=1 // pred_check
      _
    $region79: #{tpu_custom_call.1} parent=1 // pred_check_branch
      %163 = sbr.rel (0) target = $region81
    $region80: #{tpu_custom_call.1} parent=1 // pred_region
      %165 = dma.done [#allocation14], 2048
    $region81: #{tpu_custom_call.1} parent=1 // pred_fallthru
      _
    // Predicated region
    $region82: #{tpu_custom_call.1} parent=1 // pred_check
      _
    $region83: #{tpu_custom_call.1} parent=1 // pred_check_branch
      %167 = sbr.rel (0) target = $region85
    $region84: #{tpu_custom_call.1} parent=1 // pred_region
      %169 = dma.done [#allocation17], 2048
    $region85: #{tpu_custom_call.1} parent=1 // pred_fallthru
      _
    %v170 = vld [vmem:[%s1] sm:$0xff]
    %171 = vset.pattern.permute.xlu0 0
    %172 = vperm.xlu0 %171, %v170
    %v173 = vpop.permute.xlu0 %172
    %v174 = vld [vmem:[#allocation4] sm:$0xff]
    %v175 = vld [vmem:[#allocation4 + $0x8] sm:$0xff]
    %v176 = vld [vmem:[#allocation4 + $0x10] sm:$0xff]
    %v177 = vld [vmem:[#allocation4 + $0x18] sm:$0xff]
    %v178 = vld [vmem:[#allocation4 + $0x20] sm:$0xff]
    %v179 = vld [vmem:[#allocation4 + $0x28] sm:$0xff]
    %v180 = vld [vmem:[#allocation4 + $0x30] sm:$0xff]
    %v181 = vld [vmem:[#allocation4 + $0x38] sm:$0xff]
    %v182 = vld [vmem:[#allocation4 + $0x40] sm:$0xff]
    %v183 = vld [vmem:[#allocation4 + $0x48] sm:$0xff]
    %v184 = vld [vmem:[#allocation4 + $0x50] sm:$0xff]
    %v185 = vld [vmem:[#allocation4 + $0x58] sm:$0xff]
    %v186 = vld [vmem:[#allocation7] sm:$0xff]
    %v187 = vld [vmem:[#allocation7 + $0x8] sm:$0xff]
    %v188 = vld [vmem:[#allocation7 + $0x10] sm:$0xff]
    %v189 = vld [vmem:[#allocation7 + $0x18] sm:$0xff]
    %v190 = vld [vmem:[#allocation7 + $0x20] sm:$0xff]
    %v191 = vld [vmem:[#allocation7 + $0x28] sm:$0xff]
    %v192 = vld [vmem:[#allocation7 + $0x30] sm:$0xff]
    %v193 = vld [vmem:[#allocation7 + $0x38] sm:$0xff]
    %v194 = vld [vmem:[#allocation7 + $0x40] sm:$0xff]
    %v195 = vld [vmem:[#allocation7 + $0x48] sm:$0xff]
    %v196 = vld [vmem:[#allocation7 + $0x50] sm:$0xff]
    %v197 = vld [vmem:[#allocation7 + $0x58] sm:$0xff]
    %v198 = vld [vmem:[#allocation7 + $0x60] sm:$0xff]
    %v199 = vld [vmem:[#allocation7 + $0x68] sm:$0xff]
    %v200 = vld [vmem:[#allocation7 + $0x70] sm:$0xff]
    %v201 = vld [vmem:[#allocation7 + $0x78] sm:$0xff]
    %v202 = vld [vmem:[%s4] sm:$0x3]
    %v204 = vperm.slane %v202, 0
    %v205 = vperm.slane %v202, 1
    %vm208 = vcmask 523264
    %v210 = vsel %vm208, %v174, 0
    %v213 = vsel %vm208, %v175, 0
    %v216 = vsel %vm208, %v176, 0
    %v219 = vsel %vm208, %v177, 0
    %v222 = vsel %vm208, %v178, 0
    %v225 = vsel %vm208, %v179, 0
    %v228 = vsel %vm208, %v180, 0
    %v231 = vsel %vm208, %v181, 0
    %v234 = vsel %vm208, %v182, 0
    %v237 = vsel %vm208, %v183, 0
    %v240 = vsel %vm208, %v184, 0
    %v243 = vsel %vm208, %v185, 0
    %245 = vmatpush.msra.mxu0 0.0
    %246 = vmatpush.msra.mxu0 0.0
    %247 = vmatpush.msra.mxu0 0.0
    %248 = vmatpush.msra.mxu0 0.0
    %249 = vmatpush.msra.mxu0 0.0
    %250 = vmatpush.msra.mxu0 0.0
    %251 = vmatpush.msra.mxu0 0.0
    %252 = vmatpush.msra.mxu0 0.0
    %253 = vmatpush.msra.mxu0 %v200
    %254 = vmatpush.msra.mxu0 %v198
    %255 = vmatpush.msra.mxu0 %v196
    %256 = vmatpush.msra.mxu0 %v194
    %257 = vmatpush.msra.mxu0 %v192
    %258 = vmatpush.msra.mxu0 %v190
    %259 = vmatpush.msra.mxu0 %v188
    %260 = vmatpush.msra.mxu0 %v186
    %261 = vmatmul.f32.gmra.mxu0 %v210
    %v262 = vpop.f32.mrf.mxu0
    %v263 = vadd.f32 %v204, %v262
    %264 = vmatmul.f32.gmra.mxu0 %v213
    %v265 = vpop.f32.mrf.mxu0
    %v266 = vadd.f32 %v204, %v265
    %267 = vmatmul.f32.gmra.mxu0 %v216
    %v268 = vpop.f32.mrf.mxu0
    %v269 = vadd.f32 %v204, %v268
    %270 = vmatmul.f32.gmra.mxu0 %v219
    %v271 = vpop.f32.mrf.mxu0
    %v272 = vadd.f32 %v204, %v271
    %273 = vmatmul.f32.gmra.mxu0 %v222
    %v274 = vpop.f32.mrf.mxu0
    %v275 = vadd.f32 %v204, %v274
    %276 = vmatmul.f32.gmra.mxu0 %v225
    %v277 = vpop.f32.mrf.mxu0
    %v278 = vadd.f32 %v204, %v277
    %279 = vmatmul.f32.gmra.mxu0 %v228
    %v280 = vpop.f32.mrf.mxu0
    %v281 = vadd.f32 %v204, %v280
    %282 = vmatmul.f32.gmra.mxu0 %v231
    %v283 = vpop.f32.mrf.mxu0
    %v284 = vadd.f32 %v204, %v283
    %285 = vmatmul.f32.gmra.mxu0 %v234
    %v286 = vpop.f32.mrf.mxu0
    %v287 = vadd.f32 %v204, %v286
    %288 = vmatmul.f32.gmra.mxu0 %v237
    %v289 = vpop.f32.mrf.mxu0
    %v290 = vadd.f32 %v204, %v289
    %291 = vmatmul.f32.gmra.mxu0 %v240
    %v292 = vpop.f32.mrf.mxu0
    %v293 = vadd.f32 %v204, %v292
    %294 = vmatmul.f32.gmra.mxu0 %v243
    %v295 = vpop.f32.mrf.mxu0
    %v296 = vadd.f32 %v204, %v295
    %297 = vdwg.mxu0
    %298 = vmatpush.msra.mxu0 0.0
    %299 = vmatpush.msra.mxu0 0.0
    %300 = vmatpush.msra.mxu0 0.0
    %301 = vmatpush.msra.mxu0 0.0
    %302 = vmatpush.msra.mxu0 0.0
    %303 = vmatpush.msra.mxu0 0.0
    %304 = vmatpush.msra.mxu0 0.0
    %305 = vmatpush.msra.mxu0 0.0
    %306 = vmatpush.msra.mxu0 %v201
    %307 = vmatpush.msra.mxu0 %v199
    %308 = vmatpush.msra.mxu0 %v197
    %309 = vmatpush.msra.mxu0 %v195
    %310 = vmatpush.msra.mxu0 %v193
    %311 = vmatpush.msra.mxu0 %v191
    %312 = vmatpush.msra.mxu0 %v189
    %313 = vmatpush.msra.mxu0 %v187
    %314 = vmatmul.f32.gmra.mxu0 %v210
    %v315 = vpop.f32.mrf.mxu0
    %v316 = vadd.f32 %v205, %v315
    %317 = vmatmul.f32.gmra.mxu0 %v213
    %v318 = vpop.f32.mrf.mxu0
    %v319 = vadd.f32 %v205, %v318
    %320 = vmatmul.f32.gmra.mxu0 %v216
    %v321 = vpop.f32.mrf.mxu0
    %v322 = vadd.f32 %v205, %v321
    %323 = vmatmul.f32.gmra.mxu0 %v219
    %v324 = vpop.f32.mrf.mxu0
    %v325 = vadd.f32 %v205, %v324
    %326 = vmatmul.f32.gmra.mxu0 %v222
    %v327 = vpop.f32.mrf.mxu0
    %v328 = vadd.f32 %v205, %v327
    %329 = vmatmul.f32.gmra.mxu0 %v225
    %v330 = vpop.f32.mrf.mxu0
    %v331 = vadd.f32 %v205, %v330
    %332 = vmatmul.f32.gmra.mxu0 %v228
    %v333 = vpop.f32.mrf.mxu0
    %v334 = vadd.f32 %v205, %v333
    %335 = vmatmul.f32.gmra.mxu0 %v231
    %v336 = vpop.f32.mrf.mxu0
    %v337 = vadd.f32 %v205, %v336
    %338 = vmatmul.f32.gmra.mxu0 %v234
    %v339 = vpop.f32.mrf.mxu0
    %v340 = vadd.f32 %v205, %v339
    %341 = vmatmul.f32.gmra.mxu0 %v237
    %v342 = vpop.f32.mrf.mxu0
    %v343 = vadd.f32 %v205, %v342
    %344 = vmatmul.f32.gmra.mxu0 %v240
    %v345 = vpop.f32.mrf.mxu0
    %v346 = vadd.f32 %v205, %v345
    %347 = vmatmul.f32.gmra.mxu0 %v243
    %v348 = vpop.f32.mrf.mxu0
    %v349 = vadd.f32 %v205, %v348
    %350 = vdwg.mxu0
    %351 = vst [vmem:[#allocation2] sm:$0xff] %v263
    %352 = vst [vmem:[#allocation2 + $0x8] sm:$0xff] %v316
    %353 = vst [vmem:[#allocation2 + $0x10] sm:$0xff] %v266
    %354 = vst [vmem:[#allocation2 + $0x18] sm:$0xff] %v319
    %355 = vst [vmem:[#allocation2 + $0x20] sm:$0xff] %v269
    %356 = vst [vmem:[#allocation2 + $0x28] sm:$0xff] %v322
    %357 = vst [vmem:[#allocation2 + $0x30] sm:$0xff] %v272
    %358 = vst [vmem:[#allocation2 + $0x38] sm:$0xff] %v325
    %359 = vst [vmem:[#allocation2 + $0x40] sm:$0xff] %v275
    %360 = vst [vmem:[#allocation2 + $0x48] sm:$0xff] %v328
    %361 = vst [vmem:[#allocation2 + $0x50] sm:$0xff] %v278
    %362 = vst [vmem:[#allocation2 + $0x58] sm:$0xff] %v331
    %363 = vst [vmem:[#allocation2 + $0x60] sm:$0xff] %v281
    %364 = vst [vmem:[#allocation2 + $0x68] sm:$0xff] %v334
    %365 = vst [vmem:[#allocation2 + $0x70] sm:$0xff] %v284
    %366 = vst [vmem:[#allocation2 + $0x78] sm:$0xff] %v337
    %367 = vst [vmem:[#allocation2 + $0x80] sm:$0xff] %v287
    %368 = vst [vmem:[#allocation2 + $0x88] sm:$0xff] %v340
    %369 = vst [vmem:[#allocation2 + $0x90] sm:$0xff] %v290
    %370 = vst [vmem:[#allocation2 + $0x98] sm:$0xff] %v343
    %371 = vst [vmem:[#allocation2 + $0xa0] sm:$0xff] %v293
    %372 = vst [vmem:[#allocation2 + $0xa8] sm:$0xff] %v346
    %373 = vst [vmem:[#allocation2 + $0xb0] sm:$0xff] %v296
    %374 = vst [vmem:[#allocation2 + $0xb8] sm:$0xff] %v349
    %v375 = vld [vmem:[#allocation9] sm:$0xff]
    %v376 = vld [vmem:[#allocation9 + $0x8] sm:$0xff]
    %v377 = vld [vmem:[#allocation9 + $0x10] sm:$0xff]
    %v378 = vld [vmem:[#allocation9 + $0x18] sm:$0xff]
    %v379 = vld [vmem:[#allocation9 + $0x20] sm:$0xff]
    %v380 = vld [vmem:[#allocation9 + $0x28] sm:$0xff]
    %v381 = vld [vmem:[#allocation9 + $0x30] sm:$0xff]
    %v382 = vld [vmem:[#allocation9 + $0x38] sm:$0xff]
    %v383 = vld [vmem:[#allocation9 + $0x40] sm:$0xff]
    %v384 = vld [vmem:[#allocation9 + $0x48] sm:$0xff]
    %v385 = vld [vmem:[#allocation9 + $0x50] sm:$0xff]
    %v386 = vld [vmem:[#allocation9 + $0x58] sm:$0xff]
    %v387 = vld [vmem:[#allocation9 + $0x60] sm:$0xff]
    %v388 = vld [vmem:[#allocation9 + $0x68] sm:$0xff]
    %v389 = vld [vmem:[#allocation9 + $0x70] sm:$0xff]
    %v390 = vld [vmem:[#allocation9 + $0x78] sm:$0xff]
    %v392 = vsel %vm208, 0.0, 0
    %394 = vmatpush.msra.mxu0 0.0
    %395 = vmatpush.msra.mxu0 0.0
    %396 = vmatpush.msra.mxu0 0.0
    %397 = vmatpush.msra.mxu0 0.0
    %398 = vmatpush.msra.mxu0 0.0
    %399 = vmatpush.msra.mxu0 0.0
    %400 = vmatpush.msra.mxu0 0.0
    %401 = vmatpush.msra.mxu0 0.0
    %402 = vmatpush.msra.mxu0 %v389
    %403 = vmatpush.msra.mxu0 %v387
    %404 = vmatpush.msra.mxu0 %v385
    %405 = vmatpush.msra.mxu0 %v383
    %406 = vmatpush.msra.mxu0 %v381
    %407 = vmatpush.msra.mxu0 %v379
    %408 = vmatpush.msra.mxu0 %v377
    %409 = vmatpush.msra.mxu0 %v375
    %410 = vmatmul.f32.gmra.mxu0 %v392
    %v411 = vpop.f32.mrf.mxu0
    %v412 = vadd.f32 0.0, %v411
    %413 = vdwg.mxu0
    %414 = vmatpush.msra.mxu0 0.0
    %415 = vmatpush.msra.mxu0 0.0
    %416 = vmatpush.msra.mxu0 0.0
    %417 = vmatpush.msra.mxu0 0.0
    %418 = vmatpush.msra.mxu0 0.0
    %419 = vmatpush.msra.mxu0 0.0
    %420 = vmatpush.msra.mxu0 0.0
    %421 = vmatpush.msra.mxu0 0.0
    %422 = vmatpush.msra.mxu0 %v390
    %423 = vmatpush.msra.mxu0 %v388
    %424 = vmatpush.msra.mxu0 %v386
    %425 = vmatpush.msra.mxu0 %v384
    %426 = vmatpush.msra.mxu0 %v382
    %427 = vmatpush.msra.mxu0 %v380
    %428 = vmatpush.msra.mxu0 %v378
    %429 = vmatpush.msra.mxu0 %v376
    %430 = vmatmul.f32.gmra.mxu0 %v392
    %v431 = vpop.f32.mrf.mxu0
    %v432 = vadd.f32 0.0, %v431
    %433 = vdwg.mxu0
    %v434 = vld [vmem:[#allocation2] sm:$0xff]
    %v435 = vadd.f32 %v434, %v412
    %v436 = vxor.u32 %v435, 2147483648
    %v437 = vmul.f32 %v436, 1.442695
    %v438 = vpow.pop %v437
    %v439 = vadd.f32 %v438, 1.0
    %v440 = vrcp.pop %v439
    %v441 = vmul.f32 %v439, %v440
    %v442 = vsub.f32 1.0, %v441
    %v443 = vmul.f32 %v440, %v442
    %v444 = vadd.f32 %v440, %v443
    %vm445 = vweird.f32 %v439
    %vm446 = vweird.f32 %v440
    %vm447 = vmor %vm445, %vm446
    %v448 = vsel %vm447, %v440, %v444
    %v449 = vand.u32 2147483647, %v439
    %vm450 = vcmp.eq.f32.partialorder %v449, 8.507059e+37
    %v451 = vand.u32 %v439, 2147483648
    %v452 = vor.u32 1.1754944e-38, %v451
    %v453 = vsel %vm450, %v452, %v448
    %v454 = vmul.f32 1.0, %v453
    %v455 = vtanh.pop %v435
    %v456 = vmul.f32 %v454, 0.0
    %458 = vrot.lane.b32.xlu0 %v455, 32
    %v459 = vpop.permute.xlu0 %458
    %v461 = vmul.f32 %v454, %v459
    %463 = vrot.lane.b32.xlu0 %v461, 32
    %v464 = vpop.permute.xlu0 %463
    %v466 = vadd.f32 %v456, %v464
    %v467 = vtanh.pop %v466
    %469 = vrot.lane.b32.xlu0 %v467, 32
    %v470 = vpop.permute.xlu0 %469
    %v472 = vmul.f32 %v454, %v470
    %vm473 = vcmp.gt.s32.totalorder %v173, 0
    %v474 = vsel %vm473, %v466, 0.0
    %v475 = vsel %vm473, %v472, 0.0
    %477 = vrot.lane.b32.xlu0 %v475, 64
    %v478 = vpop.permute.xlu0 %477
    %vm480 = vcmask 261120
    %481 = vst.msk [vmem:[#allocation3] sm:$0xff] %vm480, %v478
    %s482 = scalar_lea.vmem [#allocation2], 176
    %v483 = vld [vmem:[%s482 + $0x8] sm:$0xff]
    %v484 = vadd.f32 %v483, %v432
    %v485 = vxor.u32 %v484, 2147483648
    %v486 = vmul.f32 %v485, 1.442695
    %v487 = vpow.pop %v486
    %v488 = vadd.f32 %v487, 1.0
    %v489 = vrcp.pop %v488
    %v490 = vmul.f32 %v488, %v489
    %v491 = vsub.f32 1.0, %v490
    %v492 = vmul.f32 %v489, %v491
    %v493 = vadd.f32 %v489, %v492
    %vm494 = vweird.f32 %v488
    %vm495 = vweird.f32 %v489
    %vm496 = vmor %vm494, %vm495
    %v497 = vsel %vm496, %v489, %v493
    %v498 = vand.u32 2147483647, %v488
    %vm499 = vcmp.eq.f32.partialorder %v498, 8.507059e+37
    %v500 = vand.u32 %v488, 2147483648
    %v501 = vor.u32 1.1754944e-38, %v500
    %v502 = vsel %vm499, %v501, %v497
    %v503 = vmul.f32 1.0, %v502
    %v504 = vtanh.pop %v484
    %v505 = vmul.f32 %v503, 0.0
    %507 = vrot.lane.b32.xlu0 %v504, 32
    %v508 = vpop.permute.xlu0 %507
    %v510 = vmul.f32 %v503, %v508
    %512 = vrot.lane.b32.xlu0 %v510, 32
    %v513 = vpop.permute.xlu0 %512
    %v515 = vadd.f32 %v505, %v513
    %v516 = vtanh.pop %v515
    %518 = vrot.lane.b32.xlu0 %v516, 32
    %v519 = vpop.permute.xlu0 %518
    %v521 = vmul.f32 %v503, %v519
    %vm522 = vcmp.gt.s32.totalorder %v173, 11
    %v523 = vsel %vm522, %v515, 0.0
    %v524 = vsel %vm522, %v521, 0.0
    %526 = vrot.lane.b32.xlu0 %v524, 96
    %v527 = vpop.permute.xlu0 %526
    %s529 = scalar_lea.vmem [#allocation3], 88
    %vm530 = vcmask 523520
    %531 = vst.msk [vmem:[%s529] sm:$0xff] %vm530, %v527
    %v532 = vsel %vm480, %v478, %v527
    %v534 = vsel %vm208, %v532, 0
    %536 = vmatpush.msra.mxu0 0.0
    %537 = vmatpush.msra.mxu0 0.0
    %538 = vmatpush.msra.mxu0 0.0
    %539 = vmatpush.msra.mxu0 0.0
    %540 = vmatpush.msra.mxu0 0.0
    %541 = vmatpush.msra.mxu0 0.0
    %542 = vmatpush.msra.mxu0 0.0
    %543 = vmatpush.msra.mxu0 0.0
    %544 = vmatpush.msra.mxu0 %v389
    %545 = vmatpush.msra.mxu0 %v387
    %546 = vmatpush.msra.mxu0 %v385
    %547 = vmatpush.msra.mxu0 %v383
    %548 = vmatpush.msra.mxu0 %v381
    %549 = vmatpush.msra.mxu0 %v379
    %550 = vmatpush.msra.mxu0 %v377
    %551 = vmatpush.msra.mxu0 %v375
    %552 = vmatmul.f32.gmra.mxu0 %v534
    %v553 = vpop.f32.mrf.mxu0
    %v554 = vadd.f32 0.0, %v553
    %555 = vdwg.mxu0
    %556 = vmatpush.msra.mxu0 0.0
    %557 = vmatpush.msra.mxu0 0.0
    %558 = vmatpush.msra.mxu0 0.0
    %559 = vmatpush.msra.mxu0 0.0
    %560 = vmatpush.msra.mxu0 0.0
    %561 = vmatpush.msra.mxu0 0.0
    %562 = vmatpush.msra.mxu0 0.0
    %563 = vmatpush.msra.mxu0 0.0
    %564 = vmatpush.msra.mxu0 %v390
    %565 = vmatpush.msra.mxu0 %v388
    %566 = vmatpush.msra.mxu0 %v386
    %567 = vmatpush.msra.mxu0 %v384
    %568 = vmatpush.msra.mxu0 %v382
    %569 = vmatpush.msra.mxu0 %v380
    %570 = vmatpush.msra.mxu0 %v378
    %571 = vmatpush.msra.mxu0 %v376
    %572 = vmatmul.f32.gmra.mxu0 %v534
    %v573 = vpop.f32.mrf.mxu0
    %v574 = vadd.f32 0.0, %v573
    %575 = vdwg.mxu0
    %s576 = scalar_lea.vmem [#allocation2], 16
    %v577 = vld [vmem:[%s576] sm:$0xff]
    %v578 = vadd.f32 %v577, %v554
    %v579 = vxor.u32 %v578, 2147483648
    %v580 = vmul.f32 %v579, 1.442695
    %v581 = vpow.pop %v580
    %v582 = vadd.f32 %v581, 1.0
    %v583 = vrcp.pop %v582
    %v584 = vmul.f32 %v582, %v583
    %v585 = vsub.f32 1.0, %v584
    %v586 = vmul.f32 %v583, %v585
    %v587 = vadd.f32 %v583, %v586
    %vm588 = vweird.f32 %v582
    %vm589 = vweird.f32 %v583
    %vm590 = vmor %vm588, %vm589
    %v591 = vsel %vm590, %v583, %v587
    %v592 = vand.u32 2147483647, %v582
    %vm593 = vcmp.eq.f32.partialorder %v592, 8.507059e+37
    %v594 = vand.u32 %v582, 2147483648
    %v595 = vor.u32 1.1754944e-38, %v594
    %v596 = vsel %vm593, %v595, %v591
    %v597 = vmul.f32 1.0, %v596
    %v598 = vtanh.pop %v578
    %v599 = vmul.f32 %v597, %v474
    %601 = vrot.lane.b32.xlu0 %v598, 32
    %v602 = vpop.permute.xlu0 %601
    %v604 = vmul.f32 %v597, %v602
    %606 = vrot.lane.b32.xlu0 %v604, 32
    %v607 = vpop.permute.xlu0 %606
    %v609 = vadd.f32 %v599, %v607
    %v610 = vtanh.pop %v609
    %612 = vrot.lane.b32.xlu0 %v610, 32
    %v613 = vpop.permute.xlu0 %612
    %v615 = vmul.f32 %v597, %v613
    %vm616 = vcmp.gt.s32.totalorder %v173, 1
    %v617 = vsel %vm616, %v609, %v474
    %618 = vrot.lane.b32.xlu0 %v532, 64
    %v619 = vpop.permute.xlu0 %618
    %v621 = vsel %vm616, %v615, %v619
    %v622 = vsel %vm616, %v615, 0.0
    %624 = vrot.lane.b32.xlu0 %v622, 64
    %v625 = vpop.permute.xlu0 %624
    %s627 = scalar_lea.vmem [#allocation3], 8
    %628 = vst.msk [vmem:[%s627] sm:$0xff] %vm480, %v625
    %s629 = scalar_lea.vmem [#allocation2], 160
    %v630 = vld [vmem:[%s629 + $0x8] sm:$0xff]
    %v631 = vadd.f32 %v630, %v574
    %v632 = vxor.u32 %v631, 2147483648
    %v633 = vmul.f32 %v632, 1.442695
    %v634 = vpow.pop %v633
    %v635 = vadd.f32 %v634, 1.0
    %v636 = vrcp.pop %v635
    %v637 = vmul.f32 %v635, %v636
    %v638 = vsub.f32 1.0, %v637
    %v639 = vmul.f32 %v636, %v638
    %v640 = vadd.f32 %v636, %v639
    %vm641 = vweird.f32 %v635
    %vm642 = vweird.f32 %v636
    %vm643 = vmor %vm641, %vm642
    %v644 = vsel %vm643, %v636, %v640
    %v645 = vand.u32 2147483647, %v635
    %vm646 = vcmp.eq.f32.partialorder %v645, 8.507059e+37
    %v647 = vand.u32 %v635, 2147483648
    %v648 = vor.u32 1.1754944e-38, %v647
    %v649 = vsel %vm646, %v648, %v644
    %v650 = vmul.f32 1.0, %v649
    %v651 = vtanh.pop %v631
    %v652 = vmul.f32 %v650, %v523
    %654 = vrot.lane.b32.xlu0 %v651, 32
    %v655 = vpop.permute.xlu0 %654
    %v657 = vmul.f32 %v650, %v655
    %659 = vrot.lane.b32.xlu0 %v657, 32
    %v660 = vpop.permute.xlu0 %659
    %v662 = vadd.f32 %v652, %v660
    %v663 = vtanh.pop %v662
    %665 = vrot.lane.b32.xlu0 %v663, 32
    %v666 = vpop.permute.xlu0 %665
    %v668 = vmul.f32 %v650, %v666
    %vm669 = vcmp.gt.s32.totalorder %v173, 10
    %v670 = vsel %vm669, %v662, %v523
    %671 = vrot.lane.b32.xlu0 %v532, 32
    %v672 = vpop.permute.xlu0 %671
    %v674 = vsel %vm669, %v668, %v672
    %v675 = vsel %vm669, %v668, 0.0
    %677 = vrot.lane.b32.xlu0 %v675, 96
    %v678 = vpop.permute.xlu0 %677
    %s680 = scalar_lea.vmem [#allocation3], 80
    %681 = vst.msk [vmem:[%s680] sm:$0xff] %vm530, %v678
    %683 = vrot.lane.b32.xlu0 %v621, 64
    %v684 = vpop.permute.xlu0 %683
    %687 = vrot.lane.b32.xlu0 %v674, 96
    %v688 = vpop.permute.xlu0 %687
    %v690 = vsel %vm480, %v684, %v688
    %v692 = vsel %vm208, %v690, 0
    %694 = vmatpush.msra.mxu0 0.0
    %695 = vmatpush.msra.mxu0 0.0
    %696 = vmatpush.msra.mxu0 0.0
    %697 = vmatpush.msra.mxu0 0.0
    %698 = vmatpush.msra.mxu0 0.0
    %699 = vmatpush.msra.mxu0 0.0
    %700 = vmatpush.msra.mxu0 0.0
    %701 = vmatpush.msra.mxu0 0.0
    %702 = vmatpush.msra.mxu0 %v389
    %703 = vmatpush.msra.mxu0 %v387
    %704 = vmatpush.msra.mxu0 %v385
    %705 = vmatpush.msra.mxu0 %v383
    %706 = vmatpush.msra.mxu0 %v381
    %707 = vmatpush.msra.mxu0 %v379
    %708 = vmatpush.msra.mxu0 %v377
    %709 = vmatpush.msra.mxu0 %v375
    %710 = vmatmul.f32.gmra.mxu0 %v692
    %v711 = vpop.f32.mrf.mxu0
    %v712 = vadd.f32 0.0, %v711
    %713 = vdwg.mxu0
    %714 = vmatpush.msra.mxu0 0.0
    %715 = vmatpush.msra.mxu0 0.0
    %716 = vmatpush.msra.mxu0 0.0
    %717 = vmatpush.msra.mxu0 0.0
    %718 = vmatpush.msra.mxu0 0.0
    %719 = vmatpush.msra.mxu0 0.0
    %720 = vmatpush.msra.mxu0 0.0
    %721 = vmatpush.msra.mxu0 0.0
    %722 = vmatpush.msra.mxu0 %v390
    %723 = vmatpush.msra.mxu0 %v388
    %724 = vmatpush.msra.mxu0 %v386
    %725 = vmatpush.msra.mxu0 %v384
    %726 = vmatpush.msra.mxu0 %v382
    %727 = vmatpush.msra.mxu0 %v380
    %728 = vmatpush.msra.mxu0 %v378
    %729 = vmatpush.msra.mxu0 %v376
    %730 = vmatmul.f32.gmra.mxu0 %v692
    %v731 = vpop.f32.mrf.mxu0
    %v732 = vadd.f32 0.0, %v731
    %733 = vdwg.mxu0
    %s734 = scalar_lea.vmem [#allocation2], 32
    %v735 = vld [vmem:[%s734] sm:$0xff]
    %v736 = vadd.f32 %v735, %v712
    %v737 = vxor.u32 %v736, 2147483648
    %v738 = vmul.f32 %v737, 1.442695
    %v739 = vpow.pop %v738
    %v740 = vadd.f32 %v739, 1.0
    %v741 = vrcp.pop %v740
    %v742 = vmul.f32 %v740, %v741
    %v743 = vsub.f32 1.0, %v742
    %v744 = vmul.f32 %v741, %v743
    %v745 = vadd.f32 %v741, %v744
    %vm746 = vweird.f32 %v740
    %vm747 = vweird.f32 %v741
    %vm748 = vmor %vm746, %vm747
    %v749 = vsel %vm748, %v741, %v745
    %v750 = vand.u32 2147483647, %v740
    %vm751 = vcmp.eq.f32.partialorder %v750, 8.507059e+37
    %v752 = vand.u32 %v740, 2147483648
    %v753 = vor.u32 1.1754944e-38, %v752
    %v754 = vsel %vm751, %v753, %v749
    %v755 = vmul.f32 1.0, %v754
    %v756 = vtanh.pop %v736
    %v757 = vmul.f32 %v755, %v617
    %759 = vrot.lane.b32.xlu0 %v756, 32
    %v760 = vpop.permute.xlu0 %759
    %v762 = vmul.f32 %v755, %v760
    %764 = vrot.lane.b32.xlu0 %v762, 32
    %v765 = vpop.permute.xlu0 %764
    %v767 = vadd.f32 %v757, %v765
    %v768 = vtanh.pop %v767
    %770 = vrot.lane.b32.xlu0 %v768, 32
    %v771 = vpop.permute.xlu0 %770
    %v773 = vmul.f32 %v755, %v771
    %vm774 = vcmp.gt.s32.totalorder %v173, 2
    %v775 = vsel %vm774, %v767, %v617
    %776 = vrot.lane.b32.xlu0 %v690, 64
    %v777 = vpop.permute.xlu0 %776
    %v779 = vsel %vm774, %v773, %v777
    %v780 = vsel %vm774, %v773, 0.0
    %782 = vrot.lane.b32.xlu0 %v780, 64
    %v783 = vpop.permute.xlu0 %782
    %s785 = scalar_lea.vmem [#allocation3], 16
    %786 = vst.msk [vmem:[%s785] sm:$0xff] %vm480, %v783
    %s787 = scalar_lea.vmem [#allocation2], 144
    %v788 = vld [vmem:[%s787 + $0x8] sm:$0xff]
    %v789 = vadd.f32 %v788, %v732
    %v790 = vxor.u32 %v789, 2147483648
    %v791 = vmul.f32 %v790, 1.442695
    %v792 = vpow.pop %v791
    %v793 = vadd.f32 %v792, 1.0
    %v794 = vrcp.pop %v793
    %v795 = vmul.f32 %v793, %v794
    %v796 = vsub.f32 1.0, %v795
    %v797 = vmul.f32 %v794, %v796
    %v798 = vadd.f32 %v794, %v797
    %vm799 = vweird.f32 %v793
    %vm800 = vweird.f32 %v794
    %vm801 = vmor %vm799, %vm800
    %v802 = vsel %vm801, %v794, %v798
    %v803 = vand.u32 2147483647, %v793
    %vm804 = vcmp.eq.f32.partialorder %v803, 8.507059e+37
    %v805 = vand.u32 %v793, 2147483648
    %v806 = vor.u32 1.1754944e-38, %v805
    %v807 = vsel %vm804, %v806, %v802
    %v808 = vmul.f32 1.0, %v807
    %v809 = vtanh.pop %v789
    %v810 = vmul.f32 %v808, %v670
    %812 = vrot.lane.b32.xlu0 %v809, 32
    %v813 = vpop.permute.xlu0 %812
    %v815 = vmul.f32 %v808, %v813
    %817 = vrot.lane.b32.xlu0 %v815, 32
    %v818 = vpop.permute.xlu0 %817
    %v820 = vadd.f32 %v810, %v818
    %v821 = vtanh.pop %v820
    %823 = vrot.lane.b32.xlu0 %v821, 32
    %v824 = vpop.permute.xlu0 %823
    %v826 = vmul.f32 %v808, %v824
    %vm827 = vcmp.gt.s32.totalorder %v173, 9
    %v828 = vsel %vm827, %v820, %v670
    %829 = vrot.lane.b32.xlu0 %v690, 32
    %v830 = vpop.permute.xlu0 %829
    %v832 = vsel %vm827, %v826, %v830
    %v833 = vsel %vm827, %v826, 0.0
    %835 = vrot.lane.b32.xlu0 %v833, 96
    %v836 = vpop.permute.xlu0 %835
    %s838 = scalar_lea.vmem [#allocation3], 72
    %839 = vst.msk [vmem:[%s838] sm:$0xff] %vm530, %v836
    %841 = vrot.lane.b32.xlu0 %v779, 64
    %v842 = vpop.permute.xlu0 %841
    %845 = vrot.lane.b32.xlu0 %v832, 96
    %v846 = vpop.permute.xlu0 %845
    %v848 = vsel %vm480, %v842, %v846
    %v850 = vsel %vm208, %v848, 0
    %852 = vmatpush.msra.mxu0 0.0
    %853 = vmatpush.msra.mxu0 0.0
    %854 = vmatpush.msra.mxu0 0.0
    %855 = vmatpush.msra.mxu0 0.0
    %856 = vmatpush.msra.mxu0 0.0
    %857 = vmatpush.msra.mxu0 0.0
    %858 = vmatpush.msra.mxu0 0.0
    %859 = vmatpush.msra.mxu0 0.0
    %860 = vmatpush.msra.mxu0 %v389
    %861 = vmatpush.msra.mxu0 %v387
    %862 = vmatpush.msra.mxu0 %v385
    %863 = vmatpush.msra.mxu0 %v383
    %864 = vmatpush.msra.mxu0 %v381
    %865 = vmatpush.msra.mxu0 %v379
    %866 = vmatpush.msra.mxu0 %v377
    %867 = vmatpush.msra.mxu0 %v375
    %868 = vmatmul.f32.gmra.mxu0 %v850
    %v869 = vpop.f32.mrf.mxu0
    %v870 = vadd.f32 0.0, %v869
    %871 = vdwg.mxu0
    %872 = vmatpush.msra.mxu0 0.0
    %873 = vmatpush.msra.mxu0 0.0
    %874 = vmatpush.msra.mxu0 0.0
    %875 = vmatpush.msra.mxu0 0.0
    %876 = vmatpush.msra.mxu0 0.0
    %877 = vmatpush.msra.mxu0 0.0
    %878 = vmatpush.msra.mxu0 0.0
    %879 = vmatpush.msra.mxu0 0.0
    %880 = vmatpush.msra.mxu0 %v390
    %881 = vmatpush.msra.mxu0 %v388
    %882 = vmatpush.msra.mxu0 %v386
    %883 = vmatpush.msra.mxu0 %v384
    %884 = vmatpush.msra.mxu0 %v382
    %885 = vmatpush.msra.mxu0 %v380
    %886 = vmatpush.msra.mxu0 %v378
    %887 = vmatpush.msra.mxu0 %v376
    %888 = vmatmul.f32.gmra.mxu0 %v850
    %v889 = vpop.f32.mrf.mxu0
    %v890 = vadd.f32 0.0, %v889
    %891 = vdwg.mxu0
    %s892 = scalar_lea.vmem [#allocation2], 48
    %v893 = vld [vmem:[%s892] sm:$0xff]
    %v894 = vadd.f32 %v893, %v870
    %v895 = vxor.u32 %v894, 2147483648
    %v896 = vmul.f32 %v895, 1.442695
    %v897 = vpow.pop %v896
    %v898 = vadd.f32 %v897, 1.0
    %v899 = vrcp.pop %v898
    %v900 = vmul.f32 %v898, %v899
    %v901 = vsub.f32 1.0, %v900
    %v902 = vmul.f32 %v899, %v901
    %v903 = vadd.f32 %v899, %v902
    %vm904 = vweird.f32 %v898
    %vm905 = vweird.f32 %v899
    %vm906 = vmor %vm904, %vm905
    %v907 = vsel %vm906, %v899, %v903
    %v908 = vand.u32 2147483647, %v898
    %vm909 = vcmp.eq.f32.partialorder %v908, 8.507059e+37
    %v910 = vand.u32 %v898, 2147483648
    %v911 = vor.u32 1.1754944e-38, %v910
    %v912 = vsel %vm909, %v911, %v907
    %v913 = vmul.f32 1.0, %v912
    %v914 = vtanh.pop %v894
    %v915 = vmul.f32 %v913, %v775
    %917 = vrot.lane.b32.xlu0 %v914, 32
    %v918 = vpop.permute.xlu0 %917
    %v920 = vmul.f32 %v913, %v918
    %922 = vrot.lane.b32.xlu0 %v920, 32
    %v923 = vpop.permute.xlu0 %922
    %v925 = vadd.f32 %v915, %v923
    %v926 = vtanh.pop %v925
    %928 = vrot.lane.b32.xlu0 %v926, 32
    %v929 = vpop.permute.xlu0 %928
    %v931 = vmul.f32 %v913, %v929
    %vm932 = vcmp.gt.s32.totalorder %v173, 3
    %v933 = vsel %vm932, %v925, %v775
    %934 = vrot.lane.b32.xlu0 %v848, 64
    %v935 = vpop.permute.xlu0 %934
    %v937 = vsel %vm932, %v931, %v935
    %v938 = vsel %vm932, %v931, 0.0
    %940 = vrot.lane.b32.xlu0 %v938, 64
    %v941 = vpop.permute.xlu0 %940
    %s943 = scalar_lea.vmem [#allocation3], 24
    %944 = vst.msk [vmem:[%s943] sm:$0xff] %vm480, %v941
    %s945 = scalar_lea.vmem [#allocation2], 128
    %v946 = vld [vmem:[%s945 + $0x8] sm:$0xff]
    %v947 = vadd.f32 %v946, %v890
    %v948 = vxor.u32 %v947, 2147483648
    %v949 = vmul.f32 %v948, 1.442695
    %v950 = vpow.pop %v949
    %v951 = vadd.f32 %v950, 1.0
    %v952 = vrcp.pop %v951
    %v953 = vmul.f32 %v951, %v952
    %v954 = vsub.f32 1.0, %v953
    %v955 = vmul.f32 %v952, %v954
    %v956 = vadd.f32 %v952, %v955
    %vm957 = vweird.f32 %v951
    %vm958 = vweird.f32 %v952
    %vm959 = vmor %vm957, %vm958
    %v960 = vsel %vm959, %v952, %v956
    %v961 = vand.u32 2147483647, %v951
    %vm962 = vcmp.eq.f32.partialorder %v961, 8.507059e+37
    %v963 = vand.u32 %v951, 2147483648
    %v964 = vor.u32 1.1754944e-38, %v963
    %v965 = vsel %vm962, %v964, %v960
    %v966 = vmul.f32 1.0, %v965
    %v967 = vtanh.pop %v947
    %v968 = vmul.f32 %v966, %v828
    %970 = vrot.lane.b32.xlu0 %v967, 32
    %v971 = vpop.permute.xlu0 %970
    %v973 = vmul.f32 %v966, %v971
    %975 = vrot.lane.b32.xlu0 %v973, 32
    %v976 = vpop.permute.xlu0 %975
    %v978 = vadd.f32 %v968, %v976
    %v979 = vtanh.pop %v978
    %981 = vrot.lane.b32.xlu0 %v979, 32
    %v982 = vpop.permute.xlu0 %981
    %v984 = vmul.f32 %v966, %v982
    %vm985 = vcmp.gt.s32.totalorder %v173, 8
    %v986 = vsel %vm985, %v978, %v828
    %987 = vrot.lane.b32.xlu0 %v848, 32
    %v988 = vpop.permute.xlu0 %987
    %v990 = vsel %vm985, %v984, %v988
    %v991 = vsel %vm985, %v984, 0.0
    %993 = vrot.lane.b32.xlu0 %v991, 96
    %v994 = vpop.permute.xlu0 %993
    %s996 = scalar_lea.vmem [#allocation3], 64
    %997 = vst.msk [vmem:[%s996] sm:$0xff] %vm530, %v994
    %999 = vrot.lane.b32.xlu0 %v937, 64
    %v1000 = vpop.permute.xlu0 %999
    %1003 = vrot.lane.b32.xlu0 %v990, 96
    %v1004 = vpop.permute.xlu0 %1003
    %v1006 = vsel %vm480, %v1000, %v1004
    %v1008 = vsel %vm208, %v1006, 0
    %1010 = vmatpush.msra.mxu0 0.0
    %1011 = vmatpush.msra.mxu0 0.0
    %1012 = vmatpush.msra.mxu0 0.0
    %1013 = vmatpush.msra.mxu0 0.0
    %1014 = vmatpush.msra.mxu0 0.0
    %1015 = vmatpush.msra.mxu0 0.0
    %1016 = vmatpush.msra.mxu0 0.0
    %1017 = vmatpush.msra.mxu0 0.0
    %1018 = vmatpush.msra.mxu0 %v389
    %1019 = vmatpush.msra.mxu0 %v387
    %1020 = vmatpush.msra.mxu0 %v385
    %1021 = vmatpush.msra.mxu0 %v383
    %1022 = vmatpush.msra.mxu0 %v381
    %1023 = vmatpush.msra.mxu0 %v379
    %1024 = vmatpush.msra.mxu0 %v377
    %1025 = vmatpush.msra.mxu0 %v375
    %1026 = vmatmul.f32.gmra.mxu0 %v1008
    %v1027 = vpop.f32.mrf.mxu0
    %v1028 = vadd.f32 0.0, %v1027
    %1029 = vdwg.mxu0
    %1030 = vmatpush.msra.mxu0 0.0
    %1031 = vmatpush.msra.mxu0 0.0
    %1032 = vmatpush.msra.mxu0 0.0
    %1033 = vmatpush.msra.mxu0 0.0
    %1034 = vmatpush.msra.mxu0 0.0
    %1035 = vmatpush.msra.mxu0 0.0
    %1036 = vmatpush.msra.mxu0 0.0
    %1037 = vmatpush.msra.mxu0 0.0
    %1038 = vmatpush.msra.mxu0 %v390
    %1039 = vmatpush.msra.mxu0 %v388
    %1040 = vmatpush.msra.mxu0 %v386
    %1041 = vmatpush.msra.mxu0 %v384
    %1042 = vmatpush.msra.mxu0 %v382
    %1043 = vmatpush.msra.mxu0 %v380
    %1044 = vmatpush.msra.mxu0 %v378
    %1045 = vmatpush.msra.mxu0 %v376
    %1046 = vmatmul.f32.gmra.mxu0 %v1008
    %v1047 = vpop.f32.mrf.mxu0
    %v1048 = vadd.f32 0.0, %v1047
    %1049 = vdwg.mxu0
    %s1050 = scalar_lea.vmem [#allocation2], 64
    %v1051 = vld [vmem:[%s1050] sm:$0xff]
    %v1052 = vadd.f32 %v1051, %v1028
    %v1053 = vxor.u32 %v1052, 2147483648
    %v1054 = vmul.f32 %v1053, 1.442695
    %v1055 = vpow.pop %v1054
    %v1056 = vadd.f32 %v1055, 1.0
    %v1057 = vrcp.pop %v1056
    %v1058 = vmul.f32 %v1056, %v1057
    %v1059 = vsub.f32 1.0, %v1058
    %v1060 = vmul.f32 %v1057, %v1059
    %v1061 = vadd.f32 %v1057, %v1060
    %vm1062 = vweird.f32 %v1056
    %vm1063 = vweird.f32 %v1057
    %vm1064 = vmor %vm1062, %vm1063
    %v1065 = vsel %vm1064, %v1057, %v1061
    %v1066 = vand.u32 2147483647, %v1056
    %vm1067 = vcmp.eq.f32.partialorder %v1066, 8.507059e+37
    %v1068 = vand.u32 %v1056, 2147483648
    %v1069 = vor.u32 1.1754944e-38, %v1068
    %v1070 = vsel %vm1067, %v1069, %v1065
    %v1071 = vmul.f32 1.0, %v1070
    %v1072 = vtanh.pop %v1052
    %v1073 = vmul.f32 %v1071, %v933
    %1075 = vrot.lane.b32.xlu0 %v1072, 32
    %v1076 = vpop.permute.xlu0 %1075
    %v1078 = vmul.f32 %v1071, %v1076
    %1080 = vrot.lane.b32.xlu0 %v1078, 32
    %v1081 = vpop.permute.xlu0 %1080
    %v1083 = vadd.f32 %v1073, %v1081
    %v1084 = vtanh.pop %v1083
    %1086 = vrot.lane.b32.xlu0 %v1084, 32
    %v1087 = vpop.permute.xlu0 %1086
    %v1089 = vmul.f32 %v1071, %v1087
    %vm1090 = vcmp.gt.s32.totalorder %v173, 4
    %v1091 = vsel %vm1090, %v1083, %v933
    %1092 = vrot.lane.b32.xlu0 %v1006, 64
    %v1093 = vpop.permute.xlu0 %1092
    %v1095 = vsel %vm1090, %v1089, %v1093
    %v1096 = vsel %vm1090, %v1089, 0.0
    %1098 = vrot.lane.b32.xlu0 %v1096, 64
    %v1099 = vpop.permute.xlu0 %1098
    %s1101 = scalar_lea.vmem [#allocation3], 32
    %1102 = vst.msk [vmem:[%s1101] sm:$0xff] %vm480, %v1099
    %s1103 = scalar_lea.vmem [#allocation2], 112
    %v1104 = vld [vmem:[%s1103 + $0x8] sm:$0xff]
    %v1105 = vadd.f32 %v1104, %v1048
    %v1106 = vxor.u32 %v1105, 2147483648
    %v1107 = vmul.f32 %v1106, 1.442695
    %v1108 = vpow.pop %v1107
    %v1109 = vadd.f32 %v1108, 1.0
    %v1110 = vrcp.pop %v1109
    %v1111 = vmul.f32 %v1109, %v1110
    %v1112 = vsub.f32 1.0, %v1111
    %v1113 = vmul.f32 %v1110, %v1112
    %v1114 = vadd.f32 %v1110, %v1113
    %vm1115 = vweird.f32 %v1109
    %vm1116 = vweird.f32 %v1110
    %vm1117 = vmor %vm1115, %vm1116
    %v1118 = vsel %vm1117, %v1110, %v1114
    %v1119 = vand.u32 2147483647, %v1109
    %vm1120 = vcmp.eq.f32.partialorder %v1119, 8.507059e+37
    %v1121 = vand.u32 %v1109, 2147483648
    %v1122 = vor.u32 1.1754944e-38, %v1121
    %v1123 = vsel %vm1120, %v1122, %v1118
    %v1124 = vmul.f32 1.0, %v1123
    %v1125 = vtanh.pop %v1105
    %v1126 = vmul.f32 %v1124, %v986
    %1128 = vrot.lane.b32.xlu0 %v1125, 32
    %v1129 = vpop.permute.xlu0 %1128
    %v1131 = vmul.f32 %v1124, %v1129
    %1133 = vrot.lane.b32.xlu0 %v1131, 32
    %v1134 = vpop.permute.xlu0 %1133
    %v1136 = vadd.f32 %v1126, %v1134
    %v1137 = vtanh.pop %v1136
    %1139 = vrot.lane.b32.xlu0 %v1137, 32
    %v1140 = vpop.permute.xlu0 %1139
    %v1142 = vmul.f32 %v1124, %v1140
    %vm1143 = vcmp.gt.s32.totalorder %v173, 7
    %v1144 = vsel %vm1143, %v1136, %v986
    %1145 = vrot.lane.b32.xlu0 %v1006, 32
    %v1146 = vpop.permute.xlu0 %1145
    %v1148 = vsel %vm1143, %v1142, %v1146
    %v1149 = vsel %vm1143, %v1142, 0.0
    %1151 = vrot.lane.b32.xlu0 %v1149, 96
    %v1152 = vpop.permute.xlu0 %1151
    %s1154 = scalar_lea.vmem [#allocation3], 56
    %1155 = vst.msk [vmem:[%s1154] sm:$0xff] %vm530, %v1152
    %1157 = vrot.lane.b32.xlu0 %v1095, 64
    %v1158 = vpop.permute.xlu0 %1157
    %1161 = vrot.lane.b32.xlu0 %v1148, 96
    %v1162 = vpop.permute.xlu0 %1161
    %v1164 = vsel %vm480, %v1158, %v1162
    %v1166 = vsel %vm208, %v1164, 0
    %1168 = vmatpush.msra.mxu0 0.0
    %1169 = vmatpush.msra.mxu0 0.0
    %1170 = vmatpush.msra.mxu0 0.0
    %1171 = vmatpush.msra.mxu0 0.0
    %1172 = vmatpush.msra.mxu0 0.0
    %1173 = vmatpush.msra.mxu0 0.0
    %1174 = vmatpush.msra.mxu0 0.0
    %1175 = vmatpush.msra.mxu0 0.0
    %1176 = vmatpush.msra.mxu0 %v389
    %1177 = vmatpush.msra.mxu0 %v387
    %1178 = vmatpush.msra.mxu0 %v385
    %1179 = vmatpush.msra.mxu0 %v383
    %1180 = vmatpush.msra.mxu0 %v381
    %1181 = vmatpush.msra.mxu0 %v379
    %1182 = vmatpush.msra.mxu0 %v377
    %1183 = vmatpush.msra.mxu0 %v375
    %1184 = vmatmul.f32.gmra.mxu0 %v1166
    %v1185 = vpop.f32.mrf.mxu0
    %v1186 = vadd.f32 0.0, %v1185
    %1187 = vdwg.mxu0
    %1188 = vmatpush.msra.mxu0 0.0
    %1189 = vmatpush.msra.mxu0 0.0
    %1190 = vmatpush.msra.mxu0 0.0
    %1191 = vmatpush.msra.mxu0 0.0
    %1192 = vmatpush.msra.mxu0 0.0
    %1193 = vmatpush.msra.mxu0 0.0
    %1194 = vmatpush.msra.mxu0 0.0
    %1195 = vmatpush.msra.mxu0 0.0
    %1196 = vmatpush.msra.mxu0 %v390
    %1197 = vmatpush.msra.mxu0 %v388
    %1198 = vmatpush.msra.mxu0 %v386
    %1199 = vmatpush.msra.mxu0 %v384
    %1200 = vmatpush.msra.mxu0 %v382
    %1201 = vmatpush.msra.mxu0 %v380
    %1202 = vmatpush.msra.mxu0 %v378
    %1203 = vmatpush.msra.mxu0 %v376
    %1204 = vmatmul.f32.gmra.mxu0 %v1166
    %v1205 = vpop.f32.mrf.mxu0
    %v1206 = vadd.f32 0.0, %v1205
    %1207 = vdwg.mxu0
    %s1208 = scalar_lea.vmem [#allocation2], 80
    %v1209 = vld [vmem:[%s1208] sm:$0xff]
    %v1210 = vadd.f32 %v1209, %v1186
    %v1211 = vxor.u32 %v1210, 2147483648
    %v1212 = vmul.f32 %v1211, 1.442695
    %v1213 = vpow.pop %v1212
    %v1214 = vadd.f32 %v1213, 1.0
    %v1215 = vrcp.pop %v1214
    %v1216 = vmul.f32 %v1214, %v1215
    %v1217 = vsub.f32 1.0, %v1216
    %v1218 = vmul.f32 %v1215, %v1217
    %v1219 = vadd.f32 %v1215, %v1218
    %vm1220 = vweird.f32 %v1214
    %vm1221 = vweird.f32 %v1215
    %vm1222 = vmor %vm1220, %vm1221
    %v1223 = vsel %vm1222, %v1215, %v1219
    %v1224 = vand.u32 2147483647, %v1214
    %vm1225 = vcmp.eq.f32.partialorder %v1224, 8.507059e+37
    %v1226 = vand.u32 %v1214, 2147483648
    %v1227 = vor.u32 1.1754944e-38, %v1226
    %v1228 = vsel %vm1225, %v1227, %v1223
    %v1229 = vmul.f32 1.0, %v1228
    %v1230 = vtanh.pop %v1210
    %v1231 = vmul.f32 %v1229, %v1091
    %1233 = vrot.lane.b32.xlu0 %v1230, 32
    %v1234 = vpop.permute.xlu0 %1233
    %v1236 = vmul.f32 %v1229, %v1234
    %1238 = vrot.lane.b32.xlu0 %v1236, 32
    %v1239 = vpop.permute.xlu0 %1238
    %v1241 = vadd.f32 %v1231, %v1239
    %v1242 = vtanh.pop %v1241
    %1244 = vrot.lane.b32.xlu0 %v1242, 32
    %v1245 = vpop.permute.xlu0 %1244
    %v1247 = vmul.f32 %v1229, %v1245
    %vm1248 = vcmp.gt.s32.totalorder %v173, 5
    %v1249 = vsel %vm1248, %v1241, %v1091
    %1250 = vrot.lane.b32.xlu0 %v1164, 64
    %v1251 = vpop.permute.xlu0 %1250
    %v1253 = vsel %vm1248, %v1247, %v1251
    %v1254 = vsel %vm1248, %v1247, 0.0
    %1256 = vrot.lane.b32.xlu0 %v1254, 64
    %v1257 = vpop.permute.xlu0 %1256
    %s1259 = scalar_lea.vmem [#allocation3], 40
    %1260 = vst.msk [vmem:[%s1259] sm:$0xff] %vm480, %v1257
    %s1261 = scalar_lea.vmem [#allocation2], 96
    %v1262 = vld [vmem:[%s1261 + $0x8] sm:$0xff]
    %v1263 = vadd.f32 %v1262, %v1206
    %v1264 = vxor.u32 %v1263, 2147483648
    %v1265 = vmul.f32 %v1264, 1.442695
    %v1266 = vpow.pop %v1265
    %v1267 = vadd.f32 %v1266, 1.0
    %v1268 = vrcp.pop %v1267
    %v1269 = vmul.f32 %v1267, %v1268
    %v1270 = vsub.f32 1.0, %v1269
    %v1271 = vmul.f32 %v1268, %v1270
    %v1272 = vadd.f32 %v1268, %v1271
    %vm1273 = vweird.f32 %v1267
    %vm1274 = vweird.f32 %v1268
    %vm1275 = vmor %vm1273, %vm1274
    %v1276 = vsel %vm1275, %v1268, %v1272
    %v1277 = vand.u32 2147483647, %v1267
    %vm1278 = vcmp.eq.f32.partialorder %v1277, 8.507059e+37
    %v1279 = vand.u32 %v1267, 2147483648
    %v1280 = vor.u32 1.1754944e-38, %v1279
    %v1281 = vsel %vm1278, %v1280, %v1276
    %v1282 = vmul.f32 1.0, %v1281
    %v1283 = vtanh.pop %v1263
    %v1284 = vmul.f32 %v1282, %v1144
    %1286 = vrot.lane.b32.xlu0 %v1283, 32
    %v1287 = vpop.permute.xlu0 %1286
    %v1289 = vmul.f32 %v1282, %v1287
    %1291 = vrot.lane.b32.xlu0 %v1289, 32
    %v1292 = vpop.permute.xlu0 %1291
    %v1294 = vadd.f32 %v1284, %v1292
    %v1295 = vtanh.pop %v1294
    %1297 = vrot.lane.b32.xlu0 %v1295, 32
    %v1298 = vpop.permute.xlu0 %1297
    %v1300 = vmul.f32 %v1282, %v1298
    %vm1301 = vcmp.gt.s32.totalorder %v173, 6
    %v1302 = vsel %vm1301, %v1294, %v1144
    %1303 = vrot.lane.b32.xlu0 %v1164, 32
    %v1304 = vpop.permute.xlu0 %1303
    %v1306 = vsel %vm1301, %v1300, %v1304
    %v1307 = vsel %vm1301, %v1300, 0.0
    %1309 = vrot.lane.b32.xlu0 %v1307, 96
    %v1310 = vpop.permute.xlu0 %1309
    %s1312 = scalar_lea.vmem [#allocation3], 48
    %1313 = vst.msk [vmem:[%s1312] sm:$0xff] %vm530, %v1310
    %1315 = vrot.lane.b32.xlu0 %v1253, 64
    %v1316 = vpop.permute.xlu0 %1315
    %1319 = vrot.lane.b32.xlu0 %v1306, 96
    %v1320 = vpop.permute.xlu0 %1319
    %v1322 = vsel %vm480, %v1316, %v1320
    %v1324 = vsel %vm208, %v1322, 0
    %1326 = vmatpush.msra.mxu0 0.0
    %1327 = vmatpush.msra.mxu0 0.0
    %1328 = vmatpush.msra.mxu0 0.0
    %1329 = vmatpush.msra.mxu0 0.0
    %1330 = vmatpush.msra.mxu0 0.0
    %1331 = vmatpush.msra.mxu0 0.0
    %1332 = vmatpush.msra.mxu0 0.0
    %1333 = vmatpush.msra.mxu0 0.0
    %1334 = vmatpush.msra.mxu0 %v389
    %1335 = vmatpush.msra.mxu0 %v387
    %1336 = vmatpush.msra.mxu0 %v385
    %1337 = vmatpush.msra.mxu0 %v383
    %1338 = vmatpush.msra.mxu0 %v381
    %1339 = vmatpush.msra.mxu0 %v379
    %1340 = vmatpush.msra.mxu0 %v377
    %1341 = vmatpush.msra.mxu0 %v375
    %1342 = vmatmul.f32.gmra.mxu0 %v1324
    %v1343 = vpop.f32.mrf.mxu0
    %v1344 = vadd.f32 0.0, %v1343
    %1345 = vdwg.mxu0
    %1346 = vmatpush.msra.mxu0 0.0
    %1347 = vmatpush.msra.mxu0 0.0
    %1348 = vmatpush.msra.mxu0 0.0
    %1349 = vmatpush.msra.mxu0 0.0
    %1350 = vmatpush.msra.mxu0 0.0
    %1351 = vmatpush.msra.mxu0 0.0
    %1352 = vmatpush.msra.mxu0 0.0
    %1353 = vmatpush.msra.mxu0 0.0
    %1354 = vmatpush.msra.mxu0 %v390
    %1355 = vmatpush.msra.mxu0 %v388
    %1356 = vmatpush.msra.mxu0 %v386
    %1357 = vmatpush.msra.mxu0 %v384
    %1358 = vmatpush.msra.mxu0 %v382
    %1359 = vmatpush.msra.mxu0 %v380
    %1360 = vmatpush.msra.mxu0 %v378
    %1361 = vmatpush.msra.mxu0 %v376
    %1362 = vmatmul.f32.gmra.mxu0 %v1324
    %v1363 = vpop.f32.mrf.mxu0
    %v1364 = vadd.f32 0.0, %v1363
    %1365 = vdwg.mxu0
    %v1366 = vld [vmem:[%s1261] sm:$0xff]
    %v1367 = vadd.f32 %v1366, %v1344
    %v1368 = vxor.u32 %v1367, 2147483648
    %v1369 = vmul.f32 %v1368, 1.442695
    %v1370 = vpow.pop %v1369
    %v1371 = vadd.f32 %v1370, 1.0
    %v1372 = vrcp.pop %v1371
    %v1373 = vmul.f32 %v1371, %v1372
    %v1374 = vsub.f32 1.0, %v1373
    %v1375 = vmul.f32 %v1372, %v1374
    %v1376 = vadd.f32 %v1372, %v1375
    %vm1377 = vweird.f32 %v1371
    %vm1378 = vweird.f32 %v1372
    %vm1379 = vmor %vm1377, %vm1378
    %v1380 = vsel %vm1379, %v1372, %v1376
    %v1381 = vand.u32 2147483647, %v1371
    %vm1382 = vcmp.eq.f32.partialorder %v1381, 8.507059e+37
    %v1383 = vand.u32 %v1371, 2147483648
    %v1384 = vor.u32 1.1754944e-38, %v1383
    %v1385 = vsel %vm1382, %v1384, %v1380
    %v1386 = vmul.f32 1.0, %v1385
    %v1387 = vtanh.pop %v1367
    %v1388 = vmul.f32 %v1386, %v1249
    %1390 = vrot.lane.b32.xlu0 %v1387, 32
    %v1391 = vpop.permute.xlu0 %1390
    %v1393 = vmul.f32 %v1386, %v1391
    %1395 = vrot.lane.b32.xlu0 %v1393, 32
    %v1396 = vpop.permute.xlu0 %1395
    %v1398 = vadd.f32 %v1388, %v1396
    %v1399 = vtanh.pop %v1398
    %1401 = vrot.lane.b32.xlu0 %v1399, 32
    %v1402 = vpop.permute.xlu0 %1401
    %v1404 = vmul.f32 %v1386, %v1402
    %v1405 = vsel %vm1301, %v1398, %v1249
    %1406 = vrot.lane.b32.xlu0 %v1322, 64
    %v1407 = vpop.permute.xlu0 %1406
    %v1409 = vsel %vm1301, %v1404, %v1407
    %v1410 = vsel %vm1301, %v1404, 0.0
    %1412 = vrot.lane.b32.xlu0 %v1410, 64
    %v1413 = vpop.permute.xlu0 %1412
    %1415 = vst.msk [vmem:[%s1312] sm:$0xff] %vm480, %v1413
    %v1416 = vld [vmem:[%s1208 + $0x8] sm:$0xff]
    %v1417 = vadd.f32 %v1416, %v1364
    %v1418 = vxor.u32 %v1417, 2147483648
    %v1419 = vmul.f32 %v1418, 1.442695
    %v1420 = vpow.pop %v1419
    %v1421 = vadd.f32 %v1420, 1.0
    %v1422 = vrcp.pop %v1421
    %v1423 = vmul.f32 %v1421, %v1422
    %v1424 = vsub.f32 1.0, %v1423
    %v1425 = vmul.f32 %v1422, %v1424
    %v1426 = vadd.f32 %v1422, %v1425
    %vm1427 = vweird.f32 %v1421
    %vm1428 = vweird.f32 %v1422
    %vm1429 = vmor %vm1427, %vm1428
    %v1430 = vsel %vm1429, %v1422, %v1426
    %v1431 = vand.u32 2147483647, %v1421
    %vm1432 = vcmp.eq.f32.partialorder %v1431, 8.507059e+37
    %v1433 = vand.u32 %v1421, 2147483648
    %v1434 = vor.u32 1.1754944e-38, %v1433
    %v1435 = vsel %vm1432, %v1434, %v1430
    %v1436 = vmul.f32 1.0, %v1435
    %v1437 = vtanh.pop %v1417
    %v1438 = vmul.f32 %v1436, %v1302
    %1440 = vrot.lane.b32.xlu0 %v1437, 32
    %v1441 = vpop.permute.xlu0 %1440
    %v1443 = vmul.f32 %v1436, %v1441
    %1445 = vrot.lane.b32.xlu0 %v1443, 32
    %v1446 = vpop.permute.xlu0 %1445
    %v1448 = vadd.f32 %v1438, %v1446
    %v1449 = vtanh.pop %v1448
    %1451 = vrot.lane.b32.xlu0 %v1449, 32
    %v1452 = vpop.permute.xlu0 %1451
    %v1454 = vmul.f32 %v1436, %v1452
    %v1455 = vsel %vm1248, %v1448, %v1302
    %1456 = vrot.lane.b32.xlu0 %v1322, 32
    %v1457 = vpop.permute.xlu0 %1456
    %v1459 = vsel %vm1248, %v1454, %v1457
    %v1460 = vsel %vm1248, %v1454, 0.0
    %1462 = vrot.lane.b32.xlu0 %v1460, 96
    %v1463 = vpop.permute.xlu0 %1462
    %1465 = vst.msk [vmem:[%s1259] sm:$0xff] %vm530, %v1463
    %1467 = vrot.lane.b32.xlu0 %v1409, 64
    %v1468 = vpop.permute.xlu0 %1467
    %1471 = vrot.lane.b32.xlu0 %v1459, 96
    %v1472 = vpop.permute.xlu0 %1471
    %v1474 = vsel %vm480, %v1468, %v1472
    %v1476 = vsel %vm208, %v1474, 0
    %1478 = vmatpush.msra.mxu0 0.0
    %1479 = vmatpush.msra.mxu0 0.0
    %1480 = vmatpush.msra.mxu0 0.0
    %1481 = vmatpush.msra.mxu0 0.0
    %1482 = vmatpush.msra.mxu0 0.0
    %1483 = vmatpush.msra.mxu0 0.0
    %1484 = vmatpush.msra.mxu0 0.0
    %1485 = vmatpush.msra.mxu0 0.0
    %1486 = vmatpush.msra.mxu0 %v389
    %1487 = vmatpush.msra.mxu0 %v387
    %1488 = vmatpush.msra.mxu0 %v385
    %1489 = vmatpush.msra.mxu0 %v383
    %1490 = vmatpush.msra.mxu0 %v381
    %1491 = vmatpush.msra.mxu0 %v379
    %1492 = vmatpush.msra.mxu0 %v377
    %1493 = vmatpush.msra.mxu0 %v375
    %1494 = vmatmul.f32.gmra.mxu0 %v1476
    %v1495 = vpop.f32.mrf.mxu0
    %v1496 = vadd.f32 0.0, %v1495
    %1497 = vdwg.mxu0
    %1498 = vmatpush.msra.mxu0 0.0
    %1499 = vmatpush.msra.mxu0 0.0
    %1500 = vmatpush.msra.mxu0 0.0
    %1501 = vmatpush.msra.mxu0 0.0
    %1502 = vmatpush.msra.mxu0 0.0
    %1503 = vmatpush.msra.mxu0 0.0
    %1504 = vmatpush.msra.mxu0 0.0
    %1505 = vmatpush.msra.mxu0 0.0
    %1506 = vmatpush.msra.mxu0 %v390
    %1507 = vmatpush.msra.mxu0 %v388
    %1508 = vmatpush.msra.mxu0 %v386
    %1509 = vmatpush.msra.mxu0 %v384
    %1510 = vmatpush.msra.mxu0 %v382
    %1511 = vmatpush.msra.mxu0 %v380
    %1512 = vmatpush.msra.mxu0 %v378
    %1513 = vmatpush.msra.mxu0 %v376
    %1514 = vmatmul.f32.gmra.mxu0 %v1476
    %v1515 = vpop.f32.mrf.mxu0
    %v1516 = vadd.f32 0.0, %v1515
    %1517 = vdwg.mxu0
    %v1518 = vld [vmem:[%s1103] sm:$0xff]
    %v1519 = vadd.f32 %v1518, %v1496
    %v1520 = vxor.u32 %v1519, 2147483648
    %v1521 = vmul.f32 %v1520, 1.442695
    %v1522 = vpow.pop %v1521
    %v1523 = vadd.f32 %v1522, 1.0
    %v1524 = vrcp.pop %v1523
    %v1525 = vmul.f32 %v1523, %v1524
    %v1526 = vsub.f32 1.0, %v1525
    %v1527 = vmul.f32 %v1524, %v1526
    %v1528 = vadd.f32 %v1524, %v1527
    %vm1529 = vweird.f32 %v1523
    %vm1530 = vweird.f32 %v1524
    %vm1531 = vmor %vm1529, %vm1530
    %v1532 = vsel %vm1531, %v1524, %v1528
    %v1533 = vand.u32 2147483647, %v1523
    %vm1534 = vcmp.eq.f32.partialorder %v1533, 8.507059e+37
    %v1535 = vand.u32 %v1523, 2147483648
    %v1536 = vor.u32 1.1754944e-38, %v1535
    %v1537 = vsel %vm1534, %v1536, %v1532
    %v1538 = vmul.f32 1.0, %v1537
    %v1539 = vtanh.pop %v1519
    %v1540 = vmul.f32 %v1538, %v1405
    %1542 = vrot.lane.b32.xlu0 %v1539, 32
    %v1543 = vpop.permute.xlu0 %1542
    %v1545 = vmul.f32 %v1538, %v1543
    %1547 = vrot.lane.b32.xlu0 %v1545, 32
    %v1548 = vpop.permute.xlu0 %1547
    %v1550 = vadd.f32 %v1540, %v1548
    %v1551 = vtanh.pop %v1550
    %1553 = vrot.lane.b32.xlu0 %v1551, 32
    %v1554 = vpop.permute.xlu0 %1553
    %v1556 = vmul.f32 %v1538, %v1554
    %v1557 = vsel %vm1143, %v1550, %v1405
    %1558 = vrot.lane.b32.xlu0 %v1474, 64
    %v1559 = vpop.permute.xlu0 %1558
    %v1561 = vsel %vm1143, %v1556, %v1559
    %v1562 = vsel %vm1143, %v1556, 0.0
    %1564 = vrot.lane.b32.xlu0 %v1562, 64
    %v1565 = vpop.permute.xlu0 %1564
    %1567 = vst.msk [vmem:[%s1154] sm:$0xff] %vm480, %v1565
    %v1568 = vld [vmem:[%s1050 + $0x8] sm:$0xff]
    %v1569 = vadd.f32 %v1568, %v1516
    %v1570 = vxor.u32 %v1569, 2147483648
    %v1571 = vmul.f32 %v1570, 1.442695
    %v1572 = vpow.pop %v1571
    %v1573 = vadd.f32 %v1572, 1.0
    %v1574 = vrcp.pop %v1573
    %v1575 = vmul.f32 %v1573, %v1574
    %v1576 = vsub.f32 1.0, %v1575
    %v1577 = vmul.f32 %v1574, %v1576
    %v1578 = vadd.f32 %v1574, %v1577
    %vm1579 = vweird.f32 %v1573
    %vm1580 = vweird.f32 %v1574
    %vm1581 = vmor %vm1579, %vm1580
    %v1582 = vsel %vm1581, %v1574, %v1578
    %v1583 = vand.u32 2147483647, %v1573
    %vm1584 = vcmp.eq.f32.partialorder %v1583, 8.507059e+37
    %v1585 = vand.u32 %v1573, 2147483648
    %v1586 = vor.u32 1.1754944e-38, %v1585
    %v1587 = vsel %vm1584, %v1586, %v1582
    %v1588 = vmul.f32 1.0, %v1587
    %v1589 = vtanh.pop %v1569
    %v1590 = vmul.f32 %v1588, %v1455
    %1592 = vrot.lane.b32.xlu0 %v1589, 32
    %v1593 = vpop.permute.xlu0 %1592
    %v1595 = vmul.f32 %v1588, %v1593
    %1597 = vrot.lane.b32.xlu0 %v1595, 32
    %v1598 = vpop.permute.xlu0 %1597
    %v1600 = vadd.f32 %v1590, %v1598
    %v1601 = vtanh.pop %v1600
    %1603 = vrot.lane.b32.xlu0 %v1601, 32
    %v1604 = vpop.permute.xlu0 %1603
    %v1606 = vmul.f32 %v1588, %v1604
    %v1607 = vsel %vm1090, %v1600, %v1455
    %1608 = vrot.lane.b32.xlu0 %v1474, 32
    %v1609 = vpop.permute.xlu0 %1608
    %v1611 = vsel %vm1090, %v1606, %v1609
    %v1612 = vsel %vm1090, %v1606, 0.0
    %1614 = vrot.lane.b32.xlu0 %v1612, 96
    %v1615 = vpop.permute.xlu0 %1614
    %1617 = vst.msk [vmem:[%s1101] sm:$0xff] %vm530, %v1615
    %1619 = vrot.lane.b32.xlu0 %v1561, 64
    %v1620 = vpop.permute.xlu0 %1619
    %1623 = vrot.lane.b32.xlu0 %v1611, 96
    %v1624 = vpop.permute.xlu0 %1623
    %v1626 = vsel %vm480, %v1620, %v1624
    %v1628 = vsel %vm208, %v1626, 0
    %1630 = vmatpush.msra.mxu0 0.0
    %1631 = vmatpush.msra.mxu0 0.0
    %1632 = vmatpush.msra.mxu0 0.0
    %1633 = vmatpush.msra.mxu0 0.0
    %1634 = vmatpush.msra.mxu0 0.0
    %1635 = vmatpush.msra.mxu0 0.0
    %1636 = vmatpush.msra.mxu0 0.0
    %1637 = vmatpush.msra.mxu0 0.0
    %1638 = vmatpush.msra.mxu0 %v389
    %1639 = vmatpush.msra.mxu0 %v387
    %1640 = vmatpush.msra.mxu0 %v385
    %1641 = vmatpush.msra.mxu0 %v383
    %1642 = vmatpush.msra.mxu0 %v381
    %1643 = vmatpush.msra.mxu0 %v379
    %1644 = vmatpush.msra.mxu0 %v377
    %1645 = vmatpush.msra.mxu0 %v375
    %1646 = vmatmul.f32.gmra.mxu0 %v1628
    %v1647 = vpop.f32.mrf.mxu0
    %v1648 = vadd.f32 0.0, %v1647
    %1649 = vdwg.mxu0
    %1650 = vmatpush.msra.mxu0 0.0
    %1651 = vmatpush.msra.mxu0 0.0
    %1652 = vmatpush.msra.mxu0 0.0
    %1653 = vmatpush.msra.mxu0 0.0
    %1654 = vmatpush.msra.mxu0 0.0
    %1655 = vmatpush.msra.mxu0 0.0
    %1656 = vmatpush.msra.mxu0 0.0
    %1657 = vmatpush.msra.mxu0 0.0
    %1658 = vmatpush.msra.mxu0 %v390
    %1659 = vmatpush.msra.mxu0 %v388
    %1660 = vmatpush.msra.mxu0 %v386
    %1661 = vmatpush.msra.mxu0 %v384
    %1662 = vmatpush.msra.mxu0 %v382
    %1663 = vmatpush.msra.mxu0 %v380
    %1664 = vmatpush.msra.mxu0 %v378
    %1665 = vmatpush.msra.mxu0 %v376
    %1666 = vmatmul.f32.gmra.mxu0 %v1628
    %v1667 = vpop.f32.mrf.mxu0
    %v1668 = vadd.f32 0.0, %v1667
    %1669 = vdwg.mxu0
    %v1670 = vld [vmem:[%s945] sm:$0xff]
    %v1671 = vadd.f32 %v1670, %v1648
    %v1672 = vxor.u32 %v1671, 2147483648
    %v1673 = vmul.f32 %v1672, 1.442695
    %v1674 = vpow.pop %v1673
    %v1675 = vadd.f32 %v1674, 1.0
    %v1676 = vrcp.pop %v1675
    %v1677 = vmul.f32 %v1675, %v1676
    %v1678 = vsub.f32 1.0, %v1677
    %v1679 = vmul.f32 %v1676, %v1678
    %v1680 = vadd.f32 %v1676, %v1679
    %vm1681 = vweird.f32 %v1675
    %vm1682 = vweird.f32 %v1676
    %vm1683 = vmor %vm1681, %vm1682
    %v1684 = vsel %vm1683, %v1676, %v1680
    %v1685 = vand.u32 2147483647, %v1675
    %vm1686 = vcmp.eq.f32.partialorder %v1685, 8.507059e+37
    %v1687 = vand.u32 %v1675, 2147483648
    %v1688 = vor.u32 1.1754944e-38, %v1687
    %v1689 = vsel %vm1686, %v1688, %v1684
    %v1690 = vmul.f32 1.0, %v1689
    %v1691 = vtanh.pop %v1671
    %v1692 = vmul.f32 %v1690, %v1557
    %1694 = vrot.lane.b32.xlu0 %v1691, 32
    %v1695 = vpop.permute.xlu0 %1694
    %v1697 = vmul.f32 %v1690, %v1695
    %1699 = vrot.lane.b32.xlu0 %v1697, 32
    %v1700 = vpop.permute.xlu0 %1699
    %v1702 = vadd.f32 %v1692, %v1700
    %v1703 = vtanh.pop %v1702
    %1705 = vrot.lane.b32.xlu0 %v1703, 32
    %v1706 = vpop.permute.xlu0 %1705
    %v1708 = vmul.f32 %v1690, %v1706
    %v1709 = vsel %vm985, %v1702, %v1557
    %1710 = vrot.lane.b32.xlu0 %v1626, 64
    %v1711 = vpop.permute.xlu0 %1710
    %v1713 = vsel %vm985, %v1708, %v1711
    %v1714 = vsel %vm985, %v1708, 0.0
    %1716 = vrot.lane.b32.xlu0 %v1714, 64
    %v1717 = vpop.permute.xlu0 %1716
    %1719 = vst.msk [vmem:[%s996] sm:$0xff] %vm480, %v1717
    %v1720 = vld [vmem:[%s892 + $0x8] sm:$0xff]
    %v1721 = vadd.f32 %v1720, %v1668
    %v1722 = vxor.u32 %v1721, 2147483648
    %v1723 = vmul.f32 %v1722, 1.442695
    %v1724 = vpow.pop %v1723
    %v1725 = vadd.f32 %v1724, 1.0
    %v1726 = vrcp.pop %v1725
    %v1727 = vmul.f32 %v1725, %v1726
    %v1728 = vsub.f32 1.0, %v1727
    %v1729 = vmul.f32 %v1726, %v1728
    %v1730 = vadd.f32 %v1726, %v1729
    %vm1731 = vweird.f32 %v1725
    %vm1732 = vweird.f32 %v1726
    %vm1733 = vmor %vm1731, %vm1732
    %v1734 = vsel %vm1733, %v1726, %v1730
    %v1735 = vand.u32 2147483647, %v1725
    %vm1736 = vcmp.eq.f32.partialorder %v1735, 8.507059e+37
    %v1737 = vand.u32 %v1725, 2147483648
    %v1738 = vor.u32 1.1754944e-38, %v1737
    %v1739 = vsel %vm1736, %v1738, %v1734
    %v1740 = vmul.f32 1.0, %v1739
    %v1741 = vtanh.pop %v1721
    %v1742 = vmul.f32 %v1740, %v1607
    %1744 = vrot.lane.b32.xlu0 %v1741, 32
    %v1745 = vpop.permute.xlu0 %1744
    %v1747 = vmul.f32 %v1740, %v1745
    %1749 = vrot.lane.b32.xlu0 %v1747, 32
    %v1750 = vpop.permute.xlu0 %1749
    %v1752 = vadd.f32 %v1742, %v1750
    %v1753 = vtanh.pop %v1752
    %1755 = vrot.lane.b32.xlu0 %v1753, 32
    %v1756 = vpop.permute.xlu0 %1755
    %v1758 = vmul.f32 %v1740, %v1756
    %v1759 = vsel %vm932, %v1752, %v1607
    %1760 = vrot.lane.b32.xlu0 %v1626, 32
    %v1761 = vpop.permute.xlu0 %1760
    %v1763 = vsel %vm932, %v1758, %v1761
    %v1764 = vsel %vm932, %v1758, 0.0
    %1766 = vrot.lane.b32.xlu0 %v1764, 96
    %v1767 = vpop.permute.xlu0 %1766
    %1769 = vst.msk [vmem:[%s943] sm:$0xff] %vm530, %v1767
    %1771 = vrot.lane.b32.xlu0 %v1713, 64
    %v1772 = vpop.permute.xlu0 %1771
    %1775 = vrot.lane.b32.xlu0 %v1763, 96
    %v1776 = vpop.permute.xlu0 %1775
    %v1778 = vsel %vm480, %v1772, %v1776
    %v1780 = vsel %vm208, %v1778, 0
    %1782 = vmatpush.msra.mxu0 0.0
    %1783 = vmatpush.msra.mxu0 0.0
    %1784 = vmatpush.msra.mxu0 0.0
    %1785 = vmatpush.msra.mxu0 0.0
    %1786 = vmatpush.msra.mxu0 0.0
    %1787 = vmatpush.msra.mxu0 0.0
    %1788 = vmatpush.msra.mxu0 0.0
    %1789 = vmatpush.msra.mxu0 0.0
    %1790 = vmatpush.msra.mxu0 %v389
    %1791 = vmatpush.msra.mxu0 %v387
    %1792 = vmatpush.msra.mxu0 %v385
    %1793 = vmatpush.msra.mxu0 %v383
    %1794 = vmatpush.msra.mxu0 %v381
    %1795 = vmatpush.msra.mxu0 %v379
    %1796 = vmatpush.msra.mxu0 %v377
    %1797 = vmatpush.msra.mxu0 %v375
    %1798 = vmatmul.f32.gmra.mxu0 %v1780
    %v1799 = vpop.f32.mrf.mxu0
    %v1800 = vadd.f32 0.0, %v1799
    %1801 = vdwg.mxu0
    %1802 = vmatpush.msra.mxu0 0.0
    %1803 = vmatpush.msra.mxu0 0.0
    %1804 = vmatpush.msra.mxu0 0.0
    %1805 = vmatpush.msra.mxu0 0.0
    %1806 = vmatpush.msra.mxu0 0.0
    %1807 = vmatpush.msra.mxu0 0.0
    %1808 = vmatpush.msra.mxu0 0.0
    %1809 = vmatpush.msra.mxu0 0.0
    %1810 = vmatpush.msra.mxu0 %v390
    %1811 = vmatpush.msra.mxu0 %v388
    %1812 = vmatpush.msra.mxu0 %v386
    %1813 = vmatpush.msra.mxu0 %v384
    %1814 = vmatpush.msra.mxu0 %v382
    %1815 = vmatpush.msra.mxu0 %v380
    %1816 = vmatpush.msra.mxu0 %v378
    %1817 = vmatpush.msra.mxu0 %v376
    %1818 = vmatmul.f32.gmra.mxu0 %v1780
    %v1819 = vpop.f32.mrf.mxu0
    %v1820 = vadd.f32 0.0, %v1819
    %1821 = vdwg.mxu0
    %v1822 = vld [vmem:[%s787] sm:$0xff]
    %v1823 = vadd.f32 %v1822, %v1800
    %v1824 = vxor.u32 %v1823, 2147483648
    %v1825 = vmul.f32 %v1824, 1.442695
    %v1826 = vpow.pop %v1825
    %v1827 = vadd.f32 %v1826, 1.0
    %v1828 = vrcp.pop %v1827
    %v1829 = vmul.f32 %v1827, %v1828
    %v1830 = vsub.f32 1.0, %v1829
    %v1831 = vmul.f32 %v1828, %v1830
    %v1832 = vadd.f32 %v1828, %v1831
    %vm1833 = vweird.f32 %v1827
    %vm1834 = vweird.f32 %v1828
    %vm1835 = vmor %vm1833, %vm1834
    %v1836 = vsel %vm1835, %v1828, %v1832
    %v1837 = vand.u32 2147483647, %v1827
    %vm1838 = vcmp.eq.f32.partialorder %v1837, 8.507059e+37
    %v1839 = vand.u32 %v1827, 2147483648
    %v1840 = vor.u32 1.1754944e-38, %v1839
    %v1841 = vsel %vm1838, %v1840, %v1836
    %v1842 = vmul.f32 1.0, %v1841
    %v1843 = vtanh.pop %v1823
    %v1844 = vmul.f32 %v1842, %v1709
    %1846 = vrot.lane.b32.xlu0 %v1843, 32
    %v1847 = vpop.permute.xlu0 %1846
    %v1849 = vmul.f32 %v1842, %v1847
    %1851 = vrot.lane.b32.xlu0 %v1849, 32
    %v1852 = vpop.permute.xlu0 %1851
    %v1854 = vadd.f32 %v1844, %v1852
    %v1855 = vtanh.pop %v1854
    %1857 = vrot.lane.b32.xlu0 %v1855, 32
    %v1858 = vpop.permute.xlu0 %1857
    %v1860 = vmul.f32 %v1842, %v1858
    %v1861 = vsel %vm827, %v1854, %v1709
    %1862 = vrot.lane.b32.xlu0 %v1778, 64
    %v1863 = vpop.permute.xlu0 %1862
    %v1865 = vsel %vm827, %v1860, %v1863
    %v1866 = vsel %vm827, %v1860, 0.0
    %1868 = vrot.lane.b32.xlu0 %v1866, 64
    %v1869 = vpop.permute.xlu0 %1868
    %1871 = vst.msk [vmem:[%s838] sm:$0xff] %vm480, %v1869
    %v1872 = vld [vmem:[%s734 + $0x8] sm:$0xff]
    %v1873 = vadd.f32 %v1872, %v1820
    %v1874 = vxor.u32 %v1873, 2147483648
    %v1875 = vmul.f32 %v1874, 1.442695
    %v1876 = vpow.pop %v1875
    %v1877 = vadd.f32 %v1876, 1.0
    %v1878 = vrcp.pop %v1877
    %v1879 = vmul.f32 %v1877, %v1878
    %v1880 = vsub.f32 1.0, %v1879
    %v1881 = vmul.f32 %v1878, %v1880
    %v1882 = vadd.f32 %v1878, %v1881
    %vm1883 = vweird.f32 %v1877
    %vm1884 = vweird.f32 %v1878
    %vm1885 = vmor %vm1883, %vm1884
    %v1886 = vsel %vm1885, %v1878, %v1882
    %v1887 = vand.u32 2147483647, %v1877
    %vm1888 = vcmp.eq.f32.partialorder %v1887, 8.507059e+37
    %v1889 = vand.u32 %v1877, 2147483648
    %v1890 = vor.u32 1.1754944e-38, %v1889
    %v1891 = vsel %vm1888, %v1890, %v1886
    %v1892 = vmul.f32 1.0, %v1891
    %v1893 = vtanh.pop %v1873
    %v1894 = vmul.f32 %v1892, %v1759
    %1896 = vrot.lane.b32.xlu0 %v1893, 32
    %v1897 = vpop.permute.xlu0 %1896
    %v1899 = vmul.f32 %v1892, %v1897
    %1901 = vrot.lane.b32.xlu0 %v1899, 32
    %v1902 = vpop.permute.xlu0 %1901
    %v1904 = vadd.f32 %v1894, %v1902
    %v1905 = vtanh.pop %v1904
    %1907 = vrot.lane.b32.xlu0 %v1905, 32
    %v1908 = vpop.permute.xlu0 %1907
    %v1910 = vmul.f32 %v1892, %v1908
    %v1911 = vsel %vm774, %v1904, %v1759
    %1912 = vrot.lane.b32.xlu0 %v1778, 32
    %v1913 = vpop.permute.xlu0 %1912
    %v1915 = vsel %vm774, %v1910, %v1913
    %v1916 = vsel %vm774, %v1910, 0.0
    %1918 = vrot.lane.b32.xlu0 %v1916, 96
    %v1919 = vpop.permute.xlu0 %1918
    %1921 = vst.msk [vmem:[%s785] sm:$0xff] %vm530, %v1919
    %1923 = vrot.lane.b32.xlu0 %v1865, 64
    %v1924 = vpop.permute.xlu0 %1923
    %1927 = vrot.lane.b32.xlu0 %v1915, 96
    %v1928 = vpop.permute.xlu0 %1927
    %v1930 = vsel %vm480, %v1924, %v1928
    %v1932 = vsel %vm208, %v1930, 0
    %1934 = vmatpush.msra.mxu0 0.0
    %1935 = vmatpush.msra.mxu0 0.0
    %1936 = vmatpush.msra.mxu0 0.0
    %1937 = vmatpush.msra.mxu0 0.0
    %1938 = vmatpush.msra.mxu0 0.0
    %1939 = vmatpush.msra.mxu0 0.0
    %1940 = vmatpush.msra.mxu0 0.0
    %1941 = vmatpush.msra.mxu0 0.0
    %1942 = vmatpush.msra.mxu0 %v389
    %1943 = vmatpush.msra.mxu0 %v387
    %1944 = vmatpush.msra.mxu0 %v385
    %1945 = vmatpush.msra.mxu0 %v383
    %1946 = vmatpush.msra.mxu0 %v381
    %1947 = vmatpush.msra.mxu0 %v379
    %1948 = vmatpush.msra.mxu0 %v377
    %1949 = vmatpush.msra.mxu0 %v375
    %1950 = vmatmul.f32.gmra.mxu0 %v1932
    %v1951 = vpop.f32.mrf.mxu0
    %v1952 = vadd.f32 0.0, %v1951
    %1953 = vdwg.mxu0
    %1954 = vmatpush.msra.mxu0 0.0
    %1955 = vmatpush.msra.mxu0 0.0
    %1956 = vmatpush.msra.mxu0 0.0
    %1957 = vmatpush.msra.mxu0 0.0
    %1958 = vmatpush.msra.mxu0 0.0
    %1959 = vmatpush.msra.mxu0 0.0
    %1960 = vmatpush.msra.mxu0 0.0
    %1961 = vmatpush.msra.mxu0 0.0
    %1962 = vmatpush.msra.mxu0 %v390
    %1963 = vmatpush.msra.mxu0 %v388
    %1964 = vmatpush.msra.mxu0 %v386
    %1965 = vmatpush.msra.mxu0 %v384
    %1966 = vmatpush.msra.mxu0 %v382
    %1967 = vmatpush.msra.mxu0 %v380
    %1968 = vmatpush.msra.mxu0 %v378
    %1969 = vmatpush.msra.mxu0 %v376
    %1970 = vmatmul.f32.gmra.mxu0 %v1932
    %v1971 = vpop.f32.mrf.mxu0
    %v1972 = vadd.f32 0.0, %v1971
    %1973 = vdwg.mxu0
    %v1974 = vld [vmem:[%s629] sm:$0xff]
    %v1975 = vadd.f32 %v1974, %v1952
    %v1976 = vxor.u32 %v1975, 2147483648
    %v1977 = vmul.f32 %v1976, 1.442695
    %v1978 = vpow.pop %v1977
    %v1979 = vadd.f32 %v1978, 1.0
    %v1980 = vrcp.pop %v1979
    %v1981 = vmul.f32 %v1979, %v1980
    %v1982 = vsub.f32 1.0, %v1981
    %v1983 = vmul.f32 %v1980, %v1982
    %v1984 = vadd.f32 %v1980, %v1983
    %vm1985 = vweird.f32 %v1979
    %vm1986 = vweird.f32 %v1980
    %vm1987 = vmor %vm1985, %vm1986
    %v1988 = vsel %vm1987, %v1980, %v1984
    %v1989 = vand.u32 2147483647, %v1979
    %vm1990 = vcmp.eq.f32.partialorder %v1989, 8.507059e+37
    %v1991 = vand.u32 %v1979, 2147483648
    %v1992 = vor.u32 1.1754944e-38, %v1991
    %v1993 = vsel %vm1990, %v1992, %v1988
    %v1994 = vmul.f32 1.0, %v1993
    %v1995 = vtanh.pop %v1975
    %v1996 = vmul.f32 %v1994, %v1861
    %1998 = vrot.lane.b32.xlu0 %v1995, 32
    %v1999 = vpop.permute.xlu0 %1998
    %v2001 = vmul.f32 %v1994, %v1999
    %2003 = vrot.lane.b32.xlu0 %v2001, 32
    %v2004 = vpop.permute.xlu0 %2003
    %v2006 = vadd.f32 %v1996, %v2004
    %v2007 = vtanh.pop %v2006
    %2009 = vrot.lane.b32.xlu0 %v2007, 32
    %v2010 = vpop.permute.xlu0 %2009
    %v2012 = vmul.f32 %v1994, %v2010
    %v2013 = vsel %vm669, %v2006, %v1861
    %2014 = vrot.lane.b32.xlu0 %v1930, 64
    %v2015 = vpop.permute.xlu0 %2014
    %v2017 = vsel %vm669, %v2012, %v2015
    %v2018 = vsel %vm669, %v2012, 0.0
    %2020 = vrot.lane.b32.xlu0 %v2018, 64
    %v2021 = vpop.permute.xlu0 %2020
    %2023 = vst.msk [vmem:[%s680] sm:$0xff] %vm480, %v2021
    %v2024 = vld [vmem:[%s576 + $0x8] sm:$0xff]
    %v2025 = vadd.f32 %v2024, %v1972
    %v2026 = vxor.u32 %v2025, 2147483648
    %v2027 = vmul.f32 %v2026, 1.442695
    %v2028 = vpow.pop %v2027
    %v2029 = vadd.f32 %v2028, 1.0
    %v2030 = vrcp.pop %v2029
    %v2031 = vmul.f32 %v2029, %v2030
    %v2032 = vsub.f32 1.0, %v2031
    %v2033 = vmul.f32 %v2030, %v2032
    %v2034 = vadd.f32 %v2030, %v2033
    %vm2035 = vweird.f32 %v2029
    %vm2036 = vweird.f32 %v2030
    %vm2037 = vmor %vm2035, %vm2036
    %v2038 = vsel %vm2037, %v2030, %v2034
    %v2039 = vand.u32 2147483647, %v2029
    %vm2040 = vcmp.eq.f32.partialorder %v2039, 8.507059e+37
    %v2041 = vand.u32 %v2029, 2147483648
    %v2042 = vor.u32 1.1754944e-38, %v2041
    %v2043 = vsel %vm2040, %v2042, %v2038
    %v2044 = vmul.f32 1.0, %v2043
    %v2045 = vtanh.pop %v2025
    %v2046 = vmul.f32 %v2044, %v1911
    %2048 = vrot.lane.b32.xlu0 %v2045, 32
    %v2049 = vpop.permute.xlu0 %2048
    %v2051 = vmul.f32 %v2044, %v2049
    %2053 = vrot.lane.b32.xlu0 %v2051, 32
    %v2054 = vpop.permute.xlu0 %2053
    %v2056 = vadd.f32 %v2046, %v2054
    %v2057 = vtanh.pop %v2056
    %2059 = vrot.lane.b32.xlu0 %v2057, 32
    %v2060 = vpop.permute.xlu0 %2059
    %v2062 = vmul.f32 %v2044, %v2060
    %v2063 = vsel %vm616, %v2056, %v1911
    %2064 = vrot.lane.b32.xlu0 %v1930, 32
    %v2065 = vpop.permute.xlu0 %2064
    %v2067 = vsel %vm616, %v2062, %v2065
    %v2068 = vsel %vm616, %v2062, 0.0
    %2070 = vrot.lane.b32.xlu0 %v2068, 96
    %v2071 = vpop.permute.xlu0 %2070
    %2073 = vst.msk [vmem:[%s627] sm:$0xff] %vm530, %v2071
    %2075 = vrot.lane.b32.xlu0 %v2017, 64
    %v2076 = vpop.permute.xlu0 %2075
    %2079 = vrot.lane.b32.xlu0 %v2067, 96
    %v2080 = vpop.permute.xlu0 %2079
    %v2082 = vsel %vm480, %v2076, %v2080
    %v2084 = vsel %vm208, %v2082, 0
    %2086 = vmatpush.msra.mxu0 0.0
    %2087 = vmatpush.msra.mxu0 0.0
    %2088 = vmatpush.msra.mxu0 0.0
    %2089 = vmatpush.msra.mxu0 0.0
    %2090 = vmatpush.msra.mxu0 0.0
    %2091 = vmatpush.msra.mxu0 0.0
    %2092 = vmatpush.msra.mxu0 0.0
    %2093 = vmatpush.msra.mxu0 0.0
    %2094 = vmatpush.msra.mxu0 %v389
    %2095 = vmatpush.msra.mxu0 %v387
    %2096 = vmatpush.msra.mxu0 %v385
    %2097 = vmatpush.msra.mxu0 %v383
    %2098 = vmatpush.msra.mxu0 %v381
    %2099 = vmatpush.msra.mxu0 %v379
    %2100 = vmatpush.msra.mxu0 %v377
    %2101 = vmatpush.msra.mxu0 %v375
    %2102 = vmatmul.f32.gmra.mxu0 %v2084
    %v2103 = vpop.f32.mrf.mxu0
    %v2104 = vadd.f32 0.0, %v2103
    %2105 = vdwg.mxu0
    %2106 = vmatpush.msra.mxu0 0.0
    %2107 = vmatpush.msra.mxu0 0.0
    %2108 = vmatpush.msra.mxu0 0.0
    %2109 = vmatpush.msra.mxu0 0.0
    %2110 = vmatpush.msra.mxu0 0.0
    %2111 = vmatpush.msra.mxu0 0.0
    %2112 = vmatpush.msra.mxu0 0.0
    %2113 = vmatpush.msra.mxu0 0.0
    %2114 = vmatpush.msra.mxu0 %v390
    %2115 = vmatpush.msra.mxu0 %v388
    %2116 = vmatpush.msra.mxu0 %v386
    %2117 = vmatpush.msra.mxu0 %v384
    %2118 = vmatpush.msra.mxu0 %v382
    %2119 = vmatpush.msra.mxu0 %v380
    %2120 = vmatpush.msra.mxu0 %v378
    %2121 = vmatpush.msra.mxu0 %v376
    %2122 = vmatmul.f32.gmra.mxu0 %v2084
    %v2123 = vpop.f32.mrf.mxu0
    %v2124 = vadd.f32 0.0, %v2123
    %2125 = vdwg.mxu0
    %v2126 = vld [vmem:[%s482] sm:$0xff]
    %v2127 = vadd.f32 %v2126, %v2104
    %v2128 = vxor.u32 %v2127, 2147483648
    %v2129 = vmul.f32 %v2128, 1.442695
    %v2130 = vpow.pop %v2129
    %v2131 = vadd.f32 %v2130, 1.0
    %v2132 = vrcp.pop %v2131
    %v2133 = vmul.f32 %v2131, %v2132
    %v2134 = vsub.f32 1.0, %v2133
    %v2135 = vmul.f32 %v2132, %v2134
    %v2136 = vadd.f32 %v2132, %v2135
    %vm2137 = vweird.f32 %v2131
    %vm2138 = vweird.f32 %v2132
    %vm2139 = vmor %vm2137, %vm2138
    %v2140 = vsel %vm2139, %v2132, %v2136
    %v2141 = vand.u32 2147483647, %v2131
    %vm2142 = vcmp.eq.f32.partialorder %v2141, 8.507059e+37
    %v2143 = vand.u32 %v2131, 2147483648
    %v2144 = vor.u32 1.1754944e-38, %v2143
    %v2145 = vsel %vm2142, %v2144, %v2140
    %v2146 = vmul.f32 1.0, %v2145
    %v2147 = vtanh.pop %v2127
    %v2148 = vmul.f32 %v2146, %v2013
    %2150 = vrot.lane.b32.xlu0 %v2147, 32
    %v2151 = vpop.permute.xlu0 %2150
    %v2153 = vmul.f32 %v2146, %v2151
    %2155 = vrot.lane.b32.xlu0 %v2153, 32
    %v2156 = vpop.permute.xlu0 %2155
    %v2158 = vadd.f32 %v2148, %v2156
    %v2159 = vtanh.pop %v2158
    %2161 = vrot.lane.b32.xlu0 %v2159, 32
    %v2162 = vpop.permute.xlu0 %2161
    %v2164 = vmul.f32 %v2146, %v2162
    %v2165 = vsel %vm522, %v2164, 0.0
    %2167 = vrot.lane.b32.xlu0 %v2165, 64
    %v2168 = vpop.permute.xlu0 %2167
    %2170 = vst.msk [vmem:[%s529] sm:$0xff] %vm480, %v2168
    %v2171 = vld [vmem:[#allocation2 + $0x8] sm:$0xff]
    %v2172 = vadd.f32 %v2171, %v2124
    %v2173 = vxor.u32 %v2172, 2147483648
    %v2174 = vmul.f32 %v2173, 1.442695
    %v2175 = vpow.pop %v2174
    %v2176 = vadd.f32 %v2175, 1.0
    %v2177 = vrcp.pop %v2176
    %v2178 = vmul.f32 %v2176, %v2177
    %v2179 = vsub.f32 1.0, %v2178
    %v2180 = vmul.f32 %v2177, %v2179
    %v2181 = vadd.f32 %v2177, %v2180
    %vm2182 = vweird.f32 %v2176
    %vm2183 = vweird.f32 %v2177
    %vm2184 = vmor %vm2182, %vm2183
    %v2185 = vsel %vm2184, %v2177, %v2181
    %v2186 = vand.u32 2147483647, %v2176
    %vm2187 = vcmp.eq.f32.partialorder %v2186, 8.507059e+37
    %v2188 = vand.u32 %v2176, 2147483648
    %v2189 = vor.u32 1.1754944e-38, %v2188
    %v2190 = vsel %vm2187, %v2189, %v2185
    %v2191 = vmul.f32 1.0, %v2190
    %v2192 = vtanh.pop %v2172
    %v2193 = vmul.f32 %v2191, %v2063
    %2195 = vrot.lane.b32.xlu0 %v2192, 32
    %v2196 = vpop.permute.xlu0 %2195
    %v2198 = vmul.f32 %v2191, %v2196
    %2200 = vrot.lane.b32.xlu0 %v2198, 32
    %v2201 = vpop.permute.xlu0 %2200
    %v2203 = vadd.f32 %v2193, %v2201
    %v2204 = vtanh.pop %v2203
    %2206 = vrot.lane.b32.xlu0 %v2204, 32
    %v2207 = vpop.permute.xlu0 %2206
    %v2209 = vmul.f32 %v2191, %v2207
    %v2210 = vsel %vm473, %v2209, 0.0
    %2212 = vrot.lane.b32.xlu0 %v2210, 96
    %v2213 = vpop.permute.xlu0 %2212
    %2215 = vst.msk [vmem:[#allocation3] sm:$0xff] %vm530, %v2213
    %v2216 = vld [vmem:[#allocation3] sm:$0xff]
    %v2217 = vld [vmem:[#allocation3 + $0x8] sm:$0xff]
    %v2218 = vld [vmem:[#allocation3 + $0x10] sm:$0xff]
    %v2219 = vld [vmem:[#allocation3 + $0x18] sm:$0xff]
    %v2220 = vld [vmem:[#allocation3 + $0x20] sm:$0xff]
    %v2221 = vld [vmem:[#allocation3 + $0x28] sm:$0xff]
    %v2222 = vld [vmem:[#allocation3 + $0x30] sm:$0xff]
    %v2223 = vld [vmem:[#allocation3 + $0x38] sm:$0xff]
    %v2224 = vld [vmem:[#allocation3 + $0x40] sm:$0xff]
    %v2225 = vld [vmem:[#allocation3 + $0x48] sm:$0xff]
    %v2226 = vld [vmem:[#allocation3 + $0x50] sm:$0xff]
    %v2227 = vld [vmem:[#allocation3 + $0x58] sm:$0xff]
    %v2228 = vld [vmem:[#allocation10] sm:$0xff]
    %v2229 = vld [vmem:[#allocation10 + $0x8] sm:$0xff]
    %v2230 = vld [vmem:[#allocation10 + $0x10] sm:$0xff]
    %v2231 = vld [vmem:[#allocation10 + $0x18] sm:$0xff]
    %v2232 = vld [vmem:[#allocation10 + $0x20] sm:$0xff]
    %v2233 = vld [vmem:[#allocation10 + $0x28] sm:$0xff]
    %v2234 = vld [vmem:[#allocation10 + $0x30] sm:$0xff]
    %v2235 = vld [vmem:[#allocation10 + $0x38] sm:$0xff]
    %v2236 = vld [vmem:[#allocation10 + $0x40] sm:$0xff]
    %v2237 = vld [vmem:[#allocation10 + $0x48] sm:$0xff]
    %v2238 = vld [vmem:[#allocation10 + $0x50] sm:$0xff]
    %v2239 = vld [vmem:[#allocation10 + $0x58] sm:$0xff]
    %v2240 = vld [vmem:[#allocation10 + $0x60] sm:$0xff]
    %v2241 = vld [vmem:[#allocation10 + $0x68] sm:$0xff]
    %v2242 = vld [vmem:[#allocation10 + $0x70] sm:$0xff]
    %v2243 = vld [vmem:[#allocation10 + $0x78] sm:$0xff]
    %v2244 = vld [vmem:[%s7] sm:$0x3]
    %v2246 = vperm.slane %v2244, 0
    %v2247 = vperm.slane %v2244, 1
    %v2251 = vsel %vm208, %v2216, 0
    %v2254 = vsel %vm208, %v2217, 0
    %v2257 = vsel %vm208, %v2218, 0
    %v2260 = vsel %vm208, %v2219, 0
    %v2263 = vsel %vm208, %v2220, 0
    %v2266 = vsel %vm208, %v2221, 0
    %v2269 = vsel %vm208, %v2222, 0
    %v2272 = vsel %vm208, %v2223, 0
    %v2275 = vsel %vm208, %v2224, 0
    %v2278 = vsel %vm208, %v2225, 0
    %v2281 = vsel %vm208, %v2226, 0
    %v2284 = vsel %vm208, %v2227, 0
    %2286 = vmatpush.msra.mxu0 0.0
    %2287 = vmatpush.msra.mxu0 0.0
    %2288 = vmatpush.msra.mxu0 0.0
    %2289 = vmatpush.msra.mxu0 0.0
    %2290 = vmatpush.msra.mxu0 0.0
    %2291 = vmatpush.msra.mxu0 0.0
    %2292 = vmatpush.msra.mxu0 0.0
    %2293 = vmatpush.msra.mxu0 0.0
    %2294 = vmatpush.msra.mxu0 %v2242
    %2295 = vmatpush.msra.mxu0 %v2240
    %2296 = vmatpush.msra.mxu0 %v2238
    %2297 = vmatpush.msra.mxu0 %v2236
    %2298 = vmatpush.msra.mxu0 %v2234
    %2299 = vmatpush.msra.mxu0 %v2232
    %2300 = vmatpush.msra.mxu0 %v2230
    %2301 = vmatpush.msra.mxu0 %v2228
    %2302 = vmatmul.f32.gmra.mxu0 %v2251
    %v2303 = vpop.f32.mrf.mxu0
    %v2304 = vadd.f32 %v2246, %v2303
    %2305 = vmatmul.f32.gmra.mxu0 %v2254
    %v2306 = vpop.f32.mrf.mxu0
    %v2307 = vadd.f32 %v2246, %v2306
    %2308 = vmatmul.f32.gmra.mxu0 %v2257
    %v2309 = vpop.f32.mrf.mxu0
    %v2310 = vadd.f32 %v2246, %v2309
    %2311 = vmatmul.f32.gmra.mxu0 %v2260
    %v2312 = vpop.f32.mrf.mxu0
    %v2313 = vadd.f32 %v2246, %v2312
    %2314 = vmatmul.f32.gmra.mxu0 %v2263
    %v2315 = vpop.f32.mrf.mxu0
    %v2316 = vadd.f32 %v2246, %v2315
    %2317 = vmatmul.f32.gmra.mxu0 %v2266
    %v2318 = vpop.f32.mrf.mxu0
    %v2319 = vadd.f32 %v2246, %v2318
    %2320 = vmatmul.f32.gmra.mxu0 %v2269
    %v2321 = vpop.f32.mrf.mxu0
    %v2322 = vadd.f32 %v2246, %v2321
    %2323 = vmatmul.f32.gmra.mxu0 %v2272
    %v2324 = vpop.f32.mrf.mxu0
    %v2325 = vadd.f32 %v2246, %v2324
    %2326 = vmatmul.f32.gmra.mxu0 %v2275
    %v2327 = vpop.f32.mrf.mxu0
    %v2328 = vadd.f32 %v2246, %v2327
    %2329 = vmatmul.f32.gmra.mxu0 %v2278
    %v2330 = vpop.f32.mrf.mxu0
    %v2331 = vadd.f32 %v2246, %v2330
    %2332 = vmatmul.f32.gmra.mxu0 %v2281
    %v2333 = vpop.f32.mrf.mxu0
    %v2334 = vadd.f32 %v2246, %v2333
    %2335 = vmatmul.f32.gmra.mxu0 %v2284
    %v2336 = vpop.f32.mrf.mxu0
    %v2337 = vadd.f32 %v2246, %v2336
    %2338 = vdwg.mxu0
    %2339 = vmatpush.msra.mxu0 0.0
    %2340 = vmatpush.msra.mxu0 0.0
    %2341 = vmatpush.msra.mxu0 0.0
    %2342 = vmatpush.msra.mxu0 0.0
    %2343 = vmatpush.msra.mxu0 0.0
    %2344 = vmatpush.msra.mxu0 0.0
    %2345 = vmatpush.msra.mxu0 0.0
    %2346 = vmatpush.msra.mxu0 0.0
    %2347 = vmatpush.msra.mxu0 %v2243
    %2348 = vmatpush.msra.mxu0 %v2241
    %2349 = vmatpush.msra.mxu0 %v2239
    %2350 = vmatpush.msra.mxu0 %v2237
    %2351 = vmatpush.msra.mxu0 %v2235
    %2352 = vmatpush.msra.mxu0 %v2233
    %2353 = vmatpush.msra.mxu0 %v2231
    %2354 = vmatpush.msra.mxu0 %v2229
    %2355 = vmatmul.f32.gmra.mxu0 %v2251
    %v2356 = vpop.f32.mrf.mxu0
    %v2357 = vadd.f32 %v2247, %v2356
    %2358 = vmatmul.f32.gmra.mxu0 %v2254
    %v2359 = vpop.f32.mrf.mxu0
    %v2360 = vadd.f32 %v2247, %v2359
    %2361 = vmatmul.f32.gmra.mxu0 %v2257
    %v2362 = vpop.f32.mrf.mxu0
    %v2363 = vadd.f32 %v2247, %v2362
    %2364 = vmatmul.f32.gmra.mxu0 %v2260
    %v2365 = vpop.f32.mrf.mxu0
    %v2366 = vadd.f32 %v2247, %v2365
    %2367 = vmatmul.f32.gmra.mxu0 %v2263
    %v2368 = vpop.f32.mrf.mxu0
    %v2369 = vadd.f32 %v2247, %v2368
    %2370 = vmatmul.f32.gmra.mxu0 %v2266
    %v2371 = vpop.f32.mrf.mxu0
    %v2372 = vadd.f32 %v2247, %v2371
    %2373 = vmatmul.f32.gmra.mxu0 %v2269
    %v2374 = vpop.f32.mrf.mxu0
    %v2375 = vadd.f32 %v2247, %v2374
    %2376 = vmatmul.f32.gmra.mxu0 %v2272
    %v2377 = vpop.f32.mrf.mxu0
    %v2378 = vadd.f32 %v2247, %v2377
    %2379 = vmatmul.f32.gmra.mxu0 %v2275
    %v2380 = vpop.f32.mrf.mxu0
    %v2381 = vadd.f32 %v2247, %v2380
    %2382 = vmatmul.f32.gmra.mxu0 %v2278
    %v2383 = vpop.f32.mrf.mxu0
    %v2384 = vadd.f32 %v2247, %v2383
    %2385 = vmatmul.f32.gmra.mxu0 %v2281
    %v2386 = vpop.f32.mrf.mxu0
    %v2387 = vadd.f32 %v2247, %v2386
    %2388 = vmatmul.f32.gmra.mxu0 %v2284
    %v2389 = vpop.f32.mrf.mxu0
    %v2390 = vadd.f32 %v2247, %v2389
    %2391 = vdwg.mxu0
    %2392 = vst [vmem:[#allocation2] sm:$0xff] %v2304
    %2393 = vst [vmem:[#allocation2 + $0x8] sm:$0xff] %v2357
    %2394 = vst [vmem:[#allocation2 + $0x10] sm:$0xff] %v2307
    %2395 = vst [vmem:[#allocation2 + $0x18] sm:$0xff] %v2360
    %2396 = vst [vmem:[#allocation2 + $0x20] sm:$0xff] %v2310
    %2397 = vst [vmem:[#allocation2 + $0x28] sm:$0xff] %v2363
    %2398 = vst [vmem:[#allocation2 + $0x30] sm:$0xff] %v2313
    %2399 = vst [vmem:[#allocation2 + $0x38] sm:$0xff] %v2366
    %2400 = vst [vmem:[#allocation2 + $0x40] sm:$0xff] %v2316
    %2401 = vst [vmem:[#allocation2 + $0x48] sm:$0xff] %v2369
    %2402 = vst [vmem:[#allocation2 + $0x50] sm:$0xff] %v2319
    %2403 = vst [vmem:[#allocation2 + $0x58] sm:$0xff] %v2372
    %2404 = vst [vmem:[#allocation2 + $0x60] sm:$0xff] %v2322
    %2405 = vst [vmem:[#allocation2 + $0x68] sm:$0xff] %v2375
    %2406 = vst [vmem:[#allocation2 + $0x70] sm:$0xff] %v2325
    %2407 = vst [vmem:[#allocation2 + $0x78] sm:$0xff] %v2378
    %2408 = vst [vmem:[#allocation2 + $0x80] sm:$0xff] %v2328
    %2409 = vst [vmem:[#allocation2 + $0x88] sm:$0xff] %v2381
    %2410 = vst [vmem:[#allocation2 + $0x90] sm:$0xff] %v2331
    %2411 = vst [vmem:[#allocation2 + $0x98] sm:$0xff] %v2384
    %2412 = vst [vmem:[#allocation2 + $0xa0] sm:$0xff] %v2334
    %2413 = vst [vmem:[#allocation2 + $0xa8] sm:$0xff] %v2387
    %2414 = vst [vmem:[#allocation2 + $0xb0] sm:$0xff] %v2337
    %2415 = vst [vmem:[#allocation2 + $0xb8] sm:$0xff] %v2390
    %v2416 = vld [vmem:[#allocation12] sm:$0xff]
    %v2417 = vld [vmem:[#allocation12 + $0x8] sm:$0xff]
    %v2418 = vld [vmem:[#allocation12 + $0x10] sm:$0xff]
    %v2419 = vld [vmem:[#allocation12 + $0x18] sm:$0xff]
    %v2420 = vld [vmem:[#allocation12 + $0x20] sm:$0xff]
    %v2421 = vld [vmem:[#allocation12 + $0x28] sm:$0xff]
    %v2422 = vld [vmem:[#allocation12 + $0x30] sm:$0xff]
    %v2423 = vld [vmem:[#allocation12 + $0x38] sm:$0xff]
    %v2424 = vld [vmem:[#allocation12 + $0x40] sm:$0xff]
    %v2425 = vld [vmem:[#allocation12 + $0x48] sm:$0xff]
    %v2426 = vld [vmem:[#allocation12 + $0x50] sm:$0xff]
    %v2427 = vld [vmem:[#allocation12 + $0x58] sm:$0xff]
    %v2428 = vld [vmem:[#allocation12 + $0x60] sm:$0xff]
    %v2429 = vld [vmem:[#allocation12 + $0x68] sm:$0xff]
    %v2430 = vld [vmem:[#allocation12 + $0x70] sm:$0xff]
    %v2431 = vld [vmem:[#allocation12 + $0x78] sm:$0xff]
    %2432 = vmatpush.msra.mxu0 0.0
    %2433 = vmatpush.msra.mxu0 0.0
    %2434 = vmatpush.msra.mxu0 0.0
    %2435 = vmatpush.msra.mxu0 0.0
    %2436 = vmatpush.msra.mxu0 0.0
    %2437 = vmatpush.msra.mxu0 0.0
    %2438 = vmatpush.msra.mxu0 0.0
    %2439 = vmatpush.msra.mxu0 0.0
    %2440 = vmatpush.msra.mxu0 %v2430
    %2441 = vmatpush.msra.mxu0 %v2428
    %2442 = vmatpush.msra.mxu0 %v2426
    %2443 = vmatpush.msra.mxu0 %v2424
    %2444 = vmatpush.msra.mxu0 %v2422
    %2445 = vmatpush.msra.mxu0 %v2420
    %2446 = vmatpush.msra.mxu0 %v2418
    %2447 = vmatpush.msra.mxu0 %v2416
    %2448 = vmatmul.f32.gmra.mxu0 %v392
    %v2449 = vpop.f32.mrf.mxu0
    %v2450 = vadd.f32 0.0, %v2449
    %2451 = vdwg.mxu0
    %2452 = vmatpush.msra.mxu0 0.0
    %2453 = vmatpush.msra.mxu0 0.0
    %2454 = vmatpush.msra.mxu0 0.0
    %2455 = vmatpush.msra.mxu0 0.0
    %2456 = vmatpush.msra.mxu0 0.0
    %2457 = vmatpush.msra.mxu0 0.0
    %2458 = vmatpush.msra.mxu0 0.0
    %2459 = vmatpush.msra.mxu0 0.0
    %2460 = vmatpush.msra.mxu0 %v2431
    %2461 = vmatpush.msra.mxu0 %v2429
    %2462 = vmatpush.msra.mxu0 %v2427
    %2463 = vmatpush.msra.mxu0 %v2425
    %2464 = vmatpush.msra.mxu0 %v2423
    %2465 = vmatpush.msra.mxu0 %v2421
    %2466 = vmatpush.msra.mxu0 %v2419
    %2467 = vmatpush.msra.mxu0 %v2417
    %2468 = vmatmul.f32.gmra.mxu0 %v392
    %v2469 = vpop.f32.mrf.mxu0
    %v2470 = vadd.f32 0.0, %v2469
    %2471 = vdwg.mxu0
    %v2472 = vld [vmem:[#allocation2] sm:$0xff]
    %v2473 = vadd.f32 %v2472, %v2450
    %v2474 = vxor.u32 %v2473, 2147483648
    %v2475 = vmul.f32 %v2474, 1.442695
    %v2476 = vpow.pop %v2475
    %v2477 = vadd.f32 %v2476, 1.0
    %v2478 = vrcp.pop %v2477
    %v2479 = vmul.f32 %v2477, %v2478
    %v2480 = vsub.f32 1.0, %v2479
    %v2481 = vmul.f32 %v2478, %v2480
    %v2482 = vadd.f32 %v2478, %v2481
    %vm2483 = vweird.f32 %v2477
    %vm2484 = vweird.f32 %v2478
    %vm2485 = vmor %vm2483, %vm2484
    %v2486 = vsel %vm2485, %v2478, %v2482
    %v2487 = vand.u32 2147483647, %v2477
    %vm2488 = vcmp.eq.f32.partialorder %v2487, 8.507059e+37
    %v2489 = vand.u32 %v2477, 2147483648
    %v2490 = vor.u32 1.1754944e-38, %v2489
    %v2491 = vsel %vm2488, %v2490, %v2486
    %v2492 = vmul.f32 1.0, %v2491
    %v2493 = vtanh.pop %v2473
    %v2494 = vmul.f32 %v2492, 0.0
    %2496 = vrot.lane.b32.xlu0 %v2493, 32
    %v2497 = vpop.permute.xlu0 %2496
    %v2499 = vmul.f32 %v2492, %v2497
    %2501 = vrot.lane.b32.xlu0 %v2499, 32
    %v2502 = vpop.permute.xlu0 %2501
    %v2504 = vadd.f32 %v2494, %v2502
    %v2505 = vtanh.pop %v2504
    %2507 = vrot.lane.b32.xlu0 %v2505, 32
    %v2508 = vpop.permute.xlu0 %2507
    %v2510 = vmul.f32 %v2492, %v2508
    %v2511 = vsel %vm473, %v2504, 0.0
    %v2512 = vsel %vm473, %v2510, 0.0
    %2514 = vrot.lane.b32.xlu0 %v2512, 64
    %v2515 = vpop.permute.xlu0 %2514
    %2517 = vst.msk [vmem:[#allocation3] sm:$0xff] %vm480, %v2515
    %v2518 = vld [vmem:[%s482 + $0x8] sm:$0xff]
    %v2519 = vadd.f32 %v2518, %v2470
    %v2520 = vxor.u32 %v2519, 2147483648
    %v2521 = vmul.f32 %v2520, 1.442695
    %v2522 = vpow.pop %v2521
    %v2523 = vadd.f32 %v2522, 1.0
    %v2524 = vrcp.pop %v2523
    %v2525 = vmul.f32 %v2523, %v2524
    %v2526 = vsub.f32 1.0, %v2525
    %v2527 = vmul.f32 %v2524, %v2526
    %v2528 = vadd.f32 %v2524, %v2527
    %vm2529 = vweird.f32 %v2523
    %vm2530 = vweird.f32 %v2524
    %vm2531 = vmor %vm2529, %vm2530
    %v2532 = vsel %vm2531, %v2524, %v2528
    %v2533 = vand.u32 2147483647, %v2523
    %vm2534 = vcmp.eq.f32.partialorder %v2533, 8.507059e+37
    %v2535 = vand.u32 %v2523, 2147483648
    %v2536 = vor.u32 1.1754944e-38, %v2535
    %v2537 = vsel %vm2534, %v2536, %v2532
    %v2538 = vmul.f32 1.0, %v2537
    %v2539 = vtanh.pop %v2519
    %v2540 = vmul.f32 %v2538, 0.0
    %2542 = vrot.lane.b32.xlu0 %v2539, 32
    %v2543 = vpop.permute.xlu0 %2542
    %v2545 = vmul.f32 %v2538, %v2543
    %2547 = vrot.lane.b32.xlu0 %v2545, 32
    %v2548 = vpop.permute.xlu0 %2547
    %v2550 = vadd.f32 %v2540, %v2548
    %v2551 = vtanh.pop %v2550
    %2553 = vrot.lane.b32.xlu0 %v2551, 32
    %v2554 = vpop.permute.xlu0 %2553
    %v2556 = vmul.f32 %v2538, %v2554
    %v2557 = vsel %vm522, %v2550, 0.0
    %v2558 = vsel %vm522, %v2556, 0.0
    %2560 = vrot.lane.b32.xlu0 %v2558, 96
    %v2561 = vpop.permute.xlu0 %2560
    %2563 = vst.msk [vmem:[%s529] sm:$0xff] %vm530, %v2561
    %v2564 = vsel %vm480, %v2515, %v2561
    %v2566 = vsel %vm208, %v2564, 0
    %2568 = vmatpush.msra.mxu0 0.0
    %2569 = vmatpush.msra.mxu0 0.0
    %2570 = vmatpush.msra.mxu0 0.0
    %2571 = vmatpush.msra.mxu0 0.0
    %2572 = vmatpush.msra.mxu0 0.0
    %2573 = vmatpush.msra.mxu0 0.0
    %2574 = vmatpush.msra.mxu0 0.0
    %2575 = vmatpush.msra.mxu0 0.0
    %2576 = vmatpush.msra.mxu0 %v2430
    %2577 = vmatpush.msra.mxu0 %v2428
    %2578 = vmatpush.msra.mxu0 %v2426
    %2579 = vmatpush.msra.mxu0 %v2424
    %2580 = vmatpush.msra.mxu0 %v2422
    %2581 = vmatpush.msra.mxu0 %v2420
    %2582 = vmatpush.msra.mxu0 %v2418
    %2583 = vmatpush.msra.mxu0 %v2416
    %2584 = vmatmul.f32.gmra.mxu0 %v2566
    %v2585 = vpop.f32.mrf.mxu0
    %v2586 = vadd.f32 0.0, %v2585
    %2587 = vdwg.mxu0
    %2588 = vmatpush.msra.mxu0 0.0
    %2589 = vmatpush.msra.mxu0 0.0
    %2590 = vmatpush.msra.mxu0 0.0
    %2591 = vmatpush.msra.mxu0 0.0
    %2592 = vmatpush.msra.mxu0 0.0
    %2593 = vmatpush.msra.mxu0 0.0
    %2594 = vmatpush.msra.mxu0 0.0
    %2595 = vmatpush.msra.mxu0 0.0
    %2596 = vmatpush.msra.mxu0 %v2431
    %2597 = vmatpush.msra.mxu0 %v2429
    %2598 = vmatpush.msra.mxu0 %v2427
    %2599 = vmatpush.msra.mxu0 %v2425
    %2600 = vmatpush.msra.mxu0 %v2423
    %2601 = vmatpush.msra.mxu0 %v2421
    %2602 = vmatpush.msra.mxu0 %v2419
    %2603 = vmatpush.msra.mxu0 %v2417
    %2604 = vmatmul.f32.gmra.mxu0 %v2566
    %v2605 = vpop.f32.mrf.mxu0
    %v2606 = vadd.f32 0.0, %v2605
    %2607 = vdwg.mxu0
    %v2608 = vld [vmem:[%s576] sm:$0xff]
    %v2609 = vadd.f32 %v2608, %v2586
    %v2610 = vxor.u32 %v2609, 2147483648
    %v2611 = vmul.f32 %v2610, 1.442695
    %v2612 = vpow.pop %v2611
    %v2613 = vadd.f32 %v2612, 1.0
    %v2614 = vrcp.pop %v2613
    %v2615 = vmul.f32 %v2613, %v2614
    %v2616 = vsub.f32 1.0, %v2615
    %v2617 = vmul.f32 %v2614, %v2616
    %v2618 = vadd.f32 %v2614, %v2617
    %vm2619 = vweird.f32 %v2613
    %vm2620 = vweird.f32 %v2614
    %vm2621 = vmor %vm2619, %vm2620
    %v2622 = vsel %vm2621, %v2614, %v2618
    %v2623 = vand.u32 2147483647, %v2613
    %vm2624 = vcmp.eq.f32.partialorder %v2623, 8.507059e+37
    %v2625 = vand.u32 %v2613, 2147483648
    %v2626 = vor.u32 1.1754944e-38, %v2625
    %v2627 = vsel %vm2624, %v2626, %v2622
    %v2628 = vmul.f32 1.0, %v2627
    %v2629 = vtanh.pop %v2609
    %v2630 = vmul.f32 %v2628, %v2511
    %2632 = vrot.lane.b32.xlu0 %v2629, 32
    %v2633 = vpop.permute.xlu0 %2632
    %v2635 = vmul.f32 %v2628, %v2633
    %2637 = vrot.lane.b32.xlu0 %v2635, 32
    %v2638 = vpop.permute.xlu0 %2637
    %v2640 = vadd.f32 %v2630, %v2638
    %v2641 = vtanh.pop %v2640
    %2643 = vrot.lane.b32.xlu0 %v2641, 32
    %v2644 = vpop.permute.xlu0 %2643
    %v2646 = vmul.f32 %v2628, %v2644
    %v2647 = vsel %vm616, %v2640, %v2511
    %2648 = vrot.lane.b32.xlu0 %v2564, 64
    %v2649 = vpop.permute.xlu0 %2648
    %v2651 = vsel %vm616, %v2646, %v2649
    %v2652 = vsel %vm616, %v2646, 0.0
    %2654 = vrot.lane.b32.xlu0 %v2652, 64
    %v2655 = vpop.permute.xlu0 %2654
    %2657 = vst.msk [vmem:[%s627] sm:$0xff] %vm480, %v2655
    %v2658 = vld [vmem:[%s629 + $0x8] sm:$0xff]
    %v2659 = vadd.f32 %v2658, %v2606
    %v2660 = vxor.u32 %v2659, 2147483648
    %v2661 = vmul.f32 %v2660, 1.442695
    %v2662 = vpow.pop %v2661
    %v2663 = vadd.f32 %v2662, 1.0
    %v2664 = vrcp.pop %v2663
    %v2665 = vmul.f32 %v2663, %v2664
    %v2666 = vsub.f32 1.0, %v2665
    %v2667 = vmul.f32 %v2664, %v2666
    %v2668 = vadd.f32 %v2664, %v2667
    %vm2669 = vweird.f32 %v2663
    %vm2670 = vweird.f32 %v2664
    %vm2671 = vmor %vm2669, %vm2670
    %v2672 = vsel %vm2671, %v2664, %v2668
    %v2673 = vand.u32 2147483647, %v2663
    %vm2674 = vcmp.eq.f32.partialorder %v2673, 8.507059e+37
    %v2675 = vand.u32 %v2663, 2147483648
    %v2676 = vor.u32 1.1754944e-38, %v2675
    %v2677 = vsel %vm2674, %v2676, %v2672
    %v2678 = vmul.f32 1.0, %v2677
    %v2679 = vtanh.pop %v2659
    %v2680 = vmul.f32 %v2678, %v2557
    %2682 = vrot.lane.b32.xlu0 %v2679, 32
    %v2683 = vpop.permute.xlu0 %2682
    %v2685 = vmul.f32 %v2678, %v2683
    %2687 = vrot.lane.b32.xlu0 %v2685, 32
    %v2688 = vpop.permute.xlu0 %2687
    %v2690 = vadd.f32 %v2680, %v2688
    %v2691 = vtanh.pop %v2690
    %2693 = vrot.lane.b32.xlu0 %v2691, 32
    %v2694 = vpop.permute.xlu0 %2693
    %v2696 = vmul.f32 %v2678, %v2694
    %v2697 = vsel %vm669, %v2690, %v2557
    %2698 = vrot.lane.b32.xlu0 %v2564, 32
    %v2699 = vpop.permute.xlu0 %2698
    %v2701 = vsel %vm669, %v2696, %v2699
    %v2702 = vsel %vm669, %v2696, 0.0
    %2704 = vrot.lane.b32.xlu0 %v2702, 96
    %v2705 = vpop.permute.xlu0 %2704
    %2707 = vst.msk [vmem:[%s680] sm:$0xff] %vm530, %v2705
    %2709 = vrot.lane.b32.xlu0 %v2651, 64
    %v2710 = vpop.permute.xlu0 %2709
    %2713 = vrot.lane.b32.xlu0 %v2701, 96
    %v2714 = vpop.permute.xlu0 %2713
    %v2716 = vsel %vm480, %v2710, %v2714
    %v2718 = vsel %vm208, %v2716, 0
    %2720 = vmatpush.msra.mxu0 0.0
    %2721 = vmatpush.msra.mxu0 0.0
    %2722 = vmatpush.msra.mxu0 0.0
    %2723 = vmatpush.msra.mxu0 0.0
    %2724 = vmatpush.msra.mxu0 0.0
    %2725 = vmatpush.msra.mxu0 0.0
    %2726 = vmatpush.msra.mxu0 0.0
    %2727 = vmatpush.msra.mxu0 0.0
    %2728 = vmatpush.msra.mxu0 %v2430
    %2729 = vmatpush.msra.mxu0 %v2428
    %2730 = vmatpush.msra.mxu0 %v2426
    %2731 = vmatpush.msra.mxu0 %v2424
    %2732 = vmatpush.msra.mxu0 %v2422
    %2733 = vmatpush.msra.mxu0 %v2420
    %2734 = vmatpush.msra.mxu0 %v2418
    %2735 = vmatpush.msra.mxu0 %v2416
    %2736 = vmatmul.f32.gmra.mxu0 %v2718
    %v2737 = vpop.f32.mrf.mxu0
    %v2738 = vadd.f32 0.0, %v2737
    %2739 = vdwg.mxu0
    %2740 = vmatpush.msra.mxu0 0.0
    %2741 = vmatpush.msra.mxu0 0.0
    %2742 = vmatpush.msra.mxu0 0.0
    %2743 = vmatpush.msra.mxu0 0.0
    %2744 = vmatpush.msra.mxu0 0.0
    %2745 = vmatpush.msra.mxu0 0.0
    %2746 = vmatpush.msra.mxu0 0.0
    %2747 = vmatpush.msra.mxu0 0.0
    %2748 = vmatpush.msra.mxu0 %v2431
    %2749 = vmatpush.msra.mxu0 %v2429
    %2750 = vmatpush.msra.mxu0 %v2427
    %2751 = vmatpush.msra.mxu0 %v2425
    %2752 = vmatpush.msra.mxu0 %v2423
    %2753 = vmatpush.msra.mxu0 %v2421
    %2754 = vmatpush.msra.mxu0 %v2419
    %2755 = vmatpush.msra.mxu0 %v2417
    %2756 = vmatmul.f32.gmra.mxu0 %v2718
    %v2757 = vpop.f32.mrf.mxu0
    %v2758 = vadd.f32 0.0, %v2757
    %2759 = vdwg.mxu0
    %v2760 = vld [vmem:[%s734] sm:$0xff]
    %v2761 = vadd.f32 %v2760, %v2738
    %v2762 = vxor.u32 %v2761, 2147483648
    %v2763 = vmul.f32 %v2762, 1.442695
    %v2764 = vpow.pop %v2763
    %v2765 = vadd.f32 %v2764, 1.0
    %v2766 = vrcp.pop %v2765
    %v2767 = vmul.f32 %v2765, %v2766
    %v2768 = vsub.f32 1.0, %v2767
    %v2769 = vmul.f32 %v2766, %v2768
    %v2770 = vadd.f32 %v2766, %v2769
    %vm2771 = vweird.f32 %v2765
    %vm2772 = vweird.f32 %v2766
    %vm2773 = vmor %vm2771, %vm2772
    %v2774 = vsel %vm2773, %v2766, %v2770
    %v2775 = vand.u32 2147483647, %v2765
    %vm2776 = vcmp.eq.f32.partialorder %v2775, 8.507059e+37
    %v2777 = vand.u32 %v2765, 2147483648
    %v2778 = vor.u32 1.1754944e-38, %v2777
    %v2779 = vsel %vm2776, %v2778, %v2774
    %v2780 = vmul.f32 1.0, %v2779
    %v2781 = vtanh.pop %v2761
    %v2782 = vmul.f32 %v2780, %v2647
    %2784 = vrot.lane.b32.xlu0 %v2781, 32
    %v2785 = vpop.permute.xlu0 %2784
    %v2787 = vmul.f32 %v2780, %v2785
    %2789 = vrot.lane.b32.xlu0 %v2787, 32
    %v2790 = vpop.permute.xlu0 %2789
    %v2792 = vadd.f32 %v2782, %v2790
    %v2793 = vtanh.pop %v2792
    %2795 = vrot.lane.b32.xlu0 %v2793, 32
    %v2796 = vpop.permute.xlu0 %2795
    %v2798 = vmul.f32 %v2780, %v2796
    %v2799 = vsel %vm774, %v2792, %v2647
    %2800 = vrot.lane.b32.xlu0 %v2716, 64
    %v2801 = vpop.permute.xlu0 %2800
    %v2803 = vsel %vm774, %v2798, %v2801
    %v2804 = vsel %vm774, %v2798, 0.0
    %2806 = vrot.lane.b32.xlu0 %v2804, 64
    %v2807 = vpop.permute.xlu0 %2806
    %2809 = vst.msk [vmem:[%s785] sm:$0xff] %vm480, %v2807
    %v2810 = vld [vmem:[%s787 + $0x8] sm:$0xff]
    %v2811 = vadd.f32 %v2810, %v2758
    %v2812 = vxor.u32 %v2811, 2147483648
    %v2813 = vmul.f32 %v2812, 1.442695
    %v2814 = vpow.pop %v2813
    %v2815 = vadd.f32 %v2814, 1.0
    %v2816 = vrcp.pop %v2815
    %v2817 = vmul.f32 %v2815, %v2816
    %v2818 = vsub.f32 1.0, %v2817
    %v2819 = vmul.f32 %v2816, %v2818
    %v2820 = vadd.f32 %v2816, %v2819
    %vm2821 = vweird.f32 %v2815
    %vm2822 = vweird.f32 %v2816
    %vm2823 = vmor %vm2821, %vm2822
    %v2824 = vsel %vm2823, %v2816, %v2820
    %v2825 = vand.u32 2147483647, %v2815
    %vm2826 = vcmp.eq.f32.partialorder %v2825, 8.507059e+37
    %v2827 = vand.u32 %v2815, 2147483648
    %v2828 = vor.u32 1.1754944e-38, %v2827
    %v2829 = vsel %vm2826, %v2828, %v2824
    %v2830 = vmul.f32 1.0, %v2829
    %v2831 = vtanh.pop %v2811
    %v2832 = vmul.f32 %v2830, %v2697
    %2834 = vrot.lane.b32.xlu0 %v2831, 32
    %v2835 = vpop.permute.xlu0 %2834
    %v2837 = vmul.f32 %v2830, %v2835
    %2839 = vrot.lane.b32.xlu0 %v2837, 32
    %v2840 = vpop.permute.xlu0 %2839
    %v2842 = vadd.f32 %v2832, %v2840
    %v2843 = vtanh.pop %v2842
    %2845 = vrot.lane.b32.xlu0 %v2843, 32
    %v2846 = vpop.permute.xlu0 %2845
    %v2848 = vmul.f32 %v2830, %v2846
    %v2849 = vsel %vm827, %v2842, %v2697
    %2850 = vrot.lane.b32.xlu0 %v2716, 32
    %v2851 = vpop.permute.xlu0 %2850
    %v2853 = vsel %vm827, %v2848, %v2851
    %v2854 = vsel %vm827, %v2848, 0.0
    %2856 = vrot.lane.b32.xlu0 %v2854, 96
    %v2857 = vpop.permute.xlu0 %2856
    %2859 = vst.msk [vmem:[%s838] sm:$0xff] %vm530, %v2857
    %2861 = vrot.lane.b32.xlu0 %v2803, 64
    %v2862 = vpop.permute.xlu0 %2861
    %2865 = vrot.lane.b32.xlu0 %v2853, 96
    %v2866 = vpop.permute.xlu0 %2865
    %v2868 = vsel %vm480, %v2862, %v2866
    %v2870 = vsel %vm208, %v2868, 0
    %2872 = vmatpush.msra.mxu0 0.0
    %2873 = vmatpush.msra.mxu0 0.0
    %2874 = vmatpush.msra.mxu0 0.0
    %2875 = vmatpush.msra.mxu0 0.0
    %2876 = vmatpush.msra.mxu0 0.0
    %2877 = vmatpush.msra.mxu0 0.0
    %2878 = vmatpush.msra.mxu0 0.0
    %2879 = vmatpush.msra.mxu0 0.0
    %2880 = vmatpush.msra.mxu0 %v2430
    %2881 = vmatpush.msra.mxu0 %v2428
    %2882 = vmatpush.msra.mxu0 %v2426
    %2883 = vmatpush.msra.mxu0 %v2424
    %2884 = vmatpush.msra.mxu0 %v2422
    %2885 = vmatpush.msra.mxu0 %v2420
    %2886 = vmatpush.msra.mxu0 %v2418
    %2887 = vmatpush.msra.mxu0 %v2416
    %2888 = vmatmul.f32.gmra.mxu0 %v2870
    %v2889 = vpop.f32.mrf.mxu0
    %v2890 = vadd.f32 0.0, %v2889
    %2891 = vdwg.mxu0
    %2892 = vmatpush.msra.mxu0 0.0
    %2893 = vmatpush.msra.mxu0 0.0
    %2894 = vmatpush.msra.mxu0 0.0
    %2895 = vmatpush.msra.mxu0 0.0
    %2896 = vmatpush.msra.mxu0 0.0
    %2897 = vmatpush.msra.mxu0 0.0
    %2898 = vmatpush.msra.mxu0 0.0
    %2899 = vmatpush.msra.mxu0 0.0
    %2900 = vmatpush.msra.mxu0 %v2431
    %2901 = vmatpush.msra.mxu0 %v2429
    %2902 = vmatpush.msra.mxu0 %v2427
    %2903 = vmatpush.msra.mxu0 %v2425
    %2904 = vmatpush.msra.mxu0 %v2423
    %2905 = vmatpush.msra.mxu0 %v2421
    %2906 = vmatpush.msra.mxu0 %v2419
    %2907 = vmatpush.msra.mxu0 %v2417
    %2908 = vmatmul.f32.gmra.mxu0 %v2870
    %v2909 = vpop.f32.mrf.mxu0
    %v2910 = vadd.f32 0.0, %v2909
    %2911 = vdwg.mxu0
    %v2912 = vld [vmem:[%s892] sm:$0xff]
    %v2913 = vadd.f32 %v2912, %v2890
    %v2914 = vxor.u32 %v2913, 2147483648
    %v2915 = vmul.f32 %v2914, 1.442695
    %v2916 = vpow.pop %v2915
    %v2917 = vadd.f32 %v2916, 1.0
    %v2918 = vrcp.pop %v2917
    %v2919 = vmul.f32 %v2917, %v2918
    %v2920 = vsub.f32 1.0, %v2919
    %v2921 = vmul.f32 %v2918, %v2920
    %v2922 = vadd.f32 %v2918, %v2921
    %vm2923 = vweird.f32 %v2917
    %vm2924 = vweird.f32 %v2918
    %vm2925 = vmor %vm2923, %vm2924
    %v2926 = vsel %vm2925, %v2918, %v2922
    %v2927 = vand.u32 2147483647, %v2917
    %vm2928 = vcmp.eq.f32.partialorder %v2927, 8.507059e+37
    %v2929 = vand.u32 %v2917, 2147483648
    %v2930 = vor.u32 1.1754944e-38, %v2929
    %v2931 = vsel %vm2928, %v2930, %v2926
    %v2932 = vmul.f32 1.0, %v2931
    %v2933 = vtanh.pop %v2913
    %v2934 = vmul.f32 %v2932, %v2799
    %2936 = vrot.lane.b32.xlu0 %v2933, 32
    %v2937 = vpop.permute.xlu0 %2936
    %v2939 = vmul.f32 %v2932, %v2937
    %2941 = vrot.lane.b32.xlu0 %v2939, 32
    %v2942 = vpop.permute.xlu0 %2941
    %v2944 = vadd.f32 %v2934, %v2942
    %v2945 = vtanh.pop %v2944
    %2947 = vrot.lane.b32.xlu0 %v2945, 32
    %v2948 = vpop.permute.xlu0 %2947
    %v2950 = vmul.f32 %v2932, %v2948
    %v2951 = vsel %vm932, %v2944, %v2799
    %2952 = vrot.lane.b32.xlu0 %v2868, 64
    %v2953 = vpop.permute.xlu0 %2952
    %v2955 = vsel %vm932, %v2950, %v2953
    %v2956 = vsel %vm932, %v2950, 0.0
    %2958 = vrot.lane.b32.xlu0 %v2956, 64
    %v2959 = vpop.permute.xlu0 %2958
    %2961 = vst.msk [vmem:[%s943] sm:$0xff] %vm480, %v2959
    %v2962 = vld [vmem:[%s945 + $0x8] sm:$0xff]
    %v2963 = vadd.f32 %v2962, %v2910
    %v2964 = vxor.u32 %v2963, 2147483648
    %v2965 = vmul.f32 %v2964, 1.442695
    %v2966 = vpow.pop %v2965
    %v2967 = vadd.f32 %v2966, 1.0
    %v2968 = vrcp.pop %v2967
    %v2969 = vmul.f32 %v2967, %v2968
    %v2970 = vsub.f32 1.0, %v2969
    %v2971 = vmul.f32 %v2968, %v2970
    %v2972 = vadd.f32 %v2968, %v2971
    %vm2973 = vweird.f32 %v2967
    %vm2974 = vweird.f32 %v2968
    %vm2975 = vmor %vm2973, %vm2974
    %v2976 = vsel %vm2975, %v2968, %v2972
    %v2977 = vand.u32 2147483647, %v2967
    %vm2978 = vcmp.eq.f32.partialorder %v2977, 8.507059e+37
    %v2979 = vand.u32 %v2967, 2147483648
    %v2980 = vor.u32 1.1754944e-38, %v2979
    %v2981 = vsel %vm2978, %v2980, %v2976
    %v2982 = vmul.f32 1.0, %v2981
    %v2983 = vtanh.pop %v2963
    %v2984 = vmul.f32 %v2982, %v2849
    %2986 = vrot.lane.b32.xlu0 %v2983, 32
    %v2987 = vpop.permute.xlu0 %2986
    %v2989 = vmul.f32 %v2982, %v2987
    %2991 = vrot.lane.b32.xlu0 %v2989, 32
    %v2992 = vpop.permute.xlu0 %2991
    %v2994 = vadd.f32 %v2984, %v2992
    %v2995 = vtanh.pop %v2994
    %2997 = vrot.lane.b32.xlu0 %v2995, 32
    %v2998 = vpop.permute.xlu0 %2997
    %v3000 = vmul.f32 %v2982, %v2998
    %v3001 = vsel %vm985, %v2994, %v2849
    %3002 = vrot.lane.b32.xlu0 %v2868, 32
    %v3003 = vpop.permute.xlu0 %3002
    %v3005 = vsel %vm985, %v3000, %v3003
    %v3006 = vsel %vm985, %v3000, 0.0
    %3008 = vrot.lane.b32.xlu0 %v3006, 96
    %v3009 = vpop.permute.xlu0 %3008
    %3011 = vst.msk [vmem:[%s996] sm:$0xff] %vm530, %v3009
    %3013 = vrot.lane.b32.xlu0 %v2955, 64
    %v3014 = vpop.permute.xlu0 %3013
    %3017 = vrot.lane.b32.xlu0 %v3005, 96
    %v3018 = vpop.permute.xlu0 %3017
    %v3020 = vsel %vm480, %v3014, %v3018
    %v3022 = vsel %vm208, %v3020, 0
    %3024 = vmatpush.msra.mxu0 0.0
    %3025 = vmatpush.msra.mxu0 0.0
    %3026 = vmatpush.msra.mxu0 0.0
    %3027 = vmatpush.msra.mxu0 0.0
    %3028 = vmatpush.msra.mxu0 0.0
    %3029 = vmatpush.msra.mxu0 0.0
    %3030 = vmatpush.msra.mxu0 0.0
    %3031 = vmatpush.msra.mxu0 0.0
    %3032 = vmatpush.msra.mxu0 %v2430
    %3033 = vmatpush.msra.mxu0 %v2428
    %3034 = vmatpush.msra.mxu0 %v2426
    %3035 = vmatpush.msra.mxu0 %v2424
    %3036 = vmatpush.msra.mxu0 %v2422
    %3037 = vmatpush.msra.mxu0 %v2420
    %3038 = vmatpush.msra.mxu0 %v2418
    %3039 = vmatpush.msra.mxu0 %v2416
    %3040 = vmatmul.f32.gmra.mxu0 %v3022
    %v3041 = vpop.f32.mrf.mxu0
    %v3042 = vadd.f32 0.0, %v3041
    %3043 = vdwg.mxu0
    %3044 = vmatpush.msra.mxu0 0.0
    %3045 = vmatpush.msra.mxu0 0.0
    %3046 = vmatpush.msra.mxu0 0.0
    %3047 = vmatpush.msra.mxu0 0.0
    %3048 = vmatpush.msra.mxu0 0.0
    %3049 = vmatpush.msra.mxu0 0.0
    %3050 = vmatpush.msra.mxu0 0.0
    %3051 = vmatpush.msra.mxu0 0.0
    %3052 = vmatpush.msra.mxu0 %v2431
    %3053 = vmatpush.msra.mxu0 %v2429
    %3054 = vmatpush.msra.mxu0 %v2427
    %3055 = vmatpush.msra.mxu0 %v2425
    %3056 = vmatpush.msra.mxu0 %v2423
    %3057 = vmatpush.msra.mxu0 %v2421
    %3058 = vmatpush.msra.mxu0 %v2419
    %3059 = vmatpush.msra.mxu0 %v2417
    %3060 = vmatmul.f32.gmra.mxu0 %v3022
    %v3061 = vpop.f32.mrf.mxu0
    %v3062 = vadd.f32 0.0, %v3061
    %3063 = vdwg.mxu0
    %v3064 = vld [vmem:[%s1050] sm:$0xff]
    %v3065 = vadd.f32 %v3064, %v3042
    %v3066 = vxor.u32 %v3065, 2147483648
    %v3067 = vmul.f32 %v3066, 1.442695
    %v3068 = vpow.pop %v3067
    %v3069 = vadd.f32 %v3068, 1.0
    %v3070 = vrcp.pop %v3069
    %v3071 = vmul.f32 %v3069, %v3070
    %v3072 = vsub.f32 1.0, %v3071
    %v3073 = vmul.f32 %v3070, %v3072
    %v3074 = vadd.f32 %v3070, %v3073
    %vm3075 = vweird.f32 %v3069
    %vm3076 = vweird.f32 %v3070
    %vm3077 = vmor %vm3075, %vm3076
    %v3078 = vsel %vm3077, %v3070, %v3074
    %v3079 = vand.u32 2147483647, %v3069
    %vm3080 = vcmp.eq.f32.partialorder %v3079, 8.507059e+37
    %v3081 = vand.u32 %v3069, 2147483648
    %v3082 = vor.u32 1.1754944e-38, %v3081
    %v3083 = vsel %vm3080, %v3082, %v3078
    %v3084 = vmul.f32 1.0, %v3083
    %v3085 = vtanh.pop %v3065
    %v3086 = vmul.f32 %v3084, %v2951
    %3088 = vrot.lane.b32.xlu0 %v3085, 32
    %v3089 = vpop.permute.xlu0 %3088
    %v3091 = vmul.f32 %v3084, %v3089
    %3093 = vrot.lane.b32.xlu0 %v3091, 32
    %v3094 = vpop.permute.xlu0 %3093
    %v3096 = vadd.f32 %v3086, %v3094
    %v3097 = vtanh.pop %v3096
    %3099 = vrot.lane.b32.xlu0 %v3097, 32
    %v3100 = vpop.permute.xlu0 %3099
    %v3102 = vmul.f32 %v3084, %v3100
    %v3103 = vsel %vm1090, %v3096, %v2951
    %3104 = vrot.lane.b32.xlu0 %v3020, 64
    %v3105 = vpop.permute.xlu0 %3104
    %v3107 = vsel %vm1090, %v3102, %v3105
    %v3108 = vsel %vm1090, %v3102, 0.0
    %3110 = vrot.lane.b32.xlu0 %v3108, 64
    %v3111 = vpop.permute.xlu0 %3110
    %3113 = vst.msk [vmem:[%s1101] sm:$0xff] %vm480, %v3111
    %v3114 = vld [vmem:[%s1103 + $0x8] sm:$0xff]
    %v3115 = vadd.f32 %v3114, %v3062
    %v3116 = vxor.u32 %v3115, 2147483648
    %v3117 = vmul.f32 %v3116, 1.442695
    %v3118 = vpow.pop %v3117
    %v3119 = vadd.f32 %v3118, 1.0
    %v3120 = vrcp.pop %v3119
    %v3121 = vmul.f32 %v3119, %v3120
    %v3122 = vsub.f32 1.0, %v3121
    %v3123 = vmul.f32 %v3120, %v3122
    %v3124 = vadd.f32 %v3120, %v3123
    %vm3125 = vweird.f32 %v3119
    %vm3126 = vweird.f32 %v3120
    %vm3127 = vmor %vm3125, %vm3126
    %v3128 = vsel %vm3127, %v3120, %v3124
    %v3129 = vand.u32 2147483647, %v3119
    %vm3130 = vcmp.eq.f32.partialorder %v3129, 8.507059e+37
    %v3131 = vand.u32 %v3119, 2147483648
    %v3132 = vor.u32 1.1754944e-38, %v3131
    %v3133 = vsel %vm3130, %v3132, %v3128
    %v3134 = vmul.f32 1.0, %v3133
    %v3135 = vtanh.pop %v3115
    %v3136 = vmul.f32 %v3134, %v3001
    %3138 = vrot.lane.b32.xlu0 %v3135, 32
    %v3139 = vpop.permute.xlu0 %3138
    %v3141 = vmul.f32 %v3134, %v3139
    %3143 = vrot.lane.b32.xlu0 %v3141, 32
    %v3144 = vpop.permute.xlu0 %3143
    %v3146 = vadd.f32 %v3136, %v3144
    %v3147 = vtanh.pop %v3146
    %3149 = vrot.lane.b32.xlu0 %v3147, 32
    %v3150 = vpop.permute.xlu0 %3149
    %v3152 = vmul.f32 %v3134, %v3150
    %v3153 = vsel %vm1143, %v3146, %v3001
    %3154 = vrot.lane.b32.xlu0 %v3020, 32
    %v3155 = vpop.permute.xlu0 %3154
    %v3157 = vsel %vm1143, %v3152, %v3155
    %v3158 = vsel %vm1143, %v3152, 0.0
    %3160 = vrot.lane.b32.xlu0 %v3158, 96
    %v3161 = vpop.permute.xlu0 %3160
    %3163 = vst.msk [vmem:[%s1154] sm:$0xff] %vm530, %v3161
    %3165 = vrot.lane.b32.xlu0 %v3107, 64
    %v3166 = vpop.permute.xlu0 %3165
    %3169 = vrot.lane.b32.xlu0 %v3157, 96
    %v3170 = vpop.permute.xlu0 %3169
    %v3172 = vsel %vm480, %v3166, %v3170
    %v3174 = vsel %vm208, %v3172, 0
    %3176 = vmatpush.msra.mxu0 0.0
    %3177 = vmatpush.msra.mxu0 0.0
    %3178 = vmatpush.msra.mxu0 0.0
    %3179 = vmatpush.msra.mxu0 0.0
    %3180 = vmatpush.msra.mxu0 0.0
    %3181 = vmatpush.msra.mxu0 0.0
    %3182 = vmatpush.msra.mxu0 0.0
    %3183 = vmatpush.msra.mxu0 0.0
    %3184 = vmatpush.msra.mxu0 %v2430
    %3185 = vmatpush.msra.mxu0 %v2428
    %3186 = vmatpush.msra.mxu0 %v2426
    %3187 = vmatpush.msra.mxu0 %v2424
    %3188 = vmatpush.msra.mxu0 %v2422
    %3189 = vmatpush.msra.mxu0 %v2420
    %3190 = vmatpush.msra.mxu0 %v2418
    %3191 = vmatpush.msra.mxu0 %v2416
    %3192 = vmatmul.f32.gmra.mxu0 %v3174
    %v3193 = vpop.f32.mrf.mxu0
    %v3194 = vadd.f32 0.0, %v3193
    %3195 = vdwg.mxu0
    %3196 = vmatpush.msra.mxu0 0.0
    %3197 = vmatpush.msra.mxu0 0.0
    %3198 = vmatpush.msra.mxu0 0.0
    %3199 = vmatpush.msra.mxu0 0.0
    %3200 = vmatpush.msra.mxu0 0.0
    %3201 = vmatpush.msra.mxu0 0.0
    %3202 = vmatpush.msra.mxu0 0.0
    %3203 = vmatpush.msra.mxu0 0.0
    %3204 = vmatpush.msra.mxu0 %v2431
    %3205 = vmatpush.msra.mxu0 %v2429
    %3206 = vmatpush.msra.mxu0 %v2427
    %3207 = vmatpush.msra.mxu0 %v2425
    %3208 = vmatpush.msra.mxu0 %v2423
    %3209 = vmatpush.msra.mxu0 %v2421
    %3210 = vmatpush.msra.mxu0 %v2419
    %3211 = vmatpush.msra.mxu0 %v2417
    %3212 = vmatmul.f32.gmra.mxu0 %v3174
    %v3213 = vpop.f32.mrf.mxu0
    %v3214 = vadd.f32 0.0, %v3213
    %3215 = vdwg.mxu0
    %v3216 = vld [vmem:[%s1208] sm:$0xff]
    %v3217 = vadd.f32 %v3216, %v3194
    %v3218 = vxor.u32 %v3217, 2147483648
    %v3219 = vmul.f32 %v3218, 1.442695
    %v3220 = vpow.pop %v3219
    %v3221 = vadd.f32 %v3220, 1.0
    %v3222 = vrcp.pop %v3221
    %v3223 = vmul.f32 %v3221, %v3222
    %v3224 = vsub.f32 1.0, %v3223
    %v3225 = vmul.f32 %v3222, %v3224
    %v3226 = vadd.f32 %v3222, %v3225
    %vm3227 = vweird.f32 %v3221
    %vm3228 = vweird.f32 %v3222
    %vm3229 = vmor %vm3227, %vm3228
    %v3230 = vsel %vm3229, %v3222, %v3226
    %v3231 = vand.u32 2147483647, %v3221
    %vm3232 = vcmp.eq.f32.partialorder %v3231, 8.507059e+37
    %v3233 = vand.u32 %v3221, 2147483648
    %v3234 = vor.u32 1.1754944e-38, %v3233
    %v3235 = vsel %vm3232, %v3234, %v3230
    %v3236 = vmul.f32 1.0, %v3235
    %v3237 = vtanh.pop %v3217
    %v3238 = vmul.f32 %v3236, %v3103
    %3240 = vrot.lane.b32.xlu0 %v3237, 32
    %v3241 = vpop.permute.xlu0 %3240
    %v3243 = vmul.f32 %v3236, %v3241
    %3245 = vrot.lane.b32.xlu0 %v3243, 32
    %v3246 = vpop.permute.xlu0 %3245
    %v3248 = vadd.f32 %v3238, %v3246
    %v3249 = vtanh.pop %v3248
    %3251 = vrot.lane.b32.xlu0 %v3249, 32
    %v3252 = vpop.permute.xlu0 %3251
    %v3254 = vmul.f32 %v3236, %v3252
    %v3255 = vsel %vm1248, %v3248, %v3103
    %3256 = vrot.lane.b32.xlu0 %v3172, 64
    %v3257 = vpop.permute.xlu0 %3256
    %v3259 = vsel %vm1248, %v3254, %v3257
    %v3260 = vsel %vm1248, %v3254, 0.0
    %3262 = vrot.lane.b32.xlu0 %v3260, 64
    %v3263 = vpop.permute.xlu0 %3262
    %3265 = vst.msk [vmem:[%s1259] sm:$0xff] %vm480, %v3263
    %v3266 = vld [vmem:[%s1261 + $0x8] sm:$0xff]
    %v3267 = vadd.f32 %v3266, %v3214
    %v3268 = vxor.u32 %v3267, 2147483648
    %v3269 = vmul.f32 %v3268, 1.442695
    %v3270 = vpow.pop %v3269
    %v3271 = vadd.f32 %v3270, 1.0
    %v3272 = vrcp.pop %v3271
    %v3273 = vmul.f32 %v3271, %v3272
    %v3274 = vsub.f32 1.0, %v3273
    %v3275 = vmul.f32 %v3272, %v3274
    %v3276 = vadd.f32 %v3272, %v3275
    %vm3277 = vweird.f32 %v3271
    %vm3278 = vweird.f32 %v3272
    %vm3279 = vmor %vm3277, %vm3278
    %v3280 = vsel %vm3279, %v3272, %v3276
    %v3281 = vand.u32 2147483647, %v3271
    %vm3282 = vcmp.eq.f32.partialorder %v3281, 8.507059e+37
    %v3283 = vand.u32 %v3271, 2147483648
    %v3284 = vor.u32 1.1754944e-38, %v3283
    %v3285 = vsel %vm3282, %v3284, %v3280
    %v3286 = vmul.f32 1.0, %v3285
    %v3287 = vtanh.pop %v3267
    %v3288 = vmul.f32 %v3286, %v3153
    %3290 = vrot.lane.b32.xlu0 %v3287, 32
    %v3291 = vpop.permute.xlu0 %3290
    %v3293 = vmul.f32 %v3286, %v3291
    %3295 = vrot.lane.b32.xlu0 %v3293, 32
    %v3296 = vpop.permute.xlu0 %3295
    %v3298 = vadd.f32 %v3288, %v3296
    %v3299 = vtanh.pop %v3298
    %3301 = vrot.lane.b32.xlu0 %v3299, 32
    %v3302 = vpop.permute.xlu0 %3301
    %v3304 = vmul.f32 %v3286, %v3302
    %v3305 = vsel %vm1301, %v3298, %v3153
    %3306 = vrot.lane.b32.xlu0 %v3172, 32
    %v3307 = vpop.permute.xlu0 %3306
    %v3309 = vsel %vm1301, %v3304, %v3307
    %v3310 = vsel %vm1301, %v3304, 0.0
    %3312 = vrot.lane.b32.xlu0 %v3310, 96
    %v3313 = vpop.permute.xlu0 %3312
    %3315 = vst.msk [vmem:[%s1312] sm:$0xff] %vm530, %v3313
    %3317 = vrot.lane.b32.xlu0 %v3259, 64
    %v3318 = vpop.permute.xlu0 %3317
    %3321 = vrot.lane.b32.xlu0 %v3309, 96
    %v3322 = vpop.permute.xlu0 %3321
    %v3324 = vsel %vm480, %v3318, %v3322
    %v3326 = vsel %vm208, %v3324, 0
    %3328 = vmatpush.msra.mxu0 0.0
    %3329 = vmatpush.msra.mxu0 0.0
    %3330 = vmatpush.msra.mxu0 0.0
    %3331 = vmatpush.msra.mxu0 0.0
    %3332 = vmatpush.msra.mxu0 0.0
    %3333 = vmatpush.msra.mxu0 0.0
    %3334 = vmatpush.msra.mxu0 0.0
    %3335 = vmatpush.msra.mxu0 0.0
    %3336 = vmatpush.msra.mxu0 %v2430
    %3337 = vmatpush.msra.mxu0 %v2428
    %3338 = vmatpush.msra.mxu0 %v2426
    %3339 = vmatpush.msra.mxu0 %v2424
    %3340 = vmatpush.msra.mxu0 %v2422
    %3341 = vmatpush.msra.mxu0 %v2420
    %3342 = vmatpush.msra.mxu0 %v2418
    %3343 = vmatpush.msra.mxu0 %v2416
    %3344 = vmatmul.f32.gmra.mxu0 %v3326
    %v3345 = vpop.f32.mrf.mxu0
    %v3346 = vadd.f32 0.0, %v3345
    %3347 = vdwg.mxu0
    %3348 = vmatpush.msra.mxu0 0.0
    %3349 = vmatpush.msra.mxu0 0.0
    %3350 = vmatpush.msra.mxu0 0.0
    %3351 = vmatpush.msra.mxu0 0.0
    %3352 = vmatpush.msra.mxu0 0.0
    %3353 = vmatpush.msra.mxu0 0.0
    %3354 = vmatpush.msra.mxu0 0.0
    %3355 = vmatpush.msra.mxu0 0.0
    %3356 = vmatpush.msra.mxu0 %v2431
    %3357 = vmatpush.msra.mxu0 %v2429
    %3358 = vmatpush.msra.mxu0 %v2427
    %3359 = vmatpush.msra.mxu0 %v2425
    %3360 = vmatpush.msra.mxu0 %v2423
    %3361 = vmatpush.msra.mxu0 %v2421
    %3362 = vmatpush.msra.mxu0 %v2419
    %3363 = vmatpush.msra.mxu0 %v2417
    %3364 = vmatmul.f32.gmra.mxu0 %v3326
    %v3365 = vpop.f32.mrf.mxu0
    %v3366 = vadd.f32 0.0, %v3365
    %3367 = vdwg.mxu0
    %v3368 = vld [vmem:[%s1261] sm:$0xff]
    %v3369 = vadd.f32 %v3368, %v3346
    %v3370 = vxor.u32 %v3369, 2147483648
    %v3371 = vmul.f32 %v3370, 1.442695
    %v3372 = vpow.pop %v3371
    %v3373 = vadd.f32 %v3372, 1.0
    %v3374 = vrcp.pop %v3373
    %v3375 = vmul.f32 %v3373, %v3374
    %v3376 = vsub.f32 1.0, %v3375
    %v3377 = vmul.f32 %v3374, %v3376
    %v3378 = vadd.f32 %v3374, %v3377
    %vm3379 = vweird.f32 %v3373
    %vm3380 = vweird.f32 %v3374
    %vm3381 = vmor %vm3379, %vm3380
    %v3382 = vsel %vm3381, %v3374, %v3378
    %v3383 = vand.u32 2147483647, %v3373
    %vm3384 = vcmp.eq.f32.partialorder %v3383, 8.507059e+37
    %v3385 = vand.u32 %v3373, 2147483648
    %v3386 = vor.u32 1.1754944e-38, %v3385
    %v3387 = vsel %vm3384, %v3386, %v3382
    %v3388 = vmul.f32 1.0, %v3387
    %v3389 = vtanh.pop %v3369
    %v3390 = vmul.f32 %v3388, %v3255
    %3392 = vrot.lane.b32.xlu0 %v3389, 32
    %v3393 = vpop.permute.xlu0 %3392
    %v3395 = vmul.f32 %v3388, %v3393
    %3397 = vrot.lane.b32.xlu0 %v3395, 32
    %v3398 = vpop.permute.xlu0 %3397
    %v3400 = vadd.f32 %v3390, %v3398
    %v3401 = vtanh.pop %v3400
    %3403 = vrot.lane.b32.xlu0 %v3401, 32
    %v3404 = vpop.permute.xlu0 %3403
    %v3406 = vmul.f32 %v3388, %v3404
    %v3407 = vsel %vm1301, %v3400, %v3255
    %3408 = vrot.lane.b32.xlu0 %v3324, 64
    %v3409 = vpop.permute.xlu0 %3408
    %v3411 = vsel %vm1301, %v3406, %v3409
    %v3412 = vsel %vm1301, %v3406, 0.0
    %3414 = vrot.lane.b32.xlu0 %v3412, 64
    %v3415 = vpop.permute.xlu0 %3414
    %3417 = vst.msk [vmem:[%s1312] sm:$0xff] %vm480, %v3415
    %v3418 = vld [vmem:[%s1208 + $0x8] sm:$0xff]
    %v3419 = vadd.f32 %v3418, %v3366
    %v3420 = vxor.u32 %v3419, 2147483648
    %v3421 = vmul.f32 %v3420, 1.442695
    %v3422 = vpow.pop %v3421
    %v3423 = vadd.f32 %v3422, 1.0
    %v3424 = vrcp.pop %v3423
    %v3425 = vmul.f32 %v3423, %v3424
    %v3426 = vsub.f32 1.0, %v3425
    %v3427 = vmul.f32 %v3424, %v3426
    %v3428 = vadd.f32 %v3424, %v3427
    %vm3429 = vweird.f32 %v3423
    %vm3430 = vweird.f32 %v3424
    %vm3431 = vmor %vm3429, %vm3430
    %v3432 = vsel %vm3431, %v3424, %v3428
    %v3433 = vand.u32 2147483647, %v3423
    %vm3434 = vcmp.eq.f32.partialorder %v3433, 8.507059e+37
    %v3435 = vand.u32 %v3423, 2147483648
    %v3436 = vor.u32 1.1754944e-38, %v3435
    %v3437 = vsel %vm3434, %v3436, %v3432
    %v3438 = vmul.f32 1.0, %v3437
    %v3439 = vtanh.pop %v3419
    %v3440 = vmul.f32 %v3438, %v3305
    %3442 = vrot.lane.b32.xlu0 %v3439, 32
    %v3443 = vpop.permute.xlu0 %3442
    %v3445 = vmul.f32 %v3438, %v3443
    %3447 = vrot.lane.b32.xlu0 %v3445, 32
    %v3448 = vpop.permute.xlu0 %3447
    %v3450 = vadd.f32 %v3440, %v3448
    %v3451 = vtanh.pop %v3450
    %3453 = vrot.lane.b32.xlu0 %v3451, 32
    %v3454 = vpop.permute.xlu0 %3453
    %v3456 = vmul.f32 %v3438, %v3454
    %v3457 = vsel %vm1248, %v3450, %v3305
    %3458 = vrot.lane.b32.xlu0 %v3324, 32
    %v3459 = vpop.permute.xlu0 %3458
    %v3461 = vsel %vm1248, %v3456, %v3459
    %v3462 = vsel %vm1248, %v3456, 0.0
    %3464 = vrot.lane.b32.xlu0 %v3462, 96
    %v3465 = vpop.permute.xlu0 %3464
    %3467 = vst.msk [vmem:[%s1259] sm:$0xff] %vm530, %v3465
    %3469 = vrot.lane.b32.xlu0 %v3411, 64
    %v3470 = vpop.permute.xlu0 %3469
    %3473 = vrot.lane.b32.xlu0 %v3461, 96
    %v3474 = vpop.permute.xlu0 %3473
    %v3476 = vsel %vm480, %v3470, %v3474
    %v3478 = vsel %vm208, %v3476, 0
    %3480 = vmatpush.msra.mxu0 0.0
    %3481 = vmatpush.msra.mxu0 0.0
    %3482 = vmatpush.msra.mxu0 0.0
    %3483 = vmatpush.msra.mxu0 0.0
    %3484 = vmatpush.msra.mxu0 0.0
    %3485 = vmatpush.msra.mxu0 0.0
    %3486 = vmatpush.msra.mxu0 0.0
    %3487 = vmatpush.msra.mxu0 0.0
    %3488 = vmatpush.msra.mxu0 %v2430
    %3489 = vmatpush.msra.mxu0 %v2428
    %3490 = vmatpush.msra.mxu0 %v2426
    %3491 = vmatpush.msra.mxu0 %v2424
    %3492 = vmatpush.msra.mxu0 %v2422
    %3493 = vmatpush.msra.mxu0 %v2420
    %3494 = vmatpush.msra.mxu0 %v2418
    %3495 = vmatpush.msra.mxu0 %v2416
    %3496 = vmatmul.f32.gmra.mxu0 %v3478
    %v3497 = vpop.f32.mrf.mxu0
    %v3498 = vadd.f32 0.0, %v3497
    %3499 = vdwg.mxu0
    %3500 = vmatpush.msra.mxu0 0.0
    %3501 = vmatpush.msra.mxu0 0.0
    %3502 = vmatpush.msra.mxu0 0.0
    %3503 = vmatpush.msra.mxu0 0.0
    %3504 = vmatpush.msra.mxu0 0.0
    %3505 = vmatpush.msra.mxu0 0.0
    %3506 = vmatpush.msra.mxu0 0.0
    %3507 = vmatpush.msra.mxu0 0.0
    %3508 = vmatpush.msra.mxu0 %v2431
    %3509 = vmatpush.msra.mxu0 %v2429
    %3510 = vmatpush.msra.mxu0 %v2427
    %3511 = vmatpush.msra.mxu0 %v2425
    %3512 = vmatpush.msra.mxu0 %v2423
    %3513 = vmatpush.msra.mxu0 %v2421
    %3514 = vmatpush.msra.mxu0 %v2419
    %3515 = vmatpush.msra.mxu0 %v2417
    %3516 = vmatmul.f32.gmra.mxu0 %v3478
    %v3517 = vpop.f32.mrf.mxu0
    %v3518 = vadd.f32 0.0, %v3517
    %3519 = vdwg.mxu0
    %v3520 = vld [vmem:[%s1103] sm:$0xff]
    %v3521 = vadd.f32 %v3520, %v3498
    %v3522 = vxor.u32 %v3521, 2147483648
    %v3523 = vmul.f32 %v3522, 1.442695
    %v3524 = vpow.pop %v3523
    %v3525 = vadd.f32 %v3524, 1.0
    %v3526 = vrcp.pop %v3525
    %v3527 = vmul.f32 %v3525, %v3526
    %v3528 = vsub.f32 1.0, %v3527
    %v3529 = vmul.f32 %v3526, %v3528
    %v3530 = vadd.f32 %v3526, %v3529
    %vm3531 = vweird.f32 %v3525
    %vm3532 = vweird.f32 %v3526
    %vm3533 = vmor %vm3531, %vm3532
    %v3534 = vsel %vm3533, %v3526, %v3530
    %v3535 = vand.u32 2147483647, %v3525
    %vm3536 = vcmp.eq.f32.partialorder %v3535, 8.507059e+37
    %v3537 = vand.u32 %v3525, 2147483648
    %v3538 = vor.u32 1.1754944e-38, %v3537
    %v3539 = vsel %vm3536, %v3538, %v3534
    %v3540 = vmul.f32 1.0, %v3539
    %v3541 = vtanh.pop %v3521
    %v3542 = vmul.f32 %v3540, %v3407
    %3544 = vrot.lane.b32.xlu0 %v3541, 32
    %v3545 = vpop.permute.xlu0 %3544
    %v3547 = vmul.f32 %v3540, %v3545
    %3549 = vrot.lane.b32.xlu0 %v3547, 32
    %v3550 = vpop.permute.xlu0 %3549
    %v3552 = vadd.f32 %v3542, %v3550
    %v3553 = vtanh.pop %v3552
    %3555 = vrot.lane.b32.xlu0 %v3553, 32
    %v3556 = vpop.permute.xlu0 %3555
    %v3558 = vmul.f32 %v3540, %v3556
    %v3559 = vsel %vm1143, %v3552, %v3407
    %3560 = vrot.lane.b32.xlu0 %v3476, 64
    %v3561 = vpop.permute.xlu0 %3560
    %v3563 = vsel %vm1143, %v3558, %v3561
    %v3564 = vsel %vm1143, %v3558, 0.0
    %3566 = vrot.lane.b32.xlu0 %v3564, 64
    %v3567 = vpop.permute.xlu0 %3566
    %3569 = vst.msk [vmem:[%s1154] sm:$0xff] %vm480, %v3567
    %v3570 = vld [vmem:[%s1050 + $0x8] sm:$0xff]
    %v3571 = vadd.f32 %v3570, %v3518
    %v3572 = vxor.u32 %v3571, 2147483648
    %v3573 = vmul.f32 %v3572, 1.442695
    %v3574 = vpow.pop %v3573
    %v3575 = vadd.f32 %v3574, 1.0
    %v3576 = vrcp.pop %v3575
    %v3577 = vmul.f32 %v3575, %v3576
    %v3578 = vsub.f32 1.0, %v3577
    %v3579 = vmul.f32 %v3576, %v3578
    %v3580 = vadd.f32 %v3576, %v3579
    %vm3581 = vweird.f32 %v3575
    %vm3582 = vweird.f32 %v3576
    %vm3583 = vmor %vm3581, %vm3582
    %v3584 = vsel %vm3583, %v3576, %v3580
    %v3585 = vand.u32 2147483647, %v3575
    %vm3586 = vcmp.eq.f32.partialorder %v3585, 8.507059e+37
    %v3587 = vand.u32 %v3575, 2147483648
    %v3588 = vor.u32 1.1754944e-38, %v3587
    %v3589 = vsel %vm3586, %v3588, %v3584
    %v3590 = vmul.f32 1.0, %v3589
    %v3591 = vtanh.pop %v3571
    %v3592 = vmul.f32 %v3590, %v3457
    %3594 = vrot.lane.b32.xlu0 %v3591, 32
    %v3595 = vpop.permute.xlu0 %3594
    %v3597 = vmul.f32 %v3590, %v3595
    %3599 = vrot.lane.b32.xlu0 %v3597, 32
    %v3600 = vpop.permute.xlu0 %3599
    %v3602 = vadd.f32 %v3592, %v3600
    %v3603 = vtanh.pop %v3602
    %3605 = vrot.lane.b32.xlu0 %v3603, 32
    %v3606 = vpop.permute.xlu0 %3605
    %v3608 = vmul.f32 %v3590, %v3606
    %v3609 = vsel %vm1090, %v3602, %v3457
    %3610 = vrot.lane.b32.xlu0 %v3476, 32
    %v3611 = vpop.permute.xlu0 %3610
    %v3613 = vsel %vm1090, %v3608, %v3611
    %v3614 = vsel %vm1090, %v3608, 0.0
    %3616 = vrot.lane.b32.xlu0 %v3614, 96
    %v3617 = vpop.permute.xlu0 %3616
    %3619 = vst.msk [vmem:[%s1101] sm:$0xff] %vm530, %v3617
    %3621 = vrot.lane.b32.xlu0 %v3563, 64
    %v3622 = vpop.permute.xlu0 %3621
    %3625 = vrot.lane.b32.xlu0 %v3613, 96
    %v3626 = vpop.permute.xlu0 %3625
    %v3628 = vsel %vm480, %v3622, %v3626
    %v3630 = vsel %vm208, %v3628, 0
    %3632 = vmatpush.msra.mxu0 0.0
    %3633 = vmatpush.msra.mxu0 0.0
    %3634 = vmatpush.msra.mxu0 0.0
    %3635 = vmatpush.msra.mxu0 0.0
    %3636 = vmatpush.msra.mxu0 0.0
    %3637 = vmatpush.msra.mxu0 0.0
    %3638 = vmatpush.msra.mxu0 0.0
    %3639 = vmatpush.msra.mxu0 0.0
    %3640 = vmatpush.msra.mxu0 %v2430
    %3641 = vmatpush.msra.mxu0 %v2428
    %3642 = vmatpush.msra.mxu0 %v2426
    %3643 = vmatpush.msra.mxu0 %v2424
    %3644 = vmatpush.msra.mxu0 %v2422
    %3645 = vmatpush.msra.mxu0 %v2420
    %3646 = vmatpush.msra.mxu0 %v2418
    %3647 = vmatpush.msra.mxu0 %v2416
    %3648 = vmatmul.f32.gmra.mxu0 %v3630
    %v3649 = vpop.f32.mrf.mxu0
    %v3650 = vadd.f32 0.0, %v3649
    %3651 = vdwg.mxu0
    %3652 = vmatpush.msra.mxu0 0.0
    %3653 = vmatpush.msra.mxu0 0.0
    %3654 = vmatpush.msra.mxu0 0.0
    %3655 = vmatpush.msra.mxu0 0.0
    %3656 = vmatpush.msra.mxu0 0.0
    %3657 = vmatpush.msra.mxu0 0.0
    %3658 = vmatpush.msra.mxu0 0.0
    %3659 = vmatpush.msra.mxu0 0.0
    %3660 = vmatpush.msra.mxu0 %v2431
    %3661 = vmatpush.msra.mxu0 %v2429
    %3662 = vmatpush.msra.mxu0 %v2427
    %3663 = vmatpush.msra.mxu0 %v2425
    %3664 = vmatpush.msra.mxu0 %v2423
    %3665 = vmatpush.msra.mxu0 %v2421
    %3666 = vmatpush.msra.mxu0 %v2419
    %3667 = vmatpush.msra.mxu0 %v2417
    %3668 = vmatmul.f32.gmra.mxu0 %v3630
    %v3669 = vpop.f32.mrf.mxu0
    %v3670 = vadd.f32 0.0, %v3669
    %3671 = vdwg.mxu0
    %v3672 = vld [vmem:[%s945] sm:$0xff]
    %v3673 = vadd.f32 %v3672, %v3650
    %v3674 = vxor.u32 %v3673, 2147483648
    %v3675 = vmul.f32 %v3674, 1.442695
    %v3676 = vpow.pop %v3675
    %v3677 = vadd.f32 %v3676, 1.0
    %v3678 = vrcp.pop %v3677
    %v3679 = vmul.f32 %v3677, %v3678
    %v3680 = vsub.f32 1.0, %v3679
    %v3681 = vmul.f32 %v3678, %v3680
    %v3682 = vadd.f32 %v3678, %v3681
    %vm3683 = vweird.f32 %v3677
    %vm3684 = vweird.f32 %v3678
    %vm3685 = vmor %vm3683, %vm3684
    %v3686 = vsel %vm3685, %v3678, %v3682
    %v3687 = vand.u32 2147483647, %v3677
    %vm3688 = vcmp.eq.f32.partialorder %v3687, 8.507059e+37
    %v3689 = vand.u32 %v3677, 2147483648
    %v3690 = vor.u32 1.1754944e-38, %v3689
    %v3691 = vsel %vm3688, %v3690, %v3686
    %v3692 = vmul.f32 1.0, %v3691
    %v3693 = vtanh.pop %v3673
    %v3694 = vmul.f32 %v3692, %v3559
    %3696 = vrot.lane.b32.xlu0 %v3693, 32
    %v3697 = vpop.permute.xlu0 %3696
    %v3699 = vmul.f32 %v3692, %v3697
    %3701 = vrot.lane.b32.xlu0 %v3699, 32
    %v3702 = vpop.permute.xlu0 %3701
    %v3704 = vadd.f32 %v3694, %v3702
    %v3705 = vtanh.pop %v3704
    %3707 = vrot.lane.b32.xlu0 %v3705, 32
    %v3708 = vpop.permute.xlu0 %3707
    %v3710 = vmul.f32 %v3692, %v3708
    %v3711 = vsel %vm985, %v3704, %v3559
    %3712 = vrot.lane.b32.xlu0 %v3628, 64
    %v3713 = vpop.permute.xlu0 %3712
    %v3715 = vsel %vm985, %v3710, %v3713
    %v3716 = vsel %vm985, %v3710, 0.0
    %3718 = vrot.lane.b32.xlu0 %v3716, 64
    %v3719 = vpop.permute.xlu0 %3718
    %3721 = vst.msk [vmem:[%s996] sm:$0xff] %vm480, %v3719
    %v3722 = vld [vmem:[%s892 + $0x8] sm:$0xff]
    %v3723 = vadd.f32 %v3722, %v3670
    %v3724 = vxor.u32 %v3723, 2147483648
    %v3725 = vmul.f32 %v3724, 1.442695
    %v3726 = vpow.pop %v3725
    %v3727 = vadd.f32 %v3726, 1.0
    %v3728 = vrcp.pop %v3727
    %v3729 = vmul.f32 %v3727, %v3728
    %v3730 = vsub.f32 1.0, %v3729
    %v3731 = vmul.f32 %v3728, %v3730
    %v3732 = vadd.f32 %v3728, %v3731
    %vm3733 = vweird.f32 %v3727
    %vm3734 = vweird.f32 %v3728
    %vm3735 = vmor %vm3733, %vm3734
    %v3736 = vsel %vm3735, %v3728, %v3732
    %v3737 = vand.u32 2147483647, %v3727
    %vm3738 = vcmp.eq.f32.partialorder %v3737, 8.507059e+37
    %v3739 = vand.u32 %v3727, 2147483648
    %v3740 = vor.u32 1.1754944e-38, %v3739
    %v3741 = vsel %vm3738, %v3740, %v3736
    %v3742 = vmul.f32 1.0, %v3741
    %v3743 = vtanh.pop %v3723
    %v3744 = vmul.f32 %v3742, %v3609
    %3746 = vrot.lane.b32.xlu0 %v3743, 32
    %v3747 = vpop.permute.xlu0 %3746
    %v3749 = vmul.f32 %v3742, %v3747
    %3751 = vrot.lane.b32.xlu0 %v3749, 32
    %v3752 = vpop.permute.xlu0 %3751
    %v3754 = vadd.f32 %v3744, %v3752
    %v3755 = vtanh.pop %v3754
    %3757 = vrot.lane.b32.xlu0 %v3755, 32
    %v3758 = vpop.permute.xlu0 %3757
    %v3760 = vmul.f32 %v3742, %v3758
    %v3761 = vsel %vm932, %v3754, %v3609
    %3762 = vrot.lane.b32.xlu0 %v3628, 32
    %v3763 = vpop.permute.xlu0 %3762
    %v3765 = vsel %vm932, %v3760, %v3763
    %v3766 = vsel %vm932, %v3760, 0.0
    %3768 = vrot.lane.b32.xlu0 %v3766, 96
    %v3769 = vpop.permute.xlu0 %3768
    %3771 = vst.msk [vmem:[%s943] sm:$0xff] %vm530, %v3769
    %3773 = vrot.lane.b32.xlu0 %v3715, 64
    %v3774 = vpop.permute.xlu0 %3773
    %3777 = vrot.lane.b32.xlu0 %v3765, 96
    %v3778 = vpop.permute.xlu0 %3777
    %v3780 = vsel %vm480, %v3774, %v3778
    %v3782 = vsel %vm208, %v3780, 0
    %3784 = vmatpush.msra.mxu0 0.0
    %3785 = vmatpush.msra.mxu0 0.0
    %3786 = vmatpush.msra.mxu0 0.0
    %3787 = vmatpush.msra.mxu0 0.0
    %3788 = vmatpush.msra.mxu0 0.0
    %3789 = vmatpush.msra.mxu0 0.0
    %3790 = vmatpush.msra.mxu0 0.0
    %3791 = vmatpush.msra.mxu0 0.0
    %3792 = vmatpush.msra.mxu0 %v2430
    %3793 = vmatpush.msra.mxu0 %v2428
    %3794 = vmatpush.msra.mxu0 %v2426
    %3795 = vmatpush.msra.mxu0 %v2424
    %3796 = vmatpush.msra.mxu0 %v2422
    %3797 = vmatpush.msra.mxu0 %v2420
    %3798 = vmatpush.msra.mxu0 %v2418
    %3799 = vmatpush.msra.mxu0 %v2416
    %3800 = vmatmul.f32.gmra.mxu0 %v3782
    %v3801 = vpop.f32.mrf.mxu0
    %v3802 = vadd.f32 0.0, %v3801
    %3803 = vdwg.mxu0
    %3804 = vmatpush.msra.mxu0 0.0
    %3805 = vmatpush.msra.mxu0 0.0
    %3806 = vmatpush.msra.mxu0 0.0
    %3807 = vmatpush.msra.mxu0 0.0
    %3808 = vmatpush.msra.mxu0 0.0
    %3809 = vmatpush.msra.mxu0 0.0
    %3810 = vmatpush.msra.mxu0 0.0
    %3811 = vmatpush.msra.mxu0 0.0
    %3812 = vmatpush.msra.mxu0 %v2431
    %3813 = vmatpush.msra.mxu0 %v2429
    %3814 = vmatpush.msra.mxu0 %v2427
    %3815 = vmatpush.msra.mxu0 %v2425
    %3816 = vmatpush.msra.mxu0 %v2423
    %3817 = vmatpush.msra.mxu0 %v2421
    %3818 = vmatpush.msra.mxu0 %v2419
    %3819 = vmatpush.msra.mxu0 %v2417
    %3820 = vmatmul.f32.gmra.mxu0 %v3782
    %v3821 = vpop.f32.mrf.mxu0
    %v3822 = vadd.f32 0.0, %v3821
    %3823 = vdwg.mxu0
    %v3824 = vld [vmem:[%s787] sm:$0xff]
    %v3825 = vadd.f32 %v3824, %v3802
    %v3826 = vxor.u32 %v3825, 2147483648
    %v3827 = vmul.f32 %v3826, 1.442695
    %v3828 = vpow.pop %v3827
    %v3829 = vadd.f32 %v3828, 1.0
    %v3830 = vrcp.pop %v3829
    %v3831 = vmul.f32 %v3829, %v3830
    %v3832 = vsub.f32 1.0, %v3831
    %v3833 = vmul.f32 %v3830, %v3832
    %v3834 = vadd.f32 %v3830, %v3833
    %vm3835 = vweird.f32 %v3829
    %vm3836 = vweird.f32 %v3830
    %vm3837 = vmor %vm3835, %vm3836
    %v3838 = vsel %vm3837, %v3830, %v3834
    %v3839 = vand.u32 2147483647, %v3829
    %vm3840 = vcmp.eq.f32.partialorder %v3839, 8.507059e+37
    %v3841 = vand.u32 %v3829, 2147483648
    %v3842 = vor.u32 1.1754944e-38, %v3841
    %v3843 = vsel %vm3840, %v3842, %v3838
    %v3844 = vmul.f32 1.0, %v3843
    %v3845 = vtanh.pop %v3825
    %v3846 = vmul.f32 %v3844, %v3711
    %3848 = vrot.lane.b32.xlu0 %v3845, 32
    %v3849 = vpop.permute.xlu0 %3848
    %v3851 = vmul.f32 %v3844, %v3849
    %3853 = vrot.lane.b32.xlu0 %v3851, 32
    %v3854 = vpop.permute.xlu0 %3853
    %v3856 = vadd.f32 %v3846, %v3854
    %v3857 = vtanh.pop %v3856
    %3859 = vrot.lane.b32.xlu0 %v3857, 32
    %v3860 = vpop.permute.xlu0 %3859
    %v3862 = vmul.f32 %v3844, %v3860
    %v3863 = vsel %vm827, %v3856, %v3711
    %3864 = vrot.lane.b32.xlu0 %v3780, 64
    %v3865 = vpop.permute.xlu0 %3864
    %v3867 = vsel %vm827, %v3862, %v3865
    %v3868 = vsel %vm827, %v3862, 0.0
    %3870 = vrot.lane.b32.xlu0 %v3868, 64
    %v3871 = vpop.permute.xlu0 %3870
    %3873 = vst.msk [vmem:[%s838] sm:$0xff] %vm480, %v3871
    %v3874 = vld [vmem:[%s734 + $0x8] sm:$0xff]
    %v3875 = vadd.f32 %v3874, %v3822
    %v3876 = vxor.u32 %v3875, 2147483648
    %v3877 = vmul.f32 %v3876, 1.442695
    %v3878 = vpow.pop %v3877
    %v3879 = vadd.f32 %v3878, 1.0
    %v3880 = vrcp.pop %v3879
    %v3881 = vmul.f32 %v3879, %v3880
    %v3882 = vsub.f32 1.0, %v3881
    %v3883 = vmul.f32 %v3880, %v3882
    %v3884 = vadd.f32 %v3880, %v3883
    %vm3885 = vweird.f32 %v3879
    %vm3886 = vweird.f32 %v3880
    %vm3887 = vmor %vm3885, %vm3886
    %v3888 = vsel %vm3887, %v3880, %v3884
    %v3889 = vand.u32 2147483647, %v3879
    %vm3890 = vcmp.eq.f32.partialorder %v3889, 8.507059e+37
    %v3891 = vand.u32 %v3879, 2147483648
    %v3892 = vor.u32 1.1754944e-38, %v3891
    %v3893 = vsel %vm3890, %v3892, %v3888
    %v3894 = vmul.f32 1.0, %v3893
    %v3895 = vtanh.pop %v3875
    %v3896 = vmul.f32 %v3894, %v3761
    %3898 = vrot.lane.b32.xlu0 %v3895, 32
    %v3899 = vpop.permute.xlu0 %3898
    %v3901 = vmul.f32 %v3894, %v3899
    %3903 = vrot.lane.b32.xlu0 %v3901, 32
    %v3904 = vpop.permute.xlu0 %3903
    %v3906 = vadd.f32 %v3896, %v3904
    %v3907 = vtanh.pop %v3906
    %3909 = vrot.lane.b32.xlu0 %v3907, 32
    %v3910 = vpop.permute.xlu0 %3909
    %v3912 = vmul.f32 %v3894, %v3910
    %v3913 = vsel %vm774, %v3906, %v3761
    %3914 = vrot.lane.b32.xlu0 %v3780, 32
    %v3915 = vpop.permute.xlu0 %3914
    %v3917 = vsel %vm774, %v3912, %v3915
    %v3918 = vsel %vm774, %v3912, 0.0
    %3920 = vrot.lane.b32.xlu0 %v3918, 96
    %v3921 = vpop.permute.xlu0 %3920
    %3923 = vst.msk [vmem:[%s785] sm:$0xff] %vm530, %v3921
    %3925 = vrot.lane.b32.xlu0 %v3867, 64
    %v3926 = vpop.permute.xlu0 %3925
    %3929 = vrot.lane.b32.xlu0 %v3917, 96
    %v3930 = vpop.permute.xlu0 %3929
    %v3932 = vsel %vm480, %v3926, %v3930
    %v3934 = vsel %vm208, %v3932, 0
    %3936 = vmatpush.msra.mxu0 0.0
    %3937 = vmatpush.msra.mxu0 0.0
    %3938 = vmatpush.msra.mxu0 0.0
    %3939 = vmatpush.msra.mxu0 0.0
    %3940 = vmatpush.msra.mxu0 0.0
    %3941 = vmatpush.msra.mxu0 0.0
    %3942 = vmatpush.msra.mxu0 0.0
    %3943 = vmatpush.msra.mxu0 0.0
    %3944 = vmatpush.msra.mxu0 %v2430
    %3945 = vmatpush.msra.mxu0 %v2428
    %3946 = vmatpush.msra.mxu0 %v2426
    %3947 = vmatpush.msra.mxu0 %v2424
    %3948 = vmatpush.msra.mxu0 %v2422
    %3949 = vmatpush.msra.mxu0 %v2420
    %3950 = vmatpush.msra.mxu0 %v2418
    %3951 = vmatpush.msra.mxu0 %v2416
    %3952 = vmatmul.f32.gmra.mxu0 %v3934
    %v3953 = vpop.f32.mrf.mxu0
    %v3954 = vadd.f32 0.0, %v3953
    %3955 = vdwg.mxu0
    %3956 = vmatpush.msra.mxu0 0.0
    %3957 = vmatpush.msra.mxu0 0.0
    %3958 = vmatpush.msra.mxu0 0.0
    %3959 = vmatpush.msra.mxu0 0.0
    %3960 = vmatpush.msra.mxu0 0.0
    %3961 = vmatpush.msra.mxu0 0.0
    %3962 = vmatpush.msra.mxu0 0.0
    %3963 = vmatpush.msra.mxu0 0.0
    %3964 = vmatpush.msra.mxu0 %v2431
    %3965 = vmatpush.msra.mxu0 %v2429
    %3966 = vmatpush.msra.mxu0 %v2427
    %3967 = vmatpush.msra.mxu0 %v2425
    %3968 = vmatpush.msra.mxu0 %v2423
    %3969 = vmatpush.msra.mxu0 %v2421
    %3970 = vmatpush.msra.mxu0 %v2419
    %3971 = vmatpush.msra.mxu0 %v2417
    %3972 = vmatmul.f32.gmra.mxu0 %v3934
    %v3973 = vpop.f32.mrf.mxu0
    %v3974 = vadd.f32 0.0, %v3973
    %3975 = vdwg.mxu0
    %v3976 = vld [vmem:[%s629] sm:$0xff]
    %v3977 = vadd.f32 %v3976, %v3954
    %v3978 = vxor.u32 %v3977, 2147483648
    %v3979 = vmul.f32 %v3978, 1.442695
    %v3980 = vpow.pop %v3979
    %v3981 = vadd.f32 %v3980, 1.0
    %v3982 = vrcp.pop %v3981
    %v3983 = vmul.f32 %v3981, %v3982
    %v3984 = vsub.f32 1.0, %v3983
    %v3985 = vmul.f32 %v3982, %v3984
    %v3986 = vadd.f32 %v3982, %v3985
    %vm3987 = vweird.f32 %v3981
    %vm3988 = vweird.f32 %v3982
    %vm3989 = vmor %vm3987, %vm3988
    %v3990 = vsel %vm3989, %v3982, %v3986
    %v3991 = vand.u32 2147483647, %v3981
    %vm3992 = vcmp.eq.f32.partialorder %v3991, 8.507059e+37
    %v3993 = vand.u32 %v3981, 2147483648
    %v3994 = vor.u32 1.1754944e-38, %v3993
    %v3995 = vsel %vm3992, %v3994, %v3990
    %v3996 = vmul.f32 1.0, %v3995
    %v3997 = vtanh.pop %v3977
    %v3998 = vmul.f32 %v3996, %v3863
    %4000 = vrot.lane.b32.xlu0 %v3997, 32
    %v4001 = vpop.permute.xlu0 %4000
    %v4003 = vmul.f32 %v3996, %v4001
    %4005 = vrot.lane.b32.xlu0 %v4003, 32
    %v4006 = vpop.permute.xlu0 %4005
    %v4008 = vadd.f32 %v3998, %v4006
    %v4009 = vtanh.pop %v4008
    %4011 = vrot.lane.b32.xlu0 %v4009, 32
    %v4012 = vpop.permute.xlu0 %4011
    %v4014 = vmul.f32 %v3996, %v4012
    %v4015 = vsel %vm669, %v4008, %v3863
    %4016 = vrot.lane.b32.xlu0 %v3932, 64
    %v4017 = vpop.permute.xlu0 %4016
    %v4019 = vsel %vm669, %v4014, %v4017
    %v4020 = vsel %vm669, %v4014, 0.0
    %4022 = vrot.lane.b32.xlu0 %v4020, 64
    %v4023 = vpop.permute.xlu0 %4022
    %4025 = vst.msk [vmem:[%s680] sm:$0xff] %vm480, %v4023
    %v4026 = vld [vmem:[%s576 + $0x8] sm:$0xff]
    %v4027 = vadd.f32 %v4026, %v3974
    %v4028 = vxor.u32 %v4027, 2147483648
    %v4029 = vmul.f32 %v4028, 1.442695
    %v4030 = vpow.pop %v4029
    %v4031 = vadd.f32 %v4030, 1.0
    %v4032 = vrcp.pop %v4031
    %v4033 = vmul.f32 %v4031, %v4032
    %v4034 = vsub.f32 1.0, %v4033
    %v4035 = vmul.f32 %v4032, %v4034
    %v4036 = vadd.f32 %v4032, %v4035
    %vm4037 = vweird.f32 %v4031
    %vm4038 = vweird.f32 %v4032
    %vm4039 = vmor %vm4037, %vm4038
    %v4040 = vsel %vm4039, %v4032, %v4036
    %v4041 = vand.u32 2147483647, %v4031
    %vm4042 = vcmp.eq.f32.partialorder %v4041, 8.507059e+37
    %v4043 = vand.u32 %v4031, 2147483648
    %v4044 = vor.u32 1.1754944e-38, %v4043
    %v4045 = vsel %vm4042, %v4044, %v4040
    %v4046 = vmul.f32 1.0, %v4045
    %v4047 = vtanh.pop %v4027
    %v4048 = vmul.f32 %v4046, %v3913
    %4050 = vrot.lane.b32.xlu0 %v4047, 32
    %v4051 = vpop.permute.xlu0 %4050
    %v4053 = vmul.f32 %v4046, %v4051
    %4055 = vrot.lane.b32.xlu0 %v4053, 32
    %v4056 = vpop.permute.xlu0 %4055
    %v4058 = vadd.f32 %v4048, %v4056
    %v4059 = vtanh.pop %v4058
    %4061 = vrot.lane.b32.xlu0 %v4059, 32
    %v4062 = vpop.permute.xlu0 %4061
    %v4064 = vmul.f32 %v4046, %v4062
    %v4065 = vsel %vm616, %v4058, %v3913
    %4066 = vrot.lane.b32.xlu0 %v3932, 32
    %v4067 = vpop.permute.xlu0 %4066
    %v4069 = vsel %vm616, %v4064, %v4067
    %v4070 = vsel %vm616, %v4064, 0.0
    %4072 = vrot.lane.b32.xlu0 %v4070, 96
    %v4073 = vpop.permute.xlu0 %4072
    %4075 = vst.msk [vmem:[%s627] sm:$0xff] %vm530, %v4073
    %4077 = vrot.lane.b32.xlu0 %v4019, 64
    %v4078 = vpop.permute.xlu0 %4077
    %4081 = vrot.lane.b32.xlu0 %v4069, 96
    %v4082 = vpop.permute.xlu0 %4081
    %v4084 = vsel %vm480, %v4078, %v4082
    %v4086 = vsel %vm208, %v4084, 0
    %4088 = vmatpush.msra.mxu0 0.0
    %4089 = vmatpush.msra.mxu0 0.0
    %4090 = vmatpush.msra.mxu0 0.0
    %4091 = vmatpush.msra.mxu0 0.0
    %4092 = vmatpush.msra.mxu0 0.0
    %4093 = vmatpush.msra.mxu0 0.0
    %4094 = vmatpush.msra.mxu0 0.0
    %4095 = vmatpush.msra.mxu0 0.0
    %4096 = vmatpush.msra.mxu0 %v2430
    %4097 = vmatpush.msra.mxu0 %v2428
    %4098 = vmatpush.msra.mxu0 %v2426
    %4099 = vmatpush.msra.mxu0 %v2424
    %4100 = vmatpush.msra.mxu0 %v2422
    %4101 = vmatpush.msra.mxu0 %v2420
    %4102 = vmatpush.msra.mxu0 %v2418
    %4103 = vmatpush.msra.mxu0 %v2416
    %4104 = vmatmul.f32.gmra.mxu0 %v4086
    %v4105 = vpop.f32.mrf.mxu0
    %v4106 = vadd.f32 0.0, %v4105
    %4107 = vdwg.mxu0
    %4108 = vmatpush.msra.mxu0 0.0
    %4109 = vmatpush.msra.mxu0 0.0
    %4110 = vmatpush.msra.mxu0 0.0
    %4111 = vmatpush.msra.mxu0 0.0
    %4112 = vmatpush.msra.mxu0 0.0
    %4113 = vmatpush.msra.mxu0 0.0
    %4114 = vmatpush.msra.mxu0 0.0
    %4115 = vmatpush.msra.mxu0 0.0
    %4116 = vmatpush.msra.mxu0 %v2431
    %4117 = vmatpush.msra.mxu0 %v2429
    %4118 = vmatpush.msra.mxu0 %v2427
    %4119 = vmatpush.msra.mxu0 %v2425
    %4120 = vmatpush.msra.mxu0 %v2423
    %4121 = vmatpush.msra.mxu0 %v2421
    %4122 = vmatpush.msra.mxu0 %v2419
    %4123 = vmatpush.msra.mxu0 %v2417
    %4124 = vmatmul.f32.gmra.mxu0 %v4086
    %v4125 = vpop.f32.mrf.mxu0
    %v4126 = vadd.f32 0.0, %v4125
    %4127 = vdwg.mxu0
    %v4128 = vld [vmem:[%s482] sm:$0xff]
    %v4129 = vadd.f32 %v4128, %v4106
    %v4130 = vxor.u32 %v4129, 2147483648
    %v4131 = vmul.f32 %v4130, 1.442695
    %v4132 = vpow.pop %v4131
    %v4133 = vadd.f32 %v4132, 1.0
    %v4134 = vrcp.pop %v4133
    %v4135 = vmul.f32 %v4133, %v4134
    %v4136 = vsub.f32 1.0, %v4135
    %v4137 = vmul.f32 %v4134, %v4136
    %v4138 = vadd.f32 %v4134, %v4137
    %vm4139 = vweird.f32 %v4133
    %vm4140 = vweird.f32 %v4134
    %vm4141 = vmor %vm4139, %vm4140
    %v4142 = vsel %vm4141, %v4134, %v4138
    %v4143 = vand.u32 2147483647, %v4133
    %vm4144 = vcmp.eq.f32.partialorder %v4143, 8.507059e+37
    %v4145 = vand.u32 %v4133, 2147483648
    %v4146 = vor.u32 1.1754944e-38, %v4145
    %v4147 = vsel %vm4144, %v4146, %v4142
    %v4148 = vmul.f32 1.0, %v4147
    %v4149 = vtanh.pop %v4129
    %v4150 = vmul.f32 %v4148, %v4015
    %4152 = vrot.lane.b32.xlu0 %v4149, 32
    %v4153 = vpop.permute.xlu0 %4152
    %v4155 = vmul.f32 %v4148, %v4153
    %4157 = vrot.lane.b32.xlu0 %v4155, 32
    %v4158 = vpop.permute.xlu0 %4157
    %v4160 = vadd.f32 %v4150, %v4158
    %v4161 = vtanh.pop %v4160
    %4163 = vrot.lane.b32.xlu0 %v4161, 32
    %v4164 = vpop.permute.xlu0 %4163
    %v4166 = vmul.f32 %v4148, %v4164
    %v4167 = vsel %vm522, %v4166, 0.0
    %4169 = vrot.lane.b32.xlu0 %v4167, 64
    %v4170 = vpop.permute.xlu0 %4169
    %4172 = vst.msk [vmem:[%s529] sm:$0xff] %vm480, %v4170
    %v4173 = vld [vmem:[#allocation2 + $0x8] sm:$0xff]
    %v4174 = vadd.f32 %v4173, %v4126
    %v4175 = vxor.u32 %v4174, 2147483648
    %v4176 = vmul.f32 %v4175, 1.442695
    %v4177 = vpow.pop %v4176
    %v4178 = vadd.f32 %v4177, 1.0
    %v4179 = vrcp.pop %v4178
    %v4180 = vmul.f32 %v4178, %v4179
    %v4181 = vsub.f32 1.0, %v4180
    %v4182 = vmul.f32 %v4179, %v4181
    %v4183 = vadd.f32 %v4179, %v4182
    %vm4184 = vweird.f32 %v4178
    %vm4185 = vweird.f32 %v4179
    %vm4186 = vmor %vm4184, %vm4185
    %v4187 = vsel %vm4186, %v4179, %v4183
    %v4188 = vand.u32 2147483647, %v4178
    %vm4189 = vcmp.eq.f32.partialorder %v4188, 8.507059e+37
    %v4190 = vand.u32 %v4178, 2147483648
    %v4191 = vor.u32 1.1754944e-38, %v4190
    %v4192 = vsel %vm4189, %v4191, %v4187
    %v4193 = vmul.f32 1.0, %v4192
    %v4194 = vtanh.pop %v4174
    %v4195 = vmul.f32 %v4193, %v4065
    %4197 = vrot.lane.b32.xlu0 %v4194, 32
    %v4198 = vpop.permute.xlu0 %4197
    %v4200 = vmul.f32 %v4193, %v4198
    %4202 = vrot.lane.b32.xlu0 %v4200, 32
    %v4203 = vpop.permute.xlu0 %4202
    %v4205 = vadd.f32 %v4195, %v4203
    %v4206 = vtanh.pop %v4205
    %4208 = vrot.lane.b32.xlu0 %v4206, 32
    %v4209 = vpop.permute.xlu0 %4208
    %v4211 = vmul.f32 %v4193, %v4209
    %v4212 = vsel %vm473, %v4211, 0.0
    %4214 = vrot.lane.b32.xlu0 %v4212, 96
    %v4215 = vpop.permute.xlu0 %4214
    %4217 = vst.msk [vmem:[#allocation3] sm:$0xff] %vm530, %v4215
    %v4218 = vld [vmem:[#allocation3] sm:$0xff]
    %v4219 = vld [vmem:[#allocation3 + $0x8] sm:$0xff]
    %v4220 = vld [vmem:[#allocation3 + $0x10] sm:$0xff]
    %v4221 = vld [vmem:[#allocation3 + $0x18] sm:$0xff]
    %v4222 = vld [vmem:[#allocation3 + $0x20] sm:$0xff]
    %v4223 = vld [vmem:[#allocation3 + $0x28] sm:$0xff]
    %v4224 = vld [vmem:[#allocation3 + $0x30] sm:$0xff]
    %v4225 = vld [vmem:[#allocation3 + $0x38] sm:$0xff]
    %v4226 = vld [vmem:[#allocation3 + $0x40] sm:$0xff]
    %v4227 = vld [vmem:[#allocation3 + $0x48] sm:$0xff]
    %v4228 = vld [vmem:[#allocation3 + $0x50] sm:$0xff]
    %v4229 = vld [vmem:[#allocation3 + $0x58] sm:$0xff]
    %v4230 = vld [vmem:[#allocation13] sm:$0xff]
    %v4231 = vld [vmem:[#allocation13 + $0x8] sm:$0xff]
    %v4232 = vld [vmem:[#allocation13 + $0x10] sm:$0xff]
    %v4233 = vld [vmem:[#allocation13 + $0x18] sm:$0xff]
    %v4234 = vld [vmem:[#allocation13 + $0x20] sm:$0xff]
    %v4235 = vld [vmem:[#allocation13 + $0x28] sm:$0xff]
    %v4236 = vld [vmem:[#allocation13 + $0x30] sm:$0xff]
    %v4237 = vld [vmem:[#allocation13 + $0x38] sm:$0xff]
    %v4238 = vld [vmem:[#allocation13 + $0x40] sm:$0xff]
    %v4239 = vld [vmem:[#allocation13 + $0x48] sm:$0xff]
    %v4240 = vld [vmem:[#allocation13 + $0x50] sm:$0xff]
    %v4241 = vld [vmem:[#allocation13 + $0x58] sm:$0xff]
    %v4242 = vld [vmem:[#allocation13 + $0x60] sm:$0xff]
    %v4243 = vld [vmem:[#allocation13 + $0x68] sm:$0xff]
    %v4244 = vld [vmem:[#allocation13 + $0x70] sm:$0xff]
    %v4245 = vld [vmem:[#allocation13 + $0x78] sm:$0xff]
    %v4246 = vld [vmem:[%s10] sm:$0x3]
    %v4248 = vperm.slane %v4246, 0
    %v4249 = vperm.slane %v4246, 1
    %v4253 = vsel %vm208, %v4218, 0
    %v4256 = vsel %vm208, %v4219, 0
    %v4259 = vsel %vm208, %v4220, 0
    %v4262 = vsel %vm208, %v4221, 0
    %v4265 = vsel %vm208, %v4222, 0
    %v4268 = vsel %vm208, %v4223, 0
    %v4271 = vsel %vm208, %v4224, 0
    %v4274 = vsel %vm208, %v4225, 0
    %v4277 = vsel %vm208, %v4226, 0
    %v4280 = vsel %vm208, %v4227, 0
    %v4283 = vsel %vm208, %v4228, 0
    %v4286 = vsel %vm208, %v4229, 0
    %4288 = vmatpush.msra.mxu0 0.0
    %4289 = vmatpush.msra.mxu0 0.0
    %4290 = vmatpush.msra.mxu0 0.0
    %4291 = vmatpush.msra.mxu0 0.0
    %4292 = vmatpush.msra.mxu0 0.0
    %4293 = vmatpush.msra.mxu0 0.0
    %4294 = vmatpush.msra.mxu0 0.0
    %4295 = vmatpush.msra.mxu0 0.0
    %4296 = vmatpush.msra.mxu0 %v4244
    %4297 = vmatpush.msra.mxu0 %v4242
    %4298 = vmatpush.msra.mxu0 %v4240
    %4299 = vmatpush.msra.mxu0 %v4238
    %4300 = vmatpush.msra.mxu0 %v4236
    %4301 = vmatpush.msra.mxu0 %v4234
    %4302 = vmatpush.msra.mxu0 %v4232
    %4303 = vmatpush.msra.mxu0 %v4230
    %4304 = vmatmul.f32.gmra.mxu0 %v4253
    %v4305 = vpop.f32.mrf.mxu0
    %v4306 = vadd.f32 %v4248, %v4305
    %4307 = vmatmul.f32.gmra.mxu0 %v4256
    %v4308 = vpop.f32.mrf.mxu0
    %v4309 = vadd.f32 %v4248, %v4308
    %4310 = vmatmul.f32.gmra.mxu0 %v4259
    %v4311 = vpop.f32.mrf.mxu0
    %v4312 = vadd.f32 %v4248, %v4311
    %4313 = vmatmul.f32.gmra.mxu0 %v4262
    %v4314 = vpop.f32.mrf.mxu0
    %v4315 = vadd.f32 %v4248, %v4314
    %4316 = vmatmul.f32.gmra.mxu0 %v4265
    %v4317 = vpop.f32.mrf.mxu0
    %v4318 = vadd.f32 %v4248, %v4317
    %4319 = vmatmul.f32.gmra.mxu0 %v4268
    %v4320 = vpop.f32.mrf.mxu0
    %v4321 = vadd.f32 %v4248, %v4320
    %4322 = vmatmul.f32.gmra.mxu0 %v4271
    %v4323 = vpop.f32.mrf.mxu0
    %v4324 = vadd.f32 %v4248, %v4323
    %4325 = vmatmul.f32.gmra.mxu0 %v4274
    %v4326 = vpop.f32.mrf.mxu0
    %v4327 = vadd.f32 %v4248, %v4326
    %4328 = vmatmul.f32.gmra.mxu0 %v4277
    %v4329 = vpop.f32.mrf.mxu0
    %v4330 = vadd.f32 %v4248, %v4329
    %4331 = vmatmul.f32.gmra.mxu0 %v4280
    %v4332 = vpop.f32.mrf.mxu0
    %v4333 = vadd.f32 %v4248, %v4332
    %4334 = vmatmul.f32.gmra.mxu0 %v4283
    %v4335 = vpop.f32.mrf.mxu0
    %v4336 = vadd.f32 %v4248, %v4335
    %4337 = vmatmul.f32.gmra.mxu0 %v4286
    %v4338 = vpop.f32.mrf.mxu0
    %v4339 = vadd.f32 %v4248, %v4338
    %4340 = vdwg.mxu0
    %4341 = vmatpush.msra.mxu0 0.0
    %4342 = vmatpush.msra.mxu0 0.0
    %4343 = vmatpush.msra.mxu0 0.0
    %4344 = vmatpush.msra.mxu0 0.0
    %4345 = vmatpush.msra.mxu0 0.0
    %4346 = vmatpush.msra.mxu0 0.0
    %4347 = vmatpush.msra.mxu0 0.0
    %4348 = vmatpush.msra.mxu0 0.0
    %4349 = vmatpush.msra.mxu0 %v4245
    %4350 = vmatpush.msra.mxu0 %v4243
    %4351 = vmatpush.msra.mxu0 %v4241
    %4352 = vmatpush.msra.mxu0 %v4239
    %4353 = vmatpush.msra.mxu0 %v4237
    %4354 = vmatpush.msra.mxu0 %v4235
    %4355 = vmatpush.msra.mxu0 %v4233
    %4356 = vmatpush.msra.mxu0 %v4231
    %4357 = vmatmul.f32.gmra.mxu0 %v4253
    %v4358 = vpop.f32.mrf.mxu0
    %v4359 = vadd.f32 %v4249, %v4358
    %4360 = vmatmul.f32.gmra.mxu0 %v4256
    %v4361 = vpop.f32.mrf.mxu0
    %v4362 = vadd.f32 %v4249, %v4361
    %4363 = vmatmul.f32.gmra.mxu0 %v4259
    %v4364 = vpop.f32.mrf.mxu0
    %v4365 = vadd.f32 %v4249, %v4364
    %4366 = vmatmul.f32.gmra.mxu0 %v4262
    %v4367 = vpop.f32.mrf.mxu0
    %v4368 = vadd.f32 %v4249, %v4367
    %4369 = vmatmul.f32.gmra.mxu0 %v4265
    %v4370 = vpop.f32.mrf.mxu0
    %v4371 = vadd.f32 %v4249, %v4370
    %4372 = vmatmul.f32.gmra.mxu0 %v4268
    %v4373 = vpop.f32.mrf.mxu0
    %v4374 = vadd.f32 %v4249, %v4373
    %4375 = vmatmul.f32.gmra.mxu0 %v4271
    %v4376 = vpop.f32.mrf.mxu0
    %v4377 = vadd.f32 %v4249, %v4376
    %4378 = vmatmul.f32.gmra.mxu0 %v4274
    %v4379 = vpop.f32.mrf.mxu0
    %v4380 = vadd.f32 %v4249, %v4379
    %4381 = vmatmul.f32.gmra.mxu0 %v4277
    %v4382 = vpop.f32.mrf.mxu0
    %v4383 = vadd.f32 %v4249, %v4382
    %4384 = vmatmul.f32.gmra.mxu0 %v4280
    %v4385 = vpop.f32.mrf.mxu0
    %v4386 = vadd.f32 %v4249, %v4385
    %4387 = vmatmul.f32.gmra.mxu0 %v4283
    %v4388 = vpop.f32.mrf.mxu0
    %v4389 = vadd.f32 %v4249, %v4388
    %4390 = vmatmul.f32.gmra.mxu0 %v4286
    %v4391 = vpop.f32.mrf.mxu0
    %v4392 = vadd.f32 %v4249, %v4391
    %4393 = vdwg.mxu0
    %4394 = vst [vmem:[#allocation2] sm:$0xff] %v4306
    %4395 = vst [vmem:[#allocation2 + $0x8] sm:$0xff] %v4359
    %4396 = vst [vmem:[#allocation2 + $0x10] sm:$0xff] %v4309
    %4397 = vst [vmem:[#allocation2 + $0x18] sm:$0xff] %v4362
    %4398 = vst [vmem:[#allocation2 + $0x20] sm:$0xff] %v4312
    %4399 = vst [vmem:[#allocation2 + $0x28] sm:$0xff] %v4365
    %4400 = vst [vmem:[#allocation2 + $0x30] sm:$0xff] %v4315
    %4401 = vst [vmem:[#allocation2 + $0x38] sm:$0xff] %v4368
    %4402 = vst [vmem:[#allocation2 + $0x40] sm:$0xff] %v4318
    %4403 = vst [vmem:[#allocation2 + $0x48] sm:$0xff] %v4371
    %4404 = vst [vmem:[#allocation2 + $0x50] sm:$0xff] %v4321
    %4405 = vst [vmem:[#allocation2 + $0x58] sm:$0xff] %v4374
    %4406 = vst [vmem:[#allocation2 + $0x60] sm:$0xff] %v4324
    %4407 = vst [vmem:[#allocation2 + $0x68] sm:$0xff] %v4377
    %4408 = vst [vmem:[#allocation2 + $0x70] sm:$0xff] %v4327
    %4409 = vst [vmem:[#allocation2 + $0x78] sm:$0xff] %v4380
    %4410 = vst [vmem:[#allocation2 + $0x80] sm:$0xff] %v4330
    %4411 = vst [vmem:[#allocation2 + $0x88] sm:$0xff] %v4383
    %4412 = vst [vmem:[#allocation2 + $0x90] sm:$0xff] %v4333
    %4413 = vst [vmem:[#allocation2 + $0x98] sm:$0xff] %v4386
    %4414 = vst [vmem:[#allocation2 + $0xa0] sm:$0xff] %v4336
    %4415 = vst [vmem:[#allocation2 + $0xa8] sm:$0xff] %v4389
    %4416 = vst [vmem:[#allocation2 + $0xb0] sm:$0xff] %v4339
    %4417 = vst [vmem:[#allocation2 + $0xb8] sm:$0xff] %v4392
    %v4418 = vld [vmem:[#allocation15] sm:$0xff]
    %v4419 = vld [vmem:[#allocation15 + $0x8] sm:$0xff]
    %v4420 = vld [vmem:[#allocation15 + $0x10] sm:$0xff]
    %v4421 = vld [vmem:[#allocation15 + $0x18] sm:$0xff]
    %v4422 = vld [vmem:[#allocation15 + $0x20] sm:$0xff]
    %v4423 = vld [vmem:[#allocation15 + $0x28] sm:$0xff]
    %v4424 = vld [vmem:[#allocation15 + $0x30] sm:$0xff]
    %v4425 = vld [vmem:[#allocation15 + $0x38] sm:$0xff]
    %v4426 = vld [vmem:[#allocation15 + $0x40] sm:$0xff]
    %v4427 = vld [vmem:[#allocation15 + $0x48] sm:$0xff]
    %v4428 = vld [vmem:[#allocation15 + $0x50] sm:$0xff]
    %v4429 = vld [vmem:[#allocation15 + $0x58] sm:$0xff]
    %v4430 = vld [vmem:[#allocation15 + $0x60] sm:$0xff]
    %v4431 = vld [vmem:[#allocation15 + $0x68] sm:$0xff]
    %v4432 = vld [vmem:[#allocation15 + $0x70] sm:$0xff]
    %v4433 = vld [vmem:[#allocation15 + $0x78] sm:$0xff]
    %4434 = vmatpush.msra.mxu0 0.0
    %4435 = vmatpush.msra.mxu0 0.0
    %4436 = vmatpush.msra.mxu0 0.0
    %4437 = vmatpush.msra.mxu0 0.0
    %4438 = vmatpush.msra.mxu0 0.0
    %4439 = vmatpush.msra.mxu0 0.0
    %4440 = vmatpush.msra.mxu0 0.0
    %4441 = vmatpush.msra.mxu0 0.0
    %4442 = vmatpush.msra.mxu0 %v4432
    %4443 = vmatpush.msra.mxu0 %v4430
    %4444 = vmatpush.msra.mxu0 %v4428
    %4445 = vmatpush.msra.mxu0 %v4426
    %4446 = vmatpush.msra.mxu0 %v4424
    %4447 = vmatpush.msra.mxu0 %v4422
    %4448 = vmatpush.msra.mxu0 %v4420
    %4449 = vmatpush.msra.mxu0 %v4418
    %4450 = vmatmul.f32.gmra.mxu0 %v392
    %v4451 = vpop.f32.mrf.mxu0
    %v4452 = vadd.f32 0.0, %v4451
    %4453 = vdwg.mxu0
    %4454 = vmatpush.msra.mxu0 0.0
    %4455 = vmatpush.msra.mxu0 0.0
    %4456 = vmatpush.msra.mxu0 0.0
    %4457 = vmatpush.msra.mxu0 0.0
    %4458 = vmatpush.msra.mxu0 0.0
    %4459 = vmatpush.msra.mxu0 0.0
    %4460 = vmatpush.msra.mxu0 0.0
    %4461 = vmatpush.msra.mxu0 0.0
    %4462 = vmatpush.msra.mxu0 %v4433
    %4463 = vmatpush.msra.mxu0 %v4431
    %4464 = vmatpush.msra.mxu0 %v4429
    %4465 = vmatpush.msra.mxu0 %v4427
    %4466 = vmatpush.msra.mxu0 %v4425
    %4467 = vmatpush.msra.mxu0 %v4423
    %4468 = vmatpush.msra.mxu0 %v4421
    %4469 = vmatpush.msra.mxu0 %v4419
    %4470 = vmatmul.f32.gmra.mxu0 %v392
    %v4471 = vpop.f32.mrf.mxu0
    %v4472 = vadd.f32 0.0, %v4471
    %4473 = vdwg.mxu0
    %v4474 = vld [vmem:[#allocation2] sm:$0xff]
    %v4475 = vadd.f32 %v4474, %v4452
    %v4476 = vxor.u32 %v4475, 2147483648
    %v4477 = vmul.f32 %v4476, 1.442695
    %v4478 = vpow.pop %v4477
    %v4479 = vadd.f32 %v4478, 1.0
    %v4480 = vrcp.pop %v4479
    %v4481 = vmul.f32 %v4479, %v4480
    %v4482 = vsub.f32 1.0, %v4481
    %v4483 = vmul.f32 %v4480, %v4482
    %v4484 = vadd.f32 %v4480, %v4483
    %vm4485 = vweird.f32 %v4479
    %vm4486 = vweird.f32 %v4480
    %vm4487 = vmor %vm4485, %vm4486
    %v4488 = vsel %vm4487, %v4480, %v4484
    %v4489 = vand.u32 2147483647, %v4479
    %vm4490 = vcmp.eq.f32.partialorder %v4489, 8.507059e+37
    %v4491 = vand.u32 %v4479, 2147483648
    %v4492 = vor.u32 1.1754944e-38, %v4491
    %v4493 = vsel %vm4490, %v4492, %v4488
    %v4494 = vmul.f32 1.0, %v4493
    %v4495 = vtanh.pop %v4475
    %v4496 = vmul.f32 %v4494, 0.0
    %4498 = vrot.lane.b32.xlu0 %v4495, 32
    %v4499 = vpop.permute.xlu0 %4498
    %v4501 = vmul.f32 %v4494, %v4499
    %4503 = vrot.lane.b32.xlu0 %v4501, 32
    %v4504 = vpop.permute.xlu0 %4503
    %v4506 = vadd.f32 %v4496, %v4504
    %v4507 = vtanh.pop %v4506
    %4509 = vrot.lane.b32.xlu0 %v4507, 32
    %v4510 = vpop.permute.xlu0 %4509
    %v4512 = vmul.f32 %v4494, %v4510
    %v4513 = vsel %vm473, %v4506, 0.0
    %v4514 = vsel %vm473, %v4512, 0.0
    %4516 = vrot.lane.b32.xlu0 %v4514, 64
    %v4517 = vpop.permute.xlu0 %4516
    %4519 = vst.msk [vmem:[#allocation3] sm:$0xff] %vm480, %v4517
    %v4520 = vld [vmem:[%s482 + $0x8] sm:$0xff]
    %v4521 = vadd.f32 %v4520, %v4472
    %v4522 = vxor.u32 %v4521, 2147483648
    %v4523 = vmul.f32 %v4522, 1.442695
    %v4524 = vpow.pop %v4523
    %v4525 = vadd.f32 %v4524, 1.0
    %v4526 = vrcp.pop %v4525
    %v4527 = vmul.f32 %v4525, %v4526
    %v4528 = vsub.f32 1.0, %v4527
    %v4529 = vmul.f32 %v4526, %v4528
    %v4530 = vadd.f32 %v4526, %v4529
    %vm4531 = vweird.f32 %v4525
    %vm4532 = vweird.f32 %v4526
    %vm4533 = vmor %vm4531, %vm4532
    %v4534 = vsel %vm4533, %v4526, %v4530
    %v4535 = vand.u32 2147483647, %v4525
    %vm4536 = vcmp.eq.f32.partialorder %v4535, 8.507059e+37
    %v4537 = vand.u32 %v4525, 2147483648
    %v4538 = vor.u32 1.1754944e-38, %v4537
    %v4539 = vsel %vm4536, %v4538, %v4534
    %v4540 = vmul.f32 1.0, %v4539
    %v4541 = vtanh.pop %v4521
    %v4542 = vmul.f32 %v4540, 0.0
    %4544 = vrot.lane.b32.xlu0 %v4541, 32
    %v4545 = vpop.permute.xlu0 %4544
    %v4547 = vmul.f32 %v4540, %v4545
    %4549 = vrot.lane.b32.xlu0 %v4547, 32
    %v4550 = vpop.permute.xlu0 %4549
    %v4552 = vadd.f32 %v4542, %v4550
    %v4553 = vtanh.pop %v4552
    %4555 = vrot.lane.b32.xlu0 %v4553, 32
    %v4556 = vpop.permute.xlu0 %4555
    %v4558 = vmul.f32 %v4540, %v4556
    %v4559 = vsel %vm522, %v4552, 0.0
    %v4560 = vsel %vm522, %v4558, 0.0
    %4562 = vrot.lane.b32.xlu0 %v4560, 96
    %v4563 = vpop.permute.xlu0 %4562
    %4565 = vst.msk [vmem:[%s529] sm:$0xff] %vm530, %v4563
    %v4566 = vsel %vm480, %v4517, %v4563
    %v4568 = vsel %vm208, %v4566, 0
    %4570 = vmatpush.msra.mxu0 0.0
    %4571 = vmatpush.msra.mxu0 0.0
    %4572 = vmatpush.msra.mxu0 0.0
    %4573 = vmatpush.msra.mxu0 0.0
    %4574 = vmatpush.msra.mxu0 0.0
    %4575 = vmatpush.msra.mxu0 0.0
    %4576 = vmatpush.msra.mxu0 0.0
    %4577 = vmatpush.msra.mxu0 0.0
    %4578 = vmatpush.msra.mxu0 %v4432
    %4579 = vmatpush.msra.mxu0 %v4430
    %4580 = vmatpush.msra.mxu0 %v4428
    %4581 = vmatpush.msra.mxu0 %v4426
    %4582 = vmatpush.msra.mxu0 %v4424
    %4583 = vmatpush.msra.mxu0 %v4422
    %4584 = vmatpush.msra.mxu0 %v4420
    %4585 = vmatpush.msra.mxu0 %v4418
    %4586 = vmatmul.f32.gmra.mxu0 %v4568
    %v4587 = vpop.f32.mrf.mxu0
    %v4588 = vadd.f32 0.0, %v4587
    %4589 = vdwg.mxu0
    %4590 = vmatpush.msra.mxu0 0.0
    %4591 = vmatpush.msra.mxu0 0.0
    %4592 = vmatpush.msra.mxu0 0.0
    %4593 = vmatpush.msra.mxu0 0.0
    %4594 = vmatpush.msra.mxu0 0.0
    %4595 = vmatpush.msra.mxu0 0.0
    %4596 = vmatpush.msra.mxu0 0.0
    %4597 = vmatpush.msra.mxu0 0.0
    %4598 = vmatpush.msra.mxu0 %v4433
    %4599 = vmatpush.msra.mxu0 %v4431
    %4600 = vmatpush.msra.mxu0 %v4429
    %4601 = vmatpush.msra.mxu0 %v4427
    %4602 = vmatpush.msra.mxu0 %v4425
    %4603 = vmatpush.msra.mxu0 %v4423
    %4604 = vmatpush.msra.mxu0 %v4421
    %4605 = vmatpush.msra.mxu0 %v4419
    %4606 = vmatmul.f32.gmra.mxu0 %v4568
    %v4607 = vpop.f32.mrf.mxu0
    %v4608 = vadd.f32 0.0, %v4607
    %4609 = vdwg.mxu0
    %v4610 = vld [vmem:[%s576] sm:$0xff]
    %v4611 = vadd.f32 %v4610, %v4588
    %v4612 = vxor.u32 %v4611, 2147483648
    %v4613 = vmul.f32 %v4612, 1.442695
    %v4614 = vpow.pop %v4613
    %v4615 = vadd.f32 %v4614, 1.0
    %v4616 = vrcp.pop %v4615
    %v4617 = vmul.f32 %v4615, %v4616
    %v4618 = vsub.f32 1.0, %v4617
    %v4619 = vmul.f32 %v4616, %v4618
    %v4620 = vadd.f32 %v4616, %v4619
    %vm4621 = vweird.f32 %v4615
    %vm4622 = vweird.f32 %v4616
    %vm4623 = vmor %vm4621, %vm4622
    %v4624 = vsel %vm4623, %v4616, %v4620
    %v4625 = vand.u32 2147483647, %v4615
    %vm4626 = vcmp.eq.f32.partialorder %v4625, 8.507059e+37
    %v4627 = vand.u32 %v4615, 2147483648
    %v4628 = vor.u32 1.1754944e-38, %v4627
    %v4629 = vsel %vm4626, %v4628, %v4624
    %v4630 = vmul.f32 1.0, %v4629
    %v4631 = vtanh.pop %v4611
    %v4632 = vmul.f32 %v4630, %v4513
    %4634 = vrot.lane.b32.xlu0 %v4631, 32
    %v4635 = vpop.permute.xlu0 %4634
    %v4637 = vmul.f32 %v4630, %v4635
    %4639 = vrot.lane.b32.xlu0 %v4637, 32
    %v4640 = vpop.permute.xlu0 %4639
    %v4642 = vadd.f32 %v4632, %v4640
    %v4643 = vtanh.pop %v4642
    %4645 = vrot.lane.b32.xlu0 %v4643, 32
    %v4646 = vpop.permute.xlu0 %4645
    %v4648 = vmul.f32 %v4630, %v4646
    %v4649 = vsel %vm616, %v4642, %v4513
    %4650 = vrot.lane.b32.xlu0 %v4566, 64
    %v4651 = vpop.permute.xlu0 %4650
    %v4653 = vsel %vm616, %v4648, %v4651
    %v4654 = vsel %vm616, %v4648, 0.0
    %4656 = vrot.lane.b32.xlu0 %v4654, 64
    %v4657 = vpop.permute.xlu0 %4656
    %4659 = vst.msk [vmem:[%s627] sm:$0xff] %vm480, %v4657
    %v4660 = vld [vmem:[%s629 + $0x8] sm:$0xff]
    %v4661 = vadd.f32 %v4660, %v4608
    %v4662 = vxor.u32 %v4661, 2147483648
    %v4663 = vmul.f32 %v4662, 1.442695
    %v4664 = vpow.pop %v4663
    %v4665 = vadd.f32 %v4664, 1.0
    %v4666 = vrcp.pop %v4665
    %v4667 = vmul.f32 %v4665, %v4666
    %v4668 = vsub.f32 1.0, %v4667
    %v4669 = vmul.f32 %v4666, %v4668
    %v4670 = vadd.f32 %v4666, %v4669
    %vm4671 = vweird.f32 %v4665
    %vm4672 = vweird.f32 %v4666
    %vm4673 = vmor %vm4671, %vm4672
    %v4674 = vsel %vm4673, %v4666, %v4670
    %v4675 = vand.u32 2147483647, %v4665
    %vm4676 = vcmp.eq.f32.partialorder %v4675, 8.507059e+37
    %v4677 = vand.u32 %v4665, 2147483648
    %v4678 = vor.u32 1.1754944e-38, %v4677
    %v4679 = vsel %vm4676, %v4678, %v4674
    %v4680 = vmul.f32 1.0, %v4679
    %v4681 = vtanh.pop %v4661
    %v4682 = vmul.f32 %v4680, %v4559
    %4684 = vrot.lane.b32.xlu0 %v4681, 32
    %v4685 = vpop.permute.xlu0 %4684
    %v4687 = vmul.f32 %v4680, %v4685
    %4689 = vrot.lane.b32.xlu0 %v4687, 32
    %v4690 = vpop.permute.xlu0 %4689
    %v4692 = vadd.f32 %v4682, %v4690
    %v4693 = vtanh.pop %v4692
    %4695 = vrot.lane.b32.xlu0 %v4693, 32
    %v4696 = vpop.permute.xlu0 %4695
    %v4698 = vmul.f32 %v4680, %v4696
    %v4699 = vsel %vm669, %v4692, %v4559
    %4700 = vrot.lane.b32.xlu0 %v4566, 32
    %v4701 = vpop.permute.xlu0 %4700
    %v4703 = vsel %vm669, %v4698, %v4701
    %v4704 = vsel %vm669, %v4698, 0.0
    %4706 = vrot.lane.b32.xlu0 %v4704, 96
    %v4707 = vpop.permute.xlu0 %4706
    %4709 = vst.msk [vmem:[%s680] sm:$0xff] %vm530, %v4707
    %4711 = vrot.lane.b32.xlu0 %v4653, 64
    %v4712 = vpop.permute.xlu0 %4711
    %4715 = vrot.lane.b32.xlu0 %v4703, 96
    %v4716 = vpop.permute.xlu0 %4715
    %v4718 = vsel %vm480, %v4712, %v4716
    %v4720 = vsel %vm208, %v4718, 0
    %4722 = vmatpush.msra.mxu0 0.0
    %4723 = vmatpush.msra.mxu0 0.0
    %4724 = vmatpush.msra.mxu0 0.0
    %4725 = vmatpush.msra.mxu0 0.0
    %4726 = vmatpush.msra.mxu0 0.0
    %4727 = vmatpush.msra.mxu0 0.0
    %4728 = vmatpush.msra.mxu0 0.0
    %4729 = vmatpush.msra.mxu0 0.0
    %4730 = vmatpush.msra.mxu0 %v4432
    %4731 = vmatpush.msra.mxu0 %v4430
    %4732 = vmatpush.msra.mxu0 %v4428
    %4733 = vmatpush.msra.mxu0 %v4426
    %4734 = vmatpush.msra.mxu0 %v4424
    %4735 = vmatpush.msra.mxu0 %v4422
    %4736 = vmatpush.msra.mxu0 %v4420
    %4737 = vmatpush.msra.mxu0 %v4418
    %4738 = vmatmul.f32.gmra.mxu0 %v4720
    %v4739 = vpop.f32.mrf.mxu0
    %v4740 = vadd.f32 0.0, %v4739
    %4741 = vdwg.mxu0
    %4742 = vmatpush.msra.mxu0 0.0
    %4743 = vmatpush.msra.mxu0 0.0
    %4744 = vmatpush.msra.mxu0 0.0
    %4745 = vmatpush.msra.mxu0 0.0
    %4746 = vmatpush.msra.mxu0 0.0
    %4747 = vmatpush.msra.mxu0 0.0
    %4748 = vmatpush.msra.mxu0 0.0
    %4749 = vmatpush.msra.mxu0 0.0
    %4750 = vmatpush.msra.mxu0 %v4433
    %4751 = vmatpush.msra.mxu0 %v4431
    %4752 = vmatpush.msra.mxu0 %v4429
    %4753 = vmatpush.msra.mxu0 %v4427
    %4754 = vmatpush.msra.mxu0 %v4425
    %4755 = vmatpush.msra.mxu0 %v4423
    %4756 = vmatpush.msra.mxu0 %v4421
    %4757 = vmatpush.msra.mxu0 %v4419
    %4758 = vmatmul.f32.gmra.mxu0 %v4720
    %v4759 = vpop.f32.mrf.mxu0
    %v4760 = vadd.f32 0.0, %v4759
    %4761 = vdwg.mxu0
    %v4762 = vld [vmem:[%s734] sm:$0xff]
    %v4763 = vadd.f32 %v4762, %v4740
    %v4764 = vxor.u32 %v4763, 2147483648
    %v4765 = vmul.f32 %v4764, 1.442695
    %v4766 = vpow.pop %v4765
    %v4767 = vadd.f32 %v4766, 1.0
    %v4768 = vrcp.pop %v4767
    %v4769 = vmul.f32 %v4767, %v4768
    %v4770 = vsub.f32 1.0, %v4769
    %v4771 = vmul.f32 %v4768, %v4770
    %v4772 = vadd.f32 %v4768, %v4771
    %vm4773 = vweird.f32 %v4767
    %vm4774 = vweird.f32 %v4768
    %vm4775 = vmor %vm4773, %vm4774
    %v4776 = vsel %vm4775, %v4768, %v4772
    %v4777 = vand.u32 2147483647, %v4767
    %vm4778 = vcmp.eq.f32.partialorder %v4777, 8.507059e+37
    %v4779 = vand.u32 %v4767, 2147483648
    %v4780 = vor.u32 1.1754944e-38, %v4779
    %v4781 = vsel %vm4778, %v4780, %v4776
    %v4782 = vmul.f32 1.0, %v4781
    %v4783 = vtanh.pop %v4763
    %v4784 = vmul.f32 %v4782, %v4649
    %4786 = vrot.lane.b32.xlu0 %v4783, 32
    %v4787 = vpop.permute.xlu0 %4786
    %v4789 = vmul.f32 %v4782, %v4787
    %4791 = vrot.lane.b32.xlu0 %v4789, 32
    %v4792 = vpop.permute.xlu0 %4791
    %v4794 = vadd.f32 %v4784, %v4792
    %v4795 = vtanh.pop %v4794
    %4797 = vrot.lane.b32.xlu0 %v4795, 32
    %v4798 = vpop.permute.xlu0 %4797
    %v4800 = vmul.f32 %v4782, %v4798
    %v4801 = vsel %vm774, %v4794, %v4649
    %4802 = vrot.lane.b32.xlu0 %v4718, 64
    %v4803 = vpop.permute.xlu0 %4802
    %v4805 = vsel %vm774, %v4800, %v4803
    %v4806 = vsel %vm774, %v4800, 0.0
    %4808 = vrot.lane.b32.xlu0 %v4806, 64
    %v4809 = vpop.permute.xlu0 %4808
    %4811 = vst.msk [vmem:[%s785] sm:$0xff] %vm480, %v4809
    %v4812 = vld [vmem:[%s787 + $0x8] sm:$0xff]
    %v4813 = vadd.f32 %v4812, %v4760
    %v4814 = vxor.u32 %v4813, 2147483648
    %v4815 = vmul.f32 %v4814, 1.442695
    %v4816 = vpow.pop %v4815
    %v4817 = vadd.f32 %v4816, 1.0
    %v4818 = vrcp.pop %v4817
    %v4819 = vmul.f32 %v4817, %v4818
    %v4820 = vsub.f32 1.0, %v4819
    %v4821 = vmul.f32 %v4818, %v4820
    %v4822 = vadd.f32 %v4818, %v4821
    %vm4823 = vweird.f32 %v4817
    %vm4824 = vweird.f32 %v4818
    %vm4825 = vmor %vm4823, %vm4824
    %v4826 = vsel %vm4825, %v4818, %v4822
    %v4827 = vand.u32 2147483647, %v4817
    %vm4828 = vcmp.eq.f32.partialorder %v4827, 8.507059e+37
    %v4829 = vand.u32 %v4817, 2147483648
    %v4830 = vor.u32 1.1754944e-38, %v4829
    %v4831 = vsel %vm4828, %v4830, %v4826
    %v4832 = vmul.f32 1.0, %v4831
    %v4833 = vtanh.pop %v4813
    %v4834 = vmul.f32 %v4832, %v4699
    %4836 = vrot.lane.b32.xlu0 %v4833, 32
    %v4837 = vpop.permute.xlu0 %4836
    %v4839 = vmul.f32 %v4832, %v4837
    %4841 = vrot.lane.b32.xlu0 %v4839, 32
    %v4842 = vpop.permute.xlu0 %4841
    %v4844 = vadd.f32 %v4834, %v4842
    %v4845 = vtanh.pop %v4844
    %4847 = vrot.lane.b32.xlu0 %v4845, 32
    %v4848 = vpop.permute.xlu0 %4847
    %v4850 = vmul.f32 %v4832, %v4848
    %v4851 = vsel %vm827, %v4844, %v4699
    %4852 = vrot.lane.b32.xlu0 %v4718, 32
    %v4853 = vpop.permute.xlu0 %4852
    %v4855 = vsel %vm827, %v4850, %v4853
    %v4856 = vsel %vm827, %v4850, 0.0
    %4858 = vrot.lane.b32.xlu0 %v4856, 96
    %v4859 = vpop.permute.xlu0 %4858
    %4861 = vst.msk [vmem:[%s838] sm:$0xff] %vm530, %v4859
    %4863 = vrot.lane.b32.xlu0 %v4805, 64
    %v4864 = vpop.permute.xlu0 %4863
    %4867 = vrot.lane.b32.xlu0 %v4855, 96
    %v4868 = vpop.permute.xlu0 %4867
    %v4870 = vsel %vm480, %v4864, %v4868
    %v4872 = vsel %vm208, %v4870, 0
    %4874 = vmatpush.msra.mxu0 0.0
    %4875 = vmatpush.msra.mxu0 0.0
    %4876 = vmatpush.msra.mxu0 0.0
    %4877 = vmatpush.msra.mxu0 0.0
    %4878 = vmatpush.msra.mxu0 0.0
    %4879 = vmatpush.msra.mxu0 0.0
    %4880 = vmatpush.msra.mxu0 0.0
    %4881 = vmatpush.msra.mxu0 0.0
    %4882 = vmatpush.msra.mxu0 %v4432
    %4883 = vmatpush.msra.mxu0 %v4430
    %4884 = vmatpush.msra.mxu0 %v4428
    %4885 = vmatpush.msra.mxu0 %v4426
    %4886 = vmatpush.msra.mxu0 %v4424
    %4887 = vmatpush.msra.mxu0 %v4422
    %4888 = vmatpush.msra.mxu0 %v4420
    %4889 = vmatpush.msra.mxu0 %v4418
    %4890 = vmatmul.f32.gmra.mxu0 %v4872
    %v4891 = vpop.f32.mrf.mxu0
    %v4892 = vadd.f32 0.0, %v4891
    %4893 = vdwg.mxu0
    %4894 = vmatpush.msra.mxu0 0.0
    %4895 = vmatpush.msra.mxu0 0.0
    %4896 = vmatpush.msra.mxu0 0.0
    %4897 = vmatpush.msra.mxu0 0.0
    %4898 = vmatpush.msra.mxu0 0.0
    %4899 = vmatpush.msra.mxu0 0.0
    %4900 = vmatpush.msra.mxu0 0.0
    %4901 = vmatpush.msra.mxu0 0.0
    %4902 = vmatpush.msra.mxu0 %v4433
    %4903 = vmatpush.msra.mxu0 %v4431
    %4904 = vmatpush.msra.mxu0 %v4429
    %4905 = vmatpush.msra.mxu0 %v4427
    %4906 = vmatpush.msra.mxu0 %v4425
    %4907 = vmatpush.msra.mxu0 %v4423
    %4908 = vmatpush.msra.mxu0 %v4421
    %4909 = vmatpush.msra.mxu0 %v4419
    %4910 = vmatmul.f32.gmra.mxu0 %v4872
    %v4911 = vpop.f32.mrf.mxu0
    %v4912 = vadd.f32 0.0, %v4911
    %4913 = vdwg.mxu0
    %v4914 = vld [vmem:[%s892] sm:$0xff]
    %v4915 = vadd.f32 %v4914, %v4892
    %v4916 = vxor.u32 %v4915, 2147483648
    %v4917 = vmul.f32 %v4916, 1.442695
    %v4918 = vpow.pop %v4917
    %v4919 = vadd.f32 %v4918, 1.0
    %v4920 = vrcp.pop %v4919
    %v4921 = vmul.f32 %v4919, %v4920
    %v4922 = vsub.f32 1.0, %v4921
    %v4923 = vmul.f32 %v4920, %v4922
    %v4924 = vadd.f32 %v4920, %v4923
    %vm4925 = vweird.f32 %v4919
    %vm4926 = vweird.f32 %v4920
    %vm4927 = vmor %vm4925, %vm4926
    %v4928 = vsel %vm4927, %v4920, %v4924
    %v4929 = vand.u32 2147483647, %v4919
    %vm4930 = vcmp.eq.f32.partialorder %v4929, 8.507059e+37
    %v4931 = vand.u32 %v4919, 2147483648
    %v4932 = vor.u32 1.1754944e-38, %v4931
    %v4933 = vsel %vm4930, %v4932, %v4928
    %v4934 = vmul.f32 1.0, %v4933
    %v4935 = vtanh.pop %v4915
    %v4936 = vmul.f32 %v4934, %v4801
    %4938 = vrot.lane.b32.xlu0 %v4935, 32
    %v4939 = vpop.permute.xlu0 %4938
    %v4941 = vmul.f32 %v4934, %v4939
    %4943 = vrot.lane.b32.xlu0 %v4941, 32
    %v4944 = vpop.permute.xlu0 %4943
    %v4946 = vadd.f32 %v4936, %v4944
    %v4947 = vtanh.pop %v4946
    %4949 = vrot.lane.b32.xlu0 %v4947, 32
    %v4950 = vpop.permute.xlu0 %4949
    %v4952 = vmul.f32 %v4934, %v4950
    %v4953 = vsel %vm932, %v4946, %v4801
    %4954 = vrot.lane.b32.xlu0 %v4870, 64
    %v4955 = vpop.permute.xlu0 %4954
    %v4957 = vsel %vm932, %v4952, %v4955
    %v4958 = vsel %vm932, %v4952, 0.0
    %4960 = vrot.lane.b32.xlu0 %v4958, 64
    %v4961 = vpop.permute.xlu0 %4960
    %4963 = vst.msk [vmem:[%s943] sm:$0xff] %vm480, %v4961
    %v4964 = vld [vmem:[%s945 + $0x8] sm:$0xff]
    %v4965 = vadd.f32 %v4964, %v4912
    %v4966 = vxor.u32 %v4965, 2147483648
    %v4967 = vmul.f32 %v4966, 1.442695
    %v4968 = vpow.pop %v4967
    %v4969 = vadd.f32 %v4968, 1.0
    %v4970 = vrcp.pop %v4969
    %v4971 = vmul.f32 %v4969, %v4970
    %v4972 = vsub.f32 1.0, %v4971
    %v4973 = vmul.f32 %v4970, %v4972
    %v4974 = vadd.f32 %v4970, %v4973
    %vm4975 = vweird.f32 %v4969
    %vm4976 = vweird.f32 %v4970
    %vm4977 = vmor %vm4975, %vm4976
    %v4978 = vsel %vm4977, %v4970, %v4974
    %v4979 = vand.u32 2147483647, %v4969
    %vm4980 = vcmp.eq.f32.partialorder %v4979, 8.507059e+37
    %v4981 = vand.u32 %v4969, 2147483648
    %v4982 = vor.u32 1.1754944e-38, %v4981
    %v4983 = vsel %vm4980, %v4982, %v4978
    %v4984 = vmul.f32 1.0, %v4983
    %v4985 = vtanh.pop %v4965
    %v4986 = vmul.f32 %v4984, %v4851
    %4988 = vrot.lane.b32.xlu0 %v4985, 32
    %v4989 = vpop.permute.xlu0 %4988
    %v4991 = vmul.f32 %v4984, %v4989
    %4993 = vrot.lane.b32.xlu0 %v4991, 32
    %v4994 = vpop.permute.xlu0 %4993
    %v4996 = vadd.f32 %v4986, %v4994
    %v4997 = vtanh.pop %v4996
    %4999 = vrot.lane.b32.xlu0 %v4997, 32
    %v5000 = vpop.permute.xlu0 %4999
    %v5002 = vmul.f32 %v4984, %v5000
    %v5003 = vsel %vm985, %v4996, %v4851
    %5004 = vrot.lane.b32.xlu0 %v4870, 32
    %v5005 = vpop.permute.xlu0 %5004
    %v5007 = vsel %vm985, %v5002, %v5005
    %v5008 = vsel %vm985, %v5002, 0.0
    %5010 = vrot.lane.b32.xlu0 %v5008, 96
    %v5011 = vpop.permute.xlu0 %5010
    %5013 = vst.msk [vmem:[%s996] sm:$0xff] %vm530, %v5011
    %5015 = vrot.lane.b32.xlu0 %v4957, 64
    %v5016 = vpop.permute.xlu0 %5015
    %5019 = vrot.lane.b32.xlu0 %v5007, 96
    %v5020 = vpop.permute.xlu0 %5019
    %v5022 = vsel %vm480, %v5016, %v5020
    %v5024 = vsel %vm208, %v5022, 0
    %5026 = vmatpush.msra.mxu0 0.0
    %5027 = vmatpush.msra.mxu0 0.0
    %5028 = vmatpush.msra.mxu0 0.0
    %5029 = vmatpush.msra.mxu0 0.0
    %5030 = vmatpush.msra.mxu0 0.0
    %5031 = vmatpush.msra.mxu0 0.0
    %5032 = vmatpush.msra.mxu0 0.0
    %5033 = vmatpush.msra.mxu0 0.0
    %5034 = vmatpush.msra.mxu0 %v4432
    %5035 = vmatpush.msra.mxu0 %v4430
    %5036 = vmatpush.msra.mxu0 %v4428
    %5037 = vmatpush.msra.mxu0 %v4426
    %5038 = vmatpush.msra.mxu0 %v4424
    %5039 = vmatpush.msra.mxu0 %v4422
    %5040 = vmatpush.msra.mxu0 %v4420
    %5041 = vmatpush.msra.mxu0 %v4418
    %5042 = vmatmul.f32.gmra.mxu0 %v5024
    %v5043 = vpop.f32.mrf.mxu0
    %v5044 = vadd.f32 0.0, %v5043
    %5045 = vdwg.mxu0
    %5046 = vmatpush.msra.mxu0 0.0
    %5047 = vmatpush.msra.mxu0 0.0
    %5048 = vmatpush.msra.mxu0 0.0
    %5049 = vmatpush.msra.mxu0 0.0
    %5050 = vmatpush.msra.mxu0 0.0
    %5051 = vmatpush.msra.mxu0 0.0
    %5052 = vmatpush.msra.mxu0 0.0
    %5053 = vmatpush.msra.mxu0 0.0
    %5054 = vmatpush.msra.mxu0 %v4433
    %5055 = vmatpush.msra.mxu0 %v4431
    %5056 = vmatpush.msra.mxu0 %v4429
    %5057 = vmatpush.msra.mxu0 %v4427
    %5058 = vmatpush.msra.mxu0 %v4425
    %5059 = vmatpush.msra.mxu0 %v4423
    %5060 = vmatpush.msra.mxu0 %v4421
    %5061 = vmatpush.msra.mxu0 %v4419
    %5062 = vmatmul.f32.gmra.mxu0 %v5024
    %v5063 = vpop.f32.mrf.mxu0
    %v5064 = vadd.f32 0.0, %v5063
    %5065 = vdwg.mxu0
    %v5066 = vld [vmem:[%s1050] sm:$0xff]
    %v5067 = vadd.f32 %v5066, %v5044
    %v5068 = vxor.u32 %v5067, 2147483648
    %v5069 = vmul.f32 %v5068, 1.442695
    %v5070 = vpow.pop %v5069
    %v5071 = vadd.f32 %v5070, 1.0
    %v5072 = vrcp.pop %v5071
    %v5073 = vmul.f32 %v5071, %v5072
    %v5074 = vsub.f32 1.0, %v5073
    %v5075 = vmul.f32 %v5072, %v5074
    %v5076 = vadd.f32 %v5072, %v5075
    %vm5077 = vweird.f32 %v5071
    %vm5078 = vweird.f32 %v5072
    %vm5079 = vmor %vm5077, %vm5078
    %v5080 = vsel %vm5079, %v5072, %v5076
    %v5081 = vand.u32 2147483647, %v5071
    %vm5082 = vcmp.eq.f32.partialorder %v5081, 8.507059e+37
    %v5083 = vand.u32 %v5071, 2147483648
    %v5084 = vor.u32 1.1754944e-38, %v5083
    %v5085 = vsel %vm5082, %v5084, %v5080
    %v5086 = vmul.f32 1.0, %v5085
    %v5087 = vtanh.pop %v5067
    %v5088 = vmul.f32 %v5086, %v4953
    %5090 = vrot.lane.b32.xlu0 %v5087, 32
    %v5091 = vpop.permute.xlu0 %5090
    %v5093 = vmul.f32 %v5086, %v5091
    %5095 = vrot.lane.b32.xlu0 %v5093, 32
    %v5096 = vpop.permute.xlu0 %5095
    %v5098 = vadd.f32 %v5088, %v5096
    %v5099 = vtanh.pop %v5098
    %5101 = vrot.lane.b32.xlu0 %v5099, 32
    %v5102 = vpop.permute.xlu0 %5101
    %v5104 = vmul.f32 %v5086, %v5102
    %v5105 = vsel %vm1090, %v5098, %v4953
    %5106 = vrot.lane.b32.xlu0 %v5022, 64
    %v5107 = vpop.permute.xlu0 %5106
    %v5109 = vsel %vm1090, %v5104, %v5107
    %v5110 = vsel %vm1090, %v5104, 0.0
    %5112 = vrot.lane.b32.xlu0 %v5110, 64
    %v5113 = vpop.permute.xlu0 %5112
    %5115 = vst.msk [vmem:[%s1101] sm:$0xff] %vm480, %v5113
    %v5116 = vld [vmem:[%s1103 + $0x8] sm:$0xff]
    %v5117 = vadd.f32 %v5116, %v5064
    %v5118 = vxor.u32 %v5117, 2147483648
    %v5119 = vmul.f32 %v5118, 1.442695
    %v5120 = vpow.pop %v5119
    %v5121 = vadd.f32 %v5120, 1.0
    %v5122 = vrcp.pop %v5121
    %v5123 = vmul.f32 %v5121, %v5122
    %v5124 = vsub.f32 1.0, %v5123
    %v5125 = vmul.f32 %v5122, %v5124
    %v5126 = vadd.f32 %v5122, %v5125
    %vm5127 = vweird.f32 %v5121
    %vm5128 = vweird.f32 %v5122
    %vm5129 = vmor %vm5127, %vm5128
    %v5130 = vsel %vm5129, %v5122, %v5126
    %v5131 = vand.u32 2147483647, %v5121
    %vm5132 = vcmp.eq.f32.partialorder %v5131, 8.507059e+37
    %v5133 = vand.u32 %v5121, 2147483648
    %v5134 = vor.u32 1.1754944e-38, %v5133
    %v5135 = vsel %vm5132, %v5134, %v5130
    %v5136 = vmul.f32 1.0, %v5135
    %v5137 = vtanh.pop %v5117
    %v5138 = vmul.f32 %v5136, %v5003
    %5140 = vrot.lane.b32.xlu0 %v5137, 32
    %v5141 = vpop.permute.xlu0 %5140
    %v5143 = vmul.f32 %v5136, %v5141
    %5145 = vrot.lane.b32.xlu0 %v5143, 32
    %v5146 = vpop.permute.xlu0 %5145
    %v5148 = vadd.f32 %v5138, %v5146
    %v5149 = vtanh.pop %v5148
    %5151 = vrot.lane.b32.xlu0 %v5149, 32
    %v5152 = vpop.permute.xlu0 %5151
    %v5154 = vmul.f32 %v5136, %v5152
    %v5155 = vsel %vm1143, %v5148, %v5003
    %5156 = vrot.lane.b32.xlu0 %v5022, 32
    %v5157 = vpop.permute.xlu0 %5156
    %v5159 = vsel %vm1143, %v5154, %v5157
    %v5160 = vsel %vm1143, %v5154, 0.0
    %5162 = vrot.lane.b32.xlu0 %v5160, 96
    %v5163 = vpop.permute.xlu0 %5162
    %5165 = vst.msk [vmem:[%s1154] sm:$0xff] %vm530, %v5163
    %5167 = vrot.lane.b32.xlu0 %v5109, 64
    %v5168 = vpop.permute.xlu0 %5167
    %5171 = vrot.lane.b32.xlu0 %v5159, 96
    %v5172 = vpop.permute.xlu0 %5171
    %v5174 = vsel %vm480, %v5168, %v5172
    %v5176 = vsel %vm208, %v5174, 0
    %5178 = vmatpush.msra.mxu0 0.0
    %5179 = vmatpush.msra.mxu0 0.0
    %5180 = vmatpush.msra.mxu0 0.0
    %5181 = vmatpush.msra.mxu0 0.0
    %5182 = vmatpush.msra.mxu0 0.0
    %5183 = vmatpush.msra.mxu0 0.0
    %5184 = vmatpush.msra.mxu0 0.0
    %5185 = vmatpush.msra.mxu0 0.0
    %5186 = vmatpush.msra.mxu0 %v4432
    %5187 = vmatpush.msra.mxu0 %v4430
    %5188 = vmatpush.msra.mxu0 %v4428
    %5189 = vmatpush.msra.mxu0 %v4426
    %5190 = vmatpush.msra.mxu0 %v4424
    %5191 = vmatpush.msra.mxu0 %v4422
    %5192 = vmatpush.msra.mxu0 %v4420
    %5193 = vmatpush.msra.mxu0 %v4418
    %5194 = vmatmul.f32.gmra.mxu0 %v5176
    %v5195 = vpop.f32.mrf.mxu0
    %v5196 = vadd.f32 0.0, %v5195
    %5197 = vdwg.mxu0
    %5198 = vmatpush.msra.mxu0 0.0
    %5199 = vmatpush.msra.mxu0 0.0
    %5200 = vmatpush.msra.mxu0 0.0
    %5201 = vmatpush.msra.mxu0 0.0
    %5202 = vmatpush.msra.mxu0 0.0
    %5203 = vmatpush.msra.mxu0 0.0
    %5204 = vmatpush.msra.mxu0 0.0
    %5205 = vmatpush.msra.mxu0 0.0
    %5206 = vmatpush.msra.mxu0 %v4433
    %5207 = vmatpush.msra.mxu0 %v4431
    %5208 = vmatpush.msra.mxu0 %v4429
    %5209 = vmatpush.msra.mxu0 %v4427
    %5210 = vmatpush.msra.mxu0 %v4425
    %5211 = vmatpush.msra.mxu0 %v4423
    %5212 = vmatpush.msra.mxu0 %v4421
    %5213 = vmatpush.msra.mxu0 %v4419
    %5214 = vmatmul.f32.gmra.mxu0 %v5176
    %v5215 = vpop.f32.mrf.mxu0
    %v5216 = vadd.f32 0.0, %v5215
    %5217 = vdwg.mxu0
    %v5218 = vld [vmem:[%s1208] sm:$0xff]
    %v5219 = vadd.f32 %v5218, %v5196
    %v5220 = vxor.u32 %v5219, 2147483648
    %v5221 = vmul.f32 %v5220, 1.442695
    %v5222 = vpow.pop %v5221
    %v5223 = vadd.f32 %v5222, 1.0
    %v5224 = vrcp.pop %v5223
    %v5225 = vmul.f32 %v5223, %v5224
    %v5226 = vsub.f32 1.0, %v5225
    %v5227 = vmul.f32 %v5224, %v5226
    %v5228 = vadd.f32 %v5224, %v5227
    %vm5229 = vweird.f32 %v5223
    %vm5230 = vweird.f32 %v5224
    %vm5231 = vmor %vm5229, %vm5230
    %v5232 = vsel %vm5231, %v5224, %v5228
    %v5233 = vand.u32 2147483647, %v5223
    %vm5234 = vcmp.eq.f32.partialorder %v5233, 8.507059e+37
    %v5235 = vand.u32 %v5223, 2147483648
    %v5236 = vor.u32 1.1754944e-38, %v5235
    %v5237 = vsel %vm5234, %v5236, %v5232
    %v5238 = vmul.f32 1.0, %v5237
    %v5239 = vtanh.pop %v5219
    %v5240 = vmul.f32 %v5238, %v5105
    %5242 = vrot.lane.b32.xlu0 %v5239, 32
    %v5243 = vpop.permute.xlu0 %5242
    %v5245 = vmul.f32 %v5238, %v5243
    %5247 = vrot.lane.b32.xlu0 %v5245, 32
    %v5248 = vpop.permute.xlu0 %5247
    %v5250 = vadd.f32 %v5240, %v5248
    %v5251 = vtanh.pop %v5250
    %5253 = vrot.lane.b32.xlu0 %v5251, 32
    %v5254 = vpop.permute.xlu0 %5253
    %v5256 = vmul.f32 %v5238, %v5254
    %v5257 = vsel %vm1248, %v5250, %v5105
    %5258 = vrot.lane.b32.xlu0 %v5174, 64
    %v5259 = vpop.permute.xlu0 %5258
    %v5261 = vsel %vm1248, %v5256, %v5259
    %v5262 = vsel %vm1248, %v5256, 0.0
    %5264 = vrot.lane.b32.xlu0 %v5262, 64
    %v5265 = vpop.permute.xlu0 %5264
    %5267 = vst.msk [vmem:[%s1259] sm:$0xff] %vm480, %v5265
    %v5268 = vld [vmem:[%s1261 + $0x8] sm:$0xff]
    %v5269 = vadd.f32 %v5268, %v5216
    %v5270 = vxor.u32 %v5269, 2147483648
    %v5271 = vmul.f32 %v5270, 1.442695
    %v5272 = vpow.pop %v5271
    %v5273 = vadd.f32 %v5272, 1.0
    %v5274 = vrcp.pop %v5273
    %v5275 = vmul.f32 %v5273, %v5274
    %v5276 = vsub.f32 1.0, %v5275
    %v5277 = vmul.f32 %v5274, %v5276
    %v5278 = vadd.f32 %v5274, %v5277
    %vm5279 = vweird.f32 %v5273
    %vm5280 = vweird.f32 %v5274
    %vm5281 = vmor %vm5279, %vm5280
    %v5282 = vsel %vm5281, %v5274, %v5278
    %v5283 = vand.u32 2147483647, %v5273
    %vm5284 = vcmp.eq.f32.partialorder %v5283, 8.507059e+37
    %v5285 = vand.u32 %v5273, 2147483648
    %v5286 = vor.u32 1.1754944e-38, %v5285
    %v5287 = vsel %vm5284, %v5286, %v5282
    %v5288 = vmul.f32 1.0, %v5287
    %v5289 = vtanh.pop %v5269
    %v5290 = vmul.f32 %v5288, %v5155
    %5292 = vrot.lane.b32.xlu0 %v5289, 32
    %v5293 = vpop.permute.xlu0 %5292
    %v5295 = vmul.f32 %v5288, %v5293
    %5297 = vrot.lane.b32.xlu0 %v5295, 32
    %v5298 = vpop.permute.xlu0 %5297
    %v5300 = vadd.f32 %v5290, %v5298
    %v5301 = vtanh.pop %v5300
    %5303 = vrot.lane.b32.xlu0 %v5301, 32
    %v5304 = vpop.permute.xlu0 %5303
    %v5306 = vmul.f32 %v5288, %v5304
    %v5307 = vsel %vm1301, %v5300, %v5155
    %5308 = vrot.lane.b32.xlu0 %v5174, 32
    %v5309 = vpop.permute.xlu0 %5308
    %v5311 = vsel %vm1301, %v5306, %v5309
    %v5312 = vsel %vm1301, %v5306, 0.0
    %5314 = vrot.lane.b32.xlu0 %v5312, 96
    %v5315 = vpop.permute.xlu0 %5314
    %5317 = vst.msk [vmem:[%s1312] sm:$0xff] %vm530, %v5315
    %5319 = vrot.lane.b32.xlu0 %v5261, 64
    %v5320 = vpop.permute.xlu0 %5319
    %5323 = vrot.lane.b32.xlu0 %v5311, 96
    %v5324 = vpop.permute.xlu0 %5323
    %v5326 = vsel %vm480, %v5320, %v5324
    %v5328 = vsel %vm208, %v5326, 0
    %5330 = vmatpush.msra.mxu0 0.0
    %5331 = vmatpush.msra.mxu0 0.0
    %5332 = vmatpush.msra.mxu0 0.0
    %5333 = vmatpush.msra.mxu0 0.0
    %5334 = vmatpush.msra.mxu0 0.0
    %5335 = vmatpush.msra.mxu0 0.0
    %5336 = vmatpush.msra.mxu0 0.0
    %5337 = vmatpush.msra.mxu0 0.0
    %5338 = vmatpush.msra.mxu0 %v4432
    %5339 = vmatpush.msra.mxu0 %v4430
    %5340 = vmatpush.msra.mxu0 %v4428
    %5341 = vmatpush.msra.mxu0 %v4426
    %5342 = vmatpush.msra.mxu0 %v4424
    %5343 = vmatpush.msra.mxu0 %v4422
    %5344 = vmatpush.msra.mxu0 %v4420
    %5345 = vmatpush.msra.mxu0 %v4418
    %5346 = vmatmul.f32.gmra.mxu0 %v5328
    %v5347 = vpop.f32.mrf.mxu0
    %v5348 = vadd.f32 0.0, %v5347
    %5349 = vdwg.mxu0
    %5350 = vmatpush.msra.mxu0 0.0
    %5351 = vmatpush.msra.mxu0 0.0
    %5352 = vmatpush.msra.mxu0 0.0
    %5353 = vmatpush.msra.mxu0 0.0
    %5354 = vmatpush.msra.mxu0 0.0
    %5355 = vmatpush.msra.mxu0 0.0
    %5356 = vmatpush.msra.mxu0 0.0
    %5357 = vmatpush.msra.mxu0 0.0
    %5358 = vmatpush.msra.mxu0 %v4433
    %5359 = vmatpush.msra.mxu0 %v4431
    %5360 = vmatpush.msra.mxu0 %v4429
    %5361 = vmatpush.msra.mxu0 %v4427
    %5362 = vmatpush.msra.mxu0 %v4425
    %5363 = vmatpush.msra.mxu0 %v4423
    %5364 = vmatpush.msra.mxu0 %v4421
    %5365 = vmatpush.msra.mxu0 %v4419
    %5366 = vmatmul.f32.gmra.mxu0 %v5328
    %v5367 = vpop.f32.mrf.mxu0
    %v5368 = vadd.f32 0.0, %v5367
    %5369 = vdwg.mxu0
    %v5370 = vld [vmem:[%s1261] sm:$0xff]
    %v5371 = vadd.f32 %v5370, %v5348
    %v5372 = vxor.u32 %v5371, 2147483648
    %v5373 = vmul.f32 %v5372, 1.442695
    %v5374 = vpow.pop %v5373
    %v5375 = vadd.f32 %v5374, 1.0
    %v5376 = vrcp.pop %v5375
    %v5377 = vmul.f32 %v5375, %v5376
    %v5378 = vsub.f32 1.0, %v5377
    %v5379 = vmul.f32 %v5376, %v5378
    %v5380 = vadd.f32 %v5376, %v5379
    %vm5381 = vweird.f32 %v5375
    %vm5382 = vweird.f32 %v5376
    %vm5383 = vmor %vm5381, %vm5382
    %v5384 = vsel %vm5383, %v5376, %v5380
    %v5385 = vand.u32 2147483647, %v5375
    %vm5386 = vcmp.eq.f32.partialorder %v5385, 8.507059e+37
    %v5387 = vand.u32 %v5375, 2147483648
    %v5388 = vor.u32 1.1754944e-38, %v5387
    %v5389 = vsel %vm5386, %v5388, %v5384
    %v5390 = vmul.f32 1.0, %v5389
    %v5391 = vtanh.pop %v5371
    %v5392 = vmul.f32 %v5390, %v5257
    %5394 = vrot.lane.b32.xlu0 %v5391, 32
    %v5395 = vpop.permute.xlu0 %5394
    %v5397 = vmul.f32 %v5390, %v5395
    %5399 = vrot.lane.b32.xlu0 %v5397, 32
    %v5400 = vpop.permute.xlu0 %5399
    %v5402 = vadd.f32 %v5392, %v5400
    %v5403 = vtanh.pop %v5402
    %5405 = vrot.lane.b32.xlu0 %v5403, 32
    %v5406 = vpop.permute.xlu0 %5405
    %v5408 = vmul.f32 %v5390, %v5406
    %v5409 = vsel %vm1301, %v5402, %v5257
    %5410 = vrot.lane.b32.xlu0 %v5326, 64
    %v5411 = vpop.permute.xlu0 %5410
    %v5413 = vsel %vm1301, %v5408, %v5411
    %v5414 = vsel %vm1301, %v5408, 0.0
    %5416 = vrot.lane.b32.xlu0 %v5414, 64
    %v5417 = vpop.permute.xlu0 %5416
    %5419 = vst.msk [vmem:[%s1312] sm:$0xff] %vm480, %v5417
    %v5420 = vld [vmem:[%s1208 + $0x8] sm:$0xff]
    %v5421 = vadd.f32 %v5420, %v5368
    %v5422 = vxor.u32 %v5421, 2147483648
    %v5423 = vmul.f32 %v5422, 1.442695
    %v5424 = vpow.pop %v5423
    %v5425 = vadd.f32 %v5424, 1.0
    %v5426 = vrcp.pop %v5425
    %v5427 = vmul.f32 %v5425, %v5426
    %v5428 = vsub.f32 1.0, %v5427
    %v5429 = vmul.f32 %v5426, %v5428
    %v5430 = vadd.f32 %v5426, %v5429
    %vm5431 = vweird.f32 %v5425
    %vm5432 = vweird.f32 %v5426
    %vm5433 = vmor %vm5431, %vm5432
    %v5434 = vsel %vm5433, %v5426, %v5430
    %v5435 = vand.u32 2147483647, %v5425
    %vm5436 = vcmp.eq.f32.partialorder %v5435, 8.507059e+37
    %v5437 = vand.u32 %v5425, 2147483648
    %v5438 = vor.u32 1.1754944e-38, %v5437
    %v5439 = vsel %vm5436, %v5438, %v5434
    %v5440 = vmul.f32 1.0, %v5439
    %v5441 = vtanh.pop %v5421
    %v5442 = vmul.f32 %v5440, %v5307
    %5444 = vrot.lane.b32.xlu0 %v5441, 32
    %v5445 = vpop.permute.xlu0 %5444
    %v5447 = vmul.f32 %v5440, %v5445
    %5449 = vrot.lane.b32.xlu0 %v5447, 32
    %v5450 = vpop.permute.xlu0 %5449
    %v5452 = vadd.f32 %v5442, %v5450
    %v5453 = vtanh.pop %v5452
    %5455 = vrot.lane.b32.xlu0 %v5453, 32
    %v5456 = vpop.permute.xlu0 %5455
    %v5458 = vmul.f32 %v5440, %v5456
    %v5459 = vsel %vm1248, %v5452, %v5307
    %5460 = vrot.lane.b32.xlu0 %v5326, 32
    %v5461 = vpop.permute.xlu0 %5460
    %v5463 = vsel %vm1248, %v5458, %v5461
    %v5464 = vsel %vm1248, %v5458, 0.0
    %5466 = vrot.lane.b32.xlu0 %v5464, 96
    %v5467 = vpop.permute.xlu0 %5466
    %5469 = vst.msk [vmem:[%s1259] sm:$0xff] %vm530, %v5467
    %5471 = vrot.lane.b32.xlu0 %v5413, 64
    %v5472 = vpop.permute.xlu0 %5471
    %5475 = vrot.lane.b32.xlu0 %v5463, 96
    %v5476 = vpop.permute.xlu0 %5475
    %v5478 = vsel %vm480, %v5472, %v5476
    %v5480 = vsel %vm208, %v5478, 0
    %5482 = vmatpush.msra.mxu0 0.0
    %5483 = vmatpush.msra.mxu0 0.0
    %5484 = vmatpush.msra.mxu0 0.0
    %5485 = vmatpush.msra.mxu0 0.0
    %5486 = vmatpush.msra.mxu0 0.0
    %5487 = vmatpush.msra.mxu0 0.0
    %5488 = vmatpush.msra.mxu0 0.0
    %5489 = vmatpush.msra.mxu0 0.0
    %5490 = vmatpush.msra.mxu0 %v4432
    %5491 = vmatpush.msra.mxu0 %v4430
    %5492 = vmatpush.msra.mxu0 %v4428
    %5493 = vmatpush.msra.mxu0 %v4426
    %5494 = vmatpush.msra.mxu0 %v4424
    %5495 = vmatpush.msra.mxu0 %v4422
    %5496 = vmatpush.msra.mxu0 %v4420
    %5497 = vmatpush.msra.mxu0 %v4418
    %5498 = vmatmul.f32.gmra.mxu0 %v5480
    %v5499 = vpop.f32.mrf.mxu0
    %v5500 = vadd.f32 0.0, %v5499
    %5501 = vdwg.mxu0
    %5502 = vmatpush.msra.mxu0 0.0
    %5503 = vmatpush.msra.mxu0 0.0
    %5504 = vmatpush.msra.mxu0 0.0
    %5505 = vmatpush.msra.mxu0 0.0
    %5506 = vmatpush.msra.mxu0 0.0
    %5507 = vmatpush.msra.mxu0 0.0
    %5508 = vmatpush.msra.mxu0 0.0
    %5509 = vmatpush.msra.mxu0 0.0
    %5510 = vmatpush.msra.mxu0 %v4433
    %5511 = vmatpush.msra.mxu0 %v4431
    %5512 = vmatpush.msra.mxu0 %v4429
    %5513 = vmatpush.msra.mxu0 %v4427
    %5514 = vmatpush.msra.mxu0 %v4425
    %5515 = vmatpush.msra.mxu0 %v4423
    %5516 = vmatpush.msra.mxu0 %v4421
    %5517 = vmatpush.msra.mxu0 %v4419
    %5518 = vmatmul.f32.gmra.mxu0 %v5480
    %v5519 = vpop.f32.mrf.mxu0
    %v5520 = vadd.f32 0.0, %v5519
    %5521 = vdwg.mxu0
    %v5522 = vld [vmem:[%s1103] sm:$0xff]
    %v5523 = vadd.f32 %v5522, %v5500
    %v5524 = vxor.u32 %v5523, 2147483648
    %v5525 = vmul.f32 %v5524, 1.442695
    %v5526 = vpow.pop %v5525
    %v5527 = vadd.f32 %v5526, 1.0
    %v5528 = vrcp.pop %v5527
    %v5529 = vmul.f32 %v5527, %v5528
    %v5530 = vsub.f32 1.0, %v5529
    %v5531 = vmul.f32 %v5528, %v5530
    %v5532 = vadd.f32 %v5528, %v5531
    %vm5533 = vweird.f32 %v5527
    %vm5534 = vweird.f32 %v5528
    %vm5535 = vmor %vm5533, %vm5534
    %v5536 = vsel %vm5535, %v5528, %v5532
    %v5537 = vand.u32 2147483647, %v5527
    %vm5538 = vcmp.eq.f32.partialorder %v5537, 8.507059e+37
    %v5539 = vand.u32 %v5527, 2147483648
    %v5540 = vor.u32 1.1754944e-38, %v5539
    %v5541 = vsel %vm5538, %v5540, %v5536
    %v5542 = vmul.f32 1.0, %v5541
    %v5543 = vtanh.pop %v5523
    %v5544 = vmul.f32 %v5542, %v5409
    %5546 = vrot.lane.b32.xlu0 %v5543, 32
    %v5547 = vpop.permute.xlu0 %5546
    %v5549 = vmul.f32 %v5542, %v5547
    %5551 = vrot.lane.b32.xlu0 %v5549, 32
    %v5552 = vpop.permute.xlu0 %5551
    %v5554 = vadd.f32 %v5544, %v5552
    %v5555 = vtanh.pop %v5554
    %5557 = vrot.lane.b32.xlu0 %v5555, 32
    %v5558 = vpop.permute.xlu0 %5557
    %v5560 = vmul.f32 %v5542, %v5558
    %v5561 = vsel %vm1143, %v5554, %v5409
    %5562 = vrot.lane.b32.xlu0 %v5478, 64
    %v5563 = vpop.permute.xlu0 %5562
    %v5565 = vsel %vm1143, %v5560, %v5563
    %v5566 = vsel %vm1143, %v5560, 0.0
    %5568 = vrot.lane.b32.xlu0 %v5566, 64
    %v5569 = vpop.permute.xlu0 %5568
    %5571 = vst.msk [vmem:[%s1154] sm:$0xff] %vm480, %v5569
    %v5572 = vld [vmem:[%s1050 + $0x8] sm:$0xff]
    %v5573 = vadd.f32 %v5572, %v5520
    %v5574 = vxor.u32 %v5573, 2147483648
    %v5575 = vmul.f32 %v5574, 1.442695
    %v5576 = vpow.pop %v5575
    %v5577 = vadd.f32 %v5576, 1.0
    %v5578 = vrcp.pop %v5577
    %v5579 = vmul.f32 %v5577, %v5578
    %v5580 = vsub.f32 1.0, %v5579
    %v5581 = vmul.f32 %v5578, %v5580
    %v5582 = vadd.f32 %v5578, %v5581
    %vm5583 = vweird.f32 %v5577
    %vm5584 = vweird.f32 %v5578
    %vm5585 = vmor %vm5583, %vm5584
    %v5586 = vsel %vm5585, %v5578, %v5582
    %v5587 = vand.u32 2147483647, %v5577
    %vm5588 = vcmp.eq.f32.partialorder %v5587, 8.507059e+37
    %v5589 = vand.u32 %v5577, 2147483648
    %v5590 = vor.u32 1.1754944e-38, %v5589
    %v5591 = vsel %vm5588, %v5590, %v5586
    %v5592 = vmul.f32 1.0, %v5591
    %v5593 = vtanh.pop %v5573
    %v5594 = vmul.f32 %v5592, %v5459
    %5596 = vrot.lane.b32.xlu0 %v5593, 32
    %v5597 = vpop.permute.xlu0 %5596
    %v5599 = vmul.f32 %v5592, %v5597
    %5601 = vrot.lane.b32.xlu0 %v5599, 32
    %v5602 = vpop.permute.xlu0 %5601
    %v5604 = vadd.f32 %v5594, %v5602
    %v5605 = vtanh.pop %v5604
    %5607 = vrot.lane.b32.xlu0 %v5605, 32
    %v5608 = vpop.permute.xlu0 %5607
    %v5610 = vmul.f32 %v5592, %v5608
    %v5611 = vsel %vm1090, %v5604, %v5459
    %5612 = vrot.lane.b32.xlu0 %v5478, 32
    %v5613 = vpop.permute.xlu0 %5612
    %v5615 = vsel %vm1090, %v5610, %v5613
    %v5616 = vsel %vm1090, %v5610, 0.0
    %5618 = vrot.lane.b32.xlu0 %v5616, 96
    %v5619 = vpop.permute.xlu0 %5618
    %5621 = vst.msk [vmem:[%s1101] sm:$0xff] %vm530, %v5619
    %5623 = vrot.lane.b32.xlu0 %v5565, 64
    %v5624 = vpop.permute.xlu0 %5623
    %5627 = vrot.lane.b32.xlu0 %v5615, 96
    %v5628 = vpop.permute.xlu0 %5627
    %v5630 = vsel %vm480, %v5624, %v5628
    %v5632 = vsel %vm208, %v5630, 0
    %5634 = vmatpush.msra.mxu0 0.0
    %5635 = vmatpush.msra.mxu0 0.0
    %5636 = vmatpush.msra.mxu0 0.0
    %5637 = vmatpush.msra.mxu0 0.0
    %5638 = vmatpush.msra.mxu0 0.0
    %5639 = vmatpush.msra.mxu0 0.0
    %5640 = vmatpush.msra.mxu0 0.0
    %5641 = vmatpush.msra.mxu0 0.0
    %5642 = vmatpush.msra.mxu0 %v4432
    %5643 = vmatpush.msra.mxu0 %v4430
    %5644 = vmatpush.msra.mxu0 %v4428
    %5645 = vmatpush.msra.mxu0 %v4426
    %5646 = vmatpush.msra.mxu0 %v4424
    %5647 = vmatpush.msra.mxu0 %v4422
    %5648 = vmatpush.msra.mxu0 %v4420
    %5649 = vmatpush.msra.mxu0 %v4418
    %5650 = vmatmul.f32.gmra.mxu0 %v5632
    %v5651 = vpop.f32.mrf.mxu0
    %v5652 = vadd.f32 0.0, %v5651
    %5653 = vdwg.mxu0
    %5654 = vmatpush.msra.mxu0 0.0
    %5655 = vmatpush.msra.mxu0 0.0
    %5656 = vmatpush.msra.mxu0 0.0
    %5657 = vmatpush.msra.mxu0 0.0
    %5658 = vmatpush.msra.mxu0 0.0
    %5659 = vmatpush.msra.mxu0 0.0
    %5660 = vmatpush.msra.mxu0 0.0
    %5661 = vmatpush.msra.mxu0 0.0
    %5662 = vmatpush.msra.mxu0 %v4433
    %5663 = vmatpush.msra.mxu0 %v4431
    %5664 = vmatpush.msra.mxu0 %v4429
    %5665 = vmatpush.msra.mxu0 %v4427
    %5666 = vmatpush.msra.mxu0 %v4425
    %5667 = vmatpush.msra.mxu0 %v4423
    %5668 = vmatpush.msra.mxu0 %v4421
    %5669 = vmatpush.msra.mxu0 %v4419
    %5670 = vmatmul.f32.gmra.mxu0 %v5632
    %v5671 = vpop.f32.mrf.mxu0
    %v5672 = vadd.f32 0.0, %v5671
    %5673 = vdwg.mxu0
    %v5674 = vld [vmem:[%s945] sm:$0xff]
    %v5675 = vadd.f32 %v5674, %v5652
    %v5676 = vxor.u32 %v5675, 2147483648
    %v5677 = vmul.f32 %v5676, 1.442695
    %v5678 = vpow.pop %v5677
    %v5679 = vadd.f32 %v5678, 1.0
    %v5680 = vrcp.pop %v5679
    %v5681 = vmul.f32 %v5679, %v5680
    %v5682 = vsub.f32 1.0, %v5681
    %v5683 = vmul.f32 %v5680, %v5682
    %v5684 = vadd.f32 %v5680, %v5683
    %vm5685 = vweird.f32 %v5679
    %vm5686 = vweird.f32 %v5680
    %vm5687 = vmor %vm5685, %vm5686
    %v5688 = vsel %vm5687, %v5680, %v5684
    %v5689 = vand.u32 2147483647, %v5679
    %vm5690 = vcmp.eq.f32.partialorder %v5689, 8.507059e+37
    %v5691 = vand.u32 %v5679, 2147483648
    %v5692 = vor.u32 1.1754944e-38, %v5691
    %v5693 = vsel %vm5690, %v5692, %v5688
    %v5694 = vmul.f32 1.0, %v5693
    %v5695 = vtanh.pop %v5675
    %v5696 = vmul.f32 %v5694, %v5561
    %5698 = vrot.lane.b32.xlu0 %v5695, 32
    %v5699 = vpop.permute.xlu0 %5698
    %v5701 = vmul.f32 %v5694, %v5699
    %5703 = vrot.lane.b32.xlu0 %v5701, 32
    %v5704 = vpop.permute.xlu0 %5703
    %v5706 = vadd.f32 %v5696, %v5704
    %v5707 = vtanh.pop %v5706
    %5709 = vrot.lane.b32.xlu0 %v5707, 32
    %v5710 = vpop.permute.xlu0 %5709
    %v5712 = vmul.f32 %v5694, %v5710
    %v5713 = vsel %vm985, %v5706, %v5561
    %5714 = vrot.lane.b32.xlu0 %v5630, 64
    %v5715 = vpop.permute.xlu0 %5714
    %v5717 = vsel %vm985, %v5712, %v5715
    %v5718 = vsel %vm985, %v5712, 0.0
    %5720 = vrot.lane.b32.xlu0 %v5718, 64
    %v5721 = vpop.permute.xlu0 %5720
    %5723 = vst.msk [vmem:[%s996] sm:$0xff] %vm480, %v5721
    %v5724 = vld [vmem:[%s892 + $0x8] sm:$0xff]
    %v5725 = vadd.f32 %v5724, %v5672
    %v5726 = vxor.u32 %v5725, 2147483648
    %v5727 = vmul.f32 %v5726, 1.442695
    %v5728 = vpow.pop %v5727
    %v5729 = vadd.f32 %v5728, 1.0
    %v5730 = vrcp.pop %v5729
    %v5731 = vmul.f32 %v5729, %v5730
    %v5732 = vsub.f32 1.0, %v5731
    %v5733 = vmul.f32 %v5730, %v5732
    %v5734 = vadd.f32 %v5730, %v5733
    %vm5735 = vweird.f32 %v5729
    %vm5736 = vweird.f32 %v5730
    %vm5737 = vmor %vm5735, %vm5736
    %v5738 = vsel %vm5737, %v5730, %v5734
    %v5739 = vand.u32 2147483647, %v5729
    %vm5740 = vcmp.eq.f32.partialorder %v5739, 8.507059e+37
    %v5741 = vand.u32 %v5729, 2147483648
    %v5742 = vor.u32 1.1754944e-38, %v5741
    %v5743 = vsel %vm5740, %v5742, %v5738
    %v5744 = vmul.f32 1.0, %v5743
    %v5745 = vtanh.pop %v5725
    %v5746 = vmul.f32 %v5744, %v5611
    %5748 = vrot.lane.b32.xlu0 %v5745, 32
    %v5749 = vpop.permute.xlu0 %5748
    %v5751 = vmul.f32 %v5744, %v5749
    %5753 = vrot.lane.b32.xlu0 %v5751, 32
    %v5754 = vpop.permute.xlu0 %5753
    %v5756 = vadd.f32 %v5746, %v5754
    %v5757 = vtanh.pop %v5756
    %5759 = vrot.lane.b32.xlu0 %v5757, 32
    %v5760 = vpop.permute.xlu0 %5759
    %v5762 = vmul.f32 %v5744, %v5760
    %v5763 = vsel %vm932, %v5756, %v5611
    %5764 = vrot.lane.b32.xlu0 %v5630, 32
    %v5765 = vpop.permute.xlu0 %5764
    %v5767 = vsel %vm932, %v5762, %v5765
    %v5768 = vsel %vm932, %v5762, 0.0
    %5770 = vrot.lane.b32.xlu0 %v5768, 96
    %v5771 = vpop.permute.xlu0 %5770
    %5773 = vst.msk [vmem:[%s943] sm:$0xff] %vm530, %v5771
    %5775 = vrot.lane.b32.xlu0 %v5717, 64
    %v5776 = vpop.permute.xlu0 %5775
    %5779 = vrot.lane.b32.xlu0 %v5767, 96
    %v5780 = vpop.permute.xlu0 %5779
    %v5782 = vsel %vm480, %v5776, %v5780
    %v5784 = vsel %vm208, %v5782, 0
    %5786 = vmatpush.msra.mxu0 0.0
    %5787 = vmatpush.msra.mxu0 0.0
    %5788 = vmatpush.msra.mxu0 0.0
    %5789 = vmatpush.msra.mxu0 0.0
    %5790 = vmatpush.msra.mxu0 0.0
    %5791 = vmatpush.msra.mxu0 0.0
    %5792 = vmatpush.msra.mxu0 0.0
    %5793 = vmatpush.msra.mxu0 0.0
    %5794 = vmatpush.msra.mxu0 %v4432
    %5795 = vmatpush.msra.mxu0 %v4430
    %5796 = vmatpush.msra.mxu0 %v4428
    %5797 = vmatpush.msra.mxu0 %v4426
    %5798 = vmatpush.msra.mxu0 %v4424
    %5799 = vmatpush.msra.mxu0 %v4422
    %5800 = vmatpush.msra.mxu0 %v4420
    %5801 = vmatpush.msra.mxu0 %v4418
    %5802 = vmatmul.f32.gmra.mxu0 %v5784
    %v5803 = vpop.f32.mrf.mxu0
    %v5804 = vadd.f32 0.0, %v5803
    %5805 = vdwg.mxu0
    %5806 = vmatpush.msra.mxu0 0.0
    %5807 = vmatpush.msra.mxu0 0.0
    %5808 = vmatpush.msra.mxu0 0.0
    %5809 = vmatpush.msra.mxu0 0.0
    %5810 = vmatpush.msra.mxu0 0.0
    %5811 = vmatpush.msra.mxu0 0.0
    %5812 = vmatpush.msra.mxu0 0.0
    %5813 = vmatpush.msra.mxu0 0.0
    %5814 = vmatpush.msra.mxu0 %v4433
    %5815 = vmatpush.msra.mxu0 %v4431
    %5816 = vmatpush.msra.mxu0 %v4429
    %5817 = vmatpush.msra.mxu0 %v4427
    %5818 = vmatpush.msra.mxu0 %v4425
    %5819 = vmatpush.msra.mxu0 %v4423
    %5820 = vmatpush.msra.mxu0 %v4421
    %5821 = vmatpush.msra.mxu0 %v4419
    %5822 = vmatmul.f32.gmra.mxu0 %v5784
    %v5823 = vpop.f32.mrf.mxu0
    %v5824 = vadd.f32 0.0, %v5823
    %5825 = vdwg.mxu0
    %v5826 = vld [vmem:[%s787] sm:$0xff]
    %v5827 = vadd.f32 %v5826, %v5804
    %v5828 = vxor.u32 %v5827, 2147483648
    %v5829 = vmul.f32 %v5828, 1.442695
    %v5830 = vpow.pop %v5829
    %v5831 = vadd.f32 %v5830, 1.0
    %v5832 = vrcp.pop %v5831
    %v5833 = vmul.f32 %v5831, %v5832
    %v5834 = vsub.f32 1.0, %v5833
    %v5835 = vmul.f32 %v5832, %v5834
    %v5836 = vadd.f32 %v5832, %v5835
    %vm5837 = vweird.f32 %v5831
    %vm5838 = vweird.f32 %v5832
    %vm5839 = vmor %vm5837, %vm5838
    %v5840 = vsel %vm5839, %v5832, %v5836
    %v5841 = vand.u32 2147483647, %v5831
    %vm5842 = vcmp.eq.f32.partialorder %v5841, 8.507059e+37
    %v5843 = vand.u32 %v5831, 2147483648
    %v5844 = vor.u32 1.1754944e-38, %v5843
    %v5845 = vsel %vm5842, %v5844, %v5840
    %v5846 = vmul.f32 1.0, %v5845
    %v5847 = vtanh.pop %v5827
    %v5848 = vmul.f32 %v5846, %v5713
    %5850 = vrot.lane.b32.xlu0 %v5847, 32
    %v5851 = vpop.permute.xlu0 %5850
    %v5853 = vmul.f32 %v5846, %v5851
    %5855 = vrot.lane.b32.xlu0 %v5853, 32
    %v5856 = vpop.permute.xlu0 %5855
    %v5858 = vadd.f32 %v5848, %v5856
    %v5859 = vtanh.pop %v5858
    %5861 = vrot.lane.b32.xlu0 %v5859, 32
    %v5862 = vpop.permute.xlu0 %5861
    %v5864 = vmul.f32 %v5846, %v5862
    %v5865 = vsel %vm827, %v5858, %v5713
    %5866 = vrot.lane.b32.xlu0 %v5782, 64
    %v5867 = vpop.permute.xlu0 %5866
    %v5869 = vsel %vm827, %v5864, %v5867
    %v5870 = vsel %vm827, %v5864, 0.0
    %5872 = vrot.lane.b32.xlu0 %v5870, 64
    %v5873 = vpop.permute.xlu0 %5872
    %5875 = vst.msk [vmem:[%s838] sm:$0xff] %vm480, %v5873
    %v5876 = vld [vmem:[%s734 + $0x8] sm:$0xff]
    %v5877 = vadd.f32 %v5876, %v5824
    %v5878 = vxor.u32 %v5877, 2147483648
    %v5879 = vmul.f32 %v5878, 1.442695
    %v5880 = vpow.pop %v5879
    %v5881 = vadd.f32 %v5880, 1.0
    %v5882 = vrcp.pop %v5881
    %v5883 = vmul.f32 %v5881, %v5882
    %v5884 = vsub.f32 1.0, %v5883
    %v5885 = vmul.f32 %v5882, %v5884
    %v5886 = vadd.f32 %v5882, %v5885
    %vm5887 = vweird.f32 %v5881
    %vm5888 = vweird.f32 %v5882
    %vm5889 = vmor %vm5887, %vm5888
    %v5890 = vsel %vm5889, %v5882, %v5886
    %v5891 = vand.u32 2147483647, %v5881
    %vm5892 = vcmp.eq.f32.partialorder %v5891, 8.507059e+37
    %v5893 = vand.u32 %v5881, 2147483648
    %v5894 = vor.u32 1.1754944e-38, %v5893
    %v5895 = vsel %vm5892, %v5894, %v5890
    %v5896 = vmul.f32 1.0, %v5895
    %v5897 = vtanh.pop %v5877
    %v5898 = vmul.f32 %v5896, %v5763
    %5900 = vrot.lane.b32.xlu0 %v5897, 32
    %v5901 = vpop.permute.xlu0 %5900
    %v5903 = vmul.f32 %v5896, %v5901
    %5905 = vrot.lane.b32.xlu0 %v5903, 32
    %v5906 = vpop.permute.xlu0 %5905
    %v5908 = vadd.f32 %v5898, %v5906
    %v5909 = vtanh.pop %v5908
    %5911 = vrot.lane.b32.xlu0 %v5909, 32
    %v5912 = vpop.permute.xlu0 %5911
    %v5914 = vmul.f32 %v5896, %v5912
    %v5915 = vsel %vm774, %v5908, %v5763
    %5916 = vrot.lane.b32.xlu0 %v5782, 32
    %v5917 = vpop.permute.xlu0 %5916
    %v5919 = vsel %vm774, %v5914, %v5917
    %v5920 = vsel %vm774, %v5914, 0.0
    %5922 = vrot.lane.b32.xlu0 %v5920, 96
    %v5923 = vpop.permute.xlu0 %5922
    %5925 = vst.msk [vmem:[%s785] sm:$0xff] %vm530, %v5923
    %5927 = vrot.lane.b32.xlu0 %v5869, 64
    %v5928 = vpop.permute.xlu0 %5927
    %5931 = vrot.lane.b32.xlu0 %v5919, 96
    %v5932 = vpop.permute.xlu0 %5931
    %v5934 = vsel %vm480, %v5928, %v5932
    %v5936 = vsel %vm208, %v5934, 0
    %5938 = vmatpush.msra.mxu0 0.0
    %5939 = vmatpush.msra.mxu0 0.0
    %5940 = vmatpush.msra.mxu0 0.0
    %5941 = vmatpush.msra.mxu0 0.0
    %5942 = vmatpush.msra.mxu0 0.0
    %5943 = vmatpush.msra.mxu0 0.0
    %5944 = vmatpush.msra.mxu0 0.0
    %5945 = vmatpush.msra.mxu0 0.0
    %5946 = vmatpush.msra.mxu0 %v4432
    %5947 = vmatpush.msra.mxu0 %v4430
    %5948 = vmatpush.msra.mxu0 %v4428
    %5949 = vmatpush.msra.mxu0 %v4426
    %5950 = vmatpush.msra.mxu0 %v4424
    %5951 = vmatpush.msra.mxu0 %v4422
    %5952 = vmatpush.msra.mxu0 %v4420
    %5953 = vmatpush.msra.mxu0 %v4418
    %5954 = vmatmul.f32.gmra.mxu0 %v5936
    %v5955 = vpop.f32.mrf.mxu0
    %v5956 = vadd.f32 0.0, %v5955
    %5957 = vdwg.mxu0
    %5958 = vmatpush.msra.mxu0 0.0
    %5959 = vmatpush.msra.mxu0 0.0
    %5960 = vmatpush.msra.mxu0 0.0
    %5961 = vmatpush.msra.mxu0 0.0
    %5962 = vmatpush.msra.mxu0 0.0
    %5963 = vmatpush.msra.mxu0 0.0
    %5964 = vmatpush.msra.mxu0 0.0
    %5965 = vmatpush.msra.mxu0 0.0
    %5966 = vmatpush.msra.mxu0 %v4433
    %5967 = vmatpush.msra.mxu0 %v4431
    %5968 = vmatpush.msra.mxu0 %v4429
    %5969 = vmatpush.msra.mxu0 %v4427
    %5970 = vmatpush.msra.mxu0 %v4425
    %5971 = vmatpush.msra.mxu0 %v4423
    %5972 = vmatpush.msra.mxu0 %v4421
    %5973 = vmatpush.msra.mxu0 %v4419
    %5974 = vmatmul.f32.gmra.mxu0 %v5936
    %v5975 = vpop.f32.mrf.mxu0
    %v5976 = vadd.f32 0.0, %v5975
    %5977 = vdwg.mxu0
    %v5978 = vld [vmem:[%s629] sm:$0xff]
    %v5979 = vadd.f32 %v5978, %v5956
    %v5980 = vxor.u32 %v5979, 2147483648
    %v5981 = vmul.f32 %v5980, 1.442695
    %v5982 = vpow.pop %v5981
    %v5983 = vadd.f32 %v5982, 1.0
    %v5984 = vrcp.pop %v5983
    %v5985 = vmul.f32 %v5983, %v5984
    %v5986 = vsub.f32 1.0, %v5985
    %v5987 = vmul.f32 %v5984, %v5986
    %v5988 = vadd.f32 %v5984, %v5987
    %vm5989 = vweird.f32 %v5983
    %vm5990 = vweird.f32 %v5984
    %vm5991 = vmor %vm5989, %vm5990
    %v5992 = vsel %vm5991, %v5984, %v5988
    %v5993 = vand.u32 2147483647, %v5983
    %vm5994 = vcmp.eq.f32.partialorder %v5993, 8.507059e+37
    %v5995 = vand.u32 %v5983, 2147483648
    %v5996 = vor.u32 1.1754944e-38, %v5995
    %v5997 = vsel %vm5994, %v5996, %v5992
    %v5998 = vmul.f32 1.0, %v5997
    %v5999 = vtanh.pop %v5979
    %v6000 = vmul.f32 %v5998, %v5865
    %6002 = vrot.lane.b32.xlu0 %v5999, 32
    %v6003 = vpop.permute.xlu0 %6002
    %v6005 = vmul.f32 %v5998, %v6003
    %6007 = vrot.lane.b32.xlu0 %v6005, 32
    %v6008 = vpop.permute.xlu0 %6007
    %v6010 = vadd.f32 %v6000, %v6008
    %v6011 = vtanh.pop %v6010
    %6013 = vrot.lane.b32.xlu0 %v6011, 32
    %v6014 = vpop.permute.xlu0 %6013
    %v6016 = vmul.f32 %v5998, %v6014
    %v6017 = vsel %vm669, %v6010, %v5865
    %6018 = vrot.lane.b32.xlu0 %v5934, 64
    %v6019 = vpop.permute.xlu0 %6018
    %v6021 = vsel %vm669, %v6016, %v6019
    %v6022 = vsel %vm669, %v6016, 0.0
    %6024 = vrot.lane.b32.xlu0 %v6022, 64
    %v6025 = vpop.permute.xlu0 %6024
    %6027 = vst.msk [vmem:[%s680] sm:$0xff] %vm480, %v6025
    %v6028 = vld [vmem:[%s576 + $0x8] sm:$0xff]
    %v6029 = vadd.f32 %v6028, %v5976
    %v6030 = vxor.u32 %v6029, 2147483648
    %v6031 = vmul.f32 %v6030, 1.442695
    %v6032 = vpow.pop %v6031
    %v6033 = vadd.f32 %v6032, 1.0
    %v6034 = vrcp.pop %v6033
    %v6035 = vmul.f32 %v6033, %v6034
    %v6036 = vsub.f32 1.0, %v6035
    %v6037 = vmul.f32 %v6034, %v6036
    %v6038 = vadd.f32 %v6034, %v6037
    %vm6039 = vweird.f32 %v6033
    %vm6040 = vweird.f32 %v6034
    %vm6041 = vmor %vm6039, %vm6040
    %v6042 = vsel %vm6041, %v6034, %v6038
    %v6043 = vand.u32 2147483647, %v6033
    %vm6044 = vcmp.eq.f32.partialorder %v6043, 8.507059e+37
    %v6045 = vand.u32 %v6033, 2147483648
    %v6046 = vor.u32 1.1754944e-38, %v6045
    %v6047 = vsel %vm6044, %v6046, %v6042
    %v6048 = vmul.f32 1.0, %v6047
    %v6049 = vtanh.pop %v6029
    %v6050 = vmul.f32 %v6048, %v5915
    %6052 = vrot.lane.b32.xlu0 %v6049, 32
    %v6053 = vpop.permute.xlu0 %6052
    %v6055 = vmul.f32 %v6048, %v6053
    %6057 = vrot.lane.b32.xlu0 %v6055, 32
    %v6058 = vpop.permute.xlu0 %6057
    %v6060 = vadd.f32 %v6050, %v6058
    %v6061 = vtanh.pop %v6060
    %6063 = vrot.lane.b32.xlu0 %v6061, 32
    %v6064 = vpop.permute.xlu0 %6063
    %v6066 = vmul.f32 %v6048, %v6064
    %v6067 = vsel %vm616, %v6060, %v5915
    %6068 = vrot.lane.b32.xlu0 %v5934, 32
    %v6069 = vpop.permute.xlu0 %6068
    %v6071 = vsel %vm616, %v6066, %v6069
    %v6072 = vsel %vm616, %v6066, 0.0
    %6074 = vrot.lane.b32.xlu0 %v6072, 96
    %v6075 = vpop.permute.xlu0 %6074
    %6077 = vst.msk [vmem:[%s627] sm:$0xff] %vm530, %v6075
    %6079 = vrot.lane.b32.xlu0 %v6021, 64
    %v6080 = vpop.permute.xlu0 %6079
    %6083 = vrot.lane.b32.xlu0 %v6071, 96
    %v6084 = vpop.permute.xlu0 %6083
    %v6086 = vsel %vm480, %v6080, %v6084
    %v6088 = vsel %vm208, %v6086, 0
    %6090 = vmatpush.msra.mxu0 0.0
    %6091 = vmatpush.msra.mxu0 0.0
    %6092 = vmatpush.msra.mxu0 0.0
    %6093 = vmatpush.msra.mxu0 0.0
    %6094 = vmatpush.msra.mxu0 0.0
    %6095 = vmatpush.msra.mxu0 0.0
    %6096 = vmatpush.msra.mxu0 0.0
    %6097 = vmatpush.msra.mxu0 0.0
    %6098 = vmatpush.msra.mxu0 %v4432
    %6099 = vmatpush.msra.mxu0 %v4430
    %6100 = vmatpush.msra.mxu0 %v4428
    %6101 = vmatpush.msra.mxu0 %v4426
    %6102 = vmatpush.msra.mxu0 %v4424
    %6103 = vmatpush.msra.mxu0 %v4422
    %6104 = vmatpush.msra.mxu0 %v4420
    %6105 = vmatpush.msra.mxu0 %v4418
    %6106 = vmatmul.f32.gmra.mxu0 %v6088
    %v6107 = vpop.f32.mrf.mxu0
    %v6108 = vadd.f32 0.0, %v6107
    %6109 = vdwg.mxu0
    %6110 = vmatpush.msra.mxu0 0.0
    %6111 = vmatpush.msra.mxu0 0.0
    %6112 = vmatpush.msra.mxu0 0.0
    %6113 = vmatpush.msra.mxu0 0.0
    %6114 = vmatpush.msra.mxu0 0.0
    %6115 = vmatpush.msra.mxu0 0.0
    %6116 = vmatpush.msra.mxu0 0.0
    %6117 = vmatpush.msra.mxu0 0.0
    %6118 = vmatpush.msra.mxu0 %v4433
    %6119 = vmatpush.msra.mxu0 %v4431
    %6120 = vmatpush.msra.mxu0 %v4429
    %6121 = vmatpush.msra.mxu0 %v4427
    %6122 = vmatpush.msra.mxu0 %v4425
    %6123 = vmatpush.msra.mxu0 %v4423
    %6124 = vmatpush.msra.mxu0 %v4421
    %6125 = vmatpush.msra.mxu0 %v4419
    %6126 = vmatmul.f32.gmra.mxu0 %v6088
    %v6127 = vpop.f32.mrf.mxu0
    %v6128 = vadd.f32 0.0, %v6127
    %6129 = vdwg.mxu0
    %v6130 = vld [vmem:[%s482] sm:$0xff]
    %v6131 = vadd.f32 %v6130, %v6108
    %v6132 = vxor.u32 %v6131, 2147483648
    %v6133 = vmul.f32 %v6132, 1.442695
    %v6134 = vpow.pop %v6133
    %v6135 = vadd.f32 %v6134, 1.0
    %v6136 = vrcp.pop %v6135
    %v6137 = vmul.f32 %v6135, %v6136
    %v6138 = vsub.f32 1.0, %v6137
    %v6139 = vmul.f32 %v6136, %v6138
    %v6140 = vadd.f32 %v6136, %v6139
    %vm6141 = vweird.f32 %v6135
    %vm6142 = vweird.f32 %v6136
    %vm6143 = vmor %vm6141, %vm6142
    %v6144 = vsel %vm6143, %v6136, %v6140
    %v6145 = vand.u32 2147483647, %v6135
    %vm6146 = vcmp.eq.f32.partialorder %v6145, 8.507059e+37
    %v6147 = vand.u32 %v6135, 2147483648
    %v6148 = vor.u32 1.1754944e-38, %v6147
    %v6149 = vsel %vm6146, %v6148, %v6144
    %v6150 = vmul.f32 1.0, %v6149
    %v6151 = vtanh.pop %v6131
    %v6152 = vmul.f32 %v6150, %v6017
    %6154 = vrot.lane.b32.xlu0 %v6151, 32
    %v6155 = vpop.permute.xlu0 %6154
    %v6157 = vmul.f32 %v6150, %v6155
    %6159 = vrot.lane.b32.xlu0 %v6157, 32
    %v6160 = vpop.permute.xlu0 %6159
    %v6162 = vadd.f32 %v6152, %v6160
    %v6163 = vtanh.pop %v6162
    %6165 = vrot.lane.b32.xlu0 %v6163, 32
    %v6166 = vpop.permute.xlu0 %6165
    %v6168 = vmul.f32 %v6150, %v6166
    %v6169 = vsel %vm522, %v6168, 0.0
    %6171 = vrot.lane.b32.xlu0 %v6169, 64
    %v6172 = vpop.permute.xlu0 %6171
    %6174 = vst.msk [vmem:[%s529] sm:$0xff] %vm480, %v6172
    %v6175 = vld [vmem:[#allocation2 + $0x8] sm:$0xff]
    %v6176 = vadd.f32 %v6175, %v6128
    %v6177 = vxor.u32 %v6176, 2147483648
    %v6178 = vmul.f32 %v6177, 1.442695
    %v6179 = vpow.pop %v6178
    %v6180 = vadd.f32 %v6179, 1.0
    %v6181 = vrcp.pop %v6180
    %v6182 = vmul.f32 %v6180, %v6181
    %v6183 = vsub.f32 1.0, %v6182
    %v6184 = vmul.f32 %v6181, %v6183
    %v6185 = vadd.f32 %v6181, %v6184
    %vm6186 = vweird.f32 %v6180
    %vm6187 = vweird.f32 %v6181
    %vm6188 = vmor %vm6186, %vm6187
    %v6189 = vsel %vm6188, %v6181, %v6185
    %v6190 = vand.u32 2147483647, %v6180
    %vm6191 = vcmp.eq.f32.partialorder %v6190, 8.507059e+37
    %v6192 = vand.u32 %v6180, 2147483648
    %v6193 = vor.u32 1.1754944e-38, %v6192
    %v6194 = vsel %vm6191, %v6193, %v6189
    %v6195 = vmul.f32 1.0, %v6194
    %v6196 = vtanh.pop %v6176
    %v6197 = vmul.f32 %v6195, %v6067
    %6199 = vrot.lane.b32.xlu0 %v6196, 32
    %v6200 = vpop.permute.xlu0 %6199
    %v6202 = vmul.f32 %v6195, %v6200
    %6204 = vrot.lane.b32.xlu0 %v6202, 32
    %v6205 = vpop.permute.xlu0 %6204
    %v6207 = vadd.f32 %v6197, %v6205
    %v6208 = vtanh.pop %v6207
    %6210 = vrot.lane.b32.xlu0 %v6208, 32
    %v6211 = vpop.permute.xlu0 %6210
    %v6213 = vmul.f32 %v6195, %v6211
    %v6214 = vsel %vm473, %v6213, 0.0
    %6216 = vrot.lane.b32.xlu0 %v6214, 96
    %v6217 = vpop.permute.xlu0 %6216
    %6219 = vst.msk [vmem:[#allocation3] sm:$0xff] %vm530, %v6217
    %v6220 = vld [vmem:[#allocation3] sm:$0xff]
    %v6221 = vld [vmem:[#allocation3 + $0x8] sm:$0xff]
    %v6222 = vld [vmem:[#allocation3 + $0x10] sm:$0xff]
    %v6223 = vld [vmem:[#allocation3 + $0x18] sm:$0xff]
    %v6224 = vld [vmem:[#allocation3 + $0x20] sm:$0xff]
    %v6225 = vld [vmem:[#allocation3 + $0x28] sm:$0xff]
    %v6226 = vld [vmem:[#allocation3 + $0x30] sm:$0xff]
    %v6227 = vld [vmem:[#allocation3 + $0x38] sm:$0xff]
    %v6228 = vld [vmem:[#allocation3 + $0x40] sm:$0xff]
    %v6229 = vld [vmem:[#allocation3 + $0x48] sm:$0xff]
    %v6230 = vld [vmem:[#allocation3 + $0x50] sm:$0xff]
    %v6231 = vld [vmem:[#allocation3 + $0x58] sm:$0xff]
    %v6232 = vld [vmem:[#allocation16] sm:$0xff]
    %v6233 = vld [vmem:[#allocation16 + $0x8] sm:$0xff]
    %v6234 = vld [vmem:[#allocation16 + $0x10] sm:$0xff]
    %v6235 = vld [vmem:[#allocation16 + $0x18] sm:$0xff]
    %v6236 = vld [vmem:[#allocation16 + $0x20] sm:$0xff]
    %v6237 = vld [vmem:[#allocation16 + $0x28] sm:$0xff]
    %v6238 = vld [vmem:[#allocation16 + $0x30] sm:$0xff]
    %v6239 = vld [vmem:[#allocation16 + $0x38] sm:$0xff]
    %v6240 = vld [vmem:[#allocation16 + $0x40] sm:$0xff]
    %v6241 = vld [vmem:[#allocation16 + $0x48] sm:$0xff]
    %v6242 = vld [vmem:[#allocation16 + $0x50] sm:$0xff]
    %v6243 = vld [vmem:[#allocation16 + $0x58] sm:$0xff]
    %v6244 = vld [vmem:[#allocation16 + $0x60] sm:$0xff]
    %v6245 = vld [vmem:[#allocation16 + $0x68] sm:$0xff]
    %v6246 = vld [vmem:[#allocation16 + $0x70] sm:$0xff]
    %v6247 = vld [vmem:[#allocation16 + $0x78] sm:$0xff]
    %v6248 = vld [vmem:[%s12] sm:$0x3]
    %v6250 = vperm.slane %v6248, 0
    %v6251 = vperm.slane %v6248, 1
    %v6255 = vsel %vm208, %v6220, 0
    %v6258 = vsel %vm208, %v6221, 0
    %v6261 = vsel %vm208, %v6222, 0
    %v6264 = vsel %vm208, %v6223, 0
    %v6267 = vsel %vm208, %v6224, 0
    %v6270 = vsel %vm208, %v6225, 0
    %v6273 = vsel %vm208, %v6226, 0
    %v6276 = vsel %vm208, %v6227, 0
    %v6279 = vsel %vm208, %v6228, 0
    %v6282 = vsel %vm208, %v6229, 0
    %v6285 = vsel %vm208, %v6230, 0
    %v6288 = vsel %vm208, %v6231, 0
    %6290 = vmatpush.msra.mxu0 0.0
    %6291 = vmatpush.msra.mxu0 0.0
    %6292 = vmatpush.msra.mxu0 0.0
    %6293 = vmatpush.msra.mxu0 0.0
    %6294 = vmatpush.msra.mxu0 0.0
    %6295 = vmatpush.msra.mxu0 0.0
    %6296 = vmatpush.msra.mxu0 0.0
    %6297 = vmatpush.msra.mxu0 0.0
    %6298 = vmatpush.msra.mxu0 %v6246
    %6299 = vmatpush.msra.mxu0 %v6244
    %6300 = vmatpush.msra.mxu0 %v6242
    %6301 = vmatpush.msra.mxu0 %v6240
    %6302 = vmatpush.msra.mxu0 %v6238
    %6303 = vmatpush.msra.mxu0 %v6236
    %6304 = vmatpush.msra.mxu0 %v6234
    %6305 = vmatpush.msra.mxu0 %v6232
    %6306 = vmatmul.f32.gmra.mxu0 %v6255
    %v6307 = vpop.f32.mrf.mxu0
    %v6308 = vadd.f32 %v6250, %v6307
    %6309 = vmatmul.f32.gmra.mxu0 %v6258
    %v6310 = vpop.f32.mrf.mxu0
    %v6311 = vadd.f32 %v6250, %v6310
    %6312 = vmatmul.f32.gmra.mxu0 %v6261
    %v6313 = vpop.f32.mrf.mxu0
    %v6314 = vadd.f32 %v6250, %v6313
    %6315 = vmatmul.f32.gmra.mxu0 %v6264
    %v6316 = vpop.f32.mrf.mxu0
    %v6317 = vadd.f32 %v6250, %v6316
    %6318 = vmatmul.f32.gmra.mxu0 %v6267
    %v6319 = vpop.f32.mrf.mxu0
    %v6320 = vadd.f32 %v6250, %v6319
    %6321 = vmatmul.f32.gmra.mxu0 %v6270
    %v6322 = vpop.f32.mrf.mxu0
    %v6323 = vadd.f32 %v6250, %v6322
    %6324 = vmatmul.f32.gmra.mxu0 %v6273
    %v6325 = vpop.f32.mrf.mxu0
    %v6326 = vadd.f32 %v6250, %v6325
    %6327 = vmatmul.f32.gmra.mxu0 %v6276
    %v6328 = vpop.f32.mrf.mxu0
    %v6329 = vadd.f32 %v6250, %v6328
    %6330 = vmatmul.f32.gmra.mxu0 %v6279
    %v6331 = vpop.f32.mrf.mxu0
    %v6332 = vadd.f32 %v6250, %v6331
    %6333 = vmatmul.f32.gmra.mxu0 %v6282
    %v6334 = vpop.f32.mrf.mxu0
    %v6335 = vadd.f32 %v6250, %v6334
    %6336 = vmatmul.f32.gmra.mxu0 %v6285
    %v6337 = vpop.f32.mrf.mxu0
    %v6338 = vadd.f32 %v6250, %v6337
    %6339 = vmatmul.f32.gmra.mxu0 %v6288
    %v6340 = vpop.f32.mrf.mxu0
    %v6341 = vadd.f32 %v6250, %v6340
    %6342 = vdwg.mxu0
    %6343 = vmatpush.msra.mxu0 0.0
    %6344 = vmatpush.msra.mxu0 0.0
    %6345 = vmatpush.msra.mxu0 0.0
    %6346 = vmatpush.msra.mxu0 0.0
    %6347 = vmatpush.msra.mxu0 0.0
    %6348 = vmatpush.msra.mxu0 0.0
    %6349 = vmatpush.msra.mxu0 0.0
    %6350 = vmatpush.msra.mxu0 0.0
    %6351 = vmatpush.msra.mxu0 %v6247
    %6352 = vmatpush.msra.mxu0 %v6245
    %6353 = vmatpush.msra.mxu0 %v6243
    %6354 = vmatpush.msra.mxu0 %v6241
    %6355 = vmatpush.msra.mxu0 %v6239
    %6356 = vmatpush.msra.mxu0 %v6237
    %6357 = vmatpush.msra.mxu0 %v6235
    %6358 = vmatpush.msra.mxu0 %v6233
    %6359 = vmatmul.f32.gmra.mxu0 %v6255
    %v6360 = vpop.f32.mrf.mxu0
    %v6361 = vadd.f32 %v6251, %v6360
    %6362 = vmatmul.f32.gmra.mxu0 %v6258
    %v6363 = vpop.f32.mrf.mxu0
    %v6364 = vadd.f32 %v6251, %v6363
    %6365 = vmatmul.f32.gmra.mxu0 %v6261
    %v6366 = vpop.f32.mrf.mxu0
    %v6367 = vadd.f32 %v6251, %v6366
    %6368 = vmatmul.f32.gmra.mxu0 %v6264
    %v6369 = vpop.f32.mrf.mxu0
    %v6370 = vadd.f32 %v6251, %v6369
    %6371 = vmatmul.f32.gmra.mxu0 %v6267
    %v6372 = vpop.f32.mrf.mxu0
    %v6373 = vadd.f32 %v6251, %v6372
    %6374 = vmatmul.f32.gmra.mxu0 %v6270
    %v6375 = vpop.f32.mrf.mxu0
    %v6376 = vadd.f32 %v6251, %v6375
    %6377 = vmatmul.f32.gmra.mxu0 %v6273
    %v6378 = vpop.f32.mrf.mxu0
    %v6379 = vadd.f32 %v6251, %v6378
    %6380 = vmatmul.f32.gmra.mxu0 %v6276
    %v6381 = vpop.f32.mrf.mxu0
    %v6382 = vadd.f32 %v6251, %v6381
    %6383 = vmatmul.f32.gmra.mxu0 %v6279
    %v6384 = vpop.f32.mrf.mxu0
    %v6385 = vadd.f32 %v6251, %v6384
    %6386 = vmatmul.f32.gmra.mxu0 %v6282
    %v6387 = vpop.f32.mrf.mxu0
    %v6388 = vadd.f32 %v6251, %v6387
    %6389 = vmatmul.f32.gmra.mxu0 %v6285
    %v6390 = vpop.f32.mrf.mxu0
    %v6391 = vadd.f32 %v6251, %v6390
    %6392 = vmatmul.f32.gmra.mxu0 %v6288
    %v6393 = vpop.f32.mrf.mxu0
    %v6394 = vadd.f32 %v6251, %v6393
    %6395 = vdwg.mxu0
    %6396 = vst [vmem:[#allocation18] sm:$0xff] %v6308
    %6397 = vst [vmem:[#allocation18 + $0x8] sm:$0xff] %v6361
    %6398 = vst [vmem:[#allocation18 + $0x10] sm:$0xff] %v6311
    %6399 = vst [vmem:[#allocation18 + $0x18] sm:$0xff] %v6364
    %6400 = vst [vmem:[#allocation18 + $0x20] sm:$0xff] %v6314
    %6401 = vst [vmem:[#allocation18 + $0x28] sm:$0xff] %v6367
    %6402 = vst [vmem:[#allocation18 + $0x30] sm:$0xff] %v6317
    %6403 = vst [vmem:[#allocation18 + $0x38] sm:$0xff] %v6370
    %6404 = vst [vmem:[#allocation18 + $0x40] sm:$0xff] %v6320
    %6405 = vst [vmem:[#allocation18 + $0x48] sm:$0xff] %v6373
    %6406 = vst [vmem:[#allocation18 + $0x50] sm:$0xff] %v6323
    %6407 = vst [vmem:[#allocation18 + $0x58] sm:$0xff] %v6376
    %6408 = vst [vmem:[#allocation18 + $0x60] sm:$0xff] %v6326
    %6409 = vst [vmem:[#allocation18 + $0x68] sm:$0xff] %v6379
    %6410 = vst [vmem:[#allocation18 + $0x70] sm:$0xff] %v6329
    %6411 = vst [vmem:[#allocation18 + $0x78] sm:$0xff] %v6382
    %6412 = vst [vmem:[#allocation18 + $0x80] sm:$0xff] %v6332
    %6413 = vst [vmem:[#allocation18 + $0x88] sm:$0xff] %v6385
    %6414 = vst [vmem:[#allocation18 + $0x90] sm:$0xff] %v6335
    %6415 = vst [vmem:[#allocation18 + $0x98] sm:$0xff] %v6388
    %6416 = vst [vmem:[#allocation18 + $0xa0] sm:$0xff] %v6338
    %6417 = vst [vmem:[#allocation18 + $0xa8] sm:$0xff] %v6391
    %6418 = vst [vmem:[#allocation18 + $0xb0] sm:$0xff] %v6341
    %6419 = vst [vmem:[#allocation18 + $0xb8] sm:$0xff] %v6394
    // Predicated region
    $region86: #{tpu_custom_call.1} parent=1 // pred_check
      _
    $region87: #{tpu_custom_call.1} parent=1 // pred_check_branch
      %6421 = sbr.rel (0) target = $region89
    $region88: #{tpu_custom_call.1} parent=1 // pred_region
      %6423 = vsyncadd [#allocation6], 0
      %s6424 = sshll.u32 [#allocation18], 4
      %s6425 = int_to_ptr.vmem [resolvable:$true] %s6424
      %s6426 = sshll.u32 %s13, 4
      %s6427 = int_to_ptr.hbm [resolvable:$true] %s6426
      %6432 = dma.vmem_to_hbm [thread:$0]  %s6425, 3072, %s6427, [#allocation6], 256, 256, 16
    $region89: #{tpu_custom_call.1} parent=1 // pred_fallthru
      _
    // Predicated region
    $region90: #{tpu_custom_call.1} parent=1 // pred_check
      _
    $region91: #{tpu_custom_call.1} parent=1 // pred_check_branch
      %6434 = sbr.rel (0) target = $region93
    $region92: #{tpu_custom_call.1} parent=1 // pred_region
      %6436 = dma.done [#allocation6], 3072
    $region93: #{tpu_custom_call.1} parent=1 // pred_fallthru
      _
    %6437 = vsyncpa [#allocation5], 1
    %6438 = vsyncpa [#allocation8], 1
    %6439 = vsyncpa [#allocation11], 1
    %6440 = vsyncpa [#allocation14], 1
    %6441 = vsyncpa [#allocation17], 1
    %6442 = vsyncpa [#allocation6], 1

</llo_original>
